<compile_context>
chip_gen: v7x
topology: tpu7x:2x2x1
jax: 0.10.0
libtpu: 0.0.40
codegen_flags: <defaults>
</compile_context>

<pallas_src>
import math

import jax
import jax.numpy as jnp
from jax.experimental import pallas as pl
from jax.experimental.pallas import tpu as pltpu


# ----------------------- config (small but lane-dense) -----------------------
VOCAB = 256                 # multiple of 128   (real: 30080)
D_MODEL = 128               # multiple of 128   (real: 2048)
N_HEADS = 4
HEAD_DIM = D_MODEL // N_HEADS       # 32        (real: 128)
D_FF = 4 * D_MODEL                  # 512       (real: 8192)
N_LAYERS = 2
BATCH = 2
SEQ = 8
ROTARY_PCT = 0.5                    # polyglot-ko-1.3b uses rotary_pct=0.5
ROT_DIM = int(HEAD_DIM * ROTARY_PCT)        # 16
ROT_HALF = ROT_DIM // 2                     # 8
ROPE_BASE = 10000.0
NEG_INF = -1e9
VOCAB_TILE = 128


# ------------------------------- helpers -------------------------------------
def _full_spec(shape):
    """BlockSpec covering the whole (small) array, same block for every grid step."""
    nd = len(shape)
    return pl.BlockSpec(tuple(shape), lambda *_: (0,) * nd)


def _layernorm_f32(x, g, b, eps=1e-5):
    mean = jnp.mean(x, axis=-1, keepdims=True)
    var = jnp.mean((x - mean) ** 2, axis=-1, keepdims=True)
    return (x - mean) * jax.lax.rsqrt(var + eps) * g + b


# --------------------- fused GPT-NeoX transformer layer ----------------------
_LAYER_PARAM_ORDER = ("ln1_g", "ln1_b", "w_qkv", "b_qkv", "w_o", "b_o",
                      "ln2_g", "ln2_b", "w_up", "b_up", "w_down", "b_down")


def _layer_kernel(x_ref, mask_ref, cos_ref, sin_ref,
                  ln1_g_ref, ln1_b_ref, w_qkv_ref, b_qkv_ref, w_o_ref, b_o_ref,
                  ln2_g_ref, ln2_b_ref, w_up_ref, b_up_ref, w_down_ref, b_down_ref,
                  o_ref):
    S, D, H, Dh = SEQ, D_MODEL, N_HEADS, HEAD_DIM

    x = x_ref[0].astype(jnp.float32)                           # [S, D]

    # --- additive causal + key-padding mask, built in-kernel from iota -------
    q_idx = jax.lax.broadcasted_iota(jnp.int32, (S, S), 0)
    k_idx = jax.lax.broadcasted_iota(jnp.int32, (S, S), 1)
    causal = q_idx >= k_idx
    key_ok = mask_ref[0] > 0.5                                  # [1, S]
    add_mask = jnp.where(jnp.logical_and(causal, key_ok), 0.0, NEG_INF)  # [S, S] f32

    cos = cos_ref[...]                                          # [S, ROT_HALF] f32
    sin = sin_ref[...]

    # --- attention branch: LN1 -> fused QKV -> per-head RoPE attn -> out-proj -
    h1 = _layernorm_f32(x, ln1_g_ref[...], ln1_b_ref[...])
    qkv = jnp.dot(h1.astype(jnp.bfloat16), w_qkv_ref[...],
                  preferred_element_type=jnp.float32) + b_qkv_ref[...]   # [S, 3D]

    scale = 1.0 / math.sqrt(Dh)
    dn = (((1,), (1,)), ((), ()))          # contract last dims, no transposes
    attn_out = jnp.zeros((S, D), jnp.float32)

    def rope(t):
        # GPT-NeoX partial rotary (rotate_half form) without any concatenate:
        # the q.k dot over the head dim is split into rotated/pass-through terms.
        t1 = t[:, :ROT_HALF]
        t2 = t[:, ROT_HALF:ROT_DIM]
        return (t1 * cos - t2 * sin, t2 * cos + t1 * sin, t[:, ROT_DIM:])

    for h in range(H):                      # static unroll, H=4
        q_h = qkv[:, h * Dh:(h + 1) * Dh]
        k_h = qkv[:, D + h * Dh:D + (h + 1) * Dh]
        v_h = qkv[:, 2 * D + h * Dh:2 * D + (h + 1) * Dh]

        q1, q2, qp = rope(q_h)
        k1, k2, kp = rope(k_h)
        s = (jax.lax.dot_general(q1.astype(jnp.bfloat16), k1.astype(jnp.bfloat16),
                                 dn, preferred_element_type=jnp.float32)
             + jax.lax.dot_general(q2.astype(jnp.bfloat16), k2.astype(jnp.bfloat16),
                                   dn, preferred_element_type=jnp.float32))
        if ROT_DIM < Dh:
            s = s + jax.lax.dot_general(qp.astype(jnp.bfloat16),
                                        kp.astype(jnp.bfloat16),
                                        dn, preferred_element_type=jnp.float32)
        s = s * scale + add_mask
        s = s - jnp.max(s, axis=-1, keepdims=True)
        p = jnp.exp(s)
        p = p * pl.reciprocal(jnp.sum(p, axis=-1, keepdims=True), approx=True)
        o_h = jnp.dot(p.astype(jnp.bfloat16), v_h.astype(jnp.bfloat16),
                      preferred_element_type=jnp.float32)        # [S, Dh]
        # Output projection decomposed per head: no [S, H, Dh] concat/transpose.
        attn_out = attn_out + jnp.dot(o_h.astype(jnp.bfloat16),
                                      w_o_ref[h * Dh:(h + 1) * Dh, :],
                                      preferred_element_type=jnp.float32)
    attn_out = attn_out + b_o_ref[...]

    # --- MLP branch (parallel residual: LN2 applied to the layer input x) ----
    h2 = _layernorm_f32(x, ln2_g_ref[...], ln2_b_ref[...])
    up = jnp.dot(h2.astype(jnp.bfloat16), w_up_ref[...],
                 preferred_element_type=jnp.float32) + b_up_ref[...]
    # TODO(synk): HF GPTNeoX default activation is exact erf GELU; tanh approx used here.
    up = jax.nn.gelu(up, approximate=True)
    mlp_out = jnp.dot(up.astype(jnp.bfloat16), w_down_ref[...],
                      preferred_element_type=jnp.float32) + b_down_ref[...]

    # GPT-NeoX use_parallel_residual=True: x + attn(ln1(x)) + mlp(ln2(x))
    o_ref[0] = (x + attn_out + mlp_out).astype(o_ref.dtype)


def transformer_layer(x, mask_f, cos, sin, layer):
    B, S, D = x.shape
    in_specs = [
        pl.BlockSpec((1, S, D), lambda b: (b, 0, 0)),     # x
        pl.BlockSpec((1, 1, S), lambda b: (b, 0, 0)),     # key-validity mask
        _full_spec(cos.shape),                            # rope cos
        _full_spec(sin.shape),                            # rope sin
    ] + [_full_spec(layer[k].shape) for k in _LAYER_PARAM_ORDER]
    return pl.pallas_call(
        _layer_kernel,
        out_shape=jax.ShapeDtypeStruct((B, S, D), x.dtype),
        grid=(B,),
        in_specs=in_specs,
        out_specs=pl.BlockSpec((1, S, D), lambda b: (b, 0, 0)),
        compiler_params=pltpu.CompilerParams(
            dimension_semantics=("parallel",),
            vmem_limit_bytes=32 * 1024 * 1024),
    )(x, mask_f, cos, sin, *[layer[k] for k in _LAYER_PARAM_ORDER])


# ---------------------- fused final LN + LM head (no bias) -------------------
def _final_kernel(x_ref, g_ref, b_ref, w_ref, o_ref):
    x = x_ref[...].astype(jnp.float32)
    h = _layernorm_f32(x, g_ref[...], b_ref[...])
    o_ref[...] = jnp.dot(h.astype(jnp.bfloat16), w_ref[...],
                         preferred_element_type=jnp.float32).astype(o_ref.dtype)


def final_ln_lm_head(x2d, lnf_g, lnf_b, w_head):
    M, D = x2d.shape
    V = w_head.shape[1]
    return pl.pallas_call(
        _final_kernel,
        out_shape=jax.ShapeDtypeStruct((M, V), jnp.float32),
        grid=(V // VOCAB_TILE,),                         # lane-dense vocab tiles
        in_specs=[
            pl.BlockSpec((M, D), lambda j: (0, 0)),
            pl.BlockSpec((1, D), lambda j: (0, 0)),
            pl.BlockSpec((1, D), lambda j: (0, 0)),
            pl.BlockSpec((D, VOCAB_TILE), lambda j: (0, j)),
        ],
        out_specs=pl.BlockSpec((M, VOCAB_TILE), lambda j: (0, j)),
        compiler_params=pltpu.CompilerParams(
            dimension_semantics=("parallel",),
            vmem_limit_bytes=32 * 1024 * 1024),
    )(x2d, lnf_g, lnf_b, w_head)


# ---------------------------- parameter creation -----------------------------
def rope_tables(seq, rot_dim, base=ROPE_BASE):
    half = rot_dim // 2
    inv_freq = 1.0 / (base ** (jnp.arange(half, dtype=jnp.float32) * 2.0 / rot_dim))
    ang = jnp.arange(seq, dtype=jnp.float32)[:, None] * inv_freq[None, :]  # [S, half]
    return jnp.cos(ang), jnp.sin(ang)


def init_params(key):
    def dense(k, fan_in, fan_out):
        # bf16 weights (MXU operands, halved HBM traffic); f32 biases.
        w = (jax.random.normal(k, (fan_in, fan_out), jnp.float32)
             * (fan_in ** -0.5)).astype(jnp.bfloat16)
        b = jnp.zeros((1, fan_out), jnp.float32)
        return w, b

    keys = jax.random.split(key, 2 + 4 * N_LAYERS)
    cos, sin = rope_tables(SEQ, ROT_DIM)
    params = {
        "wte": jax.random.normal(keys[0], (VOCAB, D_MODEL), jnp.float32) * 0.02,
        "lnf_g": jnp.ones((1, D_MODEL), jnp.float32),
        "lnf_b": jnp.zeros((1, D_MODEL), jnp.float32),
        "rope_cos": cos, "rope_sin": sin,
        "layers": [],
    }
    # GPT-NeoX embed_out (LM head) has no bias.
    params["lm_head_w"], _ = dense(keys[1], D_MODEL, VOCAB)
    for i in range(N_LAYERS):
        k0, k1, k2, k3 = keys[2 + 4 * i: 6 + 4 * i]
        w_qkv, b_qkv = dense(k0, D_MODEL, 3 * D_MODEL)
        w_o, b_o = dense(k1, D_MODEL, D_MODEL)
        w_up, b_up = dense(k2, D_MODEL, D_FF)
        w_down, b_down = dense(k3, D_FF, D_MODEL)
        params["layers"].append(dict(
            ln1_g=jnp.ones((1, D_MODEL), jnp.float32),
            ln1_b=jnp.zeros((1, D_MODEL), jnp.float32),
            ln2_g=jnp.ones((1, D_MODEL), jnp.float32),
            ln2_b=jnp.zeros((1, D_MODEL), jnp.float32),
            w_qkv=w_qkv, b_qkv=b_qkv, w_o=w_o, b_o=b_o,
            w_up=w_up, b_up=b_up, w_down=w_down, b_down=b_down,
        ))
    return params


# -------------------------------- forward pass --------------------------------
def text_encoder_forward(params, input_ids, attention_mask):
    B, S = input_ids.shape
    # Token-embedding gather stays in plain JAX (glue); everything else is Pallas.
    x = params["wte"][input_ids].astype(jnp.float32)            # [B, S, D]
    mask_f = attention_mask.astype(jnp.float32).reshape(B, 1, S)
    cos, sin = params["rope_cos"], params["rope_sin"]

    for layer in params["layers"]:
        x = transformer_layer(x, mask_f, cos, sin, layer)       # one fused kernel/layer

    logits = final_ln_lm_head(x.reshape(B * S, D_MODEL),
                              params["lnf_g"], params["lnf_b"],
                              params["lm_head_w"])
    return logits.reshape(B, S, VOCAB)      # == output[0] of the causal LM


# ------------------------------------ main ------------------------------------
if __name__ == "__main__":
    key = jax.random.PRNGKey(0)
    k_param, k_ids = jax.random.split(key)

    params = init_params(k_param)
    input_ids = jax.random.randint(k_ids, (BATCH, SEQ), 0, VOCAB, dtype=jnp.int32)
    # simple padding mask: second sequence has last 3 positions padded
    attention_mask = jnp.ones((BATCH, SEQ), jnp.int32).at[1, SEQ - 3:].set(0)

    out = jax.jit(text_encoder_forward)(params, input_ids, attention_mask)
    out = jax.block_until_ready(out)

    assert out.shape == (BATCH, SEQ, VOCAB)
    assert bool(jnp.all(jnp.isfinite(out)))
    print("KERNEL_OK")
</pallas_src>

<mosaic_0001>
module attributes {stable_mosaic.version = 11 : i64} {
  func.func @_final_kernel(%arg0: i32, %arg1: memref<16x128xf32, #tpu.memory_space<vmem>>, %arg2: memref<1x128xf32, #tpu.memory_space<vmem>>, %arg3: memref<1x128xf32, #tpu.memory_space<vmem>>, %arg4: memref<128x128xbf16, #tpu.memory_space<vmem>>, %arg5: memref<16x128xf32, #tpu.memory_space<vmem>>) attributes {dimension_semantics = [#tpu.dimension_semantics<parallel>], iteration_bounds = array<i64: 2>, scalar_prefetch = 0 : i64, scratch_operands = 0 : i64, tpu.core_type = #tpu.core_type<tc>, window_params = [{pipeline_mode = #tpu.pipeline_mode<synchronous>, transform_indices = @transform_0, window_bounds = array<i64: 16, 128>}, {pipeline_mode = #tpu.pipeline_mode<synchronous>, transform_indices = @transform_1, window_bounds = array<i64: 1, 128>}, {pipeline_mode = #tpu.pipeline_mode<synchronous>, transform_indices = @transform_2, window_bounds = array<i64: 1, 128>}, {transform_indices = @transform_3, window_bounds = array<i64: 128, 128>}, {transform_indices = @transform_4, window_bounds = array<i64: 16, 128>}]} {
    %c0 = arith.constant 0 : index
    %c0_0 = arith.constant 0 : index
    %0 = vector.load %arg1[%c0, %c0_0] : memref<16x128xf32, #tpu.memory_space<vmem>>, vector<16x128xf32>
    %c0_1 = arith.constant 0 : index
    %c0_2 = arith.constant 0 : index
    %1 = vector.load %arg2[%c0_1, %c0_2] : memref<1x128xf32, #tpu.memory_space<vmem>>, vector<1x128xf32>
    %c0_3 = arith.constant 0 : index
    %c0_4 = arith.constant 0 : index
    %2 = vector.load %arg3[%c0_3, %c0_4] : memref<1x128xf32, #tpu.memory_space<vmem>>, vector<1x128xf32>
    %cst = arith.constant dense<0.000000e+00> : vector<16xf32>
    %3 = vector.multi_reduction <add>, %0, %cst [1] : vector<16x128xf32> to vector<16xf32>
    %4 = vector.shape_cast %3 : vector<16xf32> to vector<16x1xf32>
    %cst_5 = arith.constant 1.280000e+02 : f32
    %5 = vector.broadcast %cst_5 : f32 to vector<16x1xf32>
    %6 = arith.divf %4, %5 : vector<16x1xf32>
    %7 = vector.broadcast %6 : vector<16x1xf32> to vector<16x128xf32>
    %8 = arith.subf %0, %7 : vector<16x128xf32>
    %9 = arith.mulf %8, %8 : vector<16x128xf32>
    %cst_6 = arith.constant dense<0.000000e+00> : vector<16xf32>
    %10 = vector.multi_reduction <add>, %9, %cst_6 [1] : vector<16x128xf32> to vector<16xf32>
    %11 = vector.shape_cast %10 : vector<16xf32> to vector<16x1xf32>
    %cst_7 = arith.constant 1.280000e+02 : f32
    %12 = vector.broadcast %cst_7 : f32 to vector<16x1xf32>
    %13 = arith.divf %11, %12 : vector<16x1xf32>
    %14 = vector.broadcast %6 : vector<16x1xf32> to vector<16x128xf32>
    %15 = arith.subf %0, %14 : vector<16x128xf32>
    %cst_8 = arith.constant 9.99999974E-6 : f32
    %16 = vector.broadcast %cst_8 : f32 to vector<16x1xf32>
    %17 = arith.addf %13, %16 : vector<16x1xf32>
    %18 = math.rsqrt %17 : vector<16x1xf32>
    %19 = vector.broadcast %18 : vector<16x1xf32> to vector<16x128xf32>
    %20 = arith.mulf %15, %19 : vector<16x128xf32>
    %21 = vector.broadcast %1 : vector<1x128xf32> to vector<16x128xf32>
    %22 = arith.mulf %20, %21 : vector<16x128xf32>
    %23 = vector.broadcast %2 : vector<1x128xf32> to vector<16x128xf32>
    %24 = arith.addf %22, %23 : vector<16x128xf32>
    %25 = arith.truncf %24 : vector<16x128xf32> to vector<16x128xbf16>
    %c0_9 = arith.constant 0 : index
    %c0_10 = arith.constant 0 : index
    %26 = vector.load %arg4[%c0_9, %c0_10] : memref<128x128xbf16, #tpu.memory_space<vmem>>, vector<128x128xbf16>
    %cst_11 = arith.constant dense<0.000000e+00> : vector<16x128xf32>
    %27 = tpu.matmul %25, %26, %cst_11 {dimension_numbers = #tpu.dot_dimension_numbers<[1], [0], [0], [1], [0, 0, 1, 1], [], []>} : vector<16x128xbf16>, vector<128x128xbf16>, vector<16x128xf32> -> vector<16x128xf32>
    %c0_12 = arith.constant 0 : index
    %c0_13 = arith.constant 0 : index
    %28 = vector.load %arg5[%c0_12, %c0_13] : memref<16x128xf32, #tpu.memory_space<vmem>>, vector<16x128xf32>
    tpu.vector_store %arg5[%c0_12, %c0_13], %27 {strides = array<i32>} : memref<16x128xf32, #tpu.memory_space<vmem>>, vector<16x128xf32>,
    return
  }
  func.func @transform_0(%arg0: i32) -> (i32, i32) {
    %c0_i32 = arith.constant 0 : i32
    %c0_i32_0 = arith.constant 0 : i32
    %c0_i32_1 = arith.constant 0 : i32
    return %c0_i32, %c0_i32_0 : i32, i32
  }
  func.func @transform_1(%arg0: i32) -> (i32, i32) {
    %c0_i32 = arith.constant 0 : i32
    %c0_i32_0 = arith.constant 0 : i32
    %c0_i32_1 = arith.constant 0 : i32
    return %c0_i32, %c0_i32_0 : i32, i32
  }
  func.func @transform_2(%arg0: i32) -> (i32, i32) {
    %c0_i32 = arith.constant 0 : i32
    %c0_i32_0 = arith.constant 0 : i32
    %c0_i32_1 = arith.constant 0 : i32
    return %c0_i32, %c0_i32_0 : i32, i32
  }
  func.func @transform_3(%arg0: i32) -> (i32, i32) {
    %c0_i32 = arith.constant 0 : i32
    %c0_i32_0 = arith.constant 0 : i32
    return %c0_i32, %arg0 : i32, i32
  }
  func.func @transform_4(%arg0: i32) -> (i32, i32) {
    %c0_i32 = arith.constant 0 : i32
    %c0_i32_0 = arith.constant 0 : i32
    return %c0_i32, %arg0 : i32, i32
  }
}

module attributes {stable_mosaic.version = 11 : i64} {
  func.func @_layer_kernel(%arg0: i32, %arg1: memref<1x8x128xf32, #tpu.memory_space<vmem>>, %arg2: memref<1x1x8xf32, #tpu.memory_space<vmem>>, %arg3: memref<8x8xf32, #tpu.memory_space<vmem>>, %arg4: memref<8x8xf32, #tpu.memory_space<vmem>>, %arg5: memref<1x128xf32, #tpu.memory_space<vmem>>, %arg6: memref<1x128xf32, #tpu.memory_space<vmem>>, %arg7: memref<128x384xbf16, #tpu.memory_space<vmem>>, %arg8: memref<1x384xf32, #tpu.memory_space<vmem>>, %arg9: memref<128x128xbf16, #tpu.memory_space<vmem>>, %arg10: memref<1x128xf32, #tpu.memory_space<vmem>>, %arg11: memref<1x128xf32, #tpu.memory_space<vmem>>, %arg12: memref<1x128xf32, #tpu.memory_space<vmem>>, %arg13: memref<128x512xbf16, #tpu.memory_space<vmem>>, %arg14: memref<1x512xf32, #tpu.memory_space<vmem>>, %arg15: memref<512x128xbf16, #tpu.memory_space<vmem>>, %arg16: memref<1x128xf32, #tpu.memory_space<vmem>>, %arg17: memref<1x8x128xf32, #tpu.memory_space<vmem>>) attributes {dimension_semantics = [#tpu.dimension_semantics<parallel>], iteration_bounds = array<i64: 2>, scalar_prefetch = 0 : i64, scratch_operands = 0 : i64, tpu.core_type = #tpu.core_type<tc>, window_params = [{transform_indices = @transform_0, window_bounds = array<i64: 1, 8, 128>}, {transform_indices = @transform_1, window_bounds = array<i64: 1, 1, 8>}, {pipeline_mode = #tpu.pipeline_mode<synchronous>, transform_indices = @transform_2, window_bounds = array<i64: 8, 8>}, {pipeline_mode = #tpu.pipeline_mode<synchronous>, transform_indices = @transform_3, window_bounds = array<i64: 8, 8>}, {pipeline_mode = #tpu.pipeline_mode<synchronous>, transform_indices = @transform_4, window_bounds = array<i64: 1, 128>}, {pipeline_mode = #tpu.pipeline_mode<synchronous>, transform_indices = @transform_5, window_bounds = array<i64: 1, 128>}, {pipeline_mode = #tpu.pipeline_mode<synchronous>, transform_indices = @transform_6, window_bounds = array<i64: 128, 384>}, {pipeline_mode = #tpu.pipeline_mode<synchronous>, transform_indices = @transform_7, window_bounds = array<i64: 1, 384>}, {pipeline_mode = #tpu.pipeline_mode<synchronous>, transform_indices = @transform_8, window_bounds = array<i64: 128, 128>}, {pipeline_mode = #tpu.pipeline_mode<synchronous>, transform_indices = @transform_9, window_bounds = array<i64: 1, 128>}, {pipeline_mode = #tpu.pipeline_mode<synchronous>, transform_indices = @transform_10, window_bounds = array<i64: 1, 128>}, {pipeline_mode = #tpu.pipeline_mode<synchronous>, transform_indices = @transform_11, window_bounds = array<i64: 1, 128>}, {pipeline_mode = #tpu.pipeline_mode<synchronous>, transform_indices = @transform_12, window_bounds = array<i64: 128, 512>}, {pipeline_mode = #tpu.pipeline_mode<synchronous>, transform_indices = @transform_13, window_bounds = array<i64: 1, 512>}, {pipeline_mode = #tpu.pipeline_mode<synchronous>, transform_indices = @transform_14, window_bounds = array<i64: 512, 128>}, {pipeline_mode = #tpu.pipeline_mode<synchronous>, transform_indices = @transform_15, window_bounds = array<i64: 1, 128>}, {transform_indices = @transform_16, window_bounds = array<i64: 1, 8, 128>}]} {
    %c0 = arith.constant 0 : index
    %c0_0 = arith.constant 0 : index
    %c0_1 = arith.constant 0 : index
    %0 = vector.load %arg1[%c0, %c0_0, %c0_1] : memref<1x8x128xf32, #tpu.memory_space<vmem>>, vector<1x8x128xf32>
    %1 = vector.shape_cast %0 : vector<1x8x128xf32> to vector<8x128xf32>
    %2 = tpu.iota {dimensions = array<i32: 0>} : vector<8x8xi32>
    %3 = tpu.iota {dimensions = array<i32: 1>} : vector<8x8xi32>
    %4 = arith.cmpi sge, %2, %3 : vector<8x8xi32>
    %c0_2 = arith.constant 0 : index
    %c0_3 = arith.constant 0 : index
    %c0_4 = arith.constant 0 : index
    %5 = vector.load %arg2[%c0_2, %c0_3, %c0_4] : memref<1x1x8xf32, #tpu.memory_space<vmem>>, vector<1x1x8xf32>
    %6 = vector.shape_cast %5 : vector<1x1x8xf32> to vector<1x8xf32>
    %cst = arith.constant 5.000000e-01 : f32
    %7 = vector.broadcast %cst : f32 to vector<1x8xf32>
    %8 = arith.cmpf ogt, %6, %7 : vector<1x8xf32>
    %9 = vector.broadcast %8 : vector<1x8xi1> to vector<8x8xi1>
    %10 = arith.andi %4, %9 : vector<8x8xi1>
    %cst_5 = arith.constant 0.000000e+00 : f32
    %cst_6 = arith.constant -1.000000e+09 : f32
    %11 = vector.broadcast %cst_5 : f32 to vector<8x8xf32>
    %12 = vector.broadcast %cst_6 : f32 to vector<8x8xf32>
    %13 = arith.select %10, %11, %12 : vector<8x8xi1>, vector<8x8xf32>
    %c0_7 = arith.constant 0 : index
    %c0_8 = arith.constant 0 : index
    %14 = vector.load %arg3[%c0_7, %c0_8] : memref<8x8xf32, #tpu.memory_space<vmem>>, vector<8x8xf32>
    %c0_9 = arith.constant 0 : index
    %c0_10 = arith.constant 0 : index
    %15 = vector.load %arg4[%c0_9, %c0_10] : memref<8x8xf32, #tpu.memory_space<vmem>>, vector<8x8xf32>
    %c0_11 = arith.constant 0 : index
    %c0_12 = arith.constant 0 : index
    %16 = vector.load %arg5[%c0_11, %c0_12] : memref<1x128xf32, #tpu.memory_space<vmem>>, vector<1x128xf32>
    %c0_13 = arith.constant 0 : index
    %c0_14 = arith.constant 0 : index
    %17 = vector.load %arg6[%c0_13, %c0_14] : memref<1x128xf32, #tpu.memory_space<vmem>>, vector<1x128xf32>
    %cst_15 = arith.constant dense<0.000000e+00> : vector<8xf32>
    %18 = vector.multi_reduction <add>, %1, %cst_15 [1] : vector<8x128xf32> to vector<8xf32>
    %19 = vector.shape_cast %18 : vector<8xf32> to vector<8x1xf32>
    %cst_16 = arith.constant 1.280000e+02 : f32
    %20 = vector.broadcast %cst_16 : f32 to vector<8x1xf32>
    %21 = arith.divf %19, %20 : vector<8x1xf32>
    %22 = vector.broadcast %21 : vector<8x1xf32> to vector<8x128xf32>
    %23 = arith.subf %1, %22 : vector<8x128xf32>
    %24 = arith.mulf %23, %23 : vector<8x128xf32>
    %cst_17 = arith.constant dense<0.000000e+00> : vector<8xf32>
    %25 = vector.multi_reduction <add>, %24, %cst_17 [1] : vector<8x128xf32> to vector<8xf32>
    %26 = vector.shape_cast %25 : vector<8xf32> to vector<8x1xf32>
    %cst_18 = arith.constant 1.280000e+02 : f32
    %27 = vector.broadcast %cst_18 : f32 to vector<8x1xf32>
    %28 = arith.divf %26, %27 : vector<8x1xf32>
    %29 = vector.broadcast %21 : vector<8x1xf32> to vector<8x128xf32>
    %30 = arith.subf %1, %29 : vector<8x128xf32>
    %cst_19 = arith.constant 9.99999974E-6 : f32
    %31 = vector.broadcast %cst_19 : f32 to vector<8x1xf32>
    %32 = arith.addf %28, %31 : vector<8x1xf32>
    %33 = math.rsqrt %32 : vector<8x1xf32>
    %34 = vector.broadcast %33 : vector<8x1xf32> to vector<8x128xf32>
    %35 = arith.mulf %30, %34 : vector<8x128xf32>
    %36 = vector.broadcast %16 : vector<1x128xf32> to vector<8x128xf32>
    %37 = arith.mulf %35, %36 : vector<8x128xf32>
    %38 = vector.broadcast %17 : vector<1x128xf32> to vector<8x128xf32>
    %39 = arith.addf %37, %38 : vector<8x128xf32>
    %40 = arith.truncf %39 : vector<8x128xf32> to vector<8x128xbf16>
    %c0_20 = arith.constant 0 : index
    %c0_21 = arith.constant 0 : index
    %41 = vector.load %arg7[%c0_20, %c0_21] : memref<128x384xbf16, #tpu.memory_space<vmem>>, vector<128x384xbf16>
    %cst_22 = arith.constant dense<0.000000e+00> : vector<8x384xf32>
    %42 = tpu.matmul %40, %41, %cst_22 {dimension_numbers = #tpu.dot_dimension_numbers<[1], [0], [0], [1], [0, 0, 1, 1], [], []>} : vector<8x128xbf16>, vector<128x384xbf16>, vector<8x384xf32> -> vector<8x384xf32>
    %c0_23 = arith.constant 0 : index
    %c0_24 = arith.constant 0 : index
    %43 = vector.load %arg8[%c0_23, %c0_24] : memref<1x384xf32, #tpu.memory_space<vmem>>, vector<1x384xf32>
    %44 = vector.broadcast %43 : vector<1x384xf32> to vector<8x384xf32>
    %45 = arith.addf %42, %44 : vector<8x384xf32>
    %cst_25 = arith.constant 0.000000e+00 : f32
    %46 = vector.broadcast %cst_25 : f32 to vector<8x128xf32>
    %47 = vector.extract_strided_slice %45 {offsets = [0, 0], sizes = [8, 32], strides = [1, 1]} : vector<8x384xf32> to vector<8x32xf32>
    %48 = vector.extract_strided_slice %45 {offsets = [0, 128], sizes = [8, 32], strides = [1, 1]} : vector<8x384xf32> to vector<8x32xf32>
    %49 = vector.extract_strided_slice %45 {offsets = [0, 256], sizes = [8, 32], strides = [1, 1]} : vector<8x384xf32> to vector<8x32xf32>
    %50 = vector.extract_strided_slice %47 {offsets = [0, 0], sizes = [8, 8], strides = [1, 1]} : vector<8x32xf32> to vector<8x8xf32>
    %51 = vector.extract_strided_slice %47 {offsets = [0, 8], sizes = [8, 8], strides = [1, 1]} : vector<8x32xf32> to vector<8x8xf32>
    %52 = arith.mulf %50, %14 : vector<8x8xf32>
    %53 = arith.mulf %51, %15 : vector<8x8xf32>
    %54 = arith.subf %52, %53 : vector<8x8xf32>
    %55 = arith.mulf %51, %14 : vector<8x8xf32>
    %56 = arith.mulf %50, %15 : vector<8x8xf32>
    %57 = arith.addf %55, %56 : vector<8x8xf32>
    %58 = vector.extract_strided_slice %47 {offsets = [0, 16], sizes = [8, 16], strides = [1, 1]} : vector<8x32xf32> to vector<8x16xf32>
    %59 = vector.extract_strided_slice %48 {offsets = [0, 0], sizes = [8, 8], strides = [1, 1]} : vector<8x32xf32> to vector<8x8xf32>
    %60 = vector.extract_strided_slice %48 {offsets = [0, 8], sizes = [8, 8], strides = [1, 1]} : vector<8x32xf32> to vector<8x8xf32>
    %61 = arith.mulf %59, %14 : vector<8x8xf32>
    %62 = arith.mulf %60, %15 : vector<8x8xf32>
    %63 = arith.subf %61, %62 : vector<8x8xf32>
    %64 = arith.mulf %60, %14 : vector<8x8xf32>
    %65 = arith.mulf %59, %15 : vector<8x8xf32>
    %66 = arith.addf %64, %65 : vector<8x8xf32>
    %67 = vector.extract_strided_slice %48 {offsets = [0, 16], sizes = [8, 16], strides = [1, 1]} : vector<8x32xf32> to vector<8x16xf32>
    %68 = arith.truncf %54 : vector<8x8xf32> to vector<8x8xbf16>
    %69 = arith.truncf %63 : vector<8x8xf32> to vector<8x8xbf16>
    %cst_26 = arith.constant dense<0.000000e+00> : vector<8x8xf32>
    %70 = tpu.matmul %68, %69, %cst_26 {dimension_numbers = #tpu.dot_dimension_numbers<[1], [1], [0], [0], [0, 0, 1, 0], [], []>} : vector<8x8xbf16>, vector<8x8xbf16>, vector<8x8xf32> -> vector<8x8xf32>
    %71 = arith.truncf %57 : vector<8x8xf32> to vector<8x8xbf16>
    %72 = arith.truncf %66 : vector<8x8xf32> to vector<8x8xbf16>
    %cst_27 = arith.constant dense<0.000000e+00> : vector<8x8xf32>
    %73 = tpu.matmul %71, %72, %cst_27 {dimension_numbers = #tpu.dot_dimension_numbers<[1], [1], [0], [0], [0, 0, 1, 0], [], []>} : vector<8x8xbf16>, vector<8x8xbf16>, vector<8x8xf32> -> vector<8x8xf32>
    %74 = arith.addf %70, %73 : vector<8x8xf32>
    %75 = arith.truncf %58 : vector<8x16xf32> to vector<8x16xbf16>
    %76 = arith.truncf %67 : vector<8x16xf32> to vector<8x16xbf16>
    %cst_28 = arith.constant dense<0.000000e+00> : vector<8x8xf32>
    %77 = tpu.matmul %75, %76, %cst_28 {dimension_numbers = #tpu.dot_dimension_numbers<[1], [1], [0], [0], [0, 0, 1, 0], [], []>} : vector<8x16xbf16>, vector<8x16xbf16>, vector<8x8xf32> -> vector<8x8xf32>
    %78 = arith.addf %74, %77 : vector<8x8xf32>
    %cst_29 = arith.constant 0.176776692 : f32
    %79 = vector.broadcast %cst_29 : f32 to vector<8x8xf32>
    %80 = arith.mulf %78, %79 : vector<8x8xf32>
    %81 = arith.addf %80, %13 : vector<8x8xf32>
    %cst_30 = arith.constant dense<0xFF800000> : vector<8xf32>
    %82 = vector.multi_reduction <maximumf>, %81, %cst_30 [1] : vector<8x8xf32> to vector<8xf32>
    %83 = vector.shape_cast %82 : vector<8xf32> to vector<8x1xf32>
    %84 = vector.broadcast %83 : vector<8x1xf32> to vector<8x8xf32>
    %85 = arith.subf %81, %84 : vector<8x8xf32>
    %86 = math.exp %85 : vector<8x8xf32>
    %cst_31 = arith.constant dense<0.000000e+00> : vector<8xf32>
    %87 = vector.multi_reduction <add>, %86, %cst_31 [1] : vector<8x8xf32> to vector<8xf32>
    %88 = vector.shape_cast %87 : vector<8xf32> to vector<8x1xf32>
    %89 = tpu.reciprocal %88 {approx = true} : vector<8x1xf32> -> vector<8x1xf32>
    %90 = vector.broadcast %89 : vector<8x1xf32> to vector<8x8xf32>
    %91 = arith.mulf %86, %90 : vector<8x8xf32>
    %92 = arith.truncf %91 : vector<8x8xf32> to vector<8x8xbf16>
    %93 = arith.truncf %49 : vector<8x32xf32> to vector<8x32xbf16>
    %cst_32 = arith.constant dense<0.000000e+00> : vector<8x32xf32>
    %94 = tpu.matmul %92, %93, %cst_32 {dimension_numbers = #tpu.dot_dimension_numbers<[1], [0], [0], [1], [0, 0, 1, 1], [], []>} : vector<8x8xbf16>, vector<8x32xbf16>, vector<8x32xf32> -> vector<8x32xf32>
    %95 = arith.truncf %94 : vector<8x32xf32> to vector<8x32xbf16>
    %c0_33 = arith.constant 0 : index
    %c0_34 = arith.constant 0 : index
    %96 = vector.load %arg9[%c0_33, %c0_34] : memref<128x128xbf16, #tpu.memory_space<vmem>>, vector<32x128xbf16>
    %cst_35 = arith.constant dense<0.000000e+00> : vector<8x128xf32>
    %97 = tpu.matmul %95, %96, %cst_35 {dimension_numbers = #tpu.dot_dimension_numbers<[1], [0], [0], [1], [0, 0, 1, 1], [], []>} : vector<8x32xbf16>, vector<32x128xbf16>, vector<8x128xf32> -> vector<8x128xf32>
    %98 = arith.addf %46, %97 : vector<8x128xf32>
    %99 = vector.extract_strided_slice %45 {offsets = [0, 32], sizes = [8, 32], strides = [1, 1]} : vector<8x384xf32> to vector<8x32xf32>
    %100 = vector.extract_strided_slice %45 {offsets = [0, 160], sizes = [8, 32], strides = [1, 1]} : vector<8x384xf32> to vector<8x32xf32>
    %101 = vector.extract_strided_slice %45 {offsets = [0, 288], sizes = [8, 32], strides = [1, 1]} : vector<8x384xf32> to vector<8x32xf32>
    %102 = vector.extract_strided_slice %99 {offsets = [0, 0], sizes = [8, 8], strides = [1, 1]} : vector<8x32xf32> to vector<8x8xf32>
    %103 = vector.extract_strided_slice %99 {offsets = [0, 8], sizes = [8, 8], strides = [1, 1]} : vector<8x32xf32> to vector<8x8xf32>
    %104 = arith.mulf %102, %14 : vector<8x8xf32>
    %105 = arith.mulf %103, %15 : vector<8x8xf32>
    %106 = arith.subf %104, %105 : vector<8x8xf32>
    %107 = arith.mulf %103, %14 : vector<8x8xf32>
    %108 = arith.mulf %102, %15 : vector<8x8xf32>
    %109 = arith.addf %107, %108 : vector<8x8xf32>
    %110 = vector.extract_strided_slice %99 {offsets = [0, 16], sizes = [8, 16], strides = [1, 1]} : vector<8x32xf32> to vector<8x16xf32>
    %111 = vector.extract_strided_slice %100 {offsets = [0, 0], sizes = [8, 8], strides = [1, 1]} : vector<8x32xf32> to vector<8x8xf32>
    %112 = vector.extract_strided_slice %100 {offsets = [0, 8], sizes = [8, 8], strides = [1, 1]} : vector<8x32xf32> to vector<8x8xf32>
    %113 = arith.mulf %111, %14 : vector<8x8xf32>
    %114 = arith.mulf %112, %15 : vector<8x8xf32>
    %115 = arith.subf %113, %114 : vector<8x8xf32>
    %116 = arith.mulf %112, %14 : vector<8x8xf32>
    %117 = arith.mulf %111, %15 : vector<8x8xf32>
    %118 = arith.addf %116, %117 : vector<8x8xf32>
    %119 = vector.extract_strided_slice %100 {offsets = [0, 16], sizes = [8, 16], strides = [1, 1]} : vector<8x32xf32> to vector<8x16xf32>
    %120 = arith.truncf %106 : vector<8x8xf32> to vector<8x8xbf16>
    %121 = arith.truncf %115 : vector<8x8xf32> to vector<8x8xbf16>
    %cst_36 = arith.constant dense<0.000000e+00> : vector<8x8xf32>
    %122 = tpu.matmul %120, %121, %cst_36 {dimension_numbers = #tpu.dot_dimension_numbers<[1], [1], [0], [0], [0, 0, 1, 0], [], []>} : vector<8x8xbf16>, vector<8x8xbf16>, vector<8x8xf32> -> vector<8x8xf32>
    %123 = arith.truncf %109 : vector<8x8xf32> to vector<8x8xbf16>
    %124 = arith.truncf %118 : vector<8x8xf32> to vector<8x8xbf16>
    %cst_37 = arith.constant dense<0.000000e+00> : vector<8x8xf32>
    %125 = tpu.matmul %123, %124, %cst_37 {dimension_numbers = #tpu.dot_dimension_numbers<[1], [1], [0], [0], [0, 0, 1, 0], [], []>} : vector<8x8xbf16>, vector<8x8xbf16>, vector<8x8xf32> -> vector<8x8xf32>
    %126 = arith.addf %122, %125 : vector<8x8xf32>
    %127 = arith.truncf %110 : vector<8x16xf32> to vector<8x16xbf16>
    %128 = arith.truncf %119 : vector<8x16xf32> to vector<8x16xbf16>
    %cst_38 = arith.constant dense<0.000000e+00> : vector<8x8xf32>
    %129 = tpu.matmul %127, %128, %cst_38 {dimension_numbers = #tpu.dot_dimension_numbers<[1], [1], [0], [0], [0, 0, 1, 0], [], []>} : vector<8x16xbf16>, vector<8x16xbf16>, vector<8x8xf32> -> vector<8x8xf32>
    %130 = arith.addf %126, %129 : vector<8x8xf32>
    %cst_39 = arith.constant 0.176776692 : f32
    %131 = vector.broadcast %cst_39 : f32 to vector<8x8xf32>
    %132 = arith.mulf %130, %131 : vector<8x8xf32>
    %133 = arith.addf %132, %13 : vector<8x8xf32>
    %cst_40 = arith.constant dense<0xFF800000> : vector<8xf32>
    %134 = vector.multi_reduction <maximumf>, %133, %cst_40 [1] : vector<8x8xf32> to vector<8xf32>
    %135 = vector.shape_cast %134 : vector<8xf32> to vector<8x1xf32>
    %136 = vector.broadcast %135 : vector<8x1xf32> to vector<8x8xf32>
    %137 = arith.subf %133, %136 : vector<8x8xf32>
    %138 = math.exp %137 : vector<8x8xf32>
    %cst_41 = arith.constant dense<0.000000e+00> : vector<8xf32>
    %139 = vector.multi_reduction <add>, %138, %cst_41 [1] : vector<8x8xf32> to vector<8xf32>
    %140 = vector.shape_cast %139 : vector<8xf32> to vector<8x1xf32>
    %141 = tpu.reciprocal %140 {approx = true} : vector<8x1xf32> -> vector<8x1xf32>
    %142 = vector.broadcast %141 : vector<8x1xf32> to vector<8x8xf32>
    %143 = arith.mulf %138, %142 : vector<8x8xf32>
    %144 = arith.truncf %143 : vector<8x8xf32> to vector<8x8xbf16>
    %145 = arith.truncf %101 : vector<8x32xf32> to vector<8x32xbf16>
    %cst_42 = arith.constant dense<0.000000e+00> : vector<8x32xf32>
    %146 = tpu.matmul %144, %145, %cst_42 {dimension_numbers = #tpu.dot_dimension_numbers<[1], [0], [0], [1], [0, 0, 1, 1], [], []>} : vector<8x8xbf16>, vector<8x32xbf16>, vector<8x32xf32> -> vector<8x32xf32>
    %147 = arith.truncf %146 : vector<8x32xf32> to vector<8x32xbf16>
    %c32 = arith.constant 32 : index
    %c0_43 = arith.constant 0 : index
    %148 = vector.load %arg9[%c32, %c0_43] : memref<128x128xbf16, #tpu.memory_space<vmem>>, vector<32x128xbf16>
    %cst_44 = arith.constant dense<0.000000e+00> : vector<8x128xf32>
    %149 = tpu.matmul %147, %148, %cst_44 {dimension_numbers = #tpu.dot_dimension_numbers<[1], [0], [0], [1], [0, 0, 1, 1], [], []>} : vector<8x32xbf16>, vector<32x128xbf16>, vector<8x128xf32> -> vector<8x128xf32>
    %150 = arith.addf %98, %149 : vector<8x128xf32>
    %151 = vector.extract_strided_slice %45 {offsets = [0, 64], sizes = [8, 32], strides = [1, 1]} : vector<8x384xf32> to vector<8x32xf32>
    %152 = vector.extract_strided_slice %45 {offsets = [0, 192], sizes = [8, 32], strides = [1, 1]} : vector<8x384xf32> to vector<8x32xf32>
    %153 = vector.extract_strided_slice %45 {offsets = [0, 320], sizes = [8, 32], strides = [1, 1]} : vector<8x384xf32> to vector<8x32xf32>
    %154 = vector.extract_strided_slice %151 {offsets = [0, 0], sizes = [8, 8], strides = [1, 1]} : vector<8x32xf32> to vector<8x8xf32>
    %155 = vector.extract_strided_slice %151 {offsets = [0, 8], sizes = [8, 8], strides = [1, 1]} : vector<8x32xf32> to vector<8x8xf32>
    %156 = arith.mulf %154, %14 : vector<8x8xf32>
    %157 = arith.mulf %155, %15 : vector<8x8xf32>
    %158 = arith.subf %156, %157 : vector<8x8xf32>
    %159 = arith.mulf %155, %14 : vector<8x8xf32>
    %160 = arith.mulf %154, %15 : vector<8x8xf32>
    %161 = arith.addf %159, %160 : vector<8x8xf32>
    %162 = vector.extract_strided_slice %151 {offsets = [0, 16], sizes = [8, 16], strides = [1, 1]} : vector<8x32xf32> to vector<8x16xf32>
    %163 = vector.extract_strided_slice %152 {offsets = [0, 0], sizes = [8, 8], strides = [1, 1]} : vector<8x32xf32> to vector<8x8xf32>
    %164 = vector.extract_strided_slice %152 {offsets = [0, 8], sizes = [8, 8], strides = [1, 1]} : vector<8x32xf32> to vector<8x8xf32>
    %165 = arith.mulf %163, %14 : vector<8x8xf32>
    %166 = arith.mulf %164, %15 : vector<8x8xf32>
    %167 = arith.subf %165, %166 : vector<8x8xf32>
    %168 = arith.mulf %164, %14 : vector<8x8xf32>
    %169 = arith.mulf %163, %15 : vector<8x8xf32>
    %170 = arith.addf %168, %169 : vector<8x8xf32>
    %171 = vector.extract_strided_slice %152 {offsets = [0, 16], sizes = [8, 16], strides = [1, 1]} : vector<8x32xf32> to vector<8x16xf32>
    %172 = arith.truncf %158 : vector<8x8xf32> to vector<8x8xbf16>
    %173 = arith.truncf %167 : vector<8x8xf32> to vector<8x8xbf16>
    %cst_45 = arith.constant dense<0.000000e+00> : vector<8x8xf32>
    %174 = tpu.matmul %172, %173, %cst_45 {dimension_numbers = #tpu.dot_dimension_numbers<[1], [1], [0], [0], [0, 0, 1, 0], [], []>} : vector<8x8xbf16>, vector<8x8xbf16>, vector<8x8xf32> -> vector<8x8xf32>
    %175 = arith.truncf %161 : vector<8x8xf32> to vector<8x8xbf16>
    %176 = arith.truncf %170 : vector<8x8xf32> to vector<8x8xbf16>
    %cst_46 = arith.constant dense<0.000000e+00> : vector<8x8xf32>
    %177 = tpu.matmul %175, %176, %cst_46 {dimension_numbers = #tpu.dot_dimension_numbers<[1], [1], [0], [0], [0, 0, 1, 0], [], []>} : vector<8x8xbf16>, vector<8x8xbf16>, vector<8x8xf32> -> vector<8x8xf32>
    %178 = arith.addf %174, %177 : vector<8x8xf32>
    %179 = arith.truncf %162 : vector<8x16xf32> to vector<8x16xbf16>
    %180 = arith.truncf %171 : vector<8x16xf32> to vector<8x16xbf16>
    %cst_47 = arith.constant dense<0.000000e+00> : vector<8x8xf32>
    %181 = tpu.matmul %179, %180, %cst_47 {dimension_numbers = #tpu.dot_dimension_numbers<[1], [1], [0], [0], [0, 0, 1, 0], [], []>} : vector<8x16xbf16>, vector<8x16xbf16>, vector<8x8xf32> -> vector<8x8xf32>
    %182 = arith.addf %178, %181 : vector<8x8xf32>
    %cst_48 = arith.constant 0.176776692 : f32
    %183 = vector.broadcast %cst_48 : f32 to vector<8x8xf32>
    %184 = arith.mulf %182, %183 : vector<8x8xf32>
    %185 = arith.addf %184, %13 : vector<8x8xf32>
    %cst_49 = arith.constant dense<0xFF800000> : vector<8xf32>
    %186 = vector.multi_reduction <maximumf>, %185, %cst_49 [1] : vector<8x8xf32> to vector<8xf32>
    %187 = vector.shape_cast %186 : vector<8xf32> to vector<8x1xf32>
    %188 = vector.broadcast %187 : vector<8x1xf32> to vector<8x8xf32>
    %189 = arith.subf %185, %188 : vector<8x8xf32>
    %190 = math.exp %189 : vector<8x8xf32>
    %cst_50 = arith.constant dense<0.000000e+00> : vector<8xf32>
    %191 = vector.multi_reduction <add>, %190, %cst_50 [1] : vector<8x8xf32> to vector<8xf32>
    %192 = vector.shape_cast %191 : vector<8xf32> to vector<8x1xf32>
    %193 = tpu.reciprocal %192 {approx = true} : vector<8x1xf32> -> vector<8x1xf32>
    %194 = vector.broadcast %193 : vector<8x1xf32> to vector<8x8xf32>
    %195 = arith.mulf %190, %194 : vector<8x8xf32>
    %196 = arith.truncf %195 : vector<8x8xf32> to vector<8x8xbf16>
    %197 = arith.truncf %153 : vector<8x32xf32> to vector<8x32xbf16>
    %cst_51 = arith.constant dense<0.000000e+00> : vector<8x32xf32>
    %198 = tpu.matmul %196, %197, %cst_51 {dimension_numbers = #tpu.dot_dimension_numbers<[1], [0], [0], [1], [0, 0, 1, 1], [], []>} : vector<8x8xbf16>, vector<8x32xbf16>, vector<8x32xf32> -> vector<8x32xf32>
    %199 = arith.truncf %198 : vector<8x32xf32> to vector<8x32xbf16>
    %c64 = arith.constant 64 : index
    %c0_52 = arith.constant 0 : index
    %200 = vector.load %arg9[%c64, %c0_52] : memref<128x128xbf16, #tpu.memory_space<vmem>>, vector<32x128xbf16>
    %cst_53 = arith.constant dense<0.000000e+00> : vector<8x128xf32>
    %201 = tpu.matmul %199, %200, %cst_53 {dimension_numbers = #tpu.dot_dimension_numbers<[1], [0], [0], [1], [0, 0, 1, 1], [], []>} : vector<8x32xbf16>, vector<32x128xbf16>, vector<8x128xf32> -> vector<8x128xf32>
    %202 = arith.addf %150, %201 : vector<8x128xf32>
    %203 = vector.extract_strided_slice %45 {offsets = [0, 96], sizes = [8, 32], strides = [1, 1]} : vector<8x384xf32> to vector<8x32xf32>
    %204 = vector.extract_strided_slice %45 {offsets = [0, 224], sizes = [8, 32], strides = [1, 1]} : vector<8x384xf32> to vector<8x32xf32>
    %205 = vector.extract_strided_slice %45 {offsets = [0, 352], sizes = [8, 32], strides = [1, 1]} : vector<8x384xf32> to vector<8x32xf32>
    %206 = vector.extract_strided_slice %203 {offsets = [0, 0], sizes = [8, 8], strides = [1, 1]} : vector<8x32xf32> to vector<8x8xf32>
    %207 = vector.extract_strided_slice %203 {offsets = [0, 8], sizes = [8, 8], strides = [1, 1]} : vector<8x32xf32> to vector<8x8xf32>
    %208 = arith.mulf %206, %14 : vector<8x8xf32>
    %209 = arith.mulf %207, %15 : vector<8x8xf32>
    %210 = arith.subf %208, %209 : vector<8x8xf32>
    %211 = arith.mulf %207, %14 : vector<8x8xf32>
    %212 = arith.mulf %206, %15 : vector<8x8xf32>
    %213 = arith.addf %211, %212 : vector<8x8xf32>
    %214 = vector.extract_strided_slice %203 {offsets = [0, 16], sizes = [8, 16], strides = [1, 1]} : vector<8x32xf32> to vector<8x16xf32>
    %215 = vector.extract_strided_slice %204 {offsets = [0, 0], sizes = [8, 8], strides = [1, 1]} : vector<8x32xf32> to vector<8x8xf32>
    %216 = vector.extract_strided_slice %204 {offsets = [0, 8], sizes = [8, 8], strides = [1, 1]} : vector<8x32xf32> to vector<8x8xf32>
    %217 = arith.mulf %215, %14 : vector<8x8xf32>
    %218 = arith.mulf %216, %15 : vector<8x8xf32>
    %219 = arith.subf %217, %218 : vector<8x8xf32>
    %220 = arith.mulf %216, %14 : vector<8x8xf32>
    %221 = arith.mulf %215, %15 : vector<8x8xf32>
    %222 = arith.addf %220, %221 : vector<8x8xf32>
    %223 = vector.extract_strided_slice %204 {offsets = [0, 16], sizes = [8, 16], strides = [1, 1]} : vector<8x32xf32> to vector<8x16xf32>
    %224 = arith.truncf %210 : vector<8x8xf32> to vector<8x8xbf16>
    %225 = arith.truncf %219 : vector<8x8xf32> to vector<8x8xbf16>
    %cst_54 = arith.constant dense<0.000000e+00> : vector<8x8xf32>
    %226 = tpu.matmul %224, %225, %cst_54 {dimension_numbers = #tpu.dot_dimension_numbers<[1], [1], [0], [0], [0, 0, 1, 0], [], []>} : vector<8x8xbf16>, vector<8x8xbf16>, vector<8x8xf32> -> vector<8x8xf32>
    %227 = arith.truncf %213 : vector<8x8xf32> to vector<8x8xbf16>
    %228 = arith.truncf %222 : vector<8x8xf32> to vector<8x8xbf16>
    %cst_55 = arith.constant dense<0.000000e+00> : vector<8x8xf32>
    %229 = tpu.matmul %227, %228, %cst_55 {dimension_numbers = #tpu.dot_dimension_numbers<[1], [1], [0], [0], [0, 0, 1, 0], [], []>} : vector<8x8xbf16>, vector<8x8xbf16>, vector<8x8xf32> -> vector<8x8xf32>
    %230 = arith.addf %226, %229 : vector<8x8xf32>
    %231 = arith.truncf %214 : vector<8x16xf32> to vector<8x16xbf16>
    %232 = arith.truncf %223 : vector<8x16xf32> to vector<8x16xbf16>
    %cst_56 = arith.constant dense<0.000000e+00> : vector<8x8xf32>
    %233 = tpu.matmul %231, %232, %cst_56 {dimension_numbers = #tpu.dot_dimension_numbers<[1], [1], [0], [0], [0, 0, 1, 0], [], []>} : vector<8x16xbf16>, vector<8x16xbf16>, vector<8x8xf32> -> vector<8x8xf32>
    %234 = arith.addf %230, %233 : vector<8x8xf32>
    %cst_57 = arith.constant 0.176776692 : f32
    %235 = vector.broadcast %cst_57 : f32 to vector<8x8xf32>
    %236 = arith.mulf %234, %235 : vector<8x8xf32>
    %237 = arith.addf %236, %13 : vector<8x8xf32>
    %cst_58 = arith.constant dense<0xFF800000> : vector<8xf32>
    %238 = vector.multi_reduction <maximumf>, %237, %cst_58 [1] : vector<8x8xf32> to vector<8xf32>
    %239 = vector.shape_cast %238 : vector<8xf32> to vector<8x1xf32>
    %240 = vector.broadcast %239 : vector<8x1xf32> to vector<8x8xf32>
    %241 = arith.subf %237, %240 : vector<8x8xf32>
    %242 = math.exp %241 : vector<8x8xf32>
    %cst_59 = arith.constant dense<0.000000e+00> : vector<8xf32>
    %243 = vector.multi_reduction <add>, %242, %cst_59 [1] : vector<8x8xf32> to vector<8xf32>
    %244 = vector.shape_cast %243 : vector<8xf32> to vector<8x1xf32>
    %245 = tpu.reciprocal %244 {approx = true} : vector<8x1xf32> -> vector<8x1xf32>
    %246 = vector.broadcast %245 : vector<8x1xf32> to vector<8x8xf32>
    %247 = arith.mulf %242, %246 : vector<8x8xf32>
    %248 = arith.truncf %247 : vector<8x8xf32> to vector<8x8xbf16>
    %249 = arith.truncf %205 : vector<8x32xf32> to vector<8x32xbf16>
    %cst_60 = arith.constant dense<0.000000e+00> : vector<8x32xf32>
    %250 = tpu.matmul %248, %249, %cst_60 {dimension_numbers = #tpu.dot_dimension_numbers<[1], [0], [0], [1], [0, 0, 1, 1], [], []>} : vector<8x8xbf16>, vector<8x32xbf16>, vector<8x32xf32> -> vector<8x32xf32>
    %251 = arith.truncf %250 : vector<8x32xf32> to vector<8x32xbf16>
    %c96 = arith.constant 96 : index
    %c0_61 = arith.constant 0 : index
    %252 = vector.load %arg9[%c96, %c0_61] : memref<128x128xbf16, #tpu.memory_space<vmem>>, vector<32x128xbf16>
    %cst_62 = arith.constant dense<0.000000e+00> : vector<8x128xf32>
    %253 = tpu.matmul %251, %252, %cst_62 {dimension_numbers = #tpu.dot_dimension_numbers<[1], [0], [0], [1], [0, 0, 1, 1], [], []>} : vector<8x32xbf16>, vector<32x128xbf16>, vector<8x128xf32> -> vector<8x128xf32>
    %254 = arith.addf %202, %253 : vector<8x128xf32>
    %c0_63 = arith.constant 0 : index
    %c0_64 = arith.constant 0 : index
    %255 = vector.load %arg10[%c0_63, %c0_64] : memref<1x128xf32, #tpu.memory_space<vmem>>, vector<1x128xf32>
    %256 = vector.broadcast %255 : vector<1x128xf32> to vector<8x128xf32>
    %257 = arith.addf %254, %256 : vector<8x128xf32>
    %c0_65 = arith.constant 0 : index
    %c0_66 = arith.constant 0 : index
    %258 = vector.load %arg11[%c0_65, %c0_66] : memref<1x128xf32, #tpu.memory_space<vmem>>, vector<1x128xf32>
    %c0_67 = arith.constant 0 : index
    %c0_68 = arith.constant 0 : index
    %259 = vector.load %arg12[%c0_67, %c0_68] : memref<1x128xf32, #tpu.memory_space<vmem>>, vector<1x128xf32>
    %cst_69 = arith.constant dense<0.000000e+00> : vector<8xf32>
    %260 = vector.multi_reduction <add>, %1, %cst_69 [1] : vector<8x128xf32> to vector<8xf32>
    %261 = vector.shape_cast %260 : vector<8xf32> to vector<8x1xf32>
    %cst_70 = arith.constant 1.280000e+02 : f32
    %262 = vector.broadcast %cst_70 : f32 to vector<8x1xf32>
    %263 = arith.divf %261, %262 : vector<8x1xf32>
    %264 = vector.broadcast %263 : vector<8x1xf32> to vector<8x128xf32>
    %265 = arith.subf %1, %264 : vector<8x128xf32>
    %266 = arith.mulf %265, %265 : vector<8x128xf32>
    %cst_71 = arith.constant dense<0.000000e+00> : vector<8xf32>
    %267 = vector.multi_reduction <add>, %266, %cst_71 [1] : vector<8x128xf32> to vector<8xf32>
    %268 = vector.shape_cast %267 : vector<8xf32> to vector<8x1xf32>
    %cst_72 = arith.constant 1.280000e+02 : f32
    %269 = vector.broadcast %cst_72 : f32 to vector<8x1xf32>
    %270 = arith.divf %268, %269 : vector<8x1xf32>
    %271 = vector.broadcast %263 : vector<8x1xf32> to vector<8x128xf32>
    %272 = arith.subf %1, %271 : vector<8x128xf32>
    %cst_73 = arith.constant 9.99999974E-6 : f32
    %273 = vector.broadcast %cst_73 : f32 to vector<8x1xf32>
    %274 = arith.addf %270, %273 : vector<8x1xf32>
    %275 = math.rsqrt %274 : vector<8x1xf32>
    %276 = vector.broadcast %275 : vector<8x1xf32> to vector<8x128xf32>
    %277 = arith.mulf %272, %276 : vector<8x128xf32>
    %278 = vector.broadcast %258 : vector<1x128xf32> to vector<8x128xf32>
    %279 = arith.mulf %277, %278 : vector<8x128xf32>
    %280 = vector.broadcast %259 : vector<1x128xf32> to vector<8x128xf32>
    %281 = arith.addf %279, %280 : vector<8x128xf32>
    %282 = arith.truncf %281 : vector<8x128xf32> to vector<8x128xbf16>
    %c0_74 = arith.constant 0 : index
    %c0_75 = arith.constant 0 : index
    %283 = vector.load %arg13[%c0_74, %c0_75] : memref<128x512xbf16, #tpu.memory_space<vmem>>, vector<128x512xbf16>
    %cst_76 = arith.constant dense<0.000000e+00> : vector<8x512xf32>
    %284 = tpu.matmul %282, %283, %cst_76 {dimension_numbers = #tpu.dot_dimension_numbers<[1], [0], [0], [1], [0, 0, 1, 1], [], []>} : vector<8x128xbf16>, vector<128x512xbf16>, vector<8x512xf32> -> vector<8x512xf32>
    %c0_77 = arith.constant 0 : index
    %c0_78 = arith.constant 0 : index
    %285 = vector.load %arg14[%c0_77, %c0_78] : memref<1x512xf32, #tpu.memory_space<vmem>>, vector<1x512xf32>
    %286 = vector.broadcast %285 : vector<1x512xf32> to vector<8x512xf32>
    %287 = arith.addf %284, %286 : vector<8x512xf32>
    %288 = arith.mulf %287, %287 : vector<8x512xf32>
    %289 = arith.mulf %287, %288 : vector<8x512xf32>
    %cst_79 = arith.constant 4.471500e-02 : f32
    %290 = vector.broadcast %cst_79 : f32 to vector<8x512xf32>
    %291 = arith.mulf %290, %289 : vector<8x512xf32>
    %292 = arith.addf %287, %291 : vector<8x512xf32>
    %cst_80 = arith.constant 0.797884583 : f32
    %293 = vector.broadcast %cst_80 : f32 to vector<8x512xf32>
    %294 = arith.mulf %293, %292 : vector<8x512xf32>
    %295 = math.tanh %294 : vector<8x512xf32>
    %cst_81 = arith.constant 1.000000e+00 : f32
    %296 = vector.broadcast %cst_81 : f32 to vector<8x512xf32>
    %297 = arith.addf %296, %295 : vector<8x512xf32>
    %cst_82 = arith.constant 5.000000e-01 : f32
    %298 = vector.broadcast %cst_82 : f32 to vector<8x512xf32>
    %299 = arith.mulf %298, %297 : vector<8x512xf32>
    %300 = arith.mulf %287, %299 : vector<8x512xf32>
    %301 = arith.truncf %300 : vector<8x512xf32> to vector<8x512xbf16>
    %c0_83 = arith.constant 0 : index
    %c0_84 = arith.constant 0 : index
    %302 = vector.load %arg15[%c0_83, %c0_84] : memref<512x128xbf16, #tpu.memory_space<vmem>>, vector<512x128xbf16>
    %cst_85 = arith.constant dense<0.000000e+00> : vector<8x128xf32>
    %303 = tpu.matmul %301, %302, %cst_85 {dimension_numbers = #tpu.dot_dimension_numbers<[1], [0], [0], [1], [0, 0, 1, 1], [], []>} : vector<8x512xbf16>, vector<512x128xbf16>, vector<8x128xf32> -> vector<8x128xf32>
    %c0_86 = arith.constant 0 : index
    %c0_87 = arith.constant 0 : index
    %304 = vector.load %arg16[%c0_86, %c0_87] : memref<1x128xf32, #tpu.memory_space<vmem>>, vector<1x128xf32>
    %305 = vector.broadcast %304 : vector<1x128xf32> to vector<8x128xf32>
    %306 = arith.addf %303, %305 : vector<8x128xf32>
    %307 = arith.addf %1, %257 : vector<8x128xf32>
    %308 = arith.addf %307, %306 : vector<8x128xf32>
    %c0_88 = arith.constant 0 : index
    %c0_89 = arith.constant 0 : index
    %c0_90 = arith.constant 0 : index
    %309 = vector.load %arg17[%c0_88, %c0_89, %c0_90] : memref<1x8x128xf32, #tpu.memory_space<vmem>>, vector<1x8x128xf32>
    %310 = vector.shape_cast %309 : vector<1x8x128xf32> to vector<8x128xf32>
    %311 = vector.shape_cast %308 : vector<8x128xf32> to vector<1x8x128xf32>
    tpu.vector_store %arg17[%c0_88, %c0_89, %c0_90], %311 {strides = array<i32>} : memref<1x8x128xf32, #tpu.memory_space<vmem>>, vector<1x8x128xf32>,
    return
  }
  func.func @transform_0(%arg0: i32) -> (i32, i32, i32) {
    %c0_i32 = arith.constant 0 : i32
    %c0_i32_0 = arith.constant 0 : i32
    %c0_i32_1 = arith.constant 0 : i32
    return %arg0, %c0_i32, %c0_i32_0 : i32, i32, i32
  }
  func.func @transform_1(%arg0: i32) -> (i32, i32, i32) {
    %c0_i32 = arith.constant 0 : i32
    %c0_i32_0 = arith.constant 0 : i32
    %c0_i32_1 = arith.constant 0 : i32
    return %arg0, %c0_i32, %c0_i32_0 : i32, i32, i32
  }
  func.func @transform_2(%arg0: i32) -> (i32, i32) {
    %c0_i32 = arith.constant 0 : i32
    %c0_i32_0 = arith.constant 0 : i32
    %c0_i32_1 = arith.constant 0 : i32
    return %c0_i32, %c0_i32_0 : i32, i32
  }
  func.func @transform_3(%arg0: i32) -> (i32, i32) {
    %c0_i32 = arith.constant 0 : i32
    %c0_i32_0 = arith.constant 0 : i32
    %c0_i32_1 = arith.constant 0 : i32
    return %c0_i32, %c0_i32_0 : i32, i32
  }
  func.func @transform_4(%arg0: i32) -> (i32, i32) {
    %c0_i32 = arith.constant 0 : i32
    %c0_i32_0 = arith.constant 0 : i32
    %c0_i32_1 = arith.constant 0 : i32
    return %c0_i32, %c0_i32_0 : i32, i32
  }
  func.func @transform_5(%arg0: i32) -> (i32, i32) {
    %c0_i32 = arith.constant 0 : i32
    %c0_i32_0 = arith.constant 0 : i32
    %c0_i32_1 = arith.constant 0 : i32
    return %c0_i32, %c0_i32_0 : i32, i32
  }
  func.func @transform_6(%arg0: i32) -> (i32, i32) {
    %c0_i32 = arith.constant 0 : i32
    %c0_i32_0 = arith.constant 0 : i32
    %c0_i32_1 = arith.constant 0 : i32
    return %c0_i32, %c0_i32_0 : i32, i32
  }
  func.func @transform_7(%arg0: i32) -> (i32, i32) {
    %c0_i32 = arith.constant 0 : i32
    %c0_i32_0 = arith.constant 0 : i32
    %c0_i32_1 = arith.constant 0 : i32
    return %c0_i32, %c0_i32_0 : i32, i32
  }
  func.func @transform_8(%arg0: i32) -> (i32, i32) {
    %c0_i32 = arith.constant 0 : i32
    %c0_i32_0 = arith.constant 0 : i32
    %c0_i32_1 = arith.constant 0 : i32
    return %c0_i32, %c0_i32_0 : i32, i32
  }
  func.func @transform_9(%arg0: i32) -> (i32, i32) {
    %c0_i32 = arith.constant 0 : i32
    %c0_i32_0 = arith.constant 0 : i32
    %c0_i32_1 = arith.constant 0 : i32
    return %c0_i32, %c0_i32_0 : i32, i32
  }
  func.func @transform_10(%arg0: i32) -> (i32, i32) {
    %c0_i32 = arith.constant 0 : i32
    %c0_i32_0 = arith.constant 0 : i32
    %c0_i32_1 = arith.constant 0 : i32
    return %c0_i32, %c0_i32_0 : i32, i32
  }
  func.func @transform_11(%arg0: i32) -> (i32, i32) {
    %c0_i32 = arith.constant 0 : i32
    %c0_i32_0 = arith.constant 0 : i32
    %c0_i32_1 = arith.constant 0 : i32
    return %c0_i32, %c0_i32_0 : i32, i32
  }
  func.func @transform_12(%arg0: i32) -> (i32, i32) {
    %c0_i32 = arith.constant 0 : i32
    %c0_i32_0 = arith.constant 0 : i32
    %c0_i32_1 = arith.constant 0 : i32
    return %c0_i32, %c0_i32_0 : i32, i32
  }
  func.func @transform_13(%arg0: i32) -> (i32, i32) {
    %c0_i32 = arith.constant 0 : i32
    %c0_i32_0 = arith.constant 0 : i32
    %c0_i32_1 = arith.constant 0 : i32
    return %c0_i32, %c0_i32_0 : i32, i32
  }
  func.func @transform_14(%arg0: i32) -> (i32, i32) {
    %c0_i32 = arith.constant 0 : i32
    %c0_i32_0 = arith.constant 0 : i32
    %c0_i32_1 = arith.constant 0 : i32
    return %c0_i32, %c0_i32_0 : i32, i32
  }
  func.func @transform_15(%arg0: i32) -> (i32, i32) {
    %c0_i32 = arith.constant 0 : i32
    %c0_i32_0 = arith.constant 0 : i32
    %c0_i32_1 = arith.constant 0 : i32
    return %c0_i32, %c0_i32_0 : i32, i32
  }
  func.func @transform_16(%arg0: i32) -> (i32, i32, i32) {
    %c0_i32 = arith.constant 0 : i32
    %c0_i32_0 = arith.constant 0 : i32
    %c0_i32_1 = arith.constant 0 : i32
    return %arg0, %c0_i32, %c0_i32_0 : i32, i32, i32
  }
}

module attributes {stable_mosaic.version = 11 : i64} {
  func.func @_layer_kernel(%arg0: i32, %arg1: memref<1x8x128xf32, #tpu.memory_space<vmem>>, %arg2: memref<1x1x8xf32, #tpu.memory_space<vmem>>, %arg3: memref<8x8xf32, #tpu.memory_space<vmem>>, %arg4: memref<8x8xf32, #tpu.memory_space<vmem>>, %arg5: memref<1x128xf32, #tpu.memory_space<vmem>>, %arg6: memref<1x128xf32, #tpu.memory_space<vmem>>, %arg7: memref<128x384xbf16, #tpu.memory_space<vmem>>, %arg8: memref<1x384xf32, #tpu.memory_space<vmem>>, %arg9: memref<128x128xbf16, #tpu.memory_space<vmem>>, %arg10: memref<1x128xf32, #tpu.memory_space<vmem>>, %arg11: memref<1x128xf32, #tpu.memory_space<vmem>>, %arg12: memref<1x128xf32, #tpu.memory_space<vmem>>, %arg13: memref<128x512xbf16, #tpu.memory_space<vmem>>, %arg14: memref<1x512xf32, #tpu.memory_space<vmem>>, %arg15: memref<512x128xbf16, #tpu.memory_space<vmem>>, %arg16: memref<1x128xf32, #tpu.memory_space<vmem>>, %arg17: memref<1x8x128xf32, #tpu.memory_space<vmem>>) attributes {dimension_semantics = [#tpu.dimension_semantics<parallel>], iteration_bounds = array<i64: 2>, scalar_prefetch = 0 : i64, scratch_operands = 0 : i64, tpu.core_type = #tpu.core_type<tc>, window_params = [{transform_indices = @transform_0, window_bounds = array<i64: 1, 8, 128>}, {transform_indices = @transform_1, window_bounds = array<i64: 1, 1, 8>}, {pipeline_mode = #tpu.pipeline_mode<synchronous>, transform_indices = @transform_2, window_bounds = array<i64: 8, 8>}, {pipeline_mode = #tpu.pipeline_mode<synchronous>, transform_indices = @transform_3, window_bounds = array<i64: 8, 8>}, {pipeline_mode = #tpu.pipeline_mode<synchronous>, transform_indices = @transform_4, window_bounds = array<i64: 1, 128>}, {pipeline_mode = #tpu.pipeline_mode<synchronous>, transform_indices = @transform_5, window_bounds = array<i64: 1, 128>}, {pipeline_mode = #tpu.pipeline_mode<synchronous>, transform_indices = @transform_6, window_bounds = array<i64: 128, 384>}, {pipeline_mode = #tpu.pipeline_mode<synchronous>, transform_indices = @transform_7, window_bounds = array<i64: 1, 384>}, {pipeline_mode = #tpu.pipeline_mode<synchronous>, transform_indices = @transform_8, window_bounds = array<i64: 128, 128>}, {pipeline_mode = #tpu.pipeline_mode<synchronous>, transform_indices = @transform_9, window_bounds = array<i64: 1, 128>}, {pipeline_mode = #tpu.pipeline_mode<synchronous>, transform_indices = @transform_10, window_bounds = array<i64: 1, 128>}, {pipeline_mode = #tpu.pipeline_mode<synchronous>, transform_indices = @transform_11, window_bounds = array<i64: 1, 128>}, {pipeline_mode = #tpu.pipeline_mode<synchronous>, transform_indices = @transform_12, window_bounds = array<i64: 128, 512>}, {pipeline_mode = #tpu.pipeline_mode<synchronous>, transform_indices = @transform_13, window_bounds = array<i64: 1, 512>}, {pipeline_mode = #tpu.pipeline_mode<synchronous>, transform_indices = @transform_14, window_bounds = array<i64: 512, 128>}, {pipeline_mode = #tpu.pipeline_mode<synchronous>, transform_indices = @transform_15, window_bounds = array<i64: 1, 128>}, {transform_indices = @transform_16, window_bounds = array<i64: 1, 8, 128>}]} {
    %c0 = arith.constant 0 : index
    %c0_0 = arith.constant 0 : index
    %c0_1 = arith.constant 0 : index
    %0 = vector.load %arg1[%c0, %c0_0, %c0_1] : memref<1x8x128xf32, #tpu.memory_space<vmem>>, vector<1x8x128xf32>
    %1 = vector.shape_cast %0 : vector<1x8x128xf32> to vector<8x128xf32>
    %2 = tpu.iota {dimensions = array<i32: 0>} : vector<8x8xi32>
    %3 = tpu.iota {dimensions = array<i32: 1>} : vector<8x8xi32>
    %4 = arith.cmpi sge, %2, %3 : vector<8x8xi32>
    %c0_2 = arith.constant 0 : index
    %c0_3 = arith.constant 0 : index
    %c0_4 = arith.constant 0 : index
    %5 = vector.load %arg2[%c0_2, %c0_3, %c0_4] : memref<1x1x8xf32, #tpu.memory_space<vmem>>, vector<1x1x8xf32>
    %6 = vector.shape_cast %5 : vector<1x1x8xf32> to vector<1x8xf32>
    %cst = arith.constant 5.000000e-01 : f32
    %7 = vector.broadcast %cst : f32 to vector<1x8xf32>
    %8 = arith.cmpf ogt, %6, %7 : vector<1x8xf32>
    %9 = vector.broadcast %8 : vector<1x8xi1> to vector<8x8xi1>
    %10 = arith.andi %4, %9 : vector<8x8xi1>
    %cst_5 = arith.constant 0.000000e+00 : f32
    %cst_6 = arith.constant -1.000000e+09 : f32
    %11 = vector.broadcast %cst_5 : f32 to vector<8x8xf32>
    %12 = vector.broadcast %cst_6 : f32 to vector<8x8xf32>
    %13 = arith.select %10, %11, %12 : vector<8x8xi1>, vector<8x8xf32>
    %c0_7 = arith.constant 0 : index
    %c0_8 = arith.constant 0 : index
    %14 = vector.load %arg3[%c0_7, %c0_8] : memref<8x8xf32, #tpu.memory_space<vmem>>, vector<8x8xf32>
    %c0_9 = arith.constant 0 : index
    %c0_10 = arith.constant 0 : index
    %15 = vector.load %arg4[%c0_9, %c0_10] : memref<8x8xf32, #tpu.memory_space<vmem>>, vector<8x8xf32>
    %c0_11 = arith.constant 0 : index
    %c0_12 = arith.constant 0 : index
    %16 = vector.load %arg5[%c0_11, %c0_12] : memref<1x128xf32, #tpu.memory_space<vmem>>, vector<1x128xf32>
    %c0_13 = arith.constant 0 : index
    %c0_14 = arith.constant 0 : index
    %17 = vector.load %arg6[%c0_13, %c0_14] : memref<1x128xf32, #tpu.memory_space<vmem>>, vector<1x128xf32>
    %cst_15 = arith.constant dense<0.000000e+00> : vector<8xf32>
    %18 = vector.multi_reduction <add>, %1, %cst_15 [1] : vector<8x128xf32> to vector<8xf32>
    %19 = vector.shape_cast %18 : vector<8xf32> to vector<8x1xf32>
    %cst_16 = arith.constant 1.280000e+02 : f32
    %20 = vector.broadcast %cst_16 : f32 to vector<8x1xf32>
    %21 = arith.divf %19, %20 : vector<8x1xf32>
    %22 = vector.broadcast %21 : vector<8x1xf32> to vector<8x128xf32>
    %23 = arith.subf %1, %22 : vector<8x128xf32>
    %24 = arith.mulf %23, %23 : vector<8x128xf32>
    %cst_17 = arith.constant dense<0.000000e+00> : vector<8xf32>
    %25 = vector.multi_reduction <add>, %24, %cst_17 [1] : vector<8x128xf32> to vector<8xf32>
    %26 = vector.shape_cast %25 : vector<8xf32> to vector<8x1xf32>
    %cst_18 = arith.constant 1.280000e+02 : f32
    %27 = vector.broadcast %cst_18 : f32 to vector<8x1xf32>
    %28 = arith.divf %26, %27 : vector<8x1xf32>
    %29 = vector.broadcast %21 : vector<8x1xf32> to vector<8x128xf32>
    %30 = arith.subf %1, %29 : vector<8x128xf32>
    %cst_19 = arith.constant 9.99999974E-6 : f32
    %31 = vector.broadcast %cst_19 : f32 to vector<8x1xf32>
    %32 = arith.addf %28, %31 : vector<8x1xf32>
    %33 = math.rsqrt %32 : vector<8x1xf32>
    %34 = vector.broadcast %33 : vector<8x1xf32> to vector<8x128xf32>
    %35 = arith.mulf %30, %34 : vector<8x128xf32>
    %36 = vector.broadcast %16 : vector<1x128xf32> to vector<8x128xf32>
    %37 = arith.mulf %35, %36 : vector<8x128xf32>
    %38 = vector.broadcast %17 : vector<1x128xf32> to vector<8x128xf32>
    %39 = arith.addf %37, %38 : vector<8x128xf32>
    %40 = arith.truncf %39 : vector<8x128xf32> to vector<8x128xbf16>
    %c0_20 = arith.constant 0 : index
    %c0_21 = arith.constant 0 : index
    %41 = vector.load %arg7[%c0_20, %c0_21] : memref<128x384xbf16, #tpu.memory_space<vmem>>, vector<128x384xbf16>
    %cst_22 = arith.constant dense<0.000000e+00> : vector<8x384xf32>
    %42 = tpu.matmul %40, %41, %cst_22 {dimension_numbers = #tpu.dot_dimension_numbers<[1], [0], [0], [1], [0, 0, 1, 1], [], []>} : vector<8x128xbf16>, vector<128x384xbf16>, vector<8x384xf32> -> vector<8x384xf32>
    %c0_23 = arith.constant 0 : index
    %c0_24 = arith.constant 0 : index
    %43 = vector.load %arg8[%c0_23, %c0_24] : memref<1x384xf32, #tpu.memory_space<vmem>>, vector<1x384xf32>
    %44 = vector.broadcast %43 : vector<1x384xf32> to vector<8x384xf32>
    %45 = arith.addf %42, %44 : vector<8x384xf32>
    %cst_25 = arith.constant 0.000000e+00 : f32
    %46 = vector.broadcast %cst_25 : f32 to vector<8x128xf32>
    %47 = vector.extract_strided_slice %45 {offsets = [0, 0], sizes = [8, 32], strides = [1, 1]} : vector<8x384xf32> to vector<8x32xf32>
    %48 = vector.extract_strided_slice %45 {offsets = [0, 128], sizes = [8, 32], strides = [1, 1]} : vector<8x384xf32> to vector<8x32xf32>
    %49 = vector.extract_strided_slice %45 {offsets = [0, 256], sizes = [8, 32], strides = [1, 1]} : vector<8x384xf32> to vector<8x32xf32>
    %50 = vector.extract_strided_slice %47 {offsets = [0, 0], sizes = [8, 8], strides = [1, 1]} : vector<8x32xf32> to vector<8x8xf32>
    %51 = vector.extract_strided_slice %47 {offsets = [0, 8], sizes = [8, 8], strides = [1, 1]} : vector<8x32xf32> to vector<8x8xf32>
    %52 = arith.mulf %50, %14 : vector<8x8xf32>
    %53 = arith.mulf %51, %15 : vector<8x8xf32>
    %54 = arith.subf %52, %53 : vector<8x8xf32>
    %55 = arith.mulf %51, %14 : vector<8x8xf32>
    %56 = arith.mulf %50, %15 : vector<8x8xf32>
    %57 = arith.addf %55, %56 : vector<8x8xf32>
    %58 = vector.extract_strided_slice %47 {offsets = [0, 16], sizes = [8, 16], strides = [1, 1]} : vector<8x32xf32> to vector<8x16xf32>
    %59 = vector.extract_strided_slice %48 {offsets = [0, 0], sizes = [8, 8], strides = [1, 1]} : vector<8x32xf32> to vector<8x8xf32>
    %60 = vector.extract_strided_slice %48 {offsets = [0, 8], sizes = [8, 8], strides = [1, 1]} : vector<8x32xf32> to vector<8x8xf32>
    %61 = arith.mulf %59, %14 : vector<8x8xf32>
    %62 = arith.mulf %60, %15 : vector<8x8xf32>
    %63 = arith.subf %61, %62 : vector<8x8xf32>
    %64 = arith.mulf %60, %14 : vector<8x8xf32>
    %65 = arith.mulf %59, %15 : vector<8x8xf32>
    %66 = arith.addf %64, %65 : vector<8x8xf32>
    %67 = vector.extract_strided_slice %48 {offsets = [0, 16], sizes = [8, 16], strides = [1, 1]} : vector<8x32xf32> to vector<8x16xf32>
    %68 = arith.truncf %54 : vector<8x8xf32> to vector<8x8xbf16>
    %69 = arith.truncf %63 : vector<8x8xf32> to vector<8x8xbf16>
    %cst_26 = arith.constant dense<0.000000e+00> : vector<8x8xf32>
    %70 = tpu.matmul %68, %69, %cst_26 {dimension_numbers = #tpu.dot_dimension_numbers<[1], [1], [0], [0], [0, 0, 1, 0], [], []>} : vector<8x8xbf16>, vector<8x8xbf16>, vector<8x8xf32> -> vector<8x8xf32>
    %71 = arith.truncf %57 : vector<8x8xf32> to vector<8x8xbf16>
    %72 = arith.truncf %66 : vector<8x8xf32> to vector<8x8xbf16>
    %cst_27 = arith.constant dense<0.000000e+00> : vector<8x8xf32>
    %73 = tpu.matmul %71, %72, %cst_27 {dimension_numbers = #tpu.dot_dimension_numbers<[1], [1], [0], [0], [0, 0, 1, 0], [], []>} : vector<8x8xbf16>, vector<8x8xbf16>, vector<8x8xf32> -> vector<8x8xf32>
    %74 = arith.addf %70, %73 : vector<8x8xf32>
    %75 = arith.truncf %58 : vector<8x16xf32> to vector<8x16xbf16>
    %76 = arith.truncf %67 : vector<8x16xf32> to vector<8x16xbf16>
    %cst_28 = arith.constant dense<0.000000e+00> : vector<8x8xf32>
    %77 = tpu.matmul %75, %76, %cst_28 {dimension_numbers = #tpu.dot_dimension_numbers<[1], [1], [0], [0], [0, 0, 1, 0], [], []>} : vector<8x16xbf16>, vector<8x16xbf16>, vector<8x8xf32> -> vector<8x8xf32>
    %78 = arith.addf %74, %77 : vector<8x8xf32>
    %cst_29 = arith.constant 0.176776692 : f32
    %79 = vector.broadcast %cst_29 : f32 to vector<8x8xf32>
    %80 = arith.mulf %78, %79 : vector<8x8xf32>
    %81 = arith.addf %80, %13 : vector<8x8xf32>
    %cst_30 = arith.constant dense<0xFF800000> : vector<8xf32>
    %82 = vector.multi_reduction <maximumf>, %81, %cst_30 [1] : vector<8x8xf32> to vector<8xf32>
    %83 = vector.shape_cast %82 : vector<8xf32> to vector<8x1xf32>
    %84 = vector.broadcast %83 : vector<8x1xf32> to vector<8x8xf32>
    %85 = arith.subf %81, %84 : vector<8x8xf32>
    %86 = math.exp %85 : vector<8x8xf32>
    %cst_31 = arith.constant dense<0.000000e+00> : vector<8xf32>
    %87 = vector.multi_reduction <add>, %86, %cst_31 [1] : vector<8x8xf32> to vector<8xf32>
    %88 = vector.shape_cast %87 : vector<8xf32> to vector<8x1xf32>
    %89 = tpu.reciprocal %88 {approx = true} : vector<8x1xf32> -> vector<8x1xf32>
    %90 = vector.broadcast %89 : vector<8x1xf32> to vector<8x8xf32>
    %91 = arith.mulf %86, %90 : vector<8x8xf32>
    %92 = arith.truncf %91 : vector<8x8xf32> to vector<8x8xbf16>
    %93 = arith.truncf %49 : vector<8x32xf32> to vector<8x32xbf16>
    %cst_32 = arith.constant dense<0.000000e+00> : vector<8x32xf32>
    %94 = tpu.matmul %92, %93, %cst_32 {dimension_numbers = #tpu.dot_dimension_numbers<[1], [0], [0], [1], [0, 0, 1, 1], [], []>} : vector<8x8xbf16>, vector<8x32xbf16>, vector<8x32xf32> -> vector<8x32xf32>
    %95 = arith.truncf %94 : vector<8x32xf32> to vector<8x32xbf16>
    %c0_33 = arith.constant 0 : index
    %c0_34 = arith.constant 0 : index
    %96 = vector.load %arg9[%c0_33, %c0_34] : memref<128x128xbf16, #tpu.memory_space<vmem>>, vector<32x128xbf16>
    %cst_35 = arith.constant dense<0.000000e+00> : vector<8x128xf32>
    %97 = tpu.matmul %95, %96, %cst_35 {dimension_numbers = #tpu.dot_dimension_numbers<[1], [0], [0], [1], [0, 0, 1, 1], [], []>} : vector<8x32xbf16>, vector<32x128xbf16>, vector<8x128xf32> -> vector<8x128xf32>
    %98 = arith.addf %46, %97 : vector<8x128xf32>
    %99 = vector.extract_strided_slice %45 {offsets = [0, 32], sizes = [8, 32], strides = [1, 1]} : vector<8x384xf32> to vector<8x32xf32>
    %100 = vector.extract_strided_slice %45 {offsets = [0, 160], sizes = [8, 32], strides = [1, 1]} : vector<8x384xf32> to vector<8x32xf32>
    %101 = vector.extract_strided_slice %45 {offsets = [0, 288], sizes = [8, 32], strides = [1, 1]} : vector<8x384xf32> to vector<8x32xf32>
    %102 = vector.extract_strided_slice %99 {offsets = [0, 0], sizes = [8, 8], strides = [1, 1]} : vector<8x32xf32> to vector<8x8xf32>
    %103 = vector.extract_strided_slice %99 {offsets = [0, 8], sizes = [8, 8], strides = [1, 1]} : vector<8x32xf32> to vector<8x8xf32>
    %104 = arith.mulf %102, %14 : vector<8x8xf32>
    %105 = arith.mulf %103, %15 : vector<8x8xf32>
    %106 = arith.subf %104, %105 : vector<8x8xf32>
    %107 = arith.mulf %103, %14 : vector<8x8xf32>
    %108 = arith.mulf %102, %15 : vector<8x8xf32>
    %109 = arith.addf %107, %108 : vector<8x8xf32>
    %110 = vector.extract_strided_slice %99 {offsets = [0, 16], sizes = [8, 16], strides = [1, 1]} : vector<8x32xf32> to vector<8x16xf32>
    %111 = vector.extract_strided_slice %100 {offsets = [0, 0], sizes = [8, 8], strides = [1, 1]} : vector<8x32xf32> to vector<8x8xf32>
    %112 = vector.extract_strided_slice %100 {offsets = [0, 8], sizes = [8, 8], strides = [1, 1]} : vector<8x32xf32> to vector<8x8xf32>
    %113 = arith.mulf %111, %14 : vector<8x8xf32>
    %114 = arith.mulf %112, %15 : vector<8x8xf32>
    %115 = arith.subf %113, %114 : vector<8x8xf32>
    %116 = arith.mulf %112, %14 : vector<8x8xf32>
    %117 = arith.mulf %111, %15 : vector<8x8xf32>
    %118 = arith.addf %116, %117 : vector<8x8xf32>
    %119 = vector.extract_strided_slice %100 {offsets = [0, 16], sizes = [8, 16], strides = [1, 1]} : vector<8x32xf32> to vector<8x16xf32>
    %120 = arith.truncf %106 : vector<8x8xf32> to vector<8x8xbf16>
    %121 = arith.truncf %115 : vector<8x8xf32> to vector<8x8xbf16>
    %cst_36 = arith.constant dense<0.000000e+00> : vector<8x8xf32>
    %122 = tpu.matmul %120, %121, %cst_36 {dimension_numbers = #tpu.dot_dimension_numbers<[1], [1], [0], [0], [0, 0, 1, 0], [], []>} : vector<8x8xbf16>, vector<8x8xbf16>, vector<8x8xf32> -> vector<8x8xf32>
    %123 = arith.truncf %109 : vector<8x8xf32> to vector<8x8xbf16>
    %124 = arith.truncf %118 : vector<8x8xf32> to vector<8x8xbf16>
    %cst_37 = arith.constant dense<0.000000e+00> : vector<8x8xf32>
    %125 = tpu.matmul %123, %124, %cst_37 {dimension_numbers = #tpu.dot_dimension_numbers<[1], [1], [0], [0], [0, 0, 1, 0], [], []>} : vector<8x8xbf16>, vector<8x8xbf16>, vector<8x8xf32> -> vector<8x8xf32>
    %126 = arith.addf %122, %125 : vector<8x8xf32>
    %127 = arith.truncf %110 : vector<8x16xf32> to vector<8x16xbf16>
    %128 = arith.truncf %119 : vector<8x16xf32> to vector<8x16xbf16>
    %cst_38 = arith.constant dense<0.000000e+00> : vector<8x8xf32>
    %129 = tpu.matmul %127, %128, %cst_38 {dimension_numbers = #tpu.dot_dimension_numbers<[1], [1], [0], [0], [0, 0, 1, 0], [], []>} : vector<8x16xbf16>, vector<8x16xbf16>, vector<8x8xf32> -> vector<8x8xf32>
    %130 = arith.addf %126, %129 : vector<8x8xf32>
    %cst_39 = arith.constant 0.176776692 : f32
    %131 = vector.broadcast %cst_39 : f32 to vector<8x8xf32>
    %132 = arith.mulf %130, %131 : vector<8x8xf32>
    %133 = arith.addf %132, %13 : vector<8x8xf32>
    %cst_40 = arith.constant dense<0xFF800000> : vector<8xf32>
    %134 = vector.multi_reduction <maximumf>, %133, %cst_40 [1] : vector<8x8xf32> to vector<8xf32>
    %135 = vector.shape_cast %134 : vector<8xf32> to vector<8x1xf32>
    %136 = vector.broadcast %135 : vector<8x1xf32> to vector<8x8xf32>
    %137 = arith.subf %133, %136 : vector<8x8xf32>
    %138 = math.exp %137 : vector<8x8xf32>
    %cst_41 = arith.constant dense<0.000000e+00> : vector<8xf32>
    %139 = vector.multi_reduction <add>, %138, %cst_41 [1] : vector<8x8xf32> to vector<8xf32>
    %140 = vector.shape_cast %139 : vector<8xf32> to vector<8x1xf32>
    %141 = tpu.reciprocal %140 {approx = true} : vector<8x1xf32> -> vector<8x1xf32>
    %142 = vector.broadcast %141 : vector<8x1xf32> to vector<8x8xf32>
    %143 = arith.mulf %138, %142 : vector<8x8xf32>
    %144 = arith.truncf %143 : vector<8x8xf32> to vector<8x8xbf16>
    %145 = arith.truncf %101 : vector<8x32xf32> to vector<8x32xbf16>
    %cst_42 = arith.constant dense<0.000000e+00> : vector<8x32xf32>
    %146 = tpu.matmul %144, %145, %cst_42 {dimension_numbers = #tpu.dot_dimension_numbers<[1], [0], [0], [1], [0, 0, 1, 1], [], []>} : vector<8x8xbf16>, vector<8x32xbf16>, vector<8x32xf32> -> vector<8x32xf32>
    %147 = arith.truncf %146 : vector<8x32xf32> to vector<8x32xbf16>
    %c32 = arith.constant 32 : index
    %c0_43 = arith.constant 0 : index
    %148 = vector.load %arg9[%c32, %c0_43] : memref<128x128xbf16, #tpu.memory_space<vmem>>, vector<32x128xbf16>
    %cst_44 = arith.constant dense<0.000000e+00> : vector<8x128xf32>
    %149 = tpu.matmul %147, %148, %cst_44 {dimension_numbers = #tpu.dot_dimension_numbers<[1], [0], [0], [1], [0, 0, 1, 1], [], []>} : vector<8x32xbf16>, vector<32x128xbf16>, vector<8x128xf32> -> vector<8x128xf32>
    %150 = arith.addf %98, %149 : vector<8x128xf32>
    %151 = vector.extract_strided_slice %45 {offsets = [0, 64], sizes = [8, 32], strides = [1, 1]} : vector<8x384xf32> to vector<8x32xf32>
    %152 = vector.extract_strided_slice %45 {offsets = [0, 192], sizes = [8, 32], strides = [1, 1]} : vector<8x384xf32> to vector<8x32xf32>
    %153 = vector.extract_strided_slice %45 {offsets = [0, 320], sizes = [8, 32], strides = [1, 1]} : vector<8x384xf32> to vector<8x32xf32>
    %154 = vector.extract_strided_slice %151 {offsets = [0, 0], sizes = [8, 8], strides = [1, 1]} : vector<8x32xf32> to vector<8x8xf32>
    %155 = vector.extract_strided_slice %151 {offsets = [0, 8], sizes = [8, 8], strides = [1, 1]} : vector<8x32xf32> to vector<8x8xf32>
    %156 = arith.mulf %154, %14 : vector<8x8xf32>
    %157 = arith.mulf %155, %15 : vector<8x8xf32>
    %158 = arith.subf %156, %157 : vector<8x8xf32>
    %159 = arith.mulf %155, %14 : vector<8x8xf32>
    %160 = arith.mulf %154, %15 : vector<8x8xf32>
    %161 = arith.addf %159, %160 : vector<8x8xf32>
    %162 = vector.extract_strided_slice %151 {offsets = [0, 16], sizes = [8, 16], strides = [1, 1]} : vector<8x32xf32> to vector<8x16xf32>
    %163 = vector.extract_strided_slice %152 {offsets = [0, 0], sizes = [8, 8], strides = [1, 1]} : vector<8x32xf32> to vector<8x8xf32>
    %164 = vector.extract_strided_slice %152 {offsets = [0, 8], sizes = [8, 8], strides = [1, 1]} : vector<8x32xf32> to vector<8x8xf32>
    %165 = arith.mulf %163, %14 : vector<8x8xf32>
    %166 = arith.mulf %164, %15 : vector<8x8xf32>
    %167 = arith.subf %165, %166 : vector<8x8xf32>
    %168 = arith.mulf %164, %14 : vector<8x8xf32>
    %169 = arith.mulf %163, %15 : vector<8x8xf32>
    %170 = arith.addf %168, %169 : vector<8x8xf32>
    %171 = vector.extract_strided_slice %152 {offsets = [0, 16], sizes = [8, 16], strides = [1, 1]} : vector<8x32xf32> to vector<8x16xf32>
    %172 = arith.truncf %158 : vector<8x8xf32> to vector<8x8xbf16>
    %173 = arith.truncf %167 : vector<8x8xf32> to vector<8x8xbf16>
    %cst_45 = arith.constant dense<0.000000e+00> : vector<8x8xf32>
    %174 = tpu.matmul %172, %173, %cst_45 {dimension_numbers = #tpu.dot_dimension_numbers<[1], [1], [0], [0], [0, 0, 1, 0], [], []>} : vector<8x8xbf16>, vector<8x8xbf16>, vector<8x8xf32> -> vector<8x8xf32>
    %175 = arith.truncf %161 : vector<8x8xf32> to vector<8x8xbf16>
    %176 = arith.truncf %170 : vector<8x8xf32> to vector<8x8xbf16>
    %cst_46 = arith.constant dense<0.000000e+00> : vector<8x8xf32>
    %177 = tpu.matmul %175, %176, %cst_46 {dimension_numbers = #tpu.dot_dimension_numbers<[1], [1], [0], [0], [0, 0, 1, 0], [], []>} : vector<8x8xbf16>, vector<8x8xbf16>, vector<8x8xf32> -> vector<8x8xf32>
    %178 = arith.addf %174, %177 : vector<8x8xf32>
    %179 = arith.truncf %162 : vector<8x16xf32> to vector<8x16xbf16>
    %180 = arith.truncf %171 : vector<8x16xf32> to vector<8x16xbf16>
    %cst_47 = arith.constant dense<0.000000e+00> : vector<8x8xf32>
    %181 = tpu.matmul %179, %180, %cst_47 {dimension_numbers = #tpu.dot_dimension_numbers<[1], [1], [0], [0], [0, 0, 1, 0], [], []>} : vector<8x16xbf16>, vector<8x16xbf16>, vector<8x8xf32> -> vector<8x8xf32>
    %182 = arith.addf %178, %181 : vector<8x8xf32>
    %cst_48 = arith.constant 0.176776692 : f32
    %183 = vector.broadcast %cst_48 : f32 to vector<8x8xf32>
    %184 = arith.mulf %182, %183 : vector<8x8xf32>
    %185 = arith.addf %184, %13 : vector<8x8xf32>
    %cst_49 = arith.constant dense<0xFF800000> : vector<8xf32>
    %186 = vector.multi_reduction <maximumf>, %185, %cst_49 [1] : vector<8x8xf32> to vector<8xf32>
    %187 = vector.shape_cast %186 : vector<8xf32> to vector<8x1xf32>
    %188 = vector.broadcast %187 : vector<8x1xf32> to vector<8x8xf32>
    %189 = arith.subf %185, %188 : vector<8x8xf32>
    %190 = math.exp %189 : vector<8x8xf32>
    %cst_50 = arith.constant dense<0.000000e+00> : vector<8xf32>
    %191 = vector.multi_reduction <add>, %190, %cst_50 [1] : vector<8x8xf32> to vector<8xf32>
    %192 = vector.shape_cast %191 : vector<8xf32> to vector<8x1xf32>
    %193 = tpu.reciprocal %192 {approx = true} : vector<8x1xf32> -> vector<8x1xf32>
    %194 = vector.broadcast %193 : vector<8x1xf32> to vector<8x8xf32>
    %195 = arith.mulf %190, %194 : vector<8x8xf32>
    %196 = arith.truncf %195 : vector<8x8xf32> to vector<8x8xbf16>
    %197 = arith.truncf %153 : vector<8x32xf32> to vector<8x32xbf16>
    %cst_51 = arith.constant dense<0.000000e+00> : vector<8x32xf32>
    %198 = tpu.matmul %196, %197, %cst_51 {dimension_numbers = #tpu.dot_dimension_numbers<[1], [0], [0], [1], [0, 0, 1, 1], [], []>} : vector<8x8xbf16>, vector<8x32xbf16>, vector<8x32xf32> -> vector<8x32xf32>
    %199 = arith.truncf %198 : vector<8x32xf32> to vector<8x32xbf16>
    %c64 = arith.constant 64 : index
    %c0_52 = arith.constant 0 : index
    %200 = vector.load %arg9[%c64, %c0_52] : memref<128x128xbf16, #tpu.memory_space<vmem>>, vector<32x128xbf16>
    %cst_53 = arith.constant dense<0.000000e+00> : vector<8x128xf32>
    %201 = tpu.matmul %199, %200, %cst_53 {dimension_numbers = #tpu.dot_dimension_numbers<[1], [0], [0], [1], [0, 0, 1, 1], [], []>} : vector<8x32xbf16>, vector<32x128xbf16>, vector<8x128xf32> -> vector<8x128xf32>
    %202 = arith.addf %150, %201 : vector<8x128xf32>
    %203 = vector.extract_strided_slice %45 {offsets = [0, 96], sizes = [8, 32], strides = [1, 1]} : vector<8x384xf32> to vector<8x32xf32>
    %204 = vector.extract_strided_slice %45 {offsets = [0, 224], sizes = [8, 32], strides = [1, 1]} : vector<8x384xf32> to vector<8x32xf32>
    %205 = vector.extract_strided_slice %45 {offsets = [0, 352], sizes = [8, 32], strides = [1, 1]} : vector<8x384xf32> to vector<8x32xf32>
    %206 = vector.extract_strided_slice %203 {offsets = [0, 0], sizes = [8, 8], strides = [1, 1]} : vector<8x32xf32> to vector<8x8xf32>
    %207 = vector.extract_strided_slice %203 {offsets = [0, 8], sizes = [8, 8], strides = [1, 1]} : vector<8x32xf32> to vector<8x8xf32>
    %208 = arith.mulf %206, %14 : vector<8x8xf32>
    %209 = arith.mulf %207, %15 : vector<8x8xf32>
    %210 = arith.subf %208, %209 : vector<8x8xf32>
    %211 = arith.mulf %207, %14 : vector<8x8xf32>
    %212 = arith.mulf %206, %15 : vector<8x8xf32>
    %213 = arith.addf %211, %212 : vector<8x8xf32>
    %214 = vector.extract_strided_slice %203 {offsets = [0, 16], sizes = [8, 16], strides = [1, 1]} : vector<8x32xf32> to vector<8x16xf32>
    %215 = vector.extract_strided_slice %204 {offsets = [0, 0], sizes = [8, 8], strides = [1, 1]} : vector<8x32xf32> to vector<8x8xf32>
    %216 = vector.extract_strided_slice %204 {offsets = [0, 8], sizes = [8, 8], strides = [1, 1]} : vector<8x32xf32> to vector<8x8xf32>
    %217 = arith.mulf %215, %14 : vector<8x8xf32>
    %218 = arith.mulf %216, %15 : vector<8x8xf32>
    %219 = arith.subf %217, %218 : vector<8x8xf32>
    %220 = arith.mulf %216, %14 : vector<8x8xf32>
    %221 = arith.mulf %215, %15 : vector<8x8xf32>
    %222 = arith.addf %220, %221 : vector<8x8xf32>
    %223 = vector.extract_strided_slice %204 {offsets = [0, 16], sizes = [8, 16], strides = [1, 1]} : vector<8x32xf32> to vector<8x16xf32>
    %224 = arith.truncf %210 : vector<8x8xf32> to vector<8x8xbf16>
    %225 = arith.truncf %219 : vector<8x8xf32> to vector<8x8xbf16>
    %cst_54 = arith.constant dense<0.000000e+00> : vector<8x8xf32>
    %226 = tpu.matmul %224, %225, %cst_54 {dimension_numbers = #tpu.dot_dimension_numbers<[1], [1], [0], [0], [0, 0, 1, 0], [], []>} : vector<8x8xbf16>, vector<8x8xbf16>, vector<8x8xf32> -> vector<8x8xf32>
    %227 = arith.truncf %213 : vector<8x8xf32> to vector<8x8xbf16>
    %228 = arith.truncf %222 : vector<8x8xf32> to vector<8x8xbf16>
    %cst_55 = arith.constant dense<0.000000e+00> : vector<8x8xf32>
    %229 = tpu.matmul %227, %228, %cst_55 {dimension_numbers = #tpu.dot_dimension_numbers<[1], [1], [0], [0], [0, 0, 1, 0], [], []>} : vector<8x8xbf16>, vector<8x8xbf16>, vector<8x8xf32> -> vector<8x8xf32>
    %230 = arith.addf %226, %229 : vector<8x8xf32>
    %231 = arith.truncf %214 : vector<8x16xf32> to vector<8x16xbf16>
    %232 = arith.truncf %223 : vector<8x16xf32> to vector<8x16xbf16>
    %cst_56 = arith.constant dense<0.000000e+00> : vector<8x8xf32>
    %233 = tpu.matmul %231, %232, %cst_56 {dimension_numbers = #tpu.dot_dimension_numbers<[1], [1], [0], [0], [0, 0, 1, 0], [], []>} : vector<8x16xbf16>, vector<8x16xbf16>, vector<8x8xf32> -> vector<8x8xf32>
    %234 = arith.addf %230, %233 : vector<8x8xf32>
    %cst_57 = arith.constant 0.176776692 : f32
    %235 = vector.broadcast %cst_57 : f32 to vector<8x8xf32>
    %236 = arith.mulf %234, %235 : vector<8x8xf32>
    %237 = arith.addf %236, %13 : vector<8x8xf32>
    %cst_58 = arith.constant dense<0xFF800000> : vector<8xf32>
    %238 = vector.multi_reduction <maximumf>, %237, %cst_58 [1] : vector<8x8xf32> to vector<8xf32>
    %239 = vector.shape_cast %238 : vector<8xf32> to vector<8x1xf32>
    %240 = vector.broadcast %239 : vector<8x1xf32> to vector<8x8xf32>
    %241 = arith.subf %237, %240 : vector<8x8xf32>
    %242 = math.exp %241 : vector<8x8xf32>
    %cst_59 = arith.constant dense<0.000000e+00> : vector<8xf32>
    %243 = vector.multi_reduction <add>, %242, %cst_59 [1] : vector<8x8xf32> to vector<8xf32>
    %244 = vector.shape_cast %243 : vector<8xf32> to vector<8x1xf32>
    %245 = tpu.reciprocal %244 {approx = true} : vector<8x1xf32> -> vector<8x1xf32>
    %246 = vector.broadcast %245 : vector<8x1xf32> to vector<8x8xf32>
    %247 = arith.mulf %242, %246 : vector<8x8xf32>
    %248 = arith.truncf %247 : vector<8x8xf32> to vector<8x8xbf16>
    %249 = arith.truncf %205 : vector<8x32xf32> to vector<8x32xbf16>
    %cst_60 = arith.constant dense<0.000000e+00> : vector<8x32xf32>
    %250 = tpu.matmul %248, %249, %cst_60 {dimension_numbers = #tpu.dot_dimension_numbers<[1], [0], [0], [1], [0, 0, 1, 1], [], []>} : vector<8x8xbf16>, vector<8x32xbf16>, vector<8x32xf32> -> vector<8x32xf32>
    %251 = arith.truncf %250 : vector<8x32xf32> to vector<8x32xbf16>
    %c96 = arith.constant 96 : index
    %c0_61 = arith.constant 0 : index
    %252 = vector.load %arg9[%c96, %c0_61] : memref<128x128xbf16, #tpu.memory_space<vmem>>, vector<32x128xbf16>
    %cst_62 = arith.constant dense<0.000000e+00> : vector<8x128xf32>
    %253 = tpu.matmul %251, %252, %cst_62 {dimension_numbers = #tpu.dot_dimension_numbers<[1], [0], [0], [1], [0, 0, 1, 1], [], []>} : vector<8x32xbf16>, vector<32x128xbf16>, vector<8x128xf32> -> vector<8x128xf32>
    %254 = arith.addf %202, %253 : vector<8x128xf32>
    %c0_63 = arith.constant 0 : index
    %c0_64 = arith.constant 0 : index
    %255 = vector.load %arg10[%c0_63, %c0_64] : memref<1x128xf32, #tpu.memory_space<vmem>>, vector<1x128xf32>
    %256 = vector.broadcast %255 : vector<1x128xf32> to vector<8x128xf32>
    %257 = arith.addf %254, %256 : vector<8x128xf32>
    %c0_65 = arith.constant 0 : index
    %c0_66 = arith.constant 0 : index
    %258 = vector.load %arg11[%c0_65, %c0_66] : memref<1x128xf32, #tpu.memory_space<vmem>>, vector<1x128xf32>
    %c0_67 = arith.constant 0 : index
    %c0_68 = arith.constant 0 : index
    %259 = vector.load %arg12[%c0_67, %c0_68] : memref<1x128xf32, #tpu.memory_space<vmem>>, vector<1x128xf32>
    %cst_69 = arith.constant dense<0.000000e+00> : vector<8xf32>
    %260 = vector.multi_reduction <add>, %1, %cst_69 [1] : vector<8x128xf32> to vector<8xf32>
    %261 = vector.shape_cast %260 : vector<8xf32> to vector<8x1xf32>
    %cst_70 = arith.constant 1.280000e+02 : f32
    %262 = vector.broadcast %cst_70 : f32 to vector<8x1xf32>
    %263 = arith.divf %261, %262 : vector<8x1xf32>
    %264 = vector.broadcast %263 : vector<8x1xf32> to vector<8x128xf32>
    %265 = arith.subf %1, %264 : vector<8x128xf32>
    %266 = arith.mulf %265, %265 : vector<8x128xf32>
    %cst_71 = arith.constant dense<0.000000e+00> : vector<8xf32>
    %267 = vector.multi_reduction <add>, %266, %cst_71 [1] : vector<8x128xf32> to vector<8xf32>
    %268 = vector.shape_cast %267 : vector<8xf32> to vector<8x1xf32>
    %cst_72 = arith.constant 1.280000e+02 : f32
    %269 = vector.broadcast %cst_72 : f32 to vector<8x1xf32>
    %270 = arith.divf %268, %269 : vector<8x1xf32>
    %271 = vector.broadcast %263 : vector<8x1xf32> to vector<8x128xf32>
    %272 = arith.subf %1, %271 : vector<8x128xf32>
    %cst_73 = arith.constant 9.99999974E-6 : f32
    %273 = vector.broadcast %cst_73 : f32 to vector<8x1xf32>
    %274 = arith.addf %270, %273 : vector<8x1xf32>
    %275 = math.rsqrt %274 : vector<8x1xf32>
    %276 = vector.broadcast %275 : vector<8x1xf32> to vector<8x128xf32>
    %277 = arith.mulf %272, %276 : vector<8x128xf32>
    %278 = vector.broadcast %258 : vector<1x128xf32> to vector<8x128xf32>
    %279 = arith.mulf %277, %278 : vector<8x128xf32>
    %280 = vector.broadcast %259 : vector<1x128xf32> to vector<8x128xf32>
    %281 = arith.addf %279, %280 : vector<8x128xf32>
    %282 = arith.truncf %281 : vector<8x128xf32> to vector<8x128xbf16>
    %c0_74 = arith.constant 0 : index
    %c0_75 = arith.constant 0 : index
    %283 = vector.load %arg13[%c0_74, %c0_75] : memref<128x512xbf16, #tpu.memory_space<vmem>>, vector<128x512xbf16>
    %cst_76 = arith.constant dense<0.000000e+00> : vector<8x512xf32>
    %284 = tpu.matmul %282, %283, %cst_76 {dimension_numbers = #tpu.dot_dimension_numbers<[1], [0], [0], [1], [0, 0, 1, 1], [], []>} : vector<8x128xbf16>, vector<128x512xbf16>, vector<8x512xf32> -> vector<8x512xf32>
    %c0_77 = arith.constant 0 : index
    %c0_78 = arith.constant 0 : index
    %285 = vector.load %arg14[%c0_77, %c0_78] : memref<1x512xf32, #tpu.memory_space<vmem>>, vector<1x512xf32>
    %286 = vector.broadcast %285 : vector<1x512xf32> to vector<8x512xf32>
    %287 = arith.addf %284, %286 : vector<8x512xf32>
    %288 = arith.mulf %287, %287 : vector<8x512xf32>
    %289 = arith.mulf %287, %288 : vector<8x512xf32>
    %cst_79 = arith.constant 4.471500e-02 : f32
    %290 = vector.broadcast %cst_79 : f32 to vector<8x512xf32>
    %291 = arith.mulf %290, %289 : vector<8x512xf32>
    %292 = arith.addf %287, %291 : vector<8x512xf32>
    %cst_80 = arith.constant 0.797884583 : f32
    %293 = vector.broadcast %cst_80 : f32 to vector<8x512xf32>
    %294 = arith.mulf %293, %292 : vector<8x512xf32>
    %295 = math.tanh %294 : vector<8x512xf32>
    %cst_81 = arith.constant 1.000000e+00 : f32
    %296 = vector.broadcast %cst_81 : f32 to vector<8x512xf32>
    %297 = arith.addf %296, %295 : vector<8x512xf32>
    %cst_82 = arith.constant 5.000000e-01 : f32
    %298 = vector.broadcast %cst_82 : f32 to vector<8x512xf32>
    %299 = arith.mulf %298, %297 : vector<8x512xf32>
    %300 = arith.mulf %287, %299 : vector<8x512xf32>
    %301 = arith.truncf %300 : vector<8x512xf32> to vector<8x512xbf16>
    %c0_83 = arith.constant 0 : index
    %c0_84 = arith.constant 0 : index
    %302 = vector.load %arg15[%c0_83, %c0_84] : memref<512x128xbf16, #tpu.memory_space<vmem>>, vector<512x128xbf16>
    %cst_85 = arith.constant dense<0.000000e+00> : vector<8x128xf32>
    %303 = tpu.matmul %301, %302, %cst_85 {dimension_numbers = #tpu.dot_dimension_numbers<[1], [0], [0], [1], [0, 0, 1, 1], [], []>} : vector<8x512xbf16>, vector<512x128xbf16>, vector<8x128xf32> -> vector<8x128xf32>
    %c0_86 = arith.constant 0 : index
    %c0_87 = arith.constant 0 : index
    %304 = vector.load %arg16[%c0_86, %c0_87] : memref<1x128xf32, #tpu.memory_space<vmem>>, vector<1x128xf32>
    %305 = vector.broadcast %304 : vector<1x128xf32> to vector<8x128xf32>
    %306 = arith.addf %303, %305 : vector<8x128xf32>
    %307 = arith.addf %1, %257 : vector<8x128xf32>
    %308 = arith.addf %307, %306 : vector<8x128xf32>
    %c0_88 = arith.constant 0 : index
    %c0_89 = arith.constant 0 : index
    %c0_90 = arith.constant 0 : index
    %309 = vector.load %arg17[%c0_88, %c0_89, %c0_90] : memref<1x8x128xf32, #tpu.memory_space<vmem>>, vector<1x8x128xf32>
    %310 = vector.shape_cast %309 : vector<1x8x128xf32> to vector<8x128xf32>
    %311 = vector.shape_cast %308 : vector<8x128xf32> to vector<1x8x128xf32>
    tpu.vector_store %arg17[%c0_88, %c0_89, %c0_90], %311 {strides = array<i32>} : memref<1x8x128xf32, #tpu.memory_space<vmem>>, vector<1x8x128xf32>,
    return
  }
  func.func @transform_0(%arg0: i32) -> (i32, i32, i32) {
    %c0_i32 = arith.constant 0 : i32
    %c0_i32_0 = arith.constant 0 : i32
    %c0_i32_1 = arith.constant 0 : i32
    return %arg0, %c0_i32, %c0_i32_0 : i32, i32, i32
  }
  func.func @transform_1(%arg0: i32) -> (i32, i32, i32) {
    %c0_i32 = arith.constant 0 : i32
    %c0_i32_0 = arith.constant 0 : i32
    %c0_i32_1 = arith.constant 0 : i32
    return %arg0, %c0_i32, %c0_i32_0 : i32, i32, i32
  }
  func.func @transform_2(%arg0: i32) -> (i32, i32) {
    %c0_i32 = arith.constant 0 : i32
    %c0_i32_0 = arith.constant 0 : i32
    %c0_i32_1 = arith.constant 0 : i32
    return %c0_i32, %c0_i32_0 : i32, i32
  }
  func.func @transform_3(%arg0: i32) -> (i32, i32) {
    %c0_i32 = arith.constant 0 : i32
    %c0_i32_0 = arith.constant 0 : i32
    %c0_i32_1 = arith.constant 0 : i32
    return %c0_i32, %c0_i32_0 : i32, i32
  }
  func.func @transform_4(%arg0: i32) -> (i32, i32) {
    %c0_i32 = arith.constant 0 : i32
    %c0_i32_0 = arith.constant 0 : i32
    %c0_i32_1 = arith.constant 0 : i32
    return %c0_i32, %c0_i32_0 : i32, i32
  }
  func.func @transform_5(%arg0: i32) -> (i32, i32) {
    %c0_i32 = arith.constant 0 : i32
    %c0_i32_0 = arith.constant 0 : i32
    %c0_i32_1 = arith.constant 0 : i32
    return %c0_i32, %c0_i32_0 : i32, i32
  }
  func.func @transform_6(%arg0: i32) -> (i32, i32) {
    %c0_i32 = arith.constant 0 : i32
    %c0_i32_0 = arith.constant 0 : i32
    %c0_i32_1 = arith.constant 0 : i32
    return %c0_i32, %c0_i32_0 : i32, i32
  }
  func.func @transform_7(%arg0: i32) -> (i32, i32) {
    %c0_i32 = arith.constant 0 : i32
    %c0_i32_0 = arith.constant 0 : i32
    %c0_i32_1 = arith.constant 0 : i32
    return %c0_i32, %c0_i32_0 : i32, i32
  }
  func.func @transform_8(%arg0: i32) -> (i32, i32) {
    %c0_i32 = arith.constant 0 : i32
    %c0_i32_0 = arith.constant 0 : i32
    %c0_i32_1 = arith.constant 0 : i32
    return %c0_i32, %c0_i32_0 : i32, i32
  }
  func.func @transform_9(%arg0: i32) -> (i32, i32) {
    %c0_i32 = arith.constant 0 : i32
    %c0_i32_0 = arith.constant 0 : i32
    %c0_i32_1 = arith.constant 0 : i32
    return %c0_i32, %c0_i32_0 : i32, i32
  }
  func.func @transform_10(%arg0: i32) -> (i32, i32) {
    %c0_i32 = arith.constant 0 : i32
    %c0_i32_0 = arith.constant 0 : i32
    %c0_i32_1 = arith.constant 0 : i32
    return %c0_i32, %c0_i32_0 : i32, i32
  }
  func.func @transform_11(%arg0: i32) -> (i32, i32) {
    %c0_i32 = arith.constant 0 : i32
    %c0_i32_0 = arith.constant 0 : i32
    %c0_i32_1 = arith.constant 0 : i32
    return %c0_i32, %c0_i32_0 : i32, i32
  }
  func.func @transform_12(%arg0: i32) -> (i32, i32) {
    %c0_i32 = arith.constant 0 : i32
    %c0_i32_0 = arith.constant 0 : i32
    %c0_i32_1 = arith.constant 0 : i32
    return %c0_i32, %c0_i32_0 : i32, i32
  }
  func.func @transform_13(%arg0: i32) -> (i32, i32) {
    %c0_i32 = arith.constant 0 : i32
    %c0_i32_0 = arith.constant 0 : i32
    %c0_i32_1 = arith.constant 0 : i32
    return %c0_i32, %c0_i32_0 : i32, i32
  }
  func.func @transform_14(%arg0: i32) -> (i32, i32) {
    %c0_i32 = arith.constant 0 : i32
    %c0_i32_0 = arith.constant 0 : i32
    %c0_i32_1 = arith.constant 0 : i32
    return %c0_i32, %c0_i32_0 : i32, i32
  }
  func.func @transform_15(%arg0: i32) -> (i32, i32) {
    %c0_i32 = arith.constant 0 : i32
    %c0_i32_0 = arith.constant 0 : i32
    %c0_i32_1 = arith.constant 0 : i32
    return %c0_i32, %c0_i32_0 : i32, i32
  }
  func.func @transform_16(%arg0: i32) -> (i32, i32, i32) {
    %c0_i32 = arith.constant 0 : i32
    %c0_i32_0 = arith.constant 0 : i32
    %c0_i32_1 = arith.constant 0 : i32
    return %arg0, %c0_i32, %c0_i32_0 : i32, i32, i32
  }
}

</mosaic_0001>

<llo_original>
// kernel: text_encoder_forward.5
$region0: #{text_encoder_forward.5}
  #allocation0 [shape = 'u32[]', space=smem, size = 0x4, offset = 0x4, fixed_abs, tag = 'smem constant byte address 0x4 - core index']
  #allocation1 [shape = 'u32[144,128]{1,0:T(1,128)}', space=vmem, size = 0x12000, scoped, tag = 'internal scratch']
  %s0 = inlined_call_operand.vmem [shape: f32[16,128], index: 0, kind: input, shape index: {}]
  %s1 = inlined_call_operand.vmem [shape: f32[1,128], index: 1, kind: input, shape index: {}]
  %s2 = inlined_call_operand.vmem [shape: f32[1,128], index: 2, kind: input, shape index: {}]
  %s3 = inlined_call_operand.vmem [shape: bf16[128,256], index: 3, kind: input, shape index: {}]
  %s4 = inlined_call_operand.hbm [shape: f32[16,256], index: 4, kind: output, shape index: {}]
  %s5 = sld [smem:[#allocation0]]
  $region90: #{text_encoder_forward.5} parent=0
    _
  %s7 = ssub.s32 1, %s5
  %s8 = scalar_select 0, %s7, %s5
  $region1: #{text_encoder_forward.5} parent=0
    #allocation2 [shape = 'u8[65536]{0}', space=vmem, size = 0x10000, scoped, tag = 'input window, operand 3']
    #allocation3 [shape = 'u8[16384]{0}', space=vmem, size = 0x4000, scoped, tag = 'output window, operand 0']
    #allocation4 [shape = 's32[2]{0}', space=sflag, size = 0x8, scoped, tag = 'scoped memory for text_encoder_forward.5']
    %9 = vsyncpa [#allocation4], 0
    %s10 = scalar_lea.sflag [#allocation4], 1
    %11 = vsyncpa %s10, 0
    loop: start=0, step=1, limit=4
    $region2: #{text_encoder_forward.5} parent=1 // loop_pre_header
      _
    $region3: #{text_encoder_forward.5} parent=1 // loop_header
      %s13 = sphi 0, %s17
      %p14 = scmp.ge.s32.totalorder %s13, 4
      %s21 = sphi 0, %s21
      %s23 = sphi 0, %s21
      %s24 = sphi 0, %s23
      %s38 = sphi 0, %s24
      %s42 = sphi 0, %s42
      %s44 = sphi 0, %s42
      %s45 = sphi 0, %s44
      %s59 = sphi 0, %s45
      %s63 = sphi 0, %s63
      %s65 = sphi 0, %s63
      %s66 = sphi 0, %s65
      %s80 = sphi 0, %s66
      %s86 = sphi 0, %s88
      %s89 = sphi 0, %s86
      %s90 = sphi 0, %s89
      %s106 = sphi 0, %s90
      %s112 = sphi 0, %s114
      %s115 = sphi 0, %s112
      %s116 = sphi 0, %s115
      %s132 = sphi 0, %s116
    $region4: #{text_encoder_forward.5} parent=1 // loop_header_branch
      %16 = sbr.rel (%p14) target = $region8
    $region5: #{text_encoder_forward.5} parent=1 // loop_body
      %s18 = ssub.s32 %s13, 1
      %s19 = ssub.s32 %s13, 2
      %s20 = sadd.s32 %s13, 1
      %s22 = sadd.s32 %s21, 1
      %p25 = scmp.eq.s32.totalorder %s13, 1
      %p26 = scmp.ne.s32.totalorder %s21, %s23
      %p27 = scmp.eq.s32.totalorder %s13, 0
      %p28 = por %p26, %p27
      %p29 = scmp.ne.s32.totalorder %s21, %s23
      %p30 = scmp.eq.s32.totalorder %s18, 1
      %p31 = por %p29, %p30
      %p32 = scmp.ne.s32.totalorder %s23, %s24
      %p33 = scmp.eq.s32.totalorder %s18, 0
      %p34 = por %p32, %p33
      %p35 = scmp.ne.s32.totalorder %s23, %s24
      %p36 = scmp.eq.s32.totalorder %s19, 1
      %p37 = por %p35, %p36
      %p39 = scmp.ne.s32.totalorder %s24, %s38
      %p40 = scmp.eq.s32.totalorder %s19, 0
      %p41 = por %p39, %p40
      %s43 = sadd.s32 %s42, 1
      %p46 = scmp.eq.s32.totalorder %s13, 1
      %p47 = scmp.ne.s32.totalorder %s42, %s44
      %p48 = scmp.eq.s32.totalorder %s13, 0
      %p49 = por %p47, %p48
      %p50 = scmp.ne.s32.totalorder %s42, %s44
      %p51 = scmp.eq.s32.totalorder %s18, 1
      %p52 = por %p50, %p51
      %p53 = scmp.ne.s32.totalorder %s44, %s45
      %p54 = scmp.eq.s32.totalorder %s18, 0
      %p55 = por %p53, %p54
      %p56 = scmp.ne.s32.totalorder %s44, %s45
      %p57 = scmp.eq.s32.totalorder %s19, 1
      %p58 = por %p56, %p57
      %p60 = scmp.ne.s32.totalorder %s45, %s59
      %p61 = scmp.eq.s32.totalorder %s19, 0
      %p62 = por %p60, %p61
      %s64 = sadd.s32 %s63, 1
      %p67 = scmp.eq.s32.totalorder %s13, 1
      %p68 = scmp.ne.s32.totalorder %s63, %s65
      %p69 = scmp.eq.s32.totalorder %s13, 0
      %p70 = por %p68, %p69
      %p71 = scmp.ne.s32.totalorder %s63, %s65
      %p72 = scmp.eq.s32.totalorder %s18, 1
      %p73 = por %p71, %p72
      %p74 = scmp.ne.s32.totalorder %s65, %s66
      %p75 = scmp.eq.s32.totalorder %s18, 0
      %p76 = por %p74, %p75
      %p77 = scmp.ne.s32.totalorder %s65, %s66
      %p78 = scmp.eq.s32.totalorder %s19, 1
      %p79 = por %p77, %p78
      %p81 = scmp.ne.s32.totalorder %s66, %s80
      %p82 = scmp.eq.s32.totalorder %s19, 0
      %p83 = por %p81, %p82
      %s84 = ssub.s32 %s13, %s20
      %p85 = scmp.eq.s32.totalorder %s84, 0
      %s87 = sadd.s32 %s86, 1
      %s88 = scalar_select %p85, %s86, %s87
      %p91 = pneg %p85
      %p92 = scmp.eq.s32.totalorder %s13, 1
      %p93 = por %p91, %p92
      %p94 = scmp.ne.s32.totalorder %s86, %s89
      %p95 = scmp.eq.s32.totalorder %s13, 0
      %p96 = por %p94, %p95
      %p97 = scmp.ne.s32.totalorder %s86, %s89
      %p98 = scmp.eq.s32.totalorder %s18, 1
      %p99 = por %p97, %p98
      %p100 = scmp.ne.s32.totalorder %s89, %s90
      %p101 = scmp.eq.s32.totalorder %s18, 0
      %p102 = por %p100, %p101
      %p103 = scmp.ne.s32.totalorder %s89, %s90
      %p104 = scmp.eq.s32.totalorder %s19, 1
      %p105 = por %p103, %p104
      %p107 = scmp.ne.s32.totalorder %s90, %s106
      %p108 = scmp.eq.s32.totalorder %s19, 0
      %p109 = por %p107, %p108
      %s110 = ssub.s32 %s13, %s20
      %p111 = scmp.eq.s32.totalorder %s110, 0
      %s113 = sadd.s32 %s112, 1
      %s114 = scalar_select %p111, %s112, %s113
      %p117 = pneg %p111
      %p118 = scmp.eq.s32.totalorder %s13, 1
      %p119 = por %p117, %p118
      %p120 = scmp.ne.s32.totalorder %s112, %s115
      %p121 = scmp.eq.s32.totalorder %s13, 0
      %p122 = por %p120, %p121
      %p123 = scmp.ne.s32.totalorder %s112, %s115
      %p124 = scmp.eq.s32.totalorder %s18, 1
      %p125 = por %p123, %p124
      %p126 = scmp.ne.s32.totalorder %s115, %s116
      %p127 = scmp.eq.s32.totalorder %s18, 0
      %p128 = por %p126, %p127
      %p129 = scmp.ne.s32.totalorder %s115, %s116
      %p130 = scmp.eq.s32.totalorder %s19, 1
      %p131 = por %p129, %p130
      %p133 = scmp.ne.s32.totalorder %s116, %s132
      %p134 = scmp.eq.s32.totalorder %s19, 0
      %p135 = por %p133, %p134
      %p136 = scmp.le.s32.totalorder 1, %s13
      %p137 = scmp.lt.s32.totalorder %s13, 3
      %p138 = pnand %p136, %p137
      %p139 = pneg %p138
      // Predicated region
      $region9: #{text_encoder_forward.5} parent=5 // pred_check
        _
      $region10: #{text_encoder_forward.5} parent=5 // pred_check_branch
        %141 = sbr.rel (%p138) target = $region12
      $region11: #{text_encoder_forward.5} parent=5 // pred_region
        %s142 = ssub.s32 %s13, 1
        // Predicated region
        $region13: #{text_encoder_forward.5} parent=11 // pred_check
          %p143 = pneg %p34
        $region14: #{text_encoder_forward.5} parent=11 // pred_check_branch
          %145 = sbr.rel (%p143) target = $region16
        $region15: #{text_encoder_forward.5} parent=11 // pred_region
          _
        $region16: #{text_encoder_forward.5} parent=11 // pred_fallthru
          _
        // Predicated region
        $region17: #{text_encoder_forward.5} parent=11 // pred_check
          %p146 = pneg %p55
        $region18: #{text_encoder_forward.5} parent=11 // pred_check_branch
          %148 = sbr.rel (%p146) target = $region20
        $region19: #{text_encoder_forward.5} parent=11 // pred_region
          _
        $region20: #{text_encoder_forward.5} parent=11 // pred_fallthru
          _
        // Predicated region
        $region21: #{text_encoder_forward.5} parent=11 // pred_check
          %p149 = pneg %p76
        $region22: #{text_encoder_forward.5} parent=11 // pred_check_branch
          %151 = sbr.rel (%p149) target = $region24
        $region23: #{text_encoder_forward.5} parent=11 // pred_region
          _
        $region24: #{text_encoder_forward.5} parent=11 // pred_fallthru
          _
      $region12: #{text_encoder_forward.5} parent=5 // pred_fallthru
        _
      %p152 = scmp.lt.s32.totalorder %s13, 2
      // Predicated region
      $region25: #{text_encoder_forward.5} parent=5 // pred_check
        %p153 = pneg %p152
      $region26: #{text_encoder_forward.5} parent=5 // pred_check_branch
        %155 = sbr.rel (%p153) target = $region28
      $region27: #{text_encoder_forward.5} parent=5 // pred_region
        // Predicated region
        $region29: #{text_encoder_forward.5} parent=27 // pred_check
          %p156 = pneg %p96
        $region30: #{text_encoder_forward.5} parent=27 // pred_check_branch
          %158 = sbr.rel (%p156) target = $region32
        $region31: #{text_encoder_forward.5} parent=27 // pred_region
          %s159 = sand.u32 %s86, 1
          %s160 = sand.u32 %s86, 1
          %s161 = smul.addr %s160, 64
          %s162 = scalar_lea.vmem [#allocation2], %s161
          %s163 = smul.addr %s13, 4
          %s164 = scalar_lea.vmem %s3, %s163
          // Predicated region
          $region33: #{text_encoder_forward.5} parent=31 // pred_check
            _
          $region34: #{text_encoder_forward.5} parent=31 // pred_check_branch
            %166 = sbr.rel (0) target = $region36
          $region35: #{text_encoder_forward.5} parent=31 // pred_region
            // Predicated region
            $region37: #{text_encoder_forward.5} parent=35 // pred_check
              _
            $region38: #{text_encoder_forward.5} parent=35 // pred_check_branch
              %168 = sbr.rel target = $region40
            $region39: #{text_encoder_forward.5} parent=35 // pred_region
              // Predicated region
              $region52: #{text_encoder_forward.5} parent=39 // pred_check
                _
              $region53: #{text_encoder_forward.5} parent=39 // pred_check_branch
                %213 = sbr.rel (0) target = $region55
              $region54: #{text_encoder_forward.5} parent=39 // pred_region
                loop: start=0, step=1, limit=1
                $region56: #{text_encoder_forward.5} parent=54 // loop_pre_header
                  _
                $region57: #{text_encoder_forward.5} parent=54 // loop_header
                  %s215 = sphi 0, %s219
                  %p216 = scmp.ge.s32.totalorder %s215, 1
                  %s220 = sphi %s164, %s164
                  %s221 = sphi %s162, %s162
                $region58: #{text_encoder_forward.5} parent=54 // loop_header_branch
                  %218 = sbr.rel (%p216) target = $region62
                $region59: #{text_encoder_forward.5} parent=54 // loop_body
                  _
                $region60: #{text_encoder_forward.5} parent=54 // loop_footer
                  %s219 = sadd.s32 1, %s215
                $region61: #{text_encoder_forward.5} parent=54 // loop_footer_branch
                  %214 = sbr.rel target = $region57
                $region62: #{text_encoder_forward.5} parent=54 // loop_exit
                  _
                loop: start=0, step=1, limit=1
                $region63: #{text_encoder_forward.5} parent=54 // loop_pre_header
                  _
                $region64: #{text_encoder_forward.5} parent=54 // loop_header
                  %s224 = sphi 0, %s228
                  %p225 = scmp.ge.s32.totalorder %s224, 1
                  %s229 = sphi %s164, %s164
                  %s230 = sphi %s162, %s162
                $region65: #{text_encoder_forward.5} parent=54 // loop_header_branch
                  %227 = sbr.rel (%p225) target = $region69
                $region66: #{text_encoder_forward.5} parent=54 // loop_body
                  %v231 = vld [vmem:[%s229] sm:$0xf]
                  %232 = vst [vmem:[%s230] sm:$0xf] %v231
                  %v233 = vld [vmem:[%s229 + $0x8] sm:$0xf]
                  %234 = vst [vmem:[%s230 + $0x4] sm:$0xf] %v233
                  %v235 = vld [vmem:[%s229 + $0x10] sm:$0xf]
                  %236 = vst [vmem:[%s230 + $0x8] sm:$0xf] %v235
                  %v237 = vld [vmem:[%s229 + $0x18] sm:$0xf]
                  %238 = vst [vmem:[%s230 + $0xc] sm:$0xf] %v237
                  %v239 = vld [vmem:[%s229 + $0x20] sm:$0xf]
                  %240 = vst [vmem:[%s230 + $0x10] sm:$0xf] %v239
                  %v241 = vld [vmem:[%s229 + $0x28] sm:$0xf]
                  %242 = vst [vmem:[%s230 + $0x14] sm:$0xf] %v241
                  %v243 = vld [vmem:[%s229 + $0x30] sm:$0xf]
                  %244 = vst [vmem:[%s230 + $0x18] sm:$0xf] %v243
                  %v245 = vld [vmem:[%s229 + $0x38] sm:$0xf]
                  %246 = vst [vmem:[%s230 + $0x1c] sm:$0xf] %v245
                  %v247 = vld [vmem:[%s229 + $0x40] sm:$0xf]
                  %248 = vst [vmem:[%s230 + $0x20] sm:$0xf] %v247
                  %v249 = vld [vmem:[%s229 + $0x48] sm:$0xf]
                  %250 = vst [vmem:[%s230 + $0x24] sm:$0xf] %v249
                  %v251 = vld [vmem:[%s229 + $0x50] sm:$0xf]
                  %252 = vst [vmem:[%s230 + $0x28] sm:$0xf] %v251
                  %v253 = vld [vmem:[%s229 + $0x58] sm:$0xf]
                  %254 = vst [vmem:[%s230 + $0x2c] sm:$0xf] %v253
                  %v255 = vld [vmem:[%s229 + $0x60] sm:$0xf]
                  %256 = vst [vmem:[%s230 + $0x30] sm:$0xf] %v255
                  %v257 = vld [vmem:[%s229 + $0x68] sm:$0xf]
                  %258 = vst [vmem:[%s230 + $0x34] sm:$0xf] %v257
                  %v259 = vld [vmem:[%s229 + $0x70] sm:$0xf]
                  %260 = vst [vmem:[%s230 + $0x38] sm:$0xf] %v259
                  %v261 = vld [vmem:[%s229 + $0x78] sm:$0xf]
                  %262 = vst [vmem:[%s230 + $0x3c] sm:$0xf] %v261
                $region67: #{text_encoder_forward.5} parent=54 // loop_footer
                  %s228 = sadd.s32 1, %s224
                $region68: #{text_encoder_forward.5} parent=54 // loop_footer_branch
                  %223 = sbr.rel target = $region64
                $region69: #{text_encoder_forward.5} parent=54 // loop_exit
                  _
              $region55: #{text_encoder_forward.5} parent=39 // pred_fallthru
                _
            $region40: #{text_encoder_forward.5} parent=35 // pred_fallthru
              _
            // Predicated region
            $region41: #{text_encoder_forward.5} parent=35 // pred_check
              _
            $region42: #{text_encoder_forward.5} parent=35 // pred_check_branch
              %170 = sbr.rel (0) target = $region44
            $region43: #{text_encoder_forward.5} parent=35 // pred_region
              loop: start=0, step=1, limit=1
              $region45: #{text_encoder_forward.5} parent=43 // loop_pre_header
                _
              $region46: #{text_encoder_forward.5} parent=43 // loop_header
                %s173 = sphi 0, %s177
                %p174 = scmp.ge.s32.totalorder %s173, 1
                %s178 = sphi %s164, %s164
                %s179 = sphi %s162, %s162
              $region47: #{text_encoder_forward.5} parent=43 // loop_header_branch
                %176 = sbr.rel (%p174) target = $region51
              $region48: #{text_encoder_forward.5} parent=43 // loop_body
                %v180 = vld [vmem:[%s178] sm:$0xf]
                %181 = vst [vmem:[%s179] sm:$0xf] %v180
                %v182 = vld [vmem:[%s178 + $0x8] sm:$0xf]
                %183 = vst [vmem:[%s179 + $0x4] sm:$0xf] %v182
                %v184 = vld [vmem:[%s178 + $0x10] sm:$0xf]
                %185 = vst [vmem:[%s179 + $0x8] sm:$0xf] %v184
                %v186 = vld [vmem:[%s178 + $0x18] sm:$0xf]
                %187 = vst [vmem:[%s179 + $0xc] sm:$0xf] %v186
                %v188 = vld [vmem:[%s178 + $0x20] sm:$0xf]
                %189 = vst [vmem:[%s179 + $0x10] sm:$0xf] %v188
                %v190 = vld [vmem:[%s178 + $0x28] sm:$0xf]
                %191 = vst [vmem:[%s179 + $0x14] sm:$0xf] %v190
                %v192 = vld [vmem:[%s178 + $0x30] sm:$0xf]
                %193 = vst [vmem:[%s179 + $0x18] sm:$0xf] %v192
                %v194 = vld [vmem:[%s178 + $0x38] sm:$0xf]
                %195 = vst [vmem:[%s179 + $0x1c] sm:$0xf] %v194
                %v196 = vld [vmem:[%s178 + $0x40] sm:$0xf]
                %197 = vst [vmem:[%s179 + $0x20] sm:$0xf] %v196
                %v198 = vld [vmem:[%s178 + $0x48] sm:$0xf]
                %199 = vst [vmem:[%s179 + $0x24] sm:$0xf] %v198
                %v200 = vld [vmem:[%s178 + $0x50] sm:$0xf]
                %201 = vst [vmem:[%s179 + $0x28] sm:$0xf] %v200
                %v202 = vld [vmem:[%s178 + $0x58] sm:$0xf]
                %203 = vst [vmem:[%s179 + $0x2c] sm:$0xf] %v202
                %v204 = vld [vmem:[%s178 + $0x60] sm:$0xf]
                %205 = vst [vmem:[%s179 + $0x30] sm:$0xf] %v204
                %v206 = vld [vmem:[%s178 + $0x68] sm:$0xf]
                %207 = vst [vmem:[%s179 + $0x34] sm:$0xf] %v206
                %v208 = vld [vmem:[%s178 + $0x70] sm:$0xf]
                %209 = vst [vmem:[%s179 + $0x38] sm:$0xf] %v208
                %v210 = vld [vmem:[%s178 + $0x78] sm:$0xf]
                %211 = vst [vmem:[%s179 + $0x3c] sm:$0xf] %v210
              $region49: #{text_encoder_forward.5} parent=43 // loop_footer
                %s177 = sadd.s32 1, %s173
              $region50: #{text_encoder_forward.5} parent=43 // loop_footer_branch
                %172 = sbr.rel target = $region46
              $region51: #{text_encoder_forward.5} parent=43 // loop_exit
                _
            $region44: #{text_encoder_forward.5} parent=35 // pred_fallthru
              _
          $region36: #{text_encoder_forward.5} parent=31 // pred_fallthru
            _
          %263 = vnop
        $region32: #{text_encoder_forward.5} parent=27 // pred_fallthru
          _
      $region28: #{text_encoder_forward.5} parent=5 // pred_fallthru
        _
      %p264 = scmp.le.s32.totalorder 1, %s13
      %p265 = scmp.lt.s32.totalorder %s13, 3
      %p266 = pnand %p264, %p265
      %p267 = pneg %p266
      // Predicated region
      $region70: #{text_encoder_forward.5} parent=5 // pred_check
        _
      $region71: #{text_encoder_forward.5} parent=5 // pred_check_branch
        %269 = sbr.rel (%p266) target = $region73
      $region72: #{text_encoder_forward.5} parent=5 // pred_region
        %s270 = ssub.s32 %s13, 1
        %s271 = sand.u32 %s89, 1
        %s272 = sand.u32 %s89, 1
        %s273 = smul.addr %s272, 64
        %s274 = scalar_lea.vmem [#allocation2], %s273
        // Predicated region
        $region74: #{text_encoder_forward.5} parent=72 // pred_check
          %p275 = pneg %p102
        $region75: #{text_encoder_forward.5} parent=72 // pred_check_branch
          %277 = sbr.rel (%p275) target = $region77
        $region76: #{text_encoder_forward.5} parent=72 // pred_region
          _
        $region77: #{text_encoder_forward.5} parent=72 // pred_fallthru
          _
        %p278 = pneg %p34
        %p279 = pneg %p31
        %p280 = pneg %p55
        %p281 = pneg %p52
        %p282 = pneg %p76
        %p283 = pneg %p73
        %s284 = sand.u32 %s89, 1
        %s285 = sand.u32 %s89, 1
        %s286 = smul.addr %s285, 64
        %s287 = scalar_lea.vmem [#allocation2], %s286
        %p288 = pneg %p102
        %p289 = pneg %p99
        %p290 = pneg %p128
        %p291 = pneg %p125
        %s292 = sand.u32 %s115, 1
        %s293 = scalar_lea.sflag [#allocation4], %s292
        %s294 = sand.u32 %s115, 1
        %s295 = smul.addr %s294, 16
        %s296 = scalar_lea.vmem [#allocation3], %s295
        %v298 = vld [vmem:[%s0] sm:$0xff]
        %v299 = vld [vmem:[%s0 + $0x8] sm:$0xff]
        %v300 = vld [vmem:[%s1] sm:$0x1]
        %v301 = vld [vmem:[%s2] sm:$0x1]
        %302 = vadd.xlane.f32.xlu0 %v298
        %v303 = vpop.xlane.xlu0 %302
        %304 = vadd.xlane.f32.xlu0 %v299
        %v305 = vpop.xlane.xlu0 %304
        %v306 = vrcp.pop 128.0
        %v307 = vmul.f32 %v303, %v306
        %v308 = vmul.f32 %v305, %v306
        %v309 = vsub.f32 %v298, %v307
        %v310 = vsub.f32 %v299, %v308
        %v311 = vmul.f32 %v309, %v309
        %v312 = vmul.f32 %v310, %v310
        %313 = vadd.xlane.f32.xlu0 %v311
        %v314 = vpop.xlane.xlu0 %313
        %315 = vadd.xlane.f32.xlu0 %v312
        %v316 = vpop.xlane.xlu0 %315
        %v317 = vmul.f32 %v314, %v306
        %v318 = vmul.f32 %v316, %v306
        %v319 = vadd.f32 %v317, 1e-05
        %v320 = vadd.f32 %v318, 1e-05
        %v321 = vrsqrt.pop %v319
        %v322 = vrsqrt.pop %v320
        %v323 = vmul.f32 %v309, %v321
        %v324 = vmul.f32 %v310, %v322
        %v326 = vlaneseq
        %v327 = vshrl.u32 %v326, 7
        %v328 = vsub.s32 0, %v327
        %v329 = vrot.slane %v300, %v328
        %v331 = vmul.f32 %v323, %v329
        %v332 = vmul.f32 %v324, %v329
        %v334 = vlaneseq
        %v335 = vshrl.u32 %v334, 7
        %v336 = vsub.s32 0, %v335
        %v337 = vrot.slane %v301, %v336
        %v339 = vadd.f32 %v331, %v337
        %v340 = vadd.f32 %v332, %v337
        %v341 = vpack.c.bf16 %v340, %v339
        %v342 = vld [vmem:[%s274] sm:$0xf]
        %v343 = vld [vmem:[%s274 + $0x4] sm:$0xf]
        %v344 = vld [vmem:[%s274 + $0x8] sm:$0xf]
        %v345 = vld [vmem:[%s274 + $0xc] sm:$0xf]
        %v346 = vld [vmem:[%s274 + $0x10] sm:$0xf]
        %v347 = vld [vmem:[%s274 + $0x14] sm:$0xf]
        %v348 = vld [vmem:[%s274 + $0x18] sm:$0xf]
        %v349 = vld [vmem:[%s274 + $0x1c] sm:$0xf]
        %v350 = vld [vmem:[%s274 + $0x20] sm:$0xf]
        %v351 = vld [vmem:[%s274 + $0x24] sm:$0xf]
        %v352 = vld [vmem:[%s274 + $0x28] sm:$0xf]
        %v353 = vld [vmem:[%s274 + $0x2c] sm:$0xf]
        %v354 = vld [vmem:[%s274 + $0x30] sm:$0xf]
        %v355 = vld [vmem:[%s274 + $0x34] sm:$0xf]
        %v356 = vld [vmem:[%s274 + $0x38] sm:$0xf]
        %v357 = vld [vmem:[%s274 + $0x3c] sm:$0xf]
        %v374 = vunpack.c.l.b16 %v342
        %v375 = vunpack.c.l.b16 %v343
        %v376 = vunpack.c.l.b16 %v344
        %v377 = vunpack.c.l.b16 %v345
        %v378 = vunpack.c.l.b16 %v346
        %v379 = vunpack.c.l.b16 %v347
        %v380 = vunpack.c.l.b16 %v348
        %v381 = vunpack.c.l.b16 %v349
        %v382 = vunpack.c.l.b16 %v350
        %v383 = vunpack.c.l.b16 %v351
        %v384 = vunpack.c.l.b16 %v352
        %v385 = vunpack.c.l.b16 %v353
        %v386 = vunpack.c.l.b16 %v354
        %v387 = vunpack.c.l.b16 %v355
        %v388 = vunpack.c.l.b16 %v356
        %v389 = vunpack.c.l.b16 %v357
        %v390 = vpack.c.b16 %v375, %v374
        %v391 = vpack.c.b16 %v377, %v376
        %v392 = vpack.c.b16 %v379, %v378
        %v393 = vpack.c.b16 %v381, %v380
        %v394 = vpack.c.b16 %v383, %v382
        %v395 = vpack.c.b16 %v385, %v384
        %v396 = vpack.c.b16 %v387, %v386
        %v397 = vpack.c.b16 %v389, %v388
        %406 = vmatprep.subr.bf16.mxu0 0
        %407 = vmatpush1.bf16.msra.mxu0 %v390
        %408 = vmatprep.subr.bf16.mxu0 0
        %409 = vmatpush1.bf16.msra.mxu0 %v391
        %410 = vmatprep.subr.bf16.mxu0 0
        %411 = vmatpush1.bf16.msra.mxu0 %v392
        %412 = vmatprep.subr.bf16.mxu0 0
        %413 = vmatpush1.bf16.msra.mxu0 %v393
        %414 = vmatprep.subr.bf16.mxu0 0
        %415 = vmatpush1.bf16.msra.mxu0 %v394
        %416 = vmatprep.subr.bf16.mxu0 0
        %417 = vmatpush1.bf16.msra.mxu0 %v395
        %418 = vmatprep.subr.bf16.mxu0 0
        %419 = vmatpush1.bf16.msra.mxu0 %v396
        %420 = vmatprep.subr.bf16.mxu0 0
        %421 = vmatpush1.bf16.msra.mxu0 %v397
        %422 = vmatprep.subr.bf16.mxu0 0
        %423 = vmatpush1.bf16.msra.mxu0 0
        %424 = vmatprep.subr.bf16.mxu0 0
        %425 = vmatpush1.bf16.msra.mxu0 0
        %426 = vmatprep.subr.bf16.mxu0 0
        %427 = vmatpush1.bf16.msra.mxu0 0
        %428 = vmatprep.subr.bf16.mxu0 0
        %429 = vmatpush1.bf16.msra.mxu0 0
        %430 = vmatprep.subr.bf16.mxu0 0
        %431 = vmatpush1.bf16.msra.mxu0 0
        %432 = vmatprep.subr.bf16.mxu0 0
        %433 = vmatpush1.bf16.msra.mxu0 0
        %434 = vmatprep.subr.bf16.mxu0 0
        %435 = vmatpush1.bf16.msra.mxu0 0
        %436 = vmatprep.subr.bf16.mxu0 0
        %437 = vmatpush1.bf16.msra.mxu0 0
        %438 = vmatprep.mubr.bf16.mxu0 0
        %439 = vmatmul.mubr.bf16.gmra.mrb[0].mxu0 %v341
        %v440 = vpop.f32.mrb[0].mxu0
        %v441 = vadd.f32 0.0, %v440
        %v442 = vpop.f32.mrb[0].mxu0
        %v443 = vpop.f32.mrb[0].mxu0
        %v444 = vadd.f32 0.0, %v443
        %v445 = vpop.f32.mrb[0].mxu0
        %446 = vdwg.mxu0
        %447 = vst [vmem:[%s296] sm:$0xff] %v441
        %448 = vst [vmem:[%s296 + $0x8] sm:$0xff] %v444
        %s449 = sand.u32 %s115, 1
        %s450 = scalar_lea.sflag [#allocation4], %s449
        %s451 = sand.u32 %s115, 1
        %s452 = smul.addr %s451, 16
        %s453 = scalar_lea.vmem [#allocation3], %s452
        // Predicated region
        $region78: #{text_encoder_forward.5} parent=72 // pred_check
          %p454 = pneg %p125
        $region79: #{text_encoder_forward.5} parent=72 // pred_check_branch
          %456 = sbr.rel (%p454) target = $region81
        $region80: #{text_encoder_forward.5} parent=72 // pred_region
          %s458 = ssub.s32 256, 256
          %459 = vsyncadd %s450, %s458
          %s460 = smul.addr %s18, 128
          %s461 = scalar_lea.hbm %s4, %s460
          %s462 = sshll.u32 %s453, 4
          %s463 = int_to_ptr.vmem [resolvable:$true] %s462
          %468 = dma.vmem_to_hbm [thread:$0]  %s463, 256, %s461, %s450, 128, 256, 8
        $region81: #{text_encoder_forward.5} parent=72 // pred_fallthru
          _
      $region73: #{text_encoder_forward.5} parent=5 // pred_fallthru
        _
      %p469 = scmp.le.s32.totalorder 2, %s13
      // Predicated region
      $region82: #{text_encoder_forward.5} parent=5 // pred_check
        %p470 = pneg %p469
      $region83: #{text_encoder_forward.5} parent=5 // pred_check_branch
        %472 = sbr.rel (%p470) target = $region85
      $region84: #{text_encoder_forward.5} parent=5 // pred_region
        %s473 = ssub.s32 %s13, 2
        // Predicated region
        $region86: #{text_encoder_forward.5} parent=84 // pred_check
          %p474 = pneg %p131
        $region87: #{text_encoder_forward.5} parent=84 // pred_check_branch
          %476 = sbr.rel (%p474) target = $region89
        $region88: #{text_encoder_forward.5} parent=84 // pred_region
          %s477 = sand.u32 %s116, 1
          %s478 = scalar_lea.sflag [#allocation4], %s477
          %s479 = sand.u32 %s116, 1
          %s480 = smul.addr %s479, 16
          %s481 = scalar_lea.vmem [#allocation3], %s480
          %482 = dma.done %s478, 256
        $region89: #{text_encoder_forward.5} parent=84 // pred_fallthru
          _
      $region85: #{text_encoder_forward.5} parent=5 // pred_fallthru
        _
    $region6: #{text_encoder_forward.5} parent=1 // loop_footer
      %s17 = sadd.s32 1, %s13
    $region7: #{text_encoder_forward.5} parent=1 // loop_footer_branch
      %12 = sbr.rel target = $region3
    $region8: #{text_encoder_forward.5} parent=1 // loop_exit
      _
    %483 = vsyncpa [#allocation4], 1
    %s484 = scalar_lea.sflag [#allocation4], 1
    %485 = vsyncpa %s484, 1

// kernel: text_encoder_forward.4
$region0: #{text_encoder_forward.4}
  #allocation0 [shape = 'u32[]', space=smem, size = 0x4, offset = 0x4, fixed_abs, tag = 'smem constant byte address 0x4 - core index']
  #allocation1 [shape = 'u32[144,128]{1,0:T(1,128)}', space=vmem, size = 0x12000, scoped, tag = 'internal scratch']
  %s0 = inlined_call_operand.vmem [shape: f32[2,8,128], index: 0, kind: input, shape index: {}]
  %s1 = inlined_call_operand.vmem [shape: f32[2,1,8], index: 1, kind: input, shape index: {}]
  %s2 = inlined_call_operand.vmem [shape: f32[8,8], index: 2, kind: input, shape index: {}]
  %s3 = inlined_call_operand.vmem [shape: f32[8,8], index: 3, kind: input, shape index: {}]
  %s4 = inlined_call_operand.vmem [shape: f32[1,128], index: 4, kind: input, shape index: {}]
  %s5 = inlined_call_operand.vmem [shape: f32[1,128], index: 5, kind: input, shape index: {}]
  %s6 = inlined_call_operand.vmem [shape: bf16[128,384], index: 6, kind: input, shape index: {}]
  %s7 = inlined_call_operand.vmem [shape: f32[1,384], index: 7, kind: input, shape index: {}]
  %s8 = inlined_call_operand.vmem [shape: bf16[128,128], index: 8, kind: input, shape index: {}]
  %s9 = inlined_call_operand.vmem [shape: f32[1,128], index: 9, kind: input, shape index: {}]
  %s10 = inlined_call_operand.vmem [shape: f32[1,128], index: 10, kind: input, shape index: {}]
  %s11 = inlined_call_operand.vmem [shape: f32[1,128], index: 11, kind: input, shape index: {}]
  %s12 = inlined_call_operand.vmem [shape: bf16[128,512], index: 12, kind: input, shape index: {}]
  %s13 = inlined_call_operand.vmem [shape: f32[1,512], index: 13, kind: input, shape index: {}]
  %s14 = inlined_call_operand.vmem [shape: bf16[512,128], index: 14, kind: input, shape index: {}]
  %s15 = inlined_call_operand.vmem [shape: f32[1,128], index: 15, kind: input, shape index: {}]
  %s16 = inlined_call_operand.vmem [shape: f32[2,8,128], index: 16, kind: output, shape index: {}]
  %s17 = sld [smem:[#allocation0]]
  $region97: #{text_encoder_forward.4} parent=0
    _
  %s19 = ssub.s32 1, %s17
  %s20 = scalar_select 0, %s19, %s17
  loop: start=0, step=1, limit=4
  $region2: #{text_encoder_forward.4} parent=0 // loop_pre_header
    _
  $region3: #{text_encoder_forward.4} parent=0 // loop_header
    %s22 = sphi 0, %s26
    %p23 = scmp.ge.s32.totalorder %s22, 4
    %s32 = sphi 0, %s34
    %s35 = sphi 0, %s32
    %s36 = sphi 0, %s35
    %s52 = sphi 0, %s36
    %s58 = sphi 0, %s60
    %s61 = sphi 0, %s58
    %s62 = sphi 0, %s61
    %s78 = sphi 0, %s62
    %s82 = sphi 0, %s82
    %s84 = sphi 0, %s82
    %s85 = sphi 0, %s84
    %s99 = sphi 0, %s85
    %s103 = sphi 0, %s103
    %s105 = sphi 0, %s103
    %s106 = sphi 0, %s105
    %s120 = sphi 0, %s106
    %s124 = sphi 0, %s124
    %s126 = sphi 0, %s124
    %s127 = sphi 0, %s126
    %s141 = sphi 0, %s127
    %s145 = sphi 0, %s145
    %s147 = sphi 0, %s145
    %s148 = sphi 0, %s147
    %s162 = sphi 0, %s148
    %s166 = sphi 0, %s166
    %s168 = sphi 0, %s166
    %s169 = sphi 0, %s168
    %s183 = sphi 0, %s169
    %s187 = sphi 0, %s187
    %s189 = sphi 0, %s187
    %s190 = sphi 0, %s189
    %s204 = sphi 0, %s190
    %s208 = sphi 0, %s208
    %s210 = sphi 0, %s208
    %s211 = sphi 0, %s210
    %s225 = sphi 0, %s211
    %s229 = sphi 0, %s229
    %s231 = sphi 0, %s229
    %s232 = sphi 0, %s231
    %s246 = sphi 0, %s232
    %s250 = sphi 0, %s250
    %s252 = sphi 0, %s250
    %s253 = sphi 0, %s252
    %s267 = sphi 0, %s253
    %s271 = sphi 0, %s271
    %s273 = sphi 0, %s271
    %s274 = sphi 0, %s273
    %s288 = sphi 0, %s274
    %s292 = sphi 0, %s292
    %s294 = sphi 0, %s292
    %s295 = sphi 0, %s294
    %s309 = sphi 0, %s295
    %s313 = sphi 0, %s313
    %s315 = sphi 0, %s313
    %s316 = sphi 0, %s315
    %s330 = sphi 0, %s316
    %s334 = sphi 0, %s334
    %s336 = sphi 0, %s334
    %s337 = sphi 0, %s336
    %s351 = sphi 0, %s337
    %s355 = sphi 0, %s355
    %s357 = sphi 0, %s355
    %s358 = sphi 0, %s357
    %s372 = sphi 0, %s358
    %s378 = sphi 0, %s380
    %s381 = sphi 0, %s378
    %s382 = sphi 0, %s381
    %s398 = sphi 0, %s382
  $region4: #{text_encoder_forward.4} parent=0 // loop_header_branch
    %25 = sbr.rel (%p23) target = $region8
  $region5: #{text_encoder_forward.4} parent=0 // loop_body
    %s27 = ssub.s32 %s22, 1
    %s28 = ssub.s32 %s22, 2
    %s29 = sadd.s32 %s22, 1
    %s30 = ssub.s32 %s22, %s29
    %p31 = scmp.eq.s32.totalorder %s30, 0
    %s33 = sadd.s32 %s32, 1
    %s34 = scalar_select %p31, %s32, %s33
    %p37 = pneg %p31
    %p38 = scmp.eq.s32.totalorder %s22, 1
    %p39 = por %p37, %p38
    %p40 = scmp.ne.s32.totalorder %s32, %s35
    %p41 = scmp.eq.s32.totalorder %s22, 0
    %p42 = por %p40, %p41
    %p43 = scmp.ne.s32.totalorder %s32, %s35
    %p44 = scmp.eq.s32.totalorder %s27, 1
    %p45 = por %p43, %p44
    %p46 = scmp.ne.s32.totalorder %s35, %s36
    %p47 = scmp.eq.s32.totalorder %s27, 0
    %p48 = por %p46, %p47
    %p49 = scmp.ne.s32.totalorder %s35, %s36
    %p50 = scmp.eq.s32.totalorder %s28, 1
    %p51 = por %p49, %p50
    %p53 = scmp.ne.s32.totalorder %s36, %s52
    %p54 = scmp.eq.s32.totalorder %s28, 0
    %p55 = por %p53, %p54
    %s56 = ssub.s32 %s22, %s29
    %p57 = scmp.eq.s32.totalorder %s56, 0
    %s59 = sadd.s32 %s58, 1
    %s60 = scalar_select %p57, %s58, %s59
    %p63 = pneg %p57
    %p64 = scmp.eq.s32.totalorder %s22, 1
    %p65 = por %p63, %p64
    %p66 = scmp.ne.s32.totalorder %s58, %s61
    %p67 = scmp.eq.s32.totalorder %s22, 0
    %p68 = por %p66, %p67
    %p69 = scmp.ne.s32.totalorder %s58, %s61
    %p70 = scmp.eq.s32.totalorder %s27, 1
    %p71 = por %p69, %p70
    %p72 = scmp.ne.s32.totalorder %s61, %s62
    %p73 = scmp.eq.s32.totalorder %s27, 0
    %p74 = por %p72, %p73
    %p75 = scmp.ne.s32.totalorder %s61, %s62
    %p76 = scmp.eq.s32.totalorder %s28, 1
    %p77 = por %p75, %p76
    %p79 = scmp.ne.s32.totalorder %s62, %s78
    %p80 = scmp.eq.s32.totalorder %s28, 0
    %p81 = por %p79, %p80
    %s83 = sadd.s32 %s82, 1
    %p86 = scmp.eq.s32.totalorder %s22, 1
    %p87 = scmp.ne.s32.totalorder %s82, %s84
    %p88 = scmp.eq.s32.totalorder %s22, 0
    %p89 = por %p87, %p88
    %p90 = scmp.ne.s32.totalorder %s82, %s84
    %p91 = scmp.eq.s32.totalorder %s27, 1
    %p92 = por %p90, %p91
    %p93 = scmp.ne.s32.totalorder %s84, %s85
    %p94 = scmp.eq.s32.totalorder %s27, 0
    %p95 = por %p93, %p94
    %p96 = scmp.ne.s32.totalorder %s84, %s85
    %p97 = scmp.eq.s32.totalorder %s28, 1
    %p98 = por %p96, %p97
    %p100 = scmp.ne.s32.totalorder %s85, %s99
    %p101 = scmp.eq.s32.totalorder %s28, 0
    %p102 = por %p100, %p101
    %s104 = sadd.s32 %s103, 1
    %p107 = scmp.eq.s32.totalorder %s22, 1
    %p108 = scmp.ne.s32.totalorder %s103, %s105
    %p109 = scmp.eq.s32.totalorder %s22, 0
    %p110 = por %p108, %p109
    %p111 = scmp.ne.s32.totalorder %s103, %s105
    %p112 = scmp.eq.s32.totalorder %s27, 1
    %p113 = por %p111, %p112
    %p114 = scmp.ne.s32.totalorder %s105, %s106
    %p115 = scmp.eq.s32.totalorder %s27, 0
    %p116 = por %p114, %p115
    %p117 = scmp.ne.s32.totalorder %s105, %s106
    %p118 = scmp.eq.s32.totalorder %s28, 1
    %p119 = por %p117, %p118
    %p121 = scmp.ne.s32.totalorder %s106, %s120
    %p122 = scmp.eq.s32.totalorder %s28, 0
    %p123 = por %p121, %p122
    %s125 = sadd.s32 %s124, 1
    %p128 = scmp.eq.s32.totalorder %s22, 1
    %p129 = scmp.ne.s32.totalorder %s124, %s126
    %p130 = scmp.eq.s32.totalorder %s22, 0
    %p131 = por %p129, %p130
    %p132 = scmp.ne.s32.totalorder %s124, %s126
    %p133 = scmp.eq.s32.totalorder %s27, 1
    %p134 = por %p132, %p133
    %p135 = scmp.ne.s32.totalorder %s126, %s127
    %p136 = scmp.eq.s32.totalorder %s27, 0
    %p137 = por %p135, %p136
    %p138 = scmp.ne.s32.totalorder %s126, %s127
    %p139 = scmp.eq.s32.totalorder %s28, 1
    %p140 = por %p138, %p139
    %p142 = scmp.ne.s32.totalorder %s127, %s141
    %p143 = scmp.eq.s32.totalorder %s28, 0
    %p144 = por %p142, %p143
    %s146 = sadd.s32 %s145, 1
    %p149 = scmp.eq.s32.totalorder %s22, 1
    %p150 = scmp.ne.s32.totalorder %s145, %s147
    %p151 = scmp.eq.s32.totalorder %s22, 0
    %p152 = por %p150, %p151
    %p153 = scmp.ne.s32.totalorder %s145, %s147
    %p154 = scmp.eq.s32.totalorder %s27, 1
    %p155 = por %p153, %p154
    %p156 = scmp.ne.s32.totalorder %s147, %s148
    %p157 = scmp.eq.s32.totalorder %s27, 0
    %p158 = por %p156, %p157
    %p159 = scmp.ne.s32.totalorder %s147, %s148
    %p160 = scmp.eq.s32.totalorder %s28, 1
    %p161 = por %p159, %p160
    %p163 = scmp.ne.s32.totalorder %s148, %s162
    %p164 = scmp.eq.s32.totalorder %s28, 0
    %p165 = por %p163, %p164
    %s167 = sadd.s32 %s166, 1
    %p170 = scmp.eq.s32.totalorder %s22, 1
    %p171 = scmp.ne.s32.totalorder %s166, %s168
    %p172 = scmp.eq.s32.totalorder %s22, 0
    %p173 = por %p171, %p172
    %p174 = scmp.ne.s32.totalorder %s166, %s168
    %p175 = scmp.eq.s32.totalorder %s27, 1
    %p176 = por %p174, %p175
    %p177 = scmp.ne.s32.totalorder %s168, %s169
    %p178 = scmp.eq.s32.totalorder %s27, 0
    %p179 = por %p177, %p178
    %p180 = scmp.ne.s32.totalorder %s168, %s169
    %p181 = scmp.eq.s32.totalorder %s28, 1
    %p182 = por %p180, %p181
    %p184 = scmp.ne.s32.totalorder %s169, %s183
    %p185 = scmp.eq.s32.totalorder %s28, 0
    %p186 = por %p184, %p185
    %s188 = sadd.s32 %s187, 1
    %p191 = scmp.eq.s32.totalorder %s22, 1
    %p192 = scmp.ne.s32.totalorder %s187, %s189
    %p193 = scmp.eq.s32.totalorder %s22, 0
    %p194 = por %p192, %p193
    %p195 = scmp.ne.s32.totalorder %s187, %s189
    %p196 = scmp.eq.s32.totalorder %s27, 1
    %p197 = por %p195, %p196
    %p198 = scmp.ne.s32.totalorder %s189, %s190
    %p199 = scmp.eq.s32.totalorder %s27, 0
    %p200 = por %p198, %p199
    %p201 = scmp.ne.s32.totalorder %s189, %s190
    %p202 = scmp.eq.s32.totalorder %s28, 1
    %p203 = por %p201, %p202
    %p205 = scmp.ne.s32.totalorder %s190, %s204
    %p206 = scmp.eq.s32.totalorder %s28, 0
    %p207 = por %p205, %p206
    %s209 = sadd.s32 %s208, 1
    %p212 = scmp.eq.s32.totalorder %s22, 1
    %p213 = scmp.ne.s32.totalorder %s208, %s210
    %p214 = scmp.eq.s32.totalorder %s22, 0
    %p215 = por %p213, %p214
    %p216 = scmp.ne.s32.totalorder %s208, %s210
    %p217 = scmp.eq.s32.totalorder %s27, 1
    %p218 = por %p216, %p217
    %p219 = scmp.ne.s32.totalorder %s210, %s211
    %p220 = scmp.eq.s32.totalorder %s27, 0
    %p221 = por %p219, %p220
    %p222 = scmp.ne.s32.totalorder %s210, %s211
    %p223 = scmp.eq.s32.totalorder %s28, 1
    %p224 = por %p222, %p223
    %p226 = scmp.ne.s32.totalorder %s211, %s225
    %p227 = scmp.eq.s32.totalorder %s28, 0
    %p228 = por %p226, %p227
    %s230 = sadd.s32 %s229, 1
    %p233 = scmp.eq.s32.totalorder %s22, 1
    %p234 = scmp.ne.s32.totalorder %s229, %s231
    %p235 = scmp.eq.s32.totalorder %s22, 0
    %p236 = por %p234, %p235
    %p237 = scmp.ne.s32.totalorder %s229, %s231
    %p238 = scmp.eq.s32.totalorder %s27, 1
    %p239 = por %p237, %p238
    %p240 = scmp.ne.s32.totalorder %s231, %s232
    %p241 = scmp.eq.s32.totalorder %s27, 0
    %p242 = por %p240, %p241
    %p243 = scmp.ne.s32.totalorder %s231, %s232
    %p244 = scmp.eq.s32.totalorder %s28, 1
    %p245 = por %p243, %p244
    %p247 = scmp.ne.s32.totalorder %s232, %s246
    %p248 = scmp.eq.s32.totalorder %s28, 0
    %p249 = por %p247, %p248
    %s251 = sadd.s32 %s250, 1
    %p254 = scmp.eq.s32.totalorder %s22, 1
    %p255 = scmp.ne.s32.totalorder %s250, %s252
    %p256 = scmp.eq.s32.totalorder %s22, 0
    %p257 = por %p255, %p256
    %p258 = scmp.ne.s32.totalorder %s250, %s252
    %p259 = scmp.eq.s32.totalorder %s27, 1
    %p260 = por %p258, %p259
    %p261 = scmp.ne.s32.totalorder %s252, %s253
    %p262 = scmp.eq.s32.totalorder %s27, 0
    %p263 = por %p261, %p262
    %p264 = scmp.ne.s32.totalorder %s252, %s253
    %p265 = scmp.eq.s32.totalorder %s28, 1
    %p266 = por %p264, %p265
    %p268 = scmp.ne.s32.totalorder %s253, %s267
    %p269 = scmp.eq.s32.totalorder %s28, 0
    %p270 = por %p268, %p269
    %s272 = sadd.s32 %s271, 1
    %p275 = scmp.eq.s32.totalorder %s22, 1
    %p276 = scmp.ne.s32.totalorder %s271, %s273
    %p277 = scmp.eq.s32.totalorder %s22, 0
    %p278 = por %p276, %p277
    %p279 = scmp.ne.s32.totalorder %s271, %s273
    %p280 = scmp.eq.s32.totalorder %s27, 1
    %p281 = por %p279, %p280
    %p282 = scmp.ne.s32.totalorder %s273, %s274
    %p283 = scmp.eq.s32.totalorder %s27, 0
    %p284 = por %p282, %p283
    %p285 = scmp.ne.s32.totalorder %s273, %s274
    %p286 = scmp.eq.s32.totalorder %s28, 1
    %p287 = por %p285, %p286
    %p289 = scmp.ne.s32.totalorder %s274, %s288
    %p290 = scmp.eq.s32.totalorder %s28, 0
    %p291 = por %p289, %p290
    %s293 = sadd.s32 %s292, 1
    %p296 = scmp.eq.s32.totalorder %s22, 1
    %p297 = scmp.ne.s32.totalorder %s292, %s294
    %p298 = scmp.eq.s32.totalorder %s22, 0
    %p299 = por %p297, %p298
    %p300 = scmp.ne.s32.totalorder %s292, %s294
    %p301 = scmp.eq.s32.totalorder %s27, 1
    %p302 = por %p300, %p301
    %p303 = scmp.ne.s32.totalorder %s294, %s295
    %p304 = scmp.eq.s32.totalorder %s27, 0
    %p305 = por %p303, %p304
    %p306 = scmp.ne.s32.totalorder %s294, %s295
    %p307 = scmp.eq.s32.totalorder %s28, 1
    %p308 = por %p306, %p307
    %p310 = scmp.ne.s32.totalorder %s295, %s309
    %p311 = scmp.eq.s32.totalorder %s28, 0
    %p312 = por %p310, %p311
    %s314 = sadd.s32 %s313, 1
    %p317 = scmp.eq.s32.totalorder %s22, 1
    %p318 = scmp.ne.s32.totalorder %s313, %s315
    %p319 = scmp.eq.s32.totalorder %s22, 0
    %p320 = por %p318, %p319
    %p321 = scmp.ne.s32.totalorder %s313, %s315
    %p322 = scmp.eq.s32.totalorder %s27, 1
    %p323 = por %p321, %p322
    %p324 = scmp.ne.s32.totalorder %s315, %s316
    %p325 = scmp.eq.s32.totalorder %s27, 0
    %p326 = por %p324, %p325
    %p327 = scmp.ne.s32.totalorder %s315, %s316
    %p328 = scmp.eq.s32.totalorder %s28, 1
    %p329 = por %p327, %p328
    %p331 = scmp.ne.s32.totalorder %s316, %s330
    %p332 = scmp.eq.s32.totalorder %s28, 0
    %p333 = por %p331, %p332
    %s335 = sadd.s32 %s334, 1
    %p338 = scmp.eq.s32.totalorder %s22, 1
    %p339 = scmp.ne.s32.totalorder %s334, %s336
    %p340 = scmp.eq.s32.totalorder %s22, 0
    %p341 = por %p339, %p340
    %p342 = scmp.ne.s32.totalorder %s334, %s336
    %p343 = scmp.eq.s32.totalorder %s27, 1
    %p344 = por %p342, %p343
    %p345 = scmp.ne.s32.totalorder %s336, %s337
    %p346 = scmp.eq.s32.totalorder %s27, 0
    %p347 = por %p345, %p346
    %p348 = scmp.ne.s32.totalorder %s336, %s337
    %p349 = scmp.eq.s32.totalorder %s28, 1
    %p350 = por %p348, %p349
    %p352 = scmp.ne.s32.totalorder %s337, %s351
    %p353 = scmp.eq.s32.totalorder %s28, 0
    %p354 = por %p352, %p353
    %s356 = sadd.s32 %s355, 1
    %p359 = scmp.eq.s32.totalorder %s22, 1
    %p360 = scmp.ne.s32.totalorder %s355, %s357
    %p361 = scmp.eq.s32.totalorder %s22, 0
    %p362 = por %p360, %p361
    %p363 = scmp.ne.s32.totalorder %s355, %s357
    %p364 = scmp.eq.s32.totalorder %s27, 1
    %p365 = por %p363, %p364
    %p366 = scmp.ne.s32.totalorder %s357, %s358
    %p367 = scmp.eq.s32.totalorder %s27, 0
    %p368 = por %p366, %p367
    %p369 = scmp.ne.s32.totalorder %s357, %s358
    %p370 = scmp.eq.s32.totalorder %s28, 1
    %p371 = por %p369, %p370
    %p373 = scmp.ne.s32.totalorder %s358, %s372
    %p374 = scmp.eq.s32.totalorder %s28, 0
    %p375 = por %p373, %p374
    %s376 = ssub.s32 %s22, %s29
    %p377 = scmp.eq.s32.totalorder %s376, 0
    %s379 = sadd.s32 %s378, 1
    %s380 = scalar_select %p377, %s378, %s379
    %p383 = pneg %p377
    %p384 = scmp.eq.s32.totalorder %s22, 1
    %p385 = por %p383, %p384
    %p386 = scmp.ne.s32.totalorder %s378, %s381
    %p387 = scmp.eq.s32.totalorder %s22, 0
    %p388 = por %p386, %p387
    %p389 = scmp.ne.s32.totalorder %s378, %s381
    %p390 = scmp.eq.s32.totalorder %s27, 1
    %p391 = por %p389, %p390
    %p392 = scmp.ne.s32.totalorder %s381, %s382
    %p393 = scmp.eq.s32.totalorder %s27, 0
    %p394 = por %p392, %p393
    %p395 = scmp.ne.s32.totalorder %s381, %s382
    %p396 = scmp.eq.s32.totalorder %s28, 1
    %p397 = por %p395, %p396
    %p399 = scmp.ne.s32.totalorder %s382, %s398
    %p400 = scmp.eq.s32.totalorder %s28, 0
    %p401 = por %p399, %p400
    %p402 = scmp.le.s32.totalorder 1, %s22
    %p403 = scmp.lt.s32.totalorder %s22, 3
    %p404 = pnand %p402, %p403
    %p405 = pneg %p404
    // Predicated region
    $region9: #{text_encoder_forward.4} parent=5 // pred_check
      _
    $region10: #{text_encoder_forward.4} parent=5 // pred_check_branch
      %407 = sbr.rel (%p404) target = $region12
    $region11: #{text_encoder_forward.4} parent=5 // pred_region
      %s408 = ssub.s32 %s22, 1
      // Predicated region
      $region13: #{text_encoder_forward.4} parent=11 // pred_check
        %p409 = pneg %p95
      $region14: #{text_encoder_forward.4} parent=11 // pred_check_branch
        %411 = sbr.rel (%p409) target = $region16
      $region15: #{text_encoder_forward.4} parent=11 // pred_region
        _
      $region16: #{text_encoder_forward.4} parent=11 // pred_fallthru
        _
      // Predicated region
      $region17: #{text_encoder_forward.4} parent=11 // pred_check
        %p412 = pneg %p116
      $region18: #{text_encoder_forward.4} parent=11 // pred_check_branch
        %414 = sbr.rel (%p412) target = $region20
      $region19: #{text_encoder_forward.4} parent=11 // pred_region
        _
      $region20: #{text_encoder_forward.4} parent=11 // pred_fallthru
        _
      // Predicated region
      $region21: #{text_encoder_forward.4} parent=11 // pred_check
        %p415 = pneg %p137
      $region22: #{text_encoder_forward.4} parent=11 // pred_check_branch
        %417 = sbr.rel (%p415) target = $region24
      $region23: #{text_encoder_forward.4} parent=11 // pred_region
        _
      $region24: #{text_encoder_forward.4} parent=11 // pred_fallthru
        _
      // Predicated region
      $region25: #{text_encoder_forward.4} parent=11 // pred_check
        %p418 = pneg %p158
      $region26: #{text_encoder_forward.4} parent=11 // pred_check_branch
        %420 = sbr.rel (%p418) target = $region28
      $region27: #{text_encoder_forward.4} parent=11 // pred_region
        _
      $region28: #{text_encoder_forward.4} parent=11 // pred_fallthru
        _
      // Predicated region
      $region29: #{text_encoder_forward.4} parent=11 // pred_check
        %p421 = pneg %p179
      $region30: #{text_encoder_forward.4} parent=11 // pred_check_branch
        %423 = sbr.rel (%p421) target = $region32
      $region31: #{text_encoder_forward.4} parent=11 // pred_region
        _
      $region32: #{text_encoder_forward.4} parent=11 // pred_fallthru
        _
      // Predicated region
      $region33: #{text_encoder_forward.4} parent=11 // pred_check
        %p424 = pneg %p200
      $region34: #{text_encoder_forward.4} parent=11 // pred_check_branch
        %426 = sbr.rel (%p424) target = $region36
      $region35: #{text_encoder_forward.4} parent=11 // pred_region
        _
      $region36: #{text_encoder_forward.4} parent=11 // pred_fallthru
        _
      // Predicated region
      $region37: #{text_encoder_forward.4} parent=11 // pred_check
        %p427 = pneg %p221
      $region38: #{text_encoder_forward.4} parent=11 // pred_check_branch
        %429 = sbr.rel (%p427) target = $region40
      $region39: #{text_encoder_forward.4} parent=11 // pred_region
        _
      $region40: #{text_encoder_forward.4} parent=11 // pred_fallthru
        _
      // Predicated region
      $region41: #{text_encoder_forward.4} parent=11 // pred_check
        %p430 = pneg %p242
      $region42: #{text_encoder_forward.4} parent=11 // pred_check_branch
        %432 = sbr.rel (%p430) target = $region44
      $region43: #{text_encoder_forward.4} parent=11 // pred_region
        _
      $region44: #{text_encoder_forward.4} parent=11 // pred_fallthru
        _
      // Predicated region
      $region45: #{text_encoder_forward.4} parent=11 // pred_check
        %p433 = pneg %p263
      $region46: #{text_encoder_forward.4} parent=11 // pred_check_branch
        %435 = sbr.rel (%p433) target = $region48
      $region47: #{text_encoder_forward.4} parent=11 // pred_region
        _
      $region48: #{text_encoder_forward.4} parent=11 // pred_fallthru
        _
      // Predicated region
      $region49: #{text_encoder_forward.4} parent=11 // pred_check
        %p436 = pneg %p284
      $region50: #{text_encoder_forward.4} parent=11 // pred_check_branch
        %438 = sbr.rel (%p436) target = $region52
      $region51: #{text_encoder_forward.4} parent=11 // pred_region
        _
      $region52: #{text_encoder_forward.4} parent=11 // pred_fallthru
        _
      // Predicated region
      $region53: #{text_encoder_forward.4} parent=11 // pred_check
        %p439 = pneg %p305
      $region54: #{text_encoder_forward.4} parent=11 // pred_check_branch
        %441 = sbr.rel (%p439) target = $region56
      $region55: #{text_encoder_forward.4} parent=11 // pred_region
        _
      $region56: #{text_encoder_forward.4} parent=11 // pred_fallthru
        _
      // Predicated region
      $region57: #{text_encoder_forward.4} parent=11 // pred_check
        %p442 = pneg %p326
      $region58: #{text_encoder_forward.4} parent=11 // pred_check_branch
        %444 = sbr.rel (%p442) target = $region60
      $region59: #{text_encoder_forward.4} parent=11 // pred_region
        _
      $region60: #{text_encoder_forward.4} parent=11 // pred_fallthru
        _
      // Predicated region
      $region61: #{text_encoder_forward.4} parent=11 // pred_check
        %p445 = pneg %p347
      $region62: #{text_encoder_forward.4} parent=11 // pred_check_branch
        %447 = sbr.rel (%p445) target = $region64
      $region63: #{text_encoder_forward.4} parent=11 // pred_region
        _
      $region64: #{text_encoder_forward.4} parent=11 // pred_fallthru
        _
      // Predicated region
      $region65: #{text_encoder_forward.4} parent=11 // pred_check
        %p448 = pneg %p368
      $region66: #{text_encoder_forward.4} parent=11 // pred_check_branch
        %450 = sbr.rel (%p448) target = $region68
      $region67: #{text_encoder_forward.4} parent=11 // pred_region
        _
      $region68: #{text_encoder_forward.4} parent=11 // pred_fallthru
        _
    $region12: #{text_encoder_forward.4} parent=5 // pred_fallthru
      _
    %p451 = scmp.lt.s32.totalorder %s22, 2
    // Predicated region
    $region69: #{text_encoder_forward.4} parent=5 // pred_check
      %p452 = pneg %p451
    $region70: #{text_encoder_forward.4} parent=5 // pred_check_branch
      %454 = sbr.rel (%p452) target = $region72
    $region71: #{text_encoder_forward.4} parent=5 // pred_region
      // Predicated region
      $region73: #{text_encoder_forward.4} parent=71 // pred_check
        %p455 = pneg %p42
      $region74: #{text_encoder_forward.4} parent=71 // pred_check_branch
        %457 = sbr.rel (%p455) target = $region76
      $region75: #{text_encoder_forward.4} parent=71 // pred_region
        %p458 = scmp.lt.s32.totalorder %s22, 1
        %s459 = scalar_select %p458, %s22, 1
        %s460 = smul.addr %s459, 8
        %s461 = scalar_lea.vmem %s0, %s460
      $region76: #{text_encoder_forward.4} parent=71 // pred_fallthru
        _
      // Predicated region
      $region77: #{text_encoder_forward.4} parent=71 // pred_check
        %p462 = pneg %p68
      $region78: #{text_encoder_forward.4} parent=71 // pred_check_branch
        %464 = sbr.rel (%p462) target = $region80
      $region79: #{text_encoder_forward.4} parent=71 // pred_region
        %p465 = scmp.lt.s32.totalorder %s22, 1
        %s466 = scalar_select %p465, %s22, 1
        %s467 = scalar_lea.vmem %s1, %s466
      $region80: #{text_encoder_forward.4} parent=71 // pred_fallthru
        _
    $region72: #{text_encoder_forward.4} parent=5 // pred_fallthru
      _
    %p468 = scmp.le.s32.totalorder 1, %s22
    %p469 = scmp.lt.s32.totalorder %s22, 3
    %p470 = pnand %p468, %p469
    %p471 = pneg %p470
    // Predicated region
    $region81: #{text_encoder_forward.4} parent=5 // pred_check
      _
    $region82: #{text_encoder_forward.4} parent=5 // pred_check_branch
      %473 = sbr.rel (%p470) target = $region84
    $region83: #{text_encoder_forward.4} parent=5 // pred_region
      %s474 = ssub.s32 %s22, 1
      %p475 = scmp.lt.s32.totalorder %s27, 1
      %s476 = scalar_select %p475, %s27, 1
      %s477 = smul.addr %s476, 8
      %s478 = scalar_lea.vmem %s0, %s477
      %p479 = pneg %p48
      %p480 = pneg %p45
      %p481 = scmp.lt.s32.totalorder %s27, 1
      %s482 = scalar_select %p481, %s27, 1
      %s483 = scalar_lea.vmem %s1, %s482
      %p484 = pneg %p74
      %p485 = pneg %p71
      %p486 = pneg %p95
      %p487 = pneg %p92
      %p488 = pneg %p116
      %p489 = pneg %p113
      %p490 = pneg %p137
      %p491 = pneg %p134
      %p492 = pneg %p158
      %p493 = pneg %p155
      %p494 = pneg %p179
      %p495 = pneg %p176
      %p496 = pneg %p200
      %p497 = pneg %p197
      %p498 = pneg %p221
      %p499 = pneg %p218
      %p500 = pneg %p242
      %p501 = pneg %p239
      %p502 = pneg %p263
      %p503 = pneg %p260
      %p504 = pneg %p284
      %p505 = pneg %p281
      %p506 = pneg %p305
      %p507 = pneg %p302
      %p508 = pneg %p326
      %p509 = pneg %p323
      %p510 = pneg %p347
      %p511 = pneg %p344
      %p512 = pneg %p368
      %p513 = pneg %p365
      %p514 = pneg %p394
      %p515 = pneg %p391
      %p516 = scmp.lt.s32.totalorder %s27, 1
      %s517 = scalar_select %p516, %s27, 1
      %s518 = smul.addr %s517, 8
      %s519 = scalar_lea.vmem %s16, %s518
      %p520 = scmp.lt.s32.totalorder %s27, 1
      %s521 = scalar_select %p520, %s27, 1
      %s522 = smul.addr %s521, 8
      %s523 = scalar_lea.vmem %s0, %s522
      %p524 = scmp.lt.s32.totalorder %s27, 1
      %s525 = scalar_select %p524, %s27, 1
      %s526 = scalar_lea.vmem %s1, %s525
      %p527 = scmp.lt.s32.totalorder %s27, 1
      %s528 = scalar_select %p527, %s27, 1
      %s529 = smul.addr %s528, 8
      %s530 = scalar_lea.vmem %s16, %s529
      %v532 = vld [vmem:[%s523] sm:$0xff]
      %v533 = vlaneseq
      %v534 = vshrl.u32 %v533, 7
      %v535 = vlaneseq
      %v536 = vand.u32 %v535, 127
      %vm537 = vcmp.ge.s32.totalorder %v534, %v536
      %v538 = vld [vmem:[%s526] sm:$0x1]
      %vm539 = vcmp.gt.f32.partialorder %v538, 0.5
      %v540 = vsel %vm539, 1, 0
      %v541 = vlaneseq
      %v542 = vshrl.u32 %v541, 7
      %v543 = vsub.s32 0, %v542
      %v544 = vrot.slane %v540, %v543
      %vm545 = vcmp.eq.s32.totalorder %v544, 1
      %vm546 = vmand %vm537, %vm545
      %v547 = vsel %vm546, 0.0, -1e+09
      %v548 = vld [vmem:[%s2] sm:$0xff]
      %v549 = vld [vmem:[%s3] sm:$0xff]
      %v550 = vld [vmem:[%s4] sm:$0x1]
      %v551 = vld [vmem:[%s5] sm:$0x1]
      %552 = vadd.xlane.f32.xlu0 %v532
      %v553 = vpop.xlane.xlu0 %552
      %v554 = vrcp.pop 128.0
      %v555 = vmul.f32 %v553, %v554
      %v556 = vsub.f32 %v532, %v555
      %v557 = vmul.f32 %v556, %v556
      %558 = vadd.xlane.f32.xlu0 %v557
      %v559 = vpop.xlane.xlu0 %558
      %v560 = vmul.f32 %v559, %v554
      %v561 = vadd.f32 %v560, 1e-05
      %v562 = vrsqrt.pop %v561
      %v563 = vmul.f32 %v556, %v562
      %v565 = vlaneseq
      %v566 = vshrl.u32 %v565, 7
      %v567 = vsub.s32 0, %v566
      %v568 = vrot.slane %v550, %v567
      %v570 = vmul.f32 %v563, %v568
      %v572 = vlaneseq
      %v573 = vshrl.u32 %v572, 7
      %v574 = vsub.s32 0, %v573
      %v575 = vrot.slane %v551, %v574
      %v577 = vadd.f32 %v570, %v575
      %v578 = vpack.c.bf16 %v577, %v577
      %v579 = vld [vmem:[%s6] sm:$0xff]
      %v580 = vld [vmem:[%s6 + $0x8] sm:$0xf]
      %v581 = vld [vmem:[%s6 + $0xc] sm:$0xff]
      %v582 = vld [vmem:[%s6 + $0x14] sm:$0xf]
      %v583 = vld [vmem:[%s6 + $0x18] sm:$0xff]
      %v584 = vld [vmem:[%s6 + $0x20] sm:$0xf]
      %v585 = vld [vmem:[%s6 + $0x24] sm:$0xff]
      %v586 = vld [vmem:[%s6 + $0x2c] sm:$0xf]
      %v587 = vld [vmem:[%s6 + $0x30] sm:$0xff]
      %v588 = vld [vmem:[%s6 + $0x38] sm:$0xf]
      %v589 = vld [vmem:[%s6 + $0x3c] sm:$0xff]
      %v590 = vld [vmem:[%s6 + $0x44] sm:$0xf]
      %v591 = vld [vmem:[%s6 + $0x48] sm:$0xff]
      %v592 = vld [vmem:[%s6 + $0x50] sm:$0xf]
      %v593 = vld [vmem:[%s6 + $0x54] sm:$0xff]
      %v594 = vld [vmem:[%s6 + $0x5c] sm:$0xf]
      %v595 = vld [vmem:[%s6 + $0x60] sm:$0xff]
      %v596 = vld [vmem:[%s6 + $0x68] sm:$0xf]
      %v597 = vld [vmem:[%s6 + $0x6c] sm:$0xff]
      %v598 = vld [vmem:[%s6 + $0x74] sm:$0xf]
      %v599 = vld [vmem:[%s6 + $0x78] sm:$0xff]
      %v600 = vld [vmem:[%s6 + $0x80] sm:$0xf]
      %v601 = vld [vmem:[%s6 + $0x84] sm:$0xff]
      %v602 = vld [vmem:[%s6 + $0x8c] sm:$0xf]
      %v603 = vld [vmem:[%s6 + $0x90] sm:$0xff]
      %v604 = vld [vmem:[%s6 + $0x98] sm:$0xf]
      %v605 = vld [vmem:[%s6 + $0x9c] sm:$0xff]
      %v606 = vld [vmem:[%s6 + $0xa4] sm:$0xf]
      %v607 = vld [vmem:[%s6 + $0xa8] sm:$0xff]
      %v608 = vld [vmem:[%s6 + $0xb0] sm:$0xf]
      %v609 = vld [vmem:[%s6 + $0xb4] sm:$0xff]
      %v610 = vld [vmem:[%s6 + $0xbc] sm:$0xf]
      %v611 = vld [vmem:[%s7] sm:$0x7]
      %v613 = vlaneseq
      %v614 = vshrl.u32 %v613, 7
      %v615 = vsub.s32 0, %v614
      %v616 = vrot.slane %v611, %v615
      %v617 = vlaneseq
      %v618 = vshrl.u32 %v617, 7
      %v619 = vsub.s32 1, %v618
      %v620 = vrot.slane %v611, %v619
      %v621 = vlaneseq
      %v622 = vshrl.u32 %v621, 7
      %v623 = vsub.s32 2, %v622
      %v624 = vrot.slane %v611, %v623
      %v660 = vunpack.c.l.b16 %v579
      %v661 = vunpack.c.h.b16 %v579
      %v662 = vunpack.c.l.b16 %v580
      %v663 = vunpack.c.l.b16 %v581
      %v664 = vunpack.c.h.b16 %v581
      %v665 = vunpack.c.l.b16 %v582
      %v666 = vunpack.c.l.b16 %v583
      %v667 = vunpack.c.h.b16 %v583
      %v668 = vunpack.c.l.b16 %v584
      %v669 = vunpack.c.l.b16 %v585
      %v670 = vunpack.c.h.b16 %v585
      %v671 = vunpack.c.l.b16 %v586
      %v672 = vunpack.c.l.b16 %v587
      %v673 = vunpack.c.h.b16 %v587
      %v674 = vunpack.c.l.b16 %v588
      %v675 = vunpack.c.l.b16 %v589
      %v676 = vunpack.c.h.b16 %v589
      %v677 = vunpack.c.l.b16 %v590
      %v678 = vunpack.c.l.b16 %v591
      %v679 = vunpack.c.h.b16 %v591
      %v680 = vunpack.c.l.b16 %v592
      %v681 = vunpack.c.l.b16 %v593
      %v682 = vunpack.c.h.b16 %v593
      %v683 = vunpack.c.l.b16 %v594
      %v684 = vunpack.c.l.b16 %v595
      %v685 = vunpack.c.h.b16 %v595
      %v686 = vunpack.c.l.b16 %v596
      %v687 = vunpack.c.l.b16 %v597
      %v688 = vunpack.c.h.b16 %v597
      %v689 = vunpack.c.l.b16 %v598
      %v690 = vunpack.c.l.b16 %v599
      %v691 = vunpack.c.h.b16 %v599
      %v692 = vunpack.c.l.b16 %v600
      %v693 = vunpack.c.l.b16 %v601
      %v694 = vunpack.c.h.b16 %v601
      %v695 = vunpack.c.l.b16 %v602
      %v696 = vunpack.c.l.b16 %v603
      %v697 = vunpack.c.h.b16 %v603
      %v698 = vunpack.c.l.b16 %v604
      %v699 = vunpack.c.l.b16 %v605
      %v700 = vunpack.c.h.b16 %v605
      %v701 = vunpack.c.l.b16 %v606
      %v702 = vunpack.c.l.b16 %v607
      %v703 = vunpack.c.h.b16 %v607
      %v704 = vunpack.c.l.b16 %v608
      %v705 = vunpack.c.l.b16 %v609
      %v706 = vunpack.c.h.b16 %v609
      %v707 = vunpack.c.l.b16 %v610
      %v708 = vpack.c.b16 %v663, %v660
      %v709 = vpack.c.b16 %v664, %v661
      %v710 = vpack.c.b16 %v665, %v662
      %v711 = vpack.c.b16 %v669, %v666
      %v712 = vpack.c.b16 %v670, %v667
      %v713 = vpack.c.b16 %v671, %v668
      %v714 = vpack.c.b16 %v675, %v672
      %v715 = vpack.c.b16 %v676, %v673
      %v716 = vpack.c.b16 %v677, %v674
      %v717 = vpack.c.b16 %v681, %v678
      %v718 = vpack.c.b16 %v682, %v679
      %v719 = vpack.c.b16 %v683, %v680
      %v720 = vpack.c.b16 %v687, %v684
      %v721 = vpack.c.b16 %v688, %v685
      %v722 = vpack.c.b16 %v689, %v686
      %v723 = vpack.c.b16 %v693, %v690
      %v724 = vpack.c.b16 %v694, %v691
      %v725 = vpack.c.b16 %v695, %v692
      %v726 = vpack.c.b16 %v699, %v696
      %v727 = vpack.c.b16 %v700, %v697
      %v728 = vpack.c.b16 %v701, %v698
      %v729 = vpack.c.b16 %v705, %v702
      %v730 = vpack.c.b16 %v706, %v703
      %v731 = vpack.c.b16 %v707, %v704
      %756 = vmatprep.subr.bf16.mxu0 %v709
      %757 = vmatpush1.bf16.msra.mxu0 %v708
      %758 = vmatprep.subr.bf16.mxu0 %v712
      %759 = vmatpush1.bf16.msra.mxu0 %v711
      %760 = vmatprep.subr.bf16.mxu0 %v715
      %761 = vmatpush1.bf16.msra.mxu0 %v714
      %762 = vmatprep.subr.bf16.mxu0 %v718
      %763 = vmatpush1.bf16.msra.mxu0 %v717
      %764 = vmatprep.subr.bf16.mxu0 %v721
      %765 = vmatpush1.bf16.msra.mxu0 %v720
      %766 = vmatprep.subr.bf16.mxu0 %v724
      %767 = vmatpush1.bf16.msra.mxu0 %v723
      %768 = vmatprep.subr.bf16.mxu0 %v727
      %769 = vmatpush1.bf16.msra.mxu0 %v726
      %770 = vmatprep.subr.bf16.mxu0 %v730
      %771 = vmatpush1.bf16.msra.mxu0 %v729
      %772 = vmatprep.subr.bf16.mxu0 0
      %773 = vmatpush1.bf16.msra.mxu0 0
      %774 = vmatprep.subr.bf16.mxu0 0
      %775 = vmatpush1.bf16.msra.mxu0 0
      %776 = vmatprep.subr.bf16.mxu0 0
      %777 = vmatpush1.bf16.msra.mxu0 0
      %778 = vmatprep.subr.bf16.mxu0 0
      %779 = vmatpush1.bf16.msra.mxu0 0
      %780 = vmatprep.subr.bf16.mxu0 0
      %781 = vmatpush1.bf16.msra.mxu0 0
      %782 = vmatprep.subr.bf16.mxu0 0
      %783 = vmatpush1.bf16.msra.mxu0 0
      %784 = vmatprep.subr.bf16.mxu0 0
      %785 = vmatpush1.bf16.msra.mxu0 0
      %786 = vmatprep.subr.bf16.mxu0 0
      %787 = vmatpush1.bf16.msra.mxu0 0
      %788 = vmatprep.mubr.bf16.mxu0 0
      %789 = vmatmul.mubr.bf16.gmra.mrb[0].mxu0 %v578
      %v790 = vpop.f32.mrb[0].mxu0
      %v791 = vadd.f32 %v616, %v790
      %v792 = vpop.f32.mrb[0].mxu0
      %v793 = vadd.f32 %v620, %v792
      %v794 = vpop.f32.mrb[0].mxu0
      %v795 = vpop.f32.mrb[0].mxu0
      %796 = vdwg.mxu0
      %797 = vmatprep.subr.bf16.mxu0 0
      %798 = vmatpush1.bf16.msra.mxu0 %v710
      %799 = vmatprep.subr.bf16.mxu0 0
      %800 = vmatpush1.bf16.msra.mxu0 %v713
      %801 = vmatprep.subr.bf16.mxu0 0
      %802 = vmatpush1.bf16.msra.mxu0 %v716
      %803 = vmatprep.subr.bf16.mxu0 0
      %804 = vmatpush1.bf16.msra.mxu0 %v719
      %805 = vmatprep.subr.bf16.mxu0 0
      %806 = vmatpush1.bf16.msra.mxu0 %v722
      %807 = vmatprep.subr.bf16.mxu0 0
      %808 = vmatpush1.bf16.msra.mxu0 %v725
      %809 = vmatprep.subr.bf16.mxu0 0
      %810 = vmatpush1.bf16.msra.mxu0 %v728
      %811 = vmatprep.subr.bf16.mxu0 0
      %812 = vmatpush1.bf16.msra.mxu0 %v731
      %813 = vmatprep.subr.bf16.mxu0 0
      %814 = vmatpush1.bf16.msra.mxu0 0
      %815 = vmatprep.subr.bf16.mxu0 0
      %816 = vmatpush1.bf16.msra.mxu0 0
      %817 = vmatprep.subr.bf16.mxu0 0
      %818 = vmatpush1.bf16.msra.mxu0 0
      %819 = vmatprep.subr.bf16.mxu0 0
      %820 = vmatpush1.bf16.msra.mxu0 0
      %821 = vmatprep.subr.bf16.mxu0 0
      %822 = vmatpush1.bf16.msra.mxu0 0
      %823 = vmatprep.subr.bf16.mxu0 0
      %824 = vmatpush1.bf16.msra.mxu0 0
      %825 = vmatprep.subr.bf16.mxu0 0
      %826 = vmatpush1.bf16.msra.mxu0 0
      %827 = vmatprep.subr.bf16.mxu0 0
      %828 = vmatpush1.bf16.msra.mxu0 0
      %829 = vmatprep.mubr.bf16.mxu0 0
      %830 = vmatmul.mubr.bf16.gmra.mrb[0].mxu0 %v578
      %v831 = vpop.f32.mrb[0].mxu0
      %v832 = vadd.f32 %v624, %v831
      %v833 = vpop.f32.mrb[0].mxu0
      %v834 = vpop.f32.mrb[0].mxu0
      %v835 = vpop.f32.mrb[0].mxu0
      %836 = vdwg.mxu0
      %v837 = vmul.f32 %v791, %v548
      %839 = vrot.lane.b32.xlu0 %v549, 8
      %v840 = vpop.permute.xlu0 %839
      %v842 = vmul.f32 %v791, %v840
      %844 = vrot.lane.b32.xlu0 %v842, 120
      %v845 = vpop.permute.xlu0 %844
      %v847 = vsub.f32 %v837, %v845
      %849 = vrot.lane.b32.xlu0 %v548, 8
      %v850 = vpop.permute.xlu0 %849
      %v852 = vmul.f32 %v791, %v850
      %v853 = vmul.f32 %v791, %v549
      %855 = vrot.lane.b32.xlu0 %v853, 8
      %v856 = vpop.permute.xlu0 %855
      %v858 = vadd.f32 %v852, %v856
      %v859 = vmul.f32 %v793, %v548
      %v860 = vmul.f32 %v793, %v840
      %862 = vrot.lane.b32.xlu0 %v860, 120
      %v863 = vpop.permute.xlu0 %862
      %v865 = vsub.f32 %v859, %v863
      %v866 = vmul.f32 %v793, %v850
      %v867 = vmul.f32 %v793, %v549
      %869 = vrot.lane.b32.xlu0 %v867, 8
      %v870 = vpop.permute.xlu0 %869
      %v872 = vadd.f32 %v866, %v870
      %v873 = vpack.c.bf16 %v847, %v847
      %v874 = vpack.c.bf16 %v865, %v865
      %v875 = vpack.c.bf16 %v858, %v858
      %v876 = vpack.c.bf16 %v872, %v872
      %878 = vrot.lane.b32.xlu0 %v875, 120
      %v879 = vpop.permute.xlu0 %878
      %881 = vrot.lane.b32.xlu0 %v876, 120
      %v882 = vpop.permute.xlu0 %881
      %vm883 = vcmask 64512
      %v885 = vsel %vm883, %v879, 0
      %v888 = vsel %vm883, %v882, 0
      %890 = vmatprep.subr.bf16.mxu0 0
      %891 = vmatpush1.bf16.xpose.msra.mxu0 %v888
      %892 = vmatprep.subr.bf16.mxu0 0
      %893 = vmatpush1.bf16.xpose.msra.mxu0 0
      %894 = vmatprep.subr.bf16.mxu0 0
      %895 = vmatpush1.bf16.xpose.msra.mxu0 0
      %896 = vmatprep.subr.bf16.mxu0 0
      %897 = vmatpush1.bf16.xpose.msra.mxu0 0
      %898 = vmatprep.subr.bf16.mxu0 0
      %899 = vmatpush1.bf16.xpose.msra.mxu0 0
      %900 = vmatprep.subr.bf16.mxu0 0
      %901 = vmatpush1.bf16.xpose.msra.mxu0 0
      %902 = vmatprep.subr.bf16.mxu0 0
      %903 = vmatpush1.bf16.xpose.msra.mxu0 0
      %904 = vmatprep.subr.bf16.mxu0 0
      %905 = vmatpush1.bf16.xpose.msra.mxu0 0
      %906 = vmatprep.subr.bf16.mxu0 0
      %907 = vmatpush1.bf16.xpose.msra.mxu0 0
      %908 = vmatprep.subr.bf16.mxu0 0
      %909 = vmatpush1.bf16.xpose.msra.mxu0 0
      %910 = vmatprep.subr.bf16.mxu0 0
      %911 = vmatpush1.bf16.xpose.msra.mxu0 0
      %912 = vmatprep.subr.bf16.mxu0 0
      %913 = vmatpush1.bf16.xpose.msra.mxu0 0
      %914 = vmatprep.subr.bf16.mxu0 0
      %915 = vmatpush1.bf16.xpose.msra.mxu0 0
      %916 = vmatprep.subr.bf16.mxu0 0
      %917 = vmatpush1.bf16.xpose.msra.mxu0 0
      %918 = vmatprep.subr.bf16.mxu0 0
      %919 = vmatpush1.bf16.xpose.msra.mxu0 0
      %920 = vmatprep.subr.bf16.mxu0 0
      %921 = vmatpush1.bf16.xpose.msra.mxu0 0
      %922 = vmatprep.mubr.bf16.mxu0 0
      %923 = vmatmul.mubr.bf16.gmra.mrb[0].mxu0 %v885
      %v924 = vpop.f32.mrb[0].mxu0
      %v925 = vadd.f32 0.0, %v924
      %v926 = vpop.f32.mrb[0].mxu0
      %v927 = vpop.f32.mrb[0].mxu0
      %v928 = vpop.f32.mrb[0].mxu0
      %929 = vdwg.mxu0
      %v931 = vsel %vm883, %v873, 0
      %v934 = vsel %vm883, %v874, 0
      %936 = vmatprep.subr.bf16.mxu0 0
      %937 = vmatpush1.bf16.xpose.msra.mxu0 %v934
      %938 = vmatprep.subr.bf16.mxu0 0
      %939 = vmatpush1.bf16.xpose.msra.mxu0 0
      %940 = vmatprep.subr.bf16.mxu0 0
      %941 = vmatpush1.bf16.xpose.msra.mxu0 0
      %942 = vmatprep.subr.bf16.mxu0 0
      %943 = vmatpush1.bf16.xpose.msra.mxu0 0
      %944 = vmatprep.subr.bf16.mxu0 0
      %945 = vmatpush1.bf16.xpose.msra.mxu0 0
      %946 = vmatprep.subr.bf16.mxu0 0
      %947 = vmatpush1.bf16.xpose.msra.mxu0 0
      %948 = vmatprep.subr.bf16.mxu0 0
      %949 = vmatpush1.bf16.xpose.msra.mxu0 0
      %950 = vmatprep.subr.bf16.mxu0 0
      %951 = vmatpush1.bf16.xpose.msra.mxu0 0
      %952 = vmatprep.subr.bf16.mxu0 0
      %953 = vmatpush1.bf16.xpose.msra.mxu0 0
      %954 = vmatprep.subr.bf16.mxu0 0
      %955 = vmatpush1.bf16.xpose.msra.mxu0 0
      %956 = vmatprep.subr.bf16.mxu0 0
      %957 = vmatpush1.bf16.xpose.msra.mxu0 0
      %958 = vmatprep.subr.bf16.mxu0 0
      %959 = vmatpush1.bf16.xpose.msra.mxu0 0
      %960 = vmatprep.subr.bf16.mxu0 0
      %961 = vmatpush1.bf16.xpose.msra.mxu0 0
      %962 = vmatprep.subr.bf16.mxu0 0
      %963 = vmatpush1.bf16.xpose.msra.mxu0 0
      %964 = vmatprep.subr.bf16.mxu0 0
      %965 = vmatpush1.bf16.xpose.msra.mxu0 0
      %966 = vmatprep.subr.bf16.mxu0 0
      %967 = vmatpush1.bf16.xpose.msra.mxu0 0
      %968 = vmatprep.mubr.bf16.mxu0 0
      %969 = vmatmul.mubr.bf16.gmra.mrb[0].mxu0 %v931
      %v970 = vpop.f32.mrb[0].mxu0
      %v971 = vadd.f32 %v925, %v970
      %v972 = vpop.f32.mrb[0].mxu0
      %v973 = vpop.f32.mrb[0].mxu0
      %v974 = vpop.f32.mrb[0].mxu0
      %975 = vdwg.mxu0
      %v976 = vpack.c.bf16 %v791, %v791
      %v977 = vpack.c.bf16 %v793, %v793
      %979 = vrot.lane.b32.xlu0 %v976, 112
      %v980 = vpop.permute.xlu0 %979
      %982 = vrot.lane.b32.xlu0 %v977, 112
      %v983 = vpop.permute.xlu0 %982
      %vm984 = vcmask 130048
      %v986 = vsel %vm984, %v980, 0
      %v989 = vsel %vm984, %v983, 0
      %991 = vmatprep.subr.bf16.mxu0 0
      %992 = vmatpush1.bf16.xpose.msra.mxu0 %v989
      %993 = vmatprep.subr.bf16.mxu0 0
      %994 = vmatpush1.bf16.xpose.msra.mxu0 0
      %995 = vmatprep.subr.bf16.mxu0 0
      %996 = vmatpush1.bf16.xpose.msra.mxu0 0
      %997 = vmatprep.subr.bf16.mxu0 0
      %998 = vmatpush1.bf16.xpose.msra.mxu0 0
      %999 = vmatprep.subr.bf16.mxu0 0
      %1000 = vmatpush1.bf16.xpose.msra.mxu0 0
      %1001 = vmatprep.subr.bf16.mxu0 0
      %1002 = vmatpush1.bf16.xpose.msra.mxu0 0
      %1003 = vmatprep.subr.bf16.mxu0 0
      %1004 = vmatpush1.bf16.xpose.msra.mxu0 0
      %1005 = vmatprep.subr.bf16.mxu0 0
      %1006 = vmatpush1.bf16.xpose.msra.mxu0 0
      %1007 = vmatprep.subr.bf16.mxu0 0
      %1008 = vmatpush1.bf16.xpose.msra.mxu0 0
      %1009 = vmatprep.subr.bf16.mxu0 0
      %1010 = vmatpush1.bf16.xpose.msra.mxu0 0
      %1011 = vmatprep.subr.bf16.mxu0 0
      %1012 = vmatpush1.bf16.xpose.msra.mxu0 0
      %1013 = vmatprep.subr.bf16.mxu0 0
      %1014 = vmatpush1.bf16.xpose.msra.mxu0 0
      %1015 = vmatprep.subr.bf16.mxu0 0
      %1016 = vmatpush1.bf16.xpose.msra.mxu0 0
      %1017 = vmatprep.subr.bf16.mxu0 0
      %1018 = vmatpush1.bf16.xpose.msra.mxu0 0
      %1019 = vmatprep.subr.bf16.mxu0 0
      %1020 = vmatpush1.bf16.xpose.msra.mxu0 0
      %1021 = vmatprep.subr.bf16.mxu0 0
      %1022 = vmatpush1.bf16.xpose.msra.mxu0 0
      %1023 = vmatprep.mubr.bf16.mxu0 0
      %1024 = vmatmul.mubr.bf16.gmra.mrb[0].mxu0 %v986
      %v1025 = vpop.f32.mrb[0].mxu0
      %v1026 = vadd.f32 0.0, %v1025
      %v1027 = vpop.f32.mrb[0].mxu0
      %v1028 = vpop.f32.mrb[0].mxu0
      %v1029 = vpop.f32.mrb[0].mxu0
      %1030 = vdwg.mxu0
      %v1031 = vadd.f32 %v971, %v1026
      %v1032 = vmul.f32 %v1031, 0.17677669
      %v1033 = vadd.f32 %v1032, %v547
      %v1034 = vsel %vm883, %v1033, -inf
      %1035 = vmax.xlane.f32.xlu0 %v1034
      %v1036 = vpop.xlane.xlu0 %1035
      %v1037 = vsub.f32 %v1033, %v1036
      %v1038 = vmul.f32 %v1037, 1.442695
      %v1039 = vpow.pop %v1038
      %v1040 = vsel %vm883, %v1039, 0.0
      %1041 = vadd.xlane.f32.xlu0 %v1040
      %v1042 = vpop.xlane.xlu0 %1041
      %v1043 = vrcp.pop %v1042
      %v1044 = vmul.f32 %v1039, %v1043
      %v1045 = vpack.c.bf16 %v1044, %v1044
      %v1046 = vpack.c.bf16 %v832, %v832
      %v1048 = vsel %vm883, %v1045, 0
      %vm1050 = vcmask 1043456
      %v1052 = vsel %vm1050, %v1046, 0
      %1054 = vmatprep.subr.bf16.mxu0 0
      %1055 = vmatpush1.bf16.msra.mxu0 %v1052
      %1056 = vmatprep.subr.bf16.mxu0 0
      %1057 = vmatpush1.bf16.msra.mxu0 0
      %1058 = vmatprep.subr.bf16.mxu0 0
      %1059 = vmatpush1.bf16.msra.mxu0 0
      %1060 = vmatprep.subr.bf16.mxu0 0
      %1061 = vmatpush1.bf16.msra.mxu0 0
      %1062 = vmatprep.subr.bf16.mxu0 0
      %1063 = vmatpush1.bf16.msra.mxu0 0
      %1064 = vmatprep.subr.bf16.mxu0 0
      %1065 = vmatpush1.bf16.msra.mxu0 0
      %1066 = vmatprep.subr.bf16.mxu0 0
      %1067 = vmatpush1.bf16.msra.mxu0 0
      %1068 = vmatprep.subr.bf16.mxu0 0
      %1069 = vmatpush1.bf16.msra.mxu0 0
      %1070 = vmatprep.subr.bf16.mxu0 0
      %1071 = vmatpush1.bf16.msra.mxu0 0
      %1072 = vmatprep.subr.bf16.mxu0 0
      %1073 = vmatpush1.bf16.msra.mxu0 0
      %1074 = vmatprep.subr.bf16.mxu0 0
      %1075 = vmatpush1.bf16.msra.mxu0 0
      %1076 = vmatprep.subr.bf16.mxu0 0
      %1077 = vmatpush1.bf16.msra.mxu0 0
      %1078 = vmatprep.subr.bf16.mxu0 0
      %1079 = vmatpush1.bf16.msra.mxu0 0
      %1080 = vmatprep.subr.bf16.mxu0 0
      %1081 = vmatpush1.bf16.msra.mxu0 0
      %1082 = vmatprep.subr.bf16.mxu0 0
      %1083 = vmatpush1.bf16.msra.mxu0 0
      %1084 = vmatprep.subr.bf16.mxu0 0
      %1085 = vmatpush1.bf16.msra.mxu0 0
      %1086 = vmatprep.mubr.bf16.mxu0 0
      %1087 = vmatmul.mubr.bf16.gmra.mrb[0].mxu0 %v1048
      %v1088 = vpop.f32.mrb[0].mxu0
      %v1089 = vadd.f32 0.0, %v1088
      %v1090 = vpop.f32.mrb[0].mxu0
      %v1091 = vpop.f32.mrb[0].mxu0
      %v1092 = vpop.f32.mrb[0].mxu0
      %1093 = vdwg.mxu0
      %v1094 = vpack.c.bf16 %v1089, %v1089
      %v1095 = vld [vmem:[%s8] sm:$0xf]
      %v1096 = vld [vmem:[%s8 + $0x4] sm:$0xf]
      %v1097 = vld [vmem:[%s8 + $0x8] sm:$0xf]
      %v1098 = vld [vmem:[%s8 + $0xc] sm:$0xf]
      %1099 = vrot.lane.b32.xlu0 %v548, 32
      %v1100 = vpop.permute.xlu0 %1099
      %v1102 = vmul.f32 %v791, %v1100
      %1103 = vrot.lane.b32.xlu0 %v549, 40
      %v1104 = vpop.permute.xlu0 %1103
      %v1106 = vmul.f32 %v791, %v1104
      %1108 = vrot.lane.b32.xlu0 %v1106, 120
      %v1109 = vpop.permute.xlu0 %1108
      %v1111 = vsub.f32 %v1102, %v1109
      %1112 = vrot.lane.b32.xlu0 %v548, 40
      %v1113 = vpop.permute.xlu0 %1112
      %v1115 = vmul.f32 %v791, %v1113
      %1116 = vrot.lane.b32.xlu0 %v549, 32
      %v1117 = vpop.permute.xlu0 %1116
      %v1119 = vmul.f32 %v791, %v1117
      %1121 = vrot.lane.b32.xlu0 %v1119, 8
      %v1122 = vpop.permute.xlu0 %1121
      %v1124 = vadd.f32 %v1115, %v1122
      %v1125 = vmul.f32 %v793, %v1100
      %v1126 = vmul.f32 %v793, %v1104
      %1128 = vrot.lane.b32.xlu0 %v1126, 120
      %v1129 = vpop.permute.xlu0 %1128
      %v1131 = vsub.f32 %v1125, %v1129
      %v1132 = vmul.f32 %v793, %v1113
      %v1133 = vmul.f32 %v793, %v1117
      %1135 = vrot.lane.b32.xlu0 %v1133, 8
      %v1136 = vpop.permute.xlu0 %1135
      %v1138 = vadd.f32 %v1132, %v1136
      %v1139 = vpack.c.bf16 %v1111, %v1111
      %v1140 = vpack.c.bf16 %v1131, %v1131
      %v1141 = vpack.c.bf16 %v1124, %v1124
      %v1142 = vpack.c.bf16 %v1138, %v1138
      %1144 = vrot.lane.b32.xlu0 %v1141, 88
      %v1145 = vpop.permute.xlu0 %1144
      %1147 = vrot.lane.b32.xlu0 %v1142, 88
      %v1148 = vpop.permute.xlu0 %1147
      %v1150 = vsel %vm883, %v1145, 0
      %v1153 = vsel %vm883, %v1148, 0
      %1155 = vmatprep.subr.bf16.mxu0 0
      %1156 = vmatpush1.bf16.xpose.msra.mxu0 %v1153
      %1157 = vmatprep.subr.bf16.mxu0 0
      %1158 = vmatpush1.bf16.xpose.msra.mxu0 0
      %1159 = vmatprep.subr.bf16.mxu0 0
      %1160 = vmatpush1.bf16.xpose.msra.mxu0 0
      %1161 = vmatprep.subr.bf16.mxu0 0
      %1162 = vmatpush1.bf16.xpose.msra.mxu0 0
      %1163 = vmatprep.subr.bf16.mxu0 0
      %1164 = vmatpush1.bf16.xpose.msra.mxu0 0
      %1165 = vmatprep.subr.bf16.mxu0 0
      %1166 = vmatpush1.bf16.xpose.msra.mxu0 0
      %1167 = vmatprep.subr.bf16.mxu0 0
      %1168 = vmatpush1.bf16.xpose.msra.mxu0 0
      %1169 = vmatprep.subr.bf16.mxu0 0
      %1170 = vmatpush1.bf16.xpose.msra.mxu0 0
      %1171 = vmatprep.subr.bf16.mxu0 0
      %1172 = vmatpush1.bf16.xpose.msra.mxu0 0
      %1173 = vmatprep.subr.bf16.mxu0 0
      %1174 = vmatpush1.bf16.xpose.msra.mxu0 0
      %1175 = vmatprep.subr.bf16.mxu0 0
      %1176 = vmatpush1.bf16.xpose.msra.mxu0 0
      %1177 = vmatprep.subr.bf16.mxu0 0
      %1178 = vmatpush1.bf16.xpose.msra.mxu0 0
      %1179 = vmatprep.subr.bf16.mxu0 0
      %1180 = vmatpush1.bf16.xpose.msra.mxu0 0
      %1181 = vmatprep.subr.bf16.mxu0 0
      %1182 = vmatpush1.bf16.xpose.msra.mxu0 0
      %1183 = vmatprep.subr.bf16.mxu0 0
      %1184 = vmatpush1.bf16.xpose.msra.mxu0 0
      %1185 = vmatprep.subr.bf16.mxu0 0
      %1186 = vmatpush1.bf16.xpose.msra.mxu0 0
      %1187 = vmatprep.mubr.bf16.mxu0 0
      %1188 = vmatmul.mubr.bf16.gmra.mrb[0].mxu0 %v1150
      %v1189 = vpop.f32.mrb[0].mxu0
      %v1190 = vadd.f32 0.0, %v1189
      %v1191 = vpop.f32.mrb[0].mxu0
      %v1192 = vpop.f32.mrb[0].mxu0
      %v1193 = vpop.f32.mrb[0].mxu0
      %1194 = vdwg.mxu0
      %1196 = vrot.lane.b32.xlu0 %v1139, 96
      %v1197 = vpop.permute.xlu0 %1196
      %1199 = vrot.lane.b32.xlu0 %v1140, 96
      %v1200 = vpop.permute.xlu0 %1199
      %v1202 = vsel %vm883, %v1197, 0
      %v1205 = vsel %vm883, %v1200, 0
      %1207 = vmatprep.subr.bf16.mxu0 0
      %1208 = vmatpush1.bf16.xpose.msra.mxu0 %v1205
      %1209 = vmatprep.subr.bf16.mxu0 0
      %1210 = vmatpush1.bf16.xpose.msra.mxu0 0
      %1211 = vmatprep.subr.bf16.mxu0 0
      %1212 = vmatpush1.bf16.xpose.msra.mxu0 0
      %1213 = vmatprep.subr.bf16.mxu0 0
      %1214 = vmatpush1.bf16.xpose.msra.mxu0 0
      %1215 = vmatprep.subr.bf16.mxu0 0
      %1216 = vmatpush1.bf16.xpose.msra.mxu0 0
      %1217 = vmatprep.subr.bf16.mxu0 0
      %1218 = vmatpush1.bf16.xpose.msra.mxu0 0
      %1219 = vmatprep.subr.bf16.mxu0 0
      %1220 = vmatpush1.bf16.xpose.msra.mxu0 0
      %1221 = vmatprep.subr.bf16.mxu0 0
      %1222 = vmatpush1.bf16.xpose.msra.mxu0 0
      %1223 = vmatprep.subr.bf16.mxu0 0
      %1224 = vmatpush1.bf16.xpose.msra.mxu0 0
      %1225 = vmatprep.subr.bf16.mxu0 0
      %1226 = vmatpush1.bf16.xpose.msra.mxu0 0
      %1227 = vmatprep.subr.bf16.mxu0 0
      %1228 = vmatpush1.bf16.xpose.msra.mxu0 0
      %1229 = vmatprep.subr.bf16.mxu0 0
      %1230 = vmatpush1.bf16.xpose.msra.mxu0 0
      %1231 = vmatprep.subr.bf16.mxu0 0
      %1232 = vmatpush1.bf16.xpose.msra.mxu0 0
      %1233 = vmatprep.subr.bf16.mxu0 0
      %1234 = vmatpush1.bf16.xpose.msra.mxu0 0
      %1235 = vmatprep.subr.bf16.mxu0 0
      %1236 = vmatpush1.bf16.xpose.msra.mxu0 0
      %1237 = vmatprep.subr.bf16.mxu0 0
      %1238 = vmatpush1.bf16.xpose.msra.mxu0 0
      %1239 = vmatprep.mubr.bf16.mxu0 0
      %1240 = vmatmul.mubr.bf16.gmra.mrb[0].mxu0 %v1202
      %v1241 = vpop.f32.mrb[0].mxu0
      %v1242 = vadd.f32 %v1190, %v1241
      %v1243 = vpop.f32.mrb[0].mxu0
      %v1244 = vpop.f32.mrb[0].mxu0
      %v1245 = vpop.f32.mrb[0].mxu0
      %1246 = vdwg.mxu0
      %1247 = vrot.lane.b32.xlu0 %v976, 80
      %v1248 = vpop.permute.xlu0 %1247
      %1249 = vrot.lane.b32.xlu0 %v977, 80
      %v1250 = vpop.permute.xlu0 %1249
      %v1252 = vsel %vm984, %v1248, 0
      %v1255 = vsel %vm984, %v1250, 0
      %1257 = vmatprep.subr.bf16.mxu0 0
      %1258 = vmatpush1.bf16.xpose.msra.mxu0 %v1255
      %1259 = vmatprep.subr.bf16.mxu0 0
      %1260 = vmatpush1.bf16.xpose.msra.mxu0 0
      %1261 = vmatprep.subr.bf16.mxu0 0
      %1262 = vmatpush1.bf16.xpose.msra.mxu0 0
      %1263 = vmatprep.subr.bf16.mxu0 0
      %1264 = vmatpush1.bf16.xpose.msra.mxu0 0
      %1265 = vmatprep.subr.bf16.mxu0 0
      %1266 = vmatpush1.bf16.xpose.msra.mxu0 0
      %1267 = vmatprep.subr.bf16.mxu0 0
      %1268 = vmatpush1.bf16.xpose.msra.mxu0 0
      %1269 = vmatprep.subr.bf16.mxu0 0
      %1270 = vmatpush1.bf16.xpose.msra.mxu0 0
      %1271 = vmatprep.subr.bf16.mxu0 0
      %1272 = vmatpush1.bf16.xpose.msra.mxu0 0
      %1273 = vmatprep.subr.bf16.mxu0 0
      %1274 = vmatpush1.bf16.xpose.msra.mxu0 0
      %1275 = vmatprep.subr.bf16.mxu0 0
      %1276 = vmatpush1.bf16.xpose.msra.mxu0 0
      %1277 = vmatprep.subr.bf16.mxu0 0
      %1278 = vmatpush1.bf16.xpose.msra.mxu0 0
      %1279 = vmatprep.subr.bf16.mxu0 0
      %1280 = vmatpush1.bf16.xpose.msra.mxu0 0
      %1281 = vmatprep.subr.bf16.mxu0 0
      %1282 = vmatpush1.bf16.xpose.msra.mxu0 0
      %1283 = vmatprep.subr.bf16.mxu0 0
      %1284 = vmatpush1.bf16.xpose.msra.mxu0 0
      %1285 = vmatprep.subr.bf16.mxu0 0
      %1286 = vmatpush1.bf16.xpose.msra.mxu0 0
      %1287 = vmatprep.subr.bf16.mxu0 0
      %1288 = vmatpush1.bf16.xpose.msra.mxu0 0
      %1289 = vmatprep.mubr.bf16.mxu0 0
      %1290 = vmatmul.mubr.bf16.gmra.mrb[0].mxu0 %v1252
      %v1291 = vpop.f32.mrb[0].mxu0
      %v1292 = vadd.f32 0.0, %v1291
      %v1293 = vpop.f32.mrb[0].mxu0
      %v1294 = vpop.f32.mrb[0].mxu0
      %v1295 = vpop.f32.mrb[0].mxu0
      %1296 = vdwg.mxu0
      %v1297 = vadd.f32 %v1242, %v1292
      %v1298 = vmul.f32 %v1297, 0.17677669
      %v1299 = vadd.f32 %v1298, %v547
      %v1300 = vsel %vm883, %v1299, -inf
      %1301 = vmax.xlane.f32.xlu0 %v1300
      %v1302 = vpop.xlane.xlu0 %1301
      %v1303 = vsub.f32 %v1299, %v1302
      %v1304 = vmul.f32 %v1303, 1.442695
      %v1305 = vpow.pop %v1304
      %v1306 = vsel %vm883, %v1305, 0.0
      %1307 = vadd.xlane.f32.xlu0 %v1306
      %v1308 = vpop.xlane.xlu0 %1307
      %v1309 = vrcp.pop %v1308
      %v1310 = vmul.f32 %v1305, %v1309
      %v1311 = vpack.c.bf16 %v1310, %v1310
      %1313 = vrot.lane.b32.xlu0 %v1046, 96
      %v1314 = vpop.permute.xlu0 %1313
      %v1316 = vsel %vm883, %v1311, 0
      %v1319 = vsel %vm1050, %v1314, 0
      %1321 = vmatprep.subr.bf16.mxu0 0
      %1322 = vmatpush1.bf16.msra.mxu0 %v1319
      %1323 = vmatprep.subr.bf16.mxu0 0
      %1324 = vmatpush1.bf16.msra.mxu0 0
      %1325 = vmatprep.subr.bf16.mxu0 0
      %1326 = vmatpush1.bf16.msra.mxu0 0
      %1327 = vmatprep.subr.bf16.mxu0 0
      %1328 = vmatpush1.bf16.msra.mxu0 0
      %1329 = vmatprep.subr.bf16.mxu0 0
      %1330 = vmatpush1.bf16.msra.mxu0 0
      %1331 = vmatprep.subr.bf16.mxu0 0
      %1332 = vmatpush1.bf16.msra.mxu0 0
      %1333 = vmatprep.subr.bf16.mxu0 0
      %1334 = vmatpush1.bf16.msra.mxu0 0
      %1335 = vmatprep.subr.bf16.mxu0 0
      %1336 = vmatpush1.bf16.msra.mxu0 0
      %1337 = vmatprep.subr.bf16.mxu0 0
      %1338 = vmatpush1.bf16.msra.mxu0 0
      %1339 = vmatprep.subr.bf16.mxu0 0
      %1340 = vmatpush1.bf16.msra.mxu0 0
      %1341 = vmatprep.subr.bf16.mxu0 0
      %1342 = vmatpush1.bf16.msra.mxu0 0
      %1343 = vmatprep.subr.bf16.mxu0 0
      %1344 = vmatpush1.bf16.msra.mxu0 0
      %1345 = vmatprep.subr.bf16.mxu0 0
      %1346 = vmatpush1.bf16.msra.mxu0 0
      %1347 = vmatprep.subr.bf16.mxu0 0
      %1348 = vmatpush1.bf16.msra.mxu0 0
      %1349 = vmatprep.subr.bf16.mxu0 0
      %1350 = vmatpush1.bf16.msra.mxu0 0
      %1351 = vmatprep.subr.bf16.mxu0 0
      %1352 = vmatpush1.bf16.msra.mxu0 0
      %1353 = vmatprep.mubr.bf16.mxu0 0
      %1354 = vmatmul.mubr.bf16.gmra.mrb[0].mxu0 %v1316
      %v1355 = vpop.f32.mrb[0].mxu0
      %v1356 = vadd.f32 0.0, %v1355
      %v1357 = vpop.f32.mrb[0].mxu0
      %v1358 = vpop.f32.mrb[0].mxu0
      %v1359 = vpop.f32.mrb[0].mxu0
      %1360 = vdwg.mxu0
      %v1361 = vpack.c.bf16 %v1356, %v1356
      %v1362 = vld [vmem:[%s8 + $0x10] sm:$0xf]
      %v1363 = vld [vmem:[%s8 + $0x14] sm:$0xf]
      %v1364 = vld [vmem:[%s8 + $0x18] sm:$0xf]
      %v1365 = vld [vmem:[%s8 + $0x1c] sm:$0xf]
      %v1370 = vunpack.c.l.b16 %v1362
      %v1371 = vunpack.c.l.b16 %v1363
      %v1372 = vunpack.c.l.b16 %v1364
      %v1373 = vunpack.c.l.b16 %v1365
      %v1374 = vpack.c.b16 %v1371, %v1370
      %v1375 = vpack.c.b16 %v1373, %v1372
      %vm1378 = vcmask 261120
      %v1380 = vsel %vm1378, %v1361, 0
      %1382 = vmatprep.subr.bf16.mxu0 0
      %1383 = vmatpush1.bf16.msra.mxu0 %v1374
      %1384 = vmatprep.subr.bf16.mxu0 0
      %1385 = vmatpush1.bf16.msra.mxu0 %v1375
      %1386 = vmatprep.subr.bf16.mxu0 0
      %1387 = vmatpush1.bf16.msra.mxu0 0
      %1388 = vmatprep.subr.bf16.mxu0 0
      %1389 = vmatpush1.bf16.msra.mxu0 0
      %1390 = vmatprep.subr.bf16.mxu0 0
      %1391 = vmatpush1.bf16.msra.mxu0 0
      %1392 = vmatprep.subr.bf16.mxu0 0
      %1393 = vmatpush1.bf16.msra.mxu0 0
      %1394 = vmatprep.subr.bf16.mxu0 0
      %1395 = vmatpush1.bf16.msra.mxu0 0
      %1396 = vmatprep.subr.bf16.mxu0 0
      %1397 = vmatpush1.bf16.msra.mxu0 0
      %1398 = vmatprep.subr.bf16.mxu0 0
      %1399 = vmatpush1.bf16.msra.mxu0 0
      %1400 = vmatprep.subr.bf16.mxu0 0
      %1401 = vmatpush1.bf16.msra.mxu0 0
      %1402 = vmatprep.subr.bf16.mxu0 0
      %1403 = vmatpush1.bf16.msra.mxu0 0
      %1404 = vmatprep.subr.bf16.mxu0 0
      %1405 = vmatpush1.bf16.msra.mxu0 0
      %1406 = vmatprep.subr.bf16.mxu0 0
      %1407 = vmatpush1.bf16.msra.mxu0 0
      %1408 = vmatprep.subr.bf16.mxu0 0
      %1409 = vmatpush1.bf16.msra.mxu0 0
      %1410 = vmatprep.subr.bf16.mxu0 0
      %1411 = vmatpush1.bf16.msra.mxu0 0
      %1412 = vmatprep.subr.bf16.mxu0 0
      %1413 = vmatpush1.bf16.msra.mxu0 0
      %1414 = vmatprep.mubr.bf16.mxu0 0
      %1415 = vmatmul.mubr.bf16.gmra.mrb[0].mxu0 %v1380
      %v1416 = vpop.f32.mrb[0].mxu0
      %v1417 = vadd.f32 0.0, %v1416
      %v1418 = vpop.f32.mrb[0].mxu0
      %v1419 = vpop.f32.mrb[0].mxu0
      %v1420 = vpop.f32.mrb[0].mxu0
      %1421 = vdwg.mxu0
      %v1426 = vunpack.c.l.b16 %v1095
      %v1427 = vunpack.c.l.b16 %v1096
      %v1428 = vunpack.c.l.b16 %v1097
      %v1429 = vunpack.c.l.b16 %v1098
      %v1430 = vpack.c.b16 %v1427, %v1426
      %v1431 = vpack.c.b16 %v1429, %v1428
      %v1435 = vsel %vm1378, %v1094, 0
      %1437 = vmatprep.subr.bf16.mxu0 0
      %1438 = vmatpush1.bf16.msra.mxu0 %v1430
      %1439 = vmatprep.subr.bf16.mxu0 0
      %1440 = vmatpush1.bf16.msra.mxu0 %v1431
      %1441 = vmatprep.subr.bf16.mxu0 0
      %1442 = vmatpush1.bf16.msra.mxu0 0
      %1443 = vmatprep.subr.bf16.mxu0 0
      %1444 = vmatpush1.bf16.msra.mxu0 0
      %1445 = vmatprep.subr.bf16.mxu0 0
      %1446 = vmatpush1.bf16.msra.mxu0 0
      %1447 = vmatprep.subr.bf16.mxu0 0
      %1448 = vmatpush1.bf16.msra.mxu0 0
      %1449 = vmatprep.subr.bf16.mxu0 0
      %1450 = vmatpush1.bf16.msra.mxu0 0
      %1451 = vmatprep.subr.bf16.mxu0 0
      %1452 = vmatpush1.bf16.msra.mxu0 0
      %1453 = vmatprep.subr.bf16.mxu0 0
      %1454 = vmatpush1.bf16.msra.mxu0 0
      %1455 = vmatprep.subr.bf16.mxu0 0
      %1456 = vmatpush1.bf16.msra.mxu0 0
      %1457 = vmatprep.subr.bf16.mxu0 0
      %1458 = vmatpush1.bf16.msra.mxu0 0
      %1459 = vmatprep.subr.bf16.mxu0 0
      %1460 = vmatpush1.bf16.msra.mxu0 0
      %1461 = vmatprep.subr.bf16.mxu0 0
      %1462 = vmatpush1.bf16.msra.mxu0 0
      %1463 = vmatprep.subr.bf16.mxu0 0
      %1464 = vmatpush1.bf16.msra.mxu0 0
      %1465 = vmatprep.subr.bf16.mxu0 0
      %1466 = vmatpush1.bf16.msra.mxu0 0
      %1467 = vmatprep.subr.bf16.mxu0 0
      %1468 = vmatpush1.bf16.msra.mxu0 0
      %1469 = vmatprep.mubr.bf16.mxu0 0
      %1470 = vmatmul.mubr.bf16.gmra.mrb[0].mxu0 %v1435
      %v1471 = vpop.f32.mrb[0].mxu0
      %v1472 = vadd.f32 %v1417, %v1471
      %v1473 = vpop.f32.mrb[0].mxu0
      %v1474 = vpop.f32.mrb[0].mxu0
      %v1475 = vpop.f32.mrb[0].mxu0
      %1476 = vdwg.mxu0
      %1477 = vrot.lane.b32.xlu0 %v548, 64
      %v1478 = vpop.permute.xlu0 %1477
      %v1480 = vmul.f32 %v791, %v1478
      %1481 = vrot.lane.b32.xlu0 %v549, 72
      %v1482 = vpop.permute.xlu0 %1481
      %v1484 = vmul.f32 %v791, %v1482
      %1486 = vrot.lane.b32.xlu0 %v1484, 120
      %v1487 = vpop.permute.xlu0 %1486
      %v1489 = vsub.f32 %v1480, %v1487
      %1490 = vrot.lane.b32.xlu0 %v548, 72
      %v1491 = vpop.permute.xlu0 %1490
      %v1493 = vmul.f32 %v791, %v1491
      %1494 = vrot.lane.b32.xlu0 %v549, 64
      %v1495 = vpop.permute.xlu0 %1494
      %v1497 = vmul.f32 %v791, %v1495
      %1499 = vrot.lane.b32.xlu0 %v1497, 8
      %v1500 = vpop.permute.xlu0 %1499
      %v1502 = vadd.f32 %v1493, %v1500
      %v1503 = vmul.f32 %v793, %v1478
      %v1504 = vmul.f32 %v793, %v1482
      %1506 = vrot.lane.b32.xlu0 %v1504, 120
      %v1507 = vpop.permute.xlu0 %1506
      %v1509 = vsub.f32 %v1503, %v1507
      %v1510 = vmul.f32 %v793, %v1491
      %v1511 = vmul.f32 %v793, %v1495
      %1513 = vrot.lane.b32.xlu0 %v1511, 8
      %v1514 = vpop.permute.xlu0 %1513
      %v1516 = vadd.f32 %v1510, %v1514
      %v1517 = vpack.c.bf16 %v1489, %v1489
      %v1518 = vpack.c.bf16 %v1509, %v1509
      %v1519 = vpack.c.bf16 %v1502, %v1502
      %v1520 = vpack.c.bf16 %v1516, %v1516
      %1522 = vrot.lane.b32.xlu0 %v1519, 56
      %v1523 = vpop.permute.xlu0 %1522
      %1525 = vrot.lane.b32.xlu0 %v1520, 56
      %v1526 = vpop.permute.xlu0 %1525
      %v1528 = vsel %vm883, %v1523, 0
      %v1531 = vsel %vm883, %v1526, 0
      %1533 = vmatprep.subr.bf16.mxu0 0
      %1534 = vmatpush1.bf16.xpose.msra.mxu0 %v1531
      %1535 = vmatprep.subr.bf16.mxu0 0
      %1536 = vmatpush1.bf16.xpose.msra.mxu0 0
      %1537 = vmatprep.subr.bf16.mxu0 0
      %1538 = vmatpush1.bf16.xpose.msra.mxu0 0
      %1539 = vmatprep.subr.bf16.mxu0 0
      %1540 = vmatpush1.bf16.xpose.msra.mxu0 0
      %1541 = vmatprep.subr.bf16.mxu0 0
      %1542 = vmatpush1.bf16.xpose.msra.mxu0 0
      %1543 = vmatprep.subr.bf16.mxu0 0
      %1544 = vmatpush1.bf16.xpose.msra.mxu0 0
      %1545 = vmatprep.subr.bf16.mxu0 0
      %1546 = vmatpush1.bf16.xpose.msra.mxu0 0
      %1547 = vmatprep.subr.bf16.mxu0 0
      %1548 = vmatpush1.bf16.xpose.msra.mxu0 0
      %1549 = vmatprep.subr.bf16.mxu0 0
      %1550 = vmatpush1.bf16.xpose.msra.mxu0 0
      %1551 = vmatprep.subr.bf16.mxu0 0
      %1552 = vmatpush1.bf16.xpose.msra.mxu0 0
      %1553 = vmatprep.subr.bf16.mxu0 0
      %1554 = vmatpush1.bf16.xpose.msra.mxu0 0
      %1555 = vmatprep.subr.bf16.mxu0 0
      %1556 = vmatpush1.bf16.xpose.msra.mxu0 0
      %1557 = vmatprep.subr.bf16.mxu0 0
      %1558 = vmatpush1.bf16.xpose.msra.mxu0 0
      %1559 = vmatprep.subr.bf16.mxu0 0
      %1560 = vmatpush1.bf16.xpose.msra.mxu0 0
      %1561 = vmatprep.subr.bf16.mxu0 0
      %1562 = vmatpush1.bf16.xpose.msra.mxu0 0
      %1563 = vmatprep.subr.bf16.mxu0 0
      %1564 = vmatpush1.bf16.xpose.msra.mxu0 0
      %1565 = vmatprep.mubr.bf16.mxu0 0
      %1566 = vmatmul.mubr.bf16.gmra.mrb[0].mxu0 %v1528
      %v1567 = vpop.f32.mrb[0].mxu0
      %v1568 = vadd.f32 0.0, %v1567
      %v1569 = vpop.f32.mrb[0].mxu0
      %v1570 = vpop.f32.mrb[0].mxu0
      %v1571 = vpop.f32.mrb[0].mxu0
      %1572 = vdwg.mxu0
      %1574 = vrot.lane.b32.xlu0 %v1517, 64
      %v1575 = vpop.permute.xlu0 %1574
      %1577 = vrot.lane.b32.xlu0 %v1518, 64
      %v1578 = vpop.permute.xlu0 %1577
      %v1580 = vsel %vm883, %v1575, 0
      %v1583 = vsel %vm883, %v1578, 0
      %1585 = vmatprep.subr.bf16.mxu0 0
      %1586 = vmatpush1.bf16.xpose.msra.mxu0 %v1583
      %1587 = vmatprep.subr.bf16.mxu0 0
      %1588 = vmatpush1.bf16.xpose.msra.mxu0 0
      %1589 = vmatprep.subr.bf16.mxu0 0
      %1590 = vmatpush1.bf16.xpose.msra.mxu0 0
      %1591 = vmatprep.subr.bf16.mxu0 0
      %1592 = vmatpush1.bf16.xpose.msra.mxu0 0
      %1593 = vmatprep.subr.bf16.mxu0 0
      %1594 = vmatpush1.bf16.xpose.msra.mxu0 0
      %1595 = vmatprep.subr.bf16.mxu0 0
      %1596 = vmatpush1.bf16.xpose.msra.mxu0 0
      %1597 = vmatprep.subr.bf16.mxu0 0
      %1598 = vmatpush1.bf16.xpose.msra.mxu0 0
      %1599 = vmatprep.subr.bf16.mxu0 0
      %1600 = vmatpush1.bf16.xpose.msra.mxu0 0
      %1601 = vmatprep.subr.bf16.mxu0 0
      %1602 = vmatpush1.bf16.xpose.msra.mxu0 0
      %1603 = vmatprep.subr.bf16.mxu0 0
      %1604 = vmatpush1.bf16.xpose.msra.mxu0 0
      %1605 = vmatprep.subr.bf16.mxu0 0
      %1606 = vmatpush1.bf16.xpose.msra.mxu0 0
      %1607 = vmatprep.subr.bf16.mxu0 0
      %1608 = vmatpush1.bf16.xpose.msra.mxu0 0
      %1609 = vmatprep.subr.bf16.mxu0 0
      %1610 = vmatpush1.bf16.xpose.msra.mxu0 0
      %1611 = vmatprep.subr.bf16.mxu0 0
      %1612 = vmatpush1.bf16.xpose.msra.mxu0 0
      %1613 = vmatprep.subr.bf16.mxu0 0
      %1614 = vmatpush1.bf16.xpose.msra.mxu0 0
      %1615 = vmatprep.subr.bf16.mxu0 0
      %1616 = vmatpush1.bf16.xpose.msra.mxu0 0
      %1617 = vmatprep.mubr.bf16.mxu0 0
      %1618 = vmatmul.mubr.bf16.gmra.mrb[0].mxu0 %v1580
      %v1619 = vpop.f32.mrb[0].mxu0
      %v1620 = vadd.f32 %v1568, %v1619
      %v1621 = vpop.f32.mrb[0].mxu0
      %v1622 = vpop.f32.mrb[0].mxu0
      %v1623 = vpop.f32.mrb[0].mxu0
      %1624 = vdwg.mxu0
      %1625 = vrot.lane.b32.xlu0 %v976, 48
      %v1626 = vpop.permute.xlu0 %1625
      %1627 = vrot.lane.b32.xlu0 %v977, 48
      %v1628 = vpop.permute.xlu0 %1627
      %v1630 = vsel %vm984, %v1626, 0
      %v1633 = vsel %vm984, %v1628, 0
      %1635 = vmatprep.subr.bf16.mxu0 0
      %1636 = vmatpush1.bf16.xpose.msra.mxu0 %v1633
      %1637 = vmatprep.subr.bf16.mxu0 0
      %1638 = vmatpush1.bf16.xpose.msra.mxu0 0
      %1639 = vmatprep.subr.bf16.mxu0 0
      %1640 = vmatpush1.bf16.xpose.msra.mxu0 0
      %1641 = vmatprep.subr.bf16.mxu0 0
      %1642 = vmatpush1.bf16.xpose.msra.mxu0 0
      %1643 = vmatprep.subr.bf16.mxu0 0
      %1644 = vmatpush1.bf16.xpose.msra.mxu0 0
      %1645 = vmatprep.subr.bf16.mxu0 0
      %1646 = vmatpush1.bf16.xpose.msra.mxu0 0
      %1647 = vmatprep.subr.bf16.mxu0 0
      %1648 = vmatpush1.bf16.xpose.msra.mxu0 0
      %1649 = vmatprep.subr.bf16.mxu0 0
      %1650 = vmatpush1.bf16.xpose.msra.mxu0 0
      %1651 = vmatprep.subr.bf16.mxu0 0
      %1652 = vmatpush1.bf16.xpose.msra.mxu0 0
      %1653 = vmatprep.subr.bf16.mxu0 0
      %1654 = vmatpush1.bf16.xpose.msra.mxu0 0
      %1655 = vmatprep.subr.bf16.mxu0 0
      %1656 = vmatpush1.bf16.xpose.msra.mxu0 0
      %1657 = vmatprep.subr.bf16.mxu0 0
      %1658 = vmatpush1.bf16.xpose.msra.mxu0 0
      %1659 = vmatprep.subr.bf16.mxu0 0
      %1660 = vmatpush1.bf16.xpose.msra.mxu0 0
      %1661 = vmatprep.subr.bf16.mxu0 0
      %1662 = vmatpush1.bf16.xpose.msra.mxu0 0
      %1663 = vmatprep.subr.bf16.mxu0 0
      %1664 = vmatpush1.bf16.xpose.msra.mxu0 0
      %1665 = vmatprep.subr.bf16.mxu0 0
      %1666 = vmatpush1.bf16.xpose.msra.mxu0 0
      %1667 = vmatprep.mubr.bf16.mxu0 0
      %1668 = vmatmul.mubr.bf16.gmra.mrb[0].mxu0 %v1630
      %v1669 = vpop.f32.mrb[0].mxu0
      %v1670 = vadd.f32 0.0, %v1669
      %v1671 = vpop.f32.mrb[0].mxu0
      %v1672 = vpop.f32.mrb[0].mxu0
      %v1673 = vpop.f32.mrb[0].mxu0
      %1674 = vdwg.mxu0
      %v1675 = vadd.f32 %v1620, %v1670
      %v1676 = vmul.f32 %v1675, 0.17677669
      %v1677 = vadd.f32 %v1676, %v547
      %v1678 = vsel %vm883, %v1677, -inf
      %1679 = vmax.xlane.f32.xlu0 %v1678
      %v1680 = vpop.xlane.xlu0 %1679
      %v1681 = vsub.f32 %v1677, %v1680
      %v1682 = vmul.f32 %v1681, 1.442695
      %v1683 = vpow.pop %v1682
      %v1684 = vsel %vm883, %v1683, 0.0
      %1685 = vadd.xlane.f32.xlu0 %v1684
      %v1686 = vpop.xlane.xlu0 %1685
      %v1687 = vrcp.pop %v1686
      %v1688 = vmul.f32 %v1683, %v1687
      %v1689 = vpack.c.bf16 %v1688, %v1688
      %1690 = vrot.lane.b32.xlu0 %v1046, 64
      %v1691 = vpop.permute.xlu0 %1690
      %v1693 = vsel %vm883, %v1689, 0
      %v1696 = vsel %vm1050, %v1691, 0
      %1698 = vmatprep.subr.bf16.mxu0 0
      %1699 = vmatpush1.bf16.msra.mxu0 %v1696
      %1700 = vmatprep.subr.bf16.mxu0 0
      %1701 = vmatpush1.bf16.msra.mxu0 0
      %1702 = vmatprep.subr.bf16.mxu0 0
      %1703 = vmatpush1.bf16.msra.mxu0 0
      %1704 = vmatprep.subr.bf16.mxu0 0
      %1705 = vmatpush1.bf16.msra.mxu0 0
      %1706 = vmatprep.subr.bf16.mxu0 0
      %1707 = vmatpush1.bf16.msra.mxu0 0
      %1708 = vmatprep.subr.bf16.mxu0 0
      %1709 = vmatpush1.bf16.msra.mxu0 0
      %1710 = vmatprep.subr.bf16.mxu0 0
      %1711 = vmatpush1.bf16.msra.mxu0 0
      %1712 = vmatprep.subr.bf16.mxu0 0
      %1713 = vmatpush1.bf16.msra.mxu0 0
      %1714 = vmatprep.subr.bf16.mxu0 0
      %1715 = vmatpush1.bf16.msra.mxu0 0
      %1716 = vmatprep.subr.bf16.mxu0 0
      %1717 = vmatpush1.bf16.msra.mxu0 0
      %1718 = vmatprep.subr.bf16.mxu0 0
      %1719 = vmatpush1.bf16.msra.mxu0 0
      %1720 = vmatprep.subr.bf16.mxu0 0
      %1721 = vmatpush1.bf16.msra.mxu0 0
      %1722 = vmatprep.subr.bf16.mxu0 0
      %1723 = vmatpush1.bf16.msra.mxu0 0
      %1724 = vmatprep.subr.bf16.mxu0 0
      %1725 = vmatpush1.bf16.msra.mxu0 0
      %1726 = vmatprep.subr.bf16.mxu0 0
      %1727 = vmatpush1.bf16.msra.mxu0 0
      %1728 = vmatprep.subr.bf16.mxu0 0
      %1729 = vmatpush1.bf16.msra.mxu0 0
      %1730 = vmatprep.mubr.bf16.mxu0 0
      %1731 = vmatmul.mubr.bf16.gmra.mrb[0].mxu0 %v1693
      %v1732 = vpop.f32.mrb[0].mxu0
      %v1733 = vadd.f32 0.0, %v1732
      %v1734 = vpop.f32.mrb[0].mxu0
      %v1735 = vpop.f32.mrb[0].mxu0
      %v1736 = vpop.f32.mrb[0].mxu0
      %1737 = vdwg.mxu0
      %v1738 = vpack.c.bf16 %v1733, %v1733
      %v1739 = vld [vmem:[%s8 + $0x20] sm:$0xf]
      %v1740 = vld [vmem:[%s8 + $0x24] sm:$0xf]
      %v1741 = vld [vmem:[%s8 + $0x28] sm:$0xf]
      %v1742 = vld [vmem:[%s8 + $0x2c] sm:$0xf]
      %v1747 = vunpack.c.l.b16 %v1739
      %v1748 = vunpack.c.l.b16 %v1740
      %v1749 = vunpack.c.l.b16 %v1741
      %v1750 = vunpack.c.l.b16 %v1742
      %v1751 = vpack.c.b16 %v1748, %v1747
      %v1752 = vpack.c.b16 %v1750, %v1749
      %v1756 = vsel %vm1378, %v1738, 0
      %1758 = vmatprep.subr.bf16.mxu0 0
      %1759 = vmatpush1.bf16.msra.mxu0 %v1751
      %1760 = vmatprep.subr.bf16.mxu0 0
      %1761 = vmatpush1.bf16.msra.mxu0 %v1752
      %1762 = vmatprep.subr.bf16.mxu0 0
      %1763 = vmatpush1.bf16.msra.mxu0 0
      %1764 = vmatprep.subr.bf16.mxu0 0
      %1765 = vmatpush1.bf16.msra.mxu0 0
      %1766 = vmatprep.subr.bf16.mxu0 0
      %1767 = vmatpush1.bf16.msra.mxu0 0
      %1768 = vmatprep.subr.bf16.mxu0 0
      %1769 = vmatpush1.bf16.msra.mxu0 0
      %1770 = vmatprep.subr.bf16.mxu0 0
      %1771 = vmatpush1.bf16.msra.mxu0 0
      %1772 = vmatprep.subr.bf16.mxu0 0
      %1773 = vmatpush1.bf16.msra.mxu0 0
      %1774 = vmatprep.subr.bf16.mxu0 0
      %1775 = vmatpush1.bf16.msra.mxu0 0
      %1776 = vmatprep.subr.bf16.mxu0 0
      %1777 = vmatpush1.bf16.msra.mxu0 0
      %1778 = vmatprep.subr.bf16.mxu0 0
      %1779 = vmatpush1.bf16.msra.mxu0 0
      %1780 = vmatprep.subr.bf16.mxu0 0
      %1781 = vmatpush1.bf16.msra.mxu0 0
      %1782 = vmatprep.subr.bf16.mxu0 0
      %1783 = vmatpush1.bf16.msra.mxu0 0
      %1784 = vmatprep.subr.bf16.mxu0 0
      %1785 = vmatpush1.bf16.msra.mxu0 0
      %1786 = vmatprep.subr.bf16.mxu0 0
      %1787 = vmatpush1.bf16.msra.mxu0 0
      %1788 = vmatprep.subr.bf16.mxu0 0
      %1789 = vmatpush1.bf16.msra.mxu0 0
      %1790 = vmatprep.mubr.bf16.mxu0 0
      %1791 = vmatmul.mubr.bf16.gmra.mrb[0].mxu0 %v1756
      %v1792 = vpop.f32.mrb[0].mxu0
      %v1793 = vadd.f32 0.0, %v1792
      %v1794 = vpop.f32.mrb[0].mxu0
      %v1795 = vpop.f32.mrb[0].mxu0
      %v1796 = vpop.f32.mrb[0].mxu0
      %1797 = vdwg.mxu0
      %v1798 = vadd.f32 %v1472, %v1793
      %1799 = vrot.lane.b32.xlu0 %v548, 96
      %v1800 = vpop.permute.xlu0 %1799
      %v1802 = vmul.f32 %v791, %v1800
      %1803 = vrot.lane.b32.xlu0 %v549, 104
      %v1804 = vpop.permute.xlu0 %1803
      %v1806 = vmul.f32 %v791, %v1804
      %1808 = vrot.lane.b32.xlu0 %v1806, 120
      %v1809 = vpop.permute.xlu0 %1808
      %v1811 = vsub.f32 %v1802, %v1809
      %1812 = vrot.lane.b32.xlu0 %v548, 104
      %v1813 = vpop.permute.xlu0 %1812
      %v1815 = vmul.f32 %v791, %v1813
      %1816 = vrot.lane.b32.xlu0 %v549, 96
      %v1817 = vpop.permute.xlu0 %1816
      %v1819 = vmul.f32 %v791, %v1817
      %1821 = vrot.lane.b32.xlu0 %v1819, 8
      %v1822 = vpop.permute.xlu0 %1821
      %v1824 = vadd.f32 %v1815, %v1822
      %v1825 = vmul.f32 %v793, %v1800
      %v1826 = vmul.f32 %v793, %v1804
      %1828 = vrot.lane.b32.xlu0 %v1826, 120
      %v1829 = vpop.permute.xlu0 %1828
      %v1831 = vsub.f32 %v1825, %v1829
      %v1832 = vmul.f32 %v793, %v1813
      %v1833 = vmul.f32 %v793, %v1817
      %1835 = vrot.lane.b32.xlu0 %v1833, 8
      %v1836 = vpop.permute.xlu0 %1835
      %v1838 = vadd.f32 %v1832, %v1836
      %v1839 = vpack.c.bf16 %v1811, %v1811
      %v1840 = vpack.c.bf16 %v1831, %v1831
      %v1841 = vpack.c.bf16 %v1824, %v1824
      %v1842 = vpack.c.bf16 %v1838, %v1838
      %1844 = vrot.lane.b32.xlu0 %v1841, 24
      %v1845 = vpop.permute.xlu0 %1844
      %1847 = vrot.lane.b32.xlu0 %v1842, 24
      %v1848 = vpop.permute.xlu0 %1847
      %v1850 = vsel %vm883, %v1845, 0
      %v1853 = vsel %vm883, %v1848, 0
      %1855 = vmatprep.subr.bf16.mxu0 0
      %1856 = vmatpush1.bf16.xpose.msra.mxu0 %v1853
      %1857 = vmatprep.subr.bf16.mxu0 0
      %1858 = vmatpush1.bf16.xpose.msra.mxu0 0
      %1859 = vmatprep.subr.bf16.mxu0 0
      %1860 = vmatpush1.bf16.xpose.msra.mxu0 0
      %1861 = vmatprep.subr.bf16.mxu0 0
      %1862 = vmatpush1.bf16.xpose.msra.mxu0 0
      %1863 = vmatprep.subr.bf16.mxu0 0
      %1864 = vmatpush1.bf16.xpose.msra.mxu0 0
      %1865 = vmatprep.subr.bf16.mxu0 0
      %1866 = vmatpush1.bf16.xpose.msra.mxu0 0
      %1867 = vmatprep.subr.bf16.mxu0 0
      %1868 = vmatpush1.bf16.xpose.msra.mxu0 0
      %1869 = vmatprep.subr.bf16.mxu0 0
      %1870 = vmatpush1.bf16.xpose.msra.mxu0 0
      %1871 = vmatprep.subr.bf16.mxu0 0
      %1872 = vmatpush1.bf16.xpose.msra.mxu0 0
      %1873 = vmatprep.subr.bf16.mxu0 0
      %1874 = vmatpush1.bf16.xpose.msra.mxu0 0
      %1875 = vmatprep.subr.bf16.mxu0 0
      %1876 = vmatpush1.bf16.xpose.msra.mxu0 0
      %1877 = vmatprep.subr.bf16.mxu0 0
      %1878 = vmatpush1.bf16.xpose.msra.mxu0 0
      %1879 = vmatprep.subr.bf16.mxu0 0
      %1880 = vmatpush1.bf16.xpose.msra.mxu0 0
      %1881 = vmatprep.subr.bf16.mxu0 0
      %1882 = vmatpush1.bf16.xpose.msra.mxu0 0
      %1883 = vmatprep.subr.bf16.mxu0 0
      %1884 = vmatpush1.bf16.xpose.msra.mxu0 0
      %1885 = vmatprep.subr.bf16.mxu0 0
      %1886 = vmatpush1.bf16.xpose.msra.mxu0 0
      %1887 = vmatprep.mubr.bf16.mxu0 0
      %1888 = vmatmul.mubr.bf16.gmra.mrb[0].mxu0 %v1850
      %v1889 = vpop.f32.mrb[0].mxu0
      %v1890 = vadd.f32 0.0, %v1889
      %v1891 = vpop.f32.mrb[0].mxu0
      %v1892 = vpop.f32.mrb[0].mxu0
      %v1893 = vpop.f32.mrb[0].mxu0
      %1894 = vdwg.mxu0
      %1896 = vrot.lane.b32.xlu0 %v1839, 32
      %v1897 = vpop.permute.xlu0 %1896
      %1899 = vrot.lane.b32.xlu0 %v1840, 32
      %v1900 = vpop.permute.xlu0 %1899
      %v1902 = vsel %vm883, %v1897, 0
      %v1905 = vsel %vm883, %v1900, 0
      %1907 = vmatprep.subr.bf16.mxu0 0
      %1908 = vmatpush1.bf16.xpose.msra.mxu0 %v1905
      %1909 = vmatprep.subr.bf16.mxu0 0
      %1910 = vmatpush1.bf16.xpose.msra.mxu0 0
      %1911 = vmatprep.subr.bf16.mxu0 0
      %1912 = vmatpush1.bf16.xpose.msra.mxu0 0
      %1913 = vmatprep.subr.bf16.mxu0 0
      %1914 = vmatpush1.bf16.xpose.msra.mxu0 0
      %1915 = vmatprep.subr.bf16.mxu0 0
      %1916 = vmatpush1.bf16.xpose.msra.mxu0 0
      %1917 = vmatprep.subr.bf16.mxu0 0
      %1918 = vmatpush1.bf16.xpose.msra.mxu0 0
      %1919 = vmatprep.subr.bf16.mxu0 0
      %1920 = vmatpush1.bf16.xpose.msra.mxu0 0
      %1921 = vmatprep.subr.bf16.mxu0 0
      %1922 = vmatpush1.bf16.xpose.msra.mxu0 0
      %1923 = vmatprep.subr.bf16.mxu0 0
      %1924 = vmatpush1.bf16.xpose.msra.mxu0 0
      %1925 = vmatprep.subr.bf16.mxu0 0
      %1926 = vmatpush1.bf16.xpose.msra.mxu0 0
      %1927 = vmatprep.subr.bf16.mxu0 0
      %1928 = vmatpush1.bf16.xpose.msra.mxu0 0
      %1929 = vmatprep.subr.bf16.mxu0 0
      %1930 = vmatpush1.bf16.xpose.msra.mxu0 0
      %1931 = vmatprep.subr.bf16.mxu0 0
      %1932 = vmatpush1.bf16.xpose.msra.mxu0 0
      %1933 = vmatprep.subr.bf16.mxu0 0
      %1934 = vmatpush1.bf16.xpose.msra.mxu0 0
      %1935 = vmatprep.subr.bf16.mxu0 0
      %1936 = vmatpush1.bf16.xpose.msra.mxu0 0
      %1937 = vmatprep.subr.bf16.mxu0 0
      %1938 = vmatpush1.bf16.xpose.msra.mxu0 0
      %1939 = vmatprep.mubr.bf16.mxu0 0
      %1940 = vmatmul.mubr.bf16.gmra.mrb[0].mxu0 %v1902
      %v1941 = vpop.f32.mrb[0].mxu0
      %v1942 = vadd.f32 %v1890, %v1941
      %v1943 = vpop.f32.mrb[0].mxu0
      %v1944 = vpop.f32.mrb[0].mxu0
      %v1945 = vpop.f32.mrb[0].mxu0
      %1946 = vdwg.mxu0
      %1947 = vrot.lane.b32.xlu0 %v976, 16
      %v1948 = vpop.permute.xlu0 %1947
      %1949 = vrot.lane.b32.xlu0 %v977, 16
      %v1950 = vpop.permute.xlu0 %1949
      %v1952 = vsel %vm984, %v1948, 0
      %v1955 = vsel %vm984, %v1950, 0
      %1957 = vmatprep.subr.bf16.mxu0 0
      %1958 = vmatpush1.bf16.xpose.msra.mxu0 %v1955
      %1959 = vmatprep.subr.bf16.mxu0 0
      %1960 = vmatpush1.bf16.xpose.msra.mxu0 0
      %1961 = vmatprep.subr.bf16.mxu0 0
      %1962 = vmatpush1.bf16.xpose.msra.mxu0 0
      %1963 = vmatprep.subr.bf16.mxu0 0
      %1964 = vmatpush1.bf16.xpose.msra.mxu0 0
      %1965 = vmatprep.subr.bf16.mxu0 0
      %1966 = vmatpush1.bf16.xpose.msra.mxu0 0
      %1967 = vmatprep.subr.bf16.mxu0 0
      %1968 = vmatpush1.bf16.xpose.msra.mxu0 0
      %1969 = vmatprep.subr.bf16.mxu0 0
      %1970 = vmatpush1.bf16.xpose.msra.mxu0 0
      %1971 = vmatprep.subr.bf16.mxu0 0
      %1972 = vmatpush1.bf16.xpose.msra.mxu0 0
      %1973 = vmatprep.subr.bf16.mxu0 0
      %1974 = vmatpush1.bf16.xpose.msra.mxu0 0
      %1975 = vmatprep.subr.bf16.mxu0 0
      %1976 = vmatpush1.bf16.xpose.msra.mxu0 0
      %1977 = vmatprep.subr.bf16.mxu0 0
      %1978 = vmatpush1.bf16.xpose.msra.mxu0 0
      %1979 = vmatprep.subr.bf16.mxu0 0
      %1980 = vmatpush1.bf16.xpose.msra.mxu0 0
      %1981 = vmatprep.subr.bf16.mxu0 0
      %1982 = vmatpush1.bf16.xpose.msra.mxu0 0
      %1983 = vmatprep.subr.bf16.mxu0 0
      %1984 = vmatpush1.bf16.xpose.msra.mxu0 0
      %1985 = vmatprep.subr.bf16.mxu0 0
      %1986 = vmatpush1.bf16.xpose.msra.mxu0 0
      %1987 = vmatprep.subr.bf16.mxu0 0
      %1988 = vmatpush1.bf16.xpose.msra.mxu0 0
      %1989 = vmatprep.mubr.bf16.mxu0 0
      %1990 = vmatmul.mubr.bf16.gmra.mrb[0].mxu0 %v1952
      %v1991 = vpop.f32.mrb[0].mxu0
      %v1992 = vadd.f32 0.0, %v1991
      %v1993 = vpop.f32.mrb[0].mxu0
      %v1994 = vpop.f32.mrb[0].mxu0
      %v1995 = vpop.f32.mrb[0].mxu0
      %1996 = vdwg.mxu0
      %v1997 = vadd.f32 %v1942, %v1992
      %v1998 = vmul.f32 %v1997, 0.17677669
      %v1999 = vadd.f32 %v1998, %v547
      %v2000 = vsel %vm883, %v1999, -inf
      %2001 = vmax.xlane.f32.xlu0 %v2000
      %v2002 = vpop.xlane.xlu0 %2001
      %v2003 = vsub.f32 %v1999, %v2002
      %v2004 = vmul.f32 %v2003, 1.442695
      %v2005 = vpow.pop %v2004
      %v2006 = vsel %vm883, %v2005, 0.0
      %2007 = vadd.xlane.f32.xlu0 %v2006
      %v2008 = vpop.xlane.xlu0 %2007
      %v2009 = vrcp.pop %v2008
      %v2010 = vmul.f32 %v2005, %v2009
      %v2011 = vpack.c.bf16 %v2010, %v2010
      %2012 = vrot.lane.b32.xlu0 %v1046, 32
      %v2013 = vpop.permute.xlu0 %2012
      %v2015 = vsel %vm883, %v2011, 0
      %v2018 = vsel %vm1050, %v2013, 0
      %2020 = vmatprep.subr.bf16.mxu0 0
      %2021 = vmatpush1.bf16.msra.mxu0 %v2018
      %2022 = vmatprep.subr.bf16.mxu0 0
      %2023 = vmatpush1.bf16.msra.mxu0 0
      %2024 = vmatprep.subr.bf16.mxu0 0
      %2025 = vmatpush1.bf16.msra.mxu0 0
      %2026 = vmatprep.subr.bf16.mxu0 0
      %2027 = vmatpush1.bf16.msra.mxu0 0
      %2028 = vmatprep.subr.bf16.mxu0 0
      %2029 = vmatpush1.bf16.msra.mxu0 0
      %2030 = vmatprep.subr.bf16.mxu0 0
      %2031 = vmatpush1.bf16.msra.mxu0 0
      %2032 = vmatprep.subr.bf16.mxu0 0
      %2033 = vmatpush1.bf16.msra.mxu0 0
      %2034 = vmatprep.subr.bf16.mxu0 0
      %2035 = vmatpush1.bf16.msra.mxu0 0
      %2036 = vmatprep.subr.bf16.mxu0 0
      %2037 = vmatpush1.bf16.msra.mxu0 0
      %2038 = vmatprep.subr.bf16.mxu0 0
      %2039 = vmatpush1.bf16.msra.mxu0 0
      %2040 = vmatprep.subr.bf16.mxu0 0
      %2041 = vmatpush1.bf16.msra.mxu0 0
      %2042 = vmatprep.subr.bf16.mxu0 0
      %2043 = vmatpush1.bf16.msra.mxu0 0
      %2044 = vmatprep.subr.bf16.mxu0 0
      %2045 = vmatpush1.bf16.msra.mxu0 0
      %2046 = vmatprep.subr.bf16.mxu0 0
      %2047 = vmatpush1.bf16.msra.mxu0 0
      %2048 = vmatprep.subr.bf16.mxu0 0
      %2049 = vmatpush1.bf16.msra.mxu0 0
      %2050 = vmatprep.subr.bf16.mxu0 0
      %2051 = vmatpush1.bf16.msra.mxu0 0
      %2052 = vmatprep.mubr.bf16.mxu0 0
      %2053 = vmatmul.mubr.bf16.gmra.mrb[0].mxu0 %v2015
      %v2054 = vpop.f32.mrb[0].mxu0
      %v2055 = vadd.f32 0.0, %v2054
      %v2056 = vpop.f32.mrb[0].mxu0
      %v2057 = vpop.f32.mrb[0].mxu0
      %v2058 = vpop.f32.mrb[0].mxu0
      %2059 = vdwg.mxu0
      %v2060 = vpack.c.bf16 %v2055, %v2055
      %v2061 = vld [vmem:[%s8 + $0x30] sm:$0xf]
      %v2062 = vld [vmem:[%s8 + $0x34] sm:$0xf]
      %v2063 = vld [vmem:[%s8 + $0x38] sm:$0xf]
      %v2064 = vld [vmem:[%s8 + $0x3c] sm:$0xf]
      %v2069 = vunpack.c.l.b16 %v2061
      %v2070 = vunpack.c.l.b16 %v2062
      %v2071 = vunpack.c.l.b16 %v2063
      %v2072 = vunpack.c.l.b16 %v2064
      %v2073 = vpack.c.b16 %v2070, %v2069
      %v2074 = vpack.c.b16 %v2072, %v2071
      %v2078 = vsel %vm1378, %v2060, 0
      %2080 = vmatprep.subr.bf16.mxu0 0
      %2081 = vmatpush1.bf16.msra.mxu0 %v2073
      %2082 = vmatprep.subr.bf16.mxu0 0
      %2083 = vmatpush1.bf16.msra.mxu0 %v2074
      %2084 = vmatprep.subr.bf16.mxu0 0
      %2085 = vmatpush1.bf16.msra.mxu0 0
      %2086 = vmatprep.subr.bf16.mxu0 0
      %2087 = vmatpush1.bf16.msra.mxu0 0
      %2088 = vmatprep.subr.bf16.mxu0 0
      %2089 = vmatpush1.bf16.msra.mxu0 0
      %2090 = vmatprep.subr.bf16.mxu0 0
      %2091 = vmatpush1.bf16.msra.mxu0 0
      %2092 = vmatprep.subr.bf16.mxu0 0
      %2093 = vmatpush1.bf16.msra.mxu0 0
      %2094 = vmatprep.subr.bf16.mxu0 0
      %2095 = vmatpush1.bf16.msra.mxu0 0
      %2096 = vmatprep.subr.bf16.mxu0 0
      %2097 = vmatpush1.bf16.msra.mxu0 0
      %2098 = vmatprep.subr.bf16.mxu0 0
      %2099 = vmatpush1.bf16.msra.mxu0 0
      %2100 = vmatprep.subr.bf16.mxu0 0
      %2101 = vmatpush1.bf16.msra.mxu0 0
      %2102 = vmatprep.subr.bf16.mxu0 0
      %2103 = vmatpush1.bf16.msra.mxu0 0
      %2104 = vmatprep.subr.bf16.mxu0 0
      %2105 = vmatpush1.bf16.msra.mxu0 0
      %2106 = vmatprep.subr.bf16.mxu0 0
      %2107 = vmatpush1.bf16.msra.mxu0 0
      %2108 = vmatprep.subr.bf16.mxu0 0
      %2109 = vmatpush1.bf16.msra.mxu0 0
      %2110 = vmatprep.subr.bf16.mxu0 0
      %2111 = vmatpush1.bf16.msra.mxu0 0
      %2112 = vmatprep.mubr.bf16.mxu0 0
      %2113 = vmatmul.mubr.bf16.gmra.mrb[0].mxu0 %v2078
      %v2114 = vpop.f32.mrb[0].mxu0
      %v2115 = vadd.f32 0.0, %v2114
      %v2116 = vpop.f32.mrb[0].mxu0
      %v2117 = vpop.f32.mrb[0].mxu0
      %v2118 = vpop.f32.mrb[0].mxu0
      %2119 = vdwg.mxu0
      %v2120 = vadd.f32 %v1798, %v2115
      %v2121 = vld [vmem:[%s9] sm:$0x1]
      %v2123 = vlaneseq
      %v2124 = vshrl.u32 %v2123, 7
      %v2125 = vsub.s32 0, %v2124
      %v2126 = vrot.slane %v2121, %v2125
      %v2128 = vadd.f32 %v2120, %v2126
      %v2129 = vld [vmem:[%s10] sm:$0x1]
      %v2130 = vld [vmem:[%s11] sm:$0x1]
      %v2132 = vlaneseq
      %v2133 = vshrl.u32 %v2132, 7
      %v2134 = vsub.s32 0, %v2133
      %v2135 = vrot.slane %v2129, %v2134
      %v2137 = vmul.f32 %v563, %v2135
      %v2139 = vlaneseq
      %v2140 = vshrl.u32 %v2139, 7
      %v2141 = vsub.s32 0, %v2140
      %v2142 = vrot.slane %v2130, %v2141
      %v2144 = vadd.f32 %v2137, %v2142
      %v2145 = vpack.c.bf16 %v2144, %v2144
      %v2146 = vld [vmem:[%s12] sm:$0xff]
      %v2147 = vld [vmem:[%s12 + $0x8] sm:$0xff]
      %v2148 = vld [vmem:[%s12 + $0x10] sm:$0xff]
      %v2149 = vld [vmem:[%s12 + $0x18] sm:$0xff]
      %v2150 = vld [vmem:[%s12 + $0x20] sm:$0xff]
      %v2151 = vld [vmem:[%s12 + $0x28] sm:$0xff]
      %v2152 = vld [vmem:[%s12 + $0x30] sm:$0xff]
      %v2153 = vld [vmem:[%s12 + $0x38] sm:$0xff]
      %v2154 = vld [vmem:[%s12 + $0x40] sm:$0xff]
      %v2155 = vld [vmem:[%s12 + $0x48] sm:$0xff]
      %v2156 = vld [vmem:[%s12 + $0x50] sm:$0xff]
      %v2157 = vld [vmem:[%s12 + $0x58] sm:$0xff]
      %v2158 = vld [vmem:[%s12 + $0x60] sm:$0xff]
      %v2159 = vld [vmem:[%s12 + $0x68] sm:$0xff]
      %v2160 = vld [vmem:[%s12 + $0x70] sm:$0xff]
      %v2161 = vld [vmem:[%s12 + $0x78] sm:$0xff]
      %v2162 = vld [vmem:[%s12 + $0x80] sm:$0xff]
      %v2163 = vld [vmem:[%s12 + $0x88] sm:$0xff]
      %v2164 = vld [vmem:[%s12 + $0x90] sm:$0xff]
      %v2165 = vld [vmem:[%s12 + $0x98] sm:$0xff]
      %v2166 = vld [vmem:[%s12 + $0xa0] sm:$0xff]
      %v2167 = vld [vmem:[%s12 + $0xa8] sm:$0xff]
      %v2168 = vld [vmem:[%s12 + $0xb0] sm:$0xff]
      %v2169 = vld [vmem:[%s12 + $0xb8] sm:$0xff]
      %v2170 = vld [vmem:[%s12 + $0xc0] sm:$0xff]
      %v2171 = vld [vmem:[%s12 + $0xc8] sm:$0xff]
      %v2172 = vld [vmem:[%s12 + $0xd0] sm:$0xff]
      %v2173 = vld [vmem:[%s12 + $0xd8] sm:$0xff]
      %v2174 = vld [vmem:[%s12 + $0xe0] sm:$0xff]
      %v2175 = vld [vmem:[%s12 + $0xe8] sm:$0xff]
      %v2176 = vld [vmem:[%s12 + $0xf0] sm:$0xff]
      %v2177 = vld [vmem:[%s12 + $0xf8] sm:$0xff]
      %v2178 = vld [vmem:[%s13] sm:$0xf]
      %v2180 = vlaneseq
      %v2181 = vshrl.u32 %v2180, 7
      %v2182 = vsub.s32 0, %v2181
      %v2183 = vrot.slane %v2178, %v2182
      %v2184 = vlaneseq
      %v2185 = vshrl.u32 %v2184, 7
      %v2186 = vsub.s32 1, %v2185
      %v2187 = vrot.slane %v2178, %v2186
      %v2188 = vlaneseq
      %v2189 = vshrl.u32 %v2188, 7
      %v2190 = vsub.s32 2, %v2189
      %v2191 = vrot.slane %v2178, %v2190
      %v2192 = vlaneseq
      %v2193 = vshrl.u32 %v2192, 7
      %v2194 = vsub.s32 3, %v2193
      %v2195 = vrot.slane %v2178, %v2194
      %v2232 = vunpack.c.l.b16 %v2146
      %v2233 = vunpack.c.h.b16 %v2146
      %v2234 = vunpack.c.l.b16 %v2147
      %v2235 = vunpack.c.h.b16 %v2147
      %v2236 = vunpack.c.l.b16 %v2148
      %v2237 = vunpack.c.h.b16 %v2148
      %v2238 = vunpack.c.l.b16 %v2149
      %v2239 = vunpack.c.h.b16 %v2149
      %v2240 = vunpack.c.l.b16 %v2150
      %v2241 = vunpack.c.h.b16 %v2150
      %v2242 = vunpack.c.l.b16 %v2151
      %v2243 = vunpack.c.h.b16 %v2151
      %v2244 = vunpack.c.l.b16 %v2152
      %v2245 = vunpack.c.h.b16 %v2152
      %v2246 = vunpack.c.l.b16 %v2153
      %v2247 = vunpack.c.h.b16 %v2153
      %v2248 = vunpack.c.l.b16 %v2154
      %v2249 = vunpack.c.h.b16 %v2154
      %v2250 = vunpack.c.l.b16 %v2155
      %v2251 = vunpack.c.h.b16 %v2155
      %v2252 = vunpack.c.l.b16 %v2156
      %v2253 = vunpack.c.h.b16 %v2156
      %v2254 = vunpack.c.l.b16 %v2157
      %v2255 = vunpack.c.h.b16 %v2157
      %v2256 = vunpack.c.l.b16 %v2158
      %v2257 = vunpack.c.h.b16 %v2158
      %v2258 = vunpack.c.l.b16 %v2159
      %v2259 = vunpack.c.h.b16 %v2159
      %v2260 = vunpack.c.l.b16 %v2160
      %v2261 = vunpack.c.h.b16 %v2160
      %v2262 = vunpack.c.l.b16 %v2161
      %v2263 = vunpack.c.h.b16 %v2161
      %v2264 = vunpack.c.l.b16 %v2162
      %v2265 = vunpack.c.h.b16 %v2162
      %v2266 = vunpack.c.l.b16 %v2163
      %v2267 = vunpack.c.h.b16 %v2163
      %v2268 = vunpack.c.l.b16 %v2164
      %v2269 = vunpack.c.h.b16 %v2164
      %v2270 = vunpack.c.l.b16 %v2165
      %v2271 = vunpack.c.h.b16 %v2165
      %v2272 = vunpack.c.l.b16 %v2166
      %v2273 = vunpack.c.h.b16 %v2166
      %v2274 = vunpack.c.l.b16 %v2167
      %v2275 = vunpack.c.h.b16 %v2167
      %v2276 = vunpack.c.l.b16 %v2168
      %v2277 = vunpack.c.h.b16 %v2168
      %v2278 = vunpack.c.l.b16 %v2169
      %v2279 = vunpack.c.h.b16 %v2169
      %v2280 = vunpack.c.l.b16 %v2170
      %v2281 = vunpack.c.h.b16 %v2170
      %v2282 = vunpack.c.l.b16 %v2171
      %v2283 = vunpack.c.h.b16 %v2171
      %v2284 = vunpack.c.l.b16 %v2172
      %v2285 = vunpack.c.h.b16 %v2172
      %v2286 = vunpack.c.l.b16 %v2173
      %v2287 = vunpack.c.h.b16 %v2173
      %v2288 = vunpack.c.l.b16 %v2174
      %v2289 = vunpack.c.h.b16 %v2174
      %v2290 = vunpack.c.l.b16 %v2175
      %v2291 = vunpack.c.h.b16 %v2175
      %v2292 = vunpack.c.l.b16 %v2176
      %v2293 = vunpack.c.h.b16 %v2176
      %v2294 = vunpack.c.l.b16 %v2177
      %v2295 = vunpack.c.h.b16 %v2177
      %v2296 = vpack.c.b16 %v2236, %v2232
      %v2297 = vpack.c.b16 %v2237, %v2233
      %v2298 = vpack.c.b16 %v2238, %v2234
      %v2299 = vpack.c.b16 %v2239, %v2235
      %v2300 = vpack.c.b16 %v2244, %v2240
      %v2301 = vpack.c.b16 %v2245, %v2241
      %v2302 = vpack.c.b16 %v2246, %v2242
      %v2303 = vpack.c.b16 %v2247, %v2243
      %v2304 = vpack.c.b16 %v2252, %v2248
      %v2305 = vpack.c.b16 %v2253, %v2249
      %v2306 = vpack.c.b16 %v2254, %v2250
      %v2307 = vpack.c.b16 %v2255, %v2251
      %v2308 = vpack.c.b16 %v2260, %v2256
      %v2309 = vpack.c.b16 %v2261, %v2257
      %v2310 = vpack.c.b16 %v2262, %v2258
      %v2311 = vpack.c.b16 %v2263, %v2259
      %v2312 = vpack.c.b16 %v2268, %v2264
      %v2313 = vpack.c.b16 %v2269, %v2265
      %v2314 = vpack.c.b16 %v2270, %v2266
      %v2315 = vpack.c.b16 %v2271, %v2267
      %v2316 = vpack.c.b16 %v2276, %v2272
      %v2317 = vpack.c.b16 %v2277, %v2273
      %v2318 = vpack.c.b16 %v2278, %v2274
      %v2319 = vpack.c.b16 %v2279, %v2275
      %v2320 = vpack.c.b16 %v2284, %v2280
      %v2321 = vpack.c.b16 %v2285, %v2281
      %v2322 = vpack.c.b16 %v2286, %v2282
      %v2323 = vpack.c.b16 %v2287, %v2283
      %v2324 = vpack.c.b16 %v2292, %v2288
      %v2325 = vpack.c.b16 %v2293, %v2289
      %v2326 = vpack.c.b16 %v2294, %v2290
      %v2327 = vpack.c.b16 %v2295, %v2291
      %2360 = vmatprep.subr.bf16.mxu0 %v2297
      %2361 = vmatpush1.bf16.msra.mxu0 %v2296
      %2362 = vmatprep.subr.bf16.mxu0 %v2301
      %2363 = vmatpush1.bf16.msra.mxu0 %v2300
      %2364 = vmatprep.subr.bf16.mxu0 %v2305
      %2365 = vmatpush1.bf16.msra.mxu0 %v2304
      %2366 = vmatprep.subr.bf16.mxu0 %v2309
      %2367 = vmatpush1.bf16.msra.mxu0 %v2308
      %2368 = vmatprep.subr.bf16.mxu0 %v2313
      %2369 = vmatpush1.bf16.msra.mxu0 %v2312
      %2370 = vmatprep.subr.bf16.mxu0 %v2317
      %2371 = vmatpush1.bf16.msra.mxu0 %v2316
      %2372 = vmatprep.subr.bf16.mxu0 %v2321
      %2373 = vmatpush1.bf16.msra.mxu0 %v2320
      %2374 = vmatprep.subr.bf16.mxu0 %v2325
      %2375 = vmatpush1.bf16.msra.mxu0 %v2324
      %2376 = vmatprep.subr.bf16.mxu0 0
      %2377 = vmatpush1.bf16.msra.mxu0 0
      %2378 = vmatprep.subr.bf16.mxu0 0
      %2379 = vmatpush1.bf16.msra.mxu0 0
      %2380 = vmatprep.subr.bf16.mxu0 0
      %2381 = vmatpush1.bf16.msra.mxu0 0
      %2382 = vmatprep.subr.bf16.mxu0 0
      %2383 = vmatpush1.bf16.msra.mxu0 0
      %2384 = vmatprep.subr.bf16.mxu0 0
      %2385 = vmatpush1.bf16.msra.mxu0 0
      %2386 = vmatprep.subr.bf16.mxu0 0
      %2387 = vmatpush1.bf16.msra.mxu0 0
      %2388 = vmatprep.subr.bf16.mxu0 0
      %2389 = vmatpush1.bf16.msra.mxu0 0
      %2390 = vmatprep.subr.bf16.mxu0 0
      %2391 = vmatpush1.bf16.msra.mxu0 0
      %2392 = vmatprep.mubr.bf16.mxu0 0
      %2393 = vmatmul.mubr.bf16.gmra.mrb[0].mxu0 %v2145
      %v2394 = vpop.f32.mrb[0].mxu0
      %v2395 = vadd.f32 %v2183, %v2394
      %v2396 = vpop.f32.mrb[0].mxu0
      %v2397 = vadd.f32 %v2187, %v2396
      %v2398 = vpop.f32.mrb[0].mxu0
      %v2399 = vpop.f32.mrb[0].mxu0
      %2400 = vdwg.mxu0
      %2401 = vmatprep.subr.bf16.mxu0 %v2299
      %2402 = vmatpush1.bf16.msra.mxu0 %v2298
      %2403 = vmatprep.subr.bf16.mxu0 %v2303
      %2404 = vmatpush1.bf16.msra.mxu0 %v2302
      %2405 = vmatprep.subr.bf16.mxu0 %v2307
      %2406 = vmatpush1.bf16.msra.mxu0 %v2306
      %2407 = vmatprep.subr.bf16.mxu0 %v2311
      %2408 = vmatpush1.bf16.msra.mxu0 %v2310
      %2409 = vmatprep.subr.bf16.mxu0 %v2315
      %2410 = vmatpush1.bf16.msra.mxu0 %v2314
      %2411 = vmatprep.subr.bf16.mxu0 %v2319
      %2412 = vmatpush1.bf16.msra.mxu0 %v2318
      %2413 = vmatprep.subr.bf16.mxu0 %v2323
      %2414 = vmatpush1.bf16.msra.mxu0 %v2322
      %2415 = vmatprep.subr.bf16.mxu0 %v2327
      %2416 = vmatpush1.bf16.msra.mxu0 %v2326
      %2417 = vmatprep.subr.bf16.mxu0 0
      %2418 = vmatpush1.bf16.msra.mxu0 0
      %2419 = vmatprep.subr.bf16.mxu0 0
      %2420 = vmatpush1.bf16.msra.mxu0 0
      %2421 = vmatprep.subr.bf16.mxu0 0
      %2422 = vmatpush1.bf16.msra.mxu0 0
      %2423 = vmatprep.subr.bf16.mxu0 0
      %2424 = vmatpush1.bf16.msra.mxu0 0
      %2425 = vmatprep.subr.bf16.mxu0 0
      %2426 = vmatpush1.bf16.msra.mxu0 0
      %2427 = vmatprep.subr.bf16.mxu0 0
      %2428 = vmatpush1.bf16.msra.mxu0 0
      %2429 = vmatprep.subr.bf16.mxu0 0
      %2430 = vmatpush1.bf16.msra.mxu0 0
      %2431 = vmatprep.subr.bf16.mxu0 0
      %2432 = vmatpush1.bf16.msra.mxu0 0
      %2433 = vmatprep.mubr.bf16.mxu0 0
      %2434 = vmatmul.mubr.bf16.gmra.mrb[0].mxu0 %v2145
      %v2435 = vpop.f32.mrb[0].mxu0
      %v2436 = vadd.f32 %v2191, %v2435
      %v2437 = vpop.f32.mrb[0].mxu0
      %v2438 = vadd.f32 %v2195, %v2437
      %v2439 = vpop.f32.mrb[0].mxu0
      %v2440 = vpop.f32.mrb[0].mxu0
      %2441 = vdwg.mxu0
      %v2442 = vmul.f32 %v2395, %v2395
      %v2443 = vmul.f32 %v2397, %v2397
      %v2444 = vmul.f32 %v2436, %v2436
      %v2445 = vmul.f32 %v2438, %v2438
      %v2446 = vmul.f32 %v2395, %v2442
      %v2447 = vmul.f32 %v2397, %v2443
      %v2448 = vmul.f32 %v2436, %v2444
      %v2449 = vmul.f32 %v2438, %v2445
      %v2450 = vmul.f32 %v2446, 0.044715
      %v2451 = vmul.f32 %v2447, 0.044715
      %v2452 = vmul.f32 %v2448, 0.044715
      %v2453 = vmul.f32 %v2449, 0.044715
      %v2454 = vadd.f32 %v2395, %v2450
      %v2455 = vadd.f32 %v2397, %v2451
      %v2456 = vadd.f32 %v2436, %v2452
      %v2457 = vadd.f32 %v2438, %v2453
      %v2458 = vmul.f32 %v2454, 0.7978846
      %v2459 = vmul.f32 %v2455, 0.7978846
      %v2460 = vmul.f32 %v2456, 0.7978846
      %v2461 = vmul.f32 %v2457, 0.7978846
      %v2462 = vtanh.pop %v2458
      %v2463 = vtanh.pop %v2459
      %v2464 = vtanh.pop %v2460
      %v2465 = vtanh.pop %v2461
      %v2466 = vadd.f32 %v2462, 1.0
      %v2467 = vadd.f32 %v2463, 1.0
      %v2468 = vadd.f32 %v2464, 1.0
      %v2469 = vadd.f32 %v2465, 1.0
      %v2470 = vmul.f32 %v2466, 0.5
      %v2471 = vmul.f32 %v2467, 0.5
      %v2472 = vmul.f32 %v2468, 0.5
      %v2473 = vmul.f32 %v2469, 0.5
      %v2474 = vmul.f32 %v2395, %v2470
      %v2475 = vmul.f32 %v2397, %v2471
      %v2476 = vmul.f32 %v2436, %v2472
      %v2477 = vmul.f32 %v2438, %v2473
      %v2478 = vpack.c.bf16 %v2474, %v2474
      %v2479 = vpack.c.bf16 %v2475, %v2475
      %v2480 = vpack.c.bf16 %v2476, %v2476
      %v2481 = vpack.c.bf16 %v2477, %v2477
      %v2482 = vld [vmem:[%s14] sm:$0xf]
      %v2483 = vld [vmem:[%s14 + $0x4] sm:$0xf]
      %v2484 = vld [vmem:[%s14 + $0x8] sm:$0xf]
      %v2485 = vld [vmem:[%s14 + $0xc] sm:$0xf]
      %v2486 = vld [vmem:[%s14 + $0x10] sm:$0xf]
      %v2487 = vld [vmem:[%s14 + $0x14] sm:$0xf]
      %v2488 = vld [vmem:[%s14 + $0x18] sm:$0xf]
      %v2489 = vld [vmem:[%s14 + $0x1c] sm:$0xf]
      %v2490 = vld [vmem:[%s14 + $0x20] sm:$0xf]
      %v2491 = vld [vmem:[%s14 + $0x24] sm:$0xf]
      %v2492 = vld [vmem:[%s14 + $0x28] sm:$0xf]
      %v2493 = vld [vmem:[%s14 + $0x2c] sm:$0xf]
      %v2494 = vld [vmem:[%s14 + $0x30] sm:$0xf]
      %v2495 = vld [vmem:[%s14 + $0x34] sm:$0xf]
      %v2496 = vld [vmem:[%s14 + $0x38] sm:$0xf]
      %v2497 = vld [vmem:[%s14 + $0x3c] sm:$0xf]
      %v2498 = vld [vmem:[%s14 + $0x40] sm:$0xf]
      %v2499 = vld [vmem:[%s14 + $0x44] sm:$0xf]
      %v2500 = vld [vmem:[%s14 + $0x48] sm:$0xf]
      %v2501 = vld [vmem:[%s14 + $0x4c] sm:$0xf]
      %v2502 = vld [vmem:[%s14 + $0x50] sm:$0xf]
      %v2503 = vld [vmem:[%s14 + $0x54] sm:$0xf]
      %v2504 = vld [vmem:[%s14 + $0x58] sm:$0xf]
      %v2505 = vld [vmem:[%s14 + $0x5c] sm:$0xf]
      %v2506 = vld [vmem:[%s14 + $0x60] sm:$0xf]
      %v2507 = vld [vmem:[%s14 + $0x64] sm:$0xf]
      %v2508 = vld [vmem:[%s14 + $0x68] sm:$0xf]
      %v2509 = vld [vmem:[%s14 + $0x6c] sm:$0xf]
      %v2510 = vld [vmem:[%s14 + $0x70] sm:$0xf]
      %v2511 = vld [vmem:[%s14 + $0x74] sm:$0xf]
      %v2512 = vld [vmem:[%s14 + $0x78] sm:$0xf]
      %v2513 = vld [vmem:[%s14 + $0x7c] sm:$0xf]
      %v2514 = vld [vmem:[%s14 + $0x80] sm:$0xf]
      %v2515 = vld [vmem:[%s14 + $0x84] sm:$0xf]
      %v2516 = vld [vmem:[%s14 + $0x88] sm:$0xf]
      %v2517 = vld [vmem:[%s14 + $0x8c] sm:$0xf]
      %v2518 = vld [vmem:[%s14 + $0x90] sm:$0xf]
      %v2519 = vld [vmem:[%s14 + $0x94] sm:$0xf]
      %v2520 = vld [vmem:[%s14 + $0x98] sm:$0xf]
      %v2521 = vld [vmem:[%s14 + $0x9c] sm:$0xf]
      %v2522 = vld [vmem:[%s14 + $0xa0] sm:$0xf]
      %v2523 = vld [vmem:[%s14 + $0xa4] sm:$0xf]
      %v2524 = vld [vmem:[%s14 + $0xa8] sm:$0xf]
      %v2525 = vld [vmem:[%s14 + $0xac] sm:$0xf]
      %v2526 = vld [vmem:[%s14 + $0xb0] sm:$0xf]
      %v2527 = vld [vmem:[%s14 + $0xb4] sm:$0xf]
      %v2528 = vld [vmem:[%s14 + $0xb8] sm:$0xf]
      %v2529 = vld [vmem:[%s14 + $0xbc] sm:$0xf]
      %v2530 = vld [vmem:[%s14 + $0xc0] sm:$0xf]
      %v2531 = vld [vmem:[%s14 + $0xc4] sm:$0xf]
      %v2532 = vld [vmem:[%s14 + $0xc8] sm:$0xf]
      %v2533 = vld [vmem:[%s14 + $0xcc] sm:$0xf]
      %v2534 = vld [vmem:[%s14 + $0xd0] sm:$0xf]
      %v2535 = vld [vmem:[%s14 + $0xd4] sm:$0xf]
      %v2536 = vld [vmem:[%s14 + $0xd8] sm:$0xf]
      %v2537 = vld [vmem:[%s14 + $0xdc] sm:$0xf]
      %v2538 = vld [vmem:[%s14 + $0xe0] sm:$0xf]
      %v2539 = vld [vmem:[%s14 + $0xe4] sm:$0xf]
      %v2540 = vld [vmem:[%s14 + $0xe8] sm:$0xf]
      %v2541 = vld [vmem:[%s14 + $0xec] sm:$0xf]
      %v2542 = vld [vmem:[%s14 + $0xf0] sm:$0xf]
      %v2543 = vld [vmem:[%s14 + $0xf4] sm:$0xf]
      %v2544 = vld [vmem:[%s14 + $0xf8] sm:$0xf]
      %v2545 = vld [vmem:[%s14 + $0xfc] sm:$0xf]
      %v2546 = vld [vmem:[%s15] sm:$0x1]
      %v2548 = vlaneseq
      %v2549 = vshrl.u32 %v2548, 7
      %v2550 = vsub.s32 0, %v2549
      %v2551 = vrot.slane %v2546, %v2550
      %v2617 = vunpack.c.l.b16 %v2482
      %v2618 = vunpack.c.l.b16 %v2483
      %v2619 = vunpack.c.l.b16 %v2484
      %v2620 = vunpack.c.l.b16 %v2485
      %v2621 = vunpack.c.l.b16 %v2486
      %v2622 = vunpack.c.l.b16 %v2487
      %v2623 = vunpack.c.l.b16 %v2488
      %v2624 = vunpack.c.l.b16 %v2489
      %v2625 = vunpack.c.l.b16 %v2490
      %v2626 = vunpack.c.l.b16 %v2491
      %v2627 = vunpack.c.l.b16 %v2492
      %v2628 = vunpack.c.l.b16 %v2493
      %v2629 = vunpack.c.l.b16 %v2494
      %v2630 = vunpack.c.l.b16 %v2495
      %v2631 = vunpack.c.l.b16 %v2496
      %v2632 = vunpack.c.l.b16 %v2497
      %v2633 = vunpack.c.l.b16 %v2498
      %v2634 = vunpack.c.l.b16 %v2499
      %v2635 = vunpack.c.l.b16 %v2500
      %v2636 = vunpack.c.l.b16 %v2501
      %v2637 = vunpack.c.l.b16 %v2502
      %v2638 = vunpack.c.l.b16 %v2503
      %v2639 = vunpack.c.l.b16 %v2504
      %v2640 = vunpack.c.l.b16 %v2505
      %v2641 = vunpack.c.l.b16 %v2506
      %v2642 = vunpack.c.l.b16 %v2507
      %v2643 = vunpack.c.l.b16 %v2508
      %v2644 = vunpack.c.l.b16 %v2509
      %v2645 = vunpack.c.l.b16 %v2510
      %v2646 = vunpack.c.l.b16 %v2511
      %v2647 = vunpack.c.l.b16 %v2512
      %v2648 = vunpack.c.l.b16 %v2513
      %v2649 = vunpack.c.l.b16 %v2514
      %v2650 = vunpack.c.l.b16 %v2515
      %v2651 = vunpack.c.l.b16 %v2516
      %v2652 = vunpack.c.l.b16 %v2517
      %v2653 = vunpack.c.l.b16 %v2518
      %v2654 = vunpack.c.l.b16 %v2519
      %v2655 = vunpack.c.l.b16 %v2520
      %v2656 = vunpack.c.l.b16 %v2521
      %v2657 = vunpack.c.l.b16 %v2522
      %v2658 = vunpack.c.l.b16 %v2523
      %v2659 = vunpack.c.l.b16 %v2524
      %v2660 = vunpack.c.l.b16 %v2525
      %v2661 = vunpack.c.l.b16 %v2526
      %v2662 = vunpack.c.l.b16 %v2527
      %v2663 = vunpack.c.l.b16 %v2528
      %v2664 = vunpack.c.l.b16 %v2529
      %v2665 = vunpack.c.l.b16 %v2530
      %v2666 = vunpack.c.l.b16 %v2531
      %v2667 = vunpack.c.l.b16 %v2532
      %v2668 = vunpack.c.l.b16 %v2533
      %v2669 = vunpack.c.l.b16 %v2534
      %v2670 = vunpack.c.l.b16 %v2535
      %v2671 = vunpack.c.l.b16 %v2536
      %v2672 = vunpack.c.l.b16 %v2537
      %v2673 = vunpack.c.l.b16 %v2538
      %v2674 = vunpack.c.l.b16 %v2539
      %v2675 = vunpack.c.l.b16 %v2540
      %v2676 = vunpack.c.l.b16 %v2541
      %v2677 = vunpack.c.l.b16 %v2542
      %v2678 = vunpack.c.l.b16 %v2543
      %v2679 = vunpack.c.l.b16 %v2544
      %v2680 = vunpack.c.l.b16 %v2545
      %v2681 = vpack.c.b16 %v2618, %v2617
      %v2682 = vpack.c.b16 %v2620, %v2619
      %v2683 = vpack.c.b16 %v2622, %v2621
      %v2684 = vpack.c.b16 %v2624, %v2623
      %v2685 = vpack.c.b16 %v2626, %v2625
      %v2686 = vpack.c.b16 %v2628, %v2627
      %v2687 = vpack.c.b16 %v2630, %v2629
      %v2688 = vpack.c.b16 %v2632, %v2631
      %v2689 = vpack.c.b16 %v2634, %v2633
      %v2690 = vpack.c.b16 %v2636, %v2635
      %v2691 = vpack.c.b16 %v2638, %v2637
      %v2692 = vpack.c.b16 %v2640, %v2639
      %v2693 = vpack.c.b16 %v2642, %v2641
      %v2694 = vpack.c.b16 %v2644, %v2643
      %v2695 = vpack.c.b16 %v2646, %v2645
      %v2696 = vpack.c.b16 %v2648, %v2647
      %v2697 = vpack.c.b16 %v2650, %v2649
      %v2698 = vpack.c.b16 %v2652, %v2651
      %v2699 = vpack.c.b16 %v2654, %v2653
      %v2700 = vpack.c.b16 %v2656, %v2655
      %v2701 = vpack.c.b16 %v2658, %v2657
      %v2702 = vpack.c.b16 %v2660, %v2659
      %v2703 = vpack.c.b16 %v2662, %v2661
      %v2704 = vpack.c.b16 %v2664, %v2663
      %v2705 = vpack.c.b16 %v2666, %v2665
      %v2706 = vpack.c.b16 %v2668, %v2667
      %v2707 = vpack.c.b16 %v2670, %v2669
      %v2708 = vpack.c.b16 %v2672, %v2671
      %v2709 = vpack.c.b16 %v2674, %v2673
      %v2710 = vpack.c.b16 %v2676, %v2675
      %v2711 = vpack.c.b16 %v2678, %v2677
      %v2712 = vpack.c.b16 %v2680, %v2679
      %2745 = vmatprep.subr.bf16.mxu0 0
      %2746 = vmatpush1.bf16.msra.mxu0 %v2681
      %2747 = vmatprep.subr.bf16.mxu0 0
      %2748 = vmatpush1.bf16.msra.mxu0 %v2682
      %2749 = vmatprep.subr.bf16.mxu0 0
      %2750 = vmatpush1.bf16.msra.mxu0 %v2683
      %2751 = vmatprep.subr.bf16.mxu0 0
      %2752 = vmatpush1.bf16.msra.mxu0 %v2684
      %2753 = vmatprep.subr.bf16.mxu0 0
      %2754 = vmatpush1.bf16.msra.mxu0 %v2685
      %2755 = vmatprep.subr.bf16.mxu0 0
      %2756 = vmatpush1.bf16.msra.mxu0 %v2686
      %2757 = vmatprep.subr.bf16.mxu0 0
      %2758 = vmatpush1.bf16.msra.mxu0 %v2687
      %2759 = vmatprep.subr.bf16.mxu0 0
      %2760 = vmatpush1.bf16.msra.mxu0 %v2688
      %2761 = vmatprep.subr.bf16.mxu0 0
      %2762 = vmatpush1.bf16.msra.mxu0 %v2689
      %2763 = vmatprep.subr.bf16.mxu0 0
      %2764 = vmatpush1.bf16.msra.mxu0 %v2690
      %2765 = vmatprep.subr.bf16.mxu0 0
      %2766 = vmatpush1.bf16.msra.mxu0 %v2691
      %2767 = vmatprep.subr.bf16.mxu0 0
      %2768 = vmatpush1.bf16.msra.mxu0 %v2692
      %2769 = vmatprep.subr.bf16.mxu0 0
      %2770 = vmatpush1.bf16.msra.mxu0 %v2693
      %2771 = vmatprep.subr.bf16.mxu0 0
      %2772 = vmatpush1.bf16.msra.mxu0 %v2694
      %2773 = vmatprep.subr.bf16.mxu0 0
      %2774 = vmatpush1.bf16.msra.mxu0 %v2695
      %2775 = vmatprep.subr.bf16.mxu0 0
      %2776 = vmatpush1.bf16.msra.mxu0 %v2696
      %2777 = vmatprep.mubr.bf16.mxu0 %v2479
      %2778 = vmatmul.mubr.bf16.gmra.mrb[0].mxu0 %v2478
      %v2779 = vpop.f32.mrb[0].mxu0
      %v2780 = vadd.f32 %v2551, %v2779
      %v2781 = vpop.f32.mrb[0].mxu0
      %v2782 = vpop.f32.mrb[0].mxu0
      %v2783 = vpop.f32.mrb[0].mxu0
      %2784 = vdwg.mxu0
      %2785 = vmatprep.subr.bf16.mxu0 0
      %2786 = vmatpush1.bf16.msra.mxu0 %v2697
      %2787 = vmatprep.subr.bf16.mxu0 0
      %2788 = vmatpush1.bf16.msra.mxu0 %v2698
      %2789 = vmatprep.subr.bf16.mxu0 0
      %2790 = vmatpush1.bf16.msra.mxu0 %v2699
      %2791 = vmatprep.subr.bf16.mxu0 0
      %2792 = vmatpush1.bf16.msra.mxu0 %v2700
      %2793 = vmatprep.subr.bf16.mxu0 0
      %2794 = vmatpush1.bf16.msra.mxu0 %v2701
      %2795 = vmatprep.subr.bf16.mxu0 0
      %2796 = vmatpush1.bf16.msra.mxu0 %v2702
      %2797 = vmatprep.subr.bf16.mxu0 0
      %2798 = vmatpush1.bf16.msra.mxu0 %v2703
      %2799 = vmatprep.subr.bf16.mxu0 0
      %2800 = vmatpush1.bf16.msra.mxu0 %v2704
      %2801 = vmatprep.subr.bf16.mxu0 0
      %2802 = vmatpush1.bf16.msra.mxu0 %v2705
      %2803 = vmatprep.subr.bf16.mxu0 0
      %2804 = vmatpush1.bf16.msra.mxu0 %v2706
      %2805 = vmatprep.subr.bf16.mxu0 0
      %2806 = vmatpush1.bf16.msra.mxu0 %v2707
      %2807 = vmatprep.subr.bf16.mxu0 0
      %2808 = vmatpush1.bf16.msra.mxu0 %v2708
      %2809 = vmatprep.subr.bf16.mxu0 0
      %2810 = vmatpush1.bf16.msra.mxu0 %v2709
      %2811 = vmatprep.subr.bf16.mxu0 0
      %2812 = vmatpush1.bf16.msra.mxu0 %v2710
      %2813 = vmatprep.subr.bf16.mxu0 0
      %2814 = vmatpush1.bf16.msra.mxu0 %v2711
      %2815 = vmatprep.subr.bf16.mxu0 0
      %2816 = vmatpush1.bf16.msra.mxu0 %v2712
      %2817 = vmatprep.mubr.bf16.mxu0 %v2481
      %2818 = vmatmul.mubr.bf16.gmra.mrb[0].mxu0 %v2480
      %v2819 = vpop.f32.mrb[0].mxu0
      %v2820 = vadd.f32 %v2780, %v2819
      %v2821 = vpop.f32.mrb[0].mxu0
      %v2822 = vpop.f32.mrb[0].mxu0
      %v2823 = vpop.f32.mrb[0].mxu0
      %2824 = vdwg.mxu0
      %v2825 = vadd.f32 %v532, %v2128
      %v2826 = vadd.f32 %v2825, %v2820
      %2827 = vst [vmem:[%s530] sm:$0xff] %v2826
      %p2828 = scmp.lt.s32.totalorder %s27, 1
      %s2829 = scalar_select %p2828, %s27, 1
      %s2830 = smul.addr %s2829, 8
      %s2831 = scalar_lea.vmem %s16, %s2830
      // Predicated region
      $region85: #{text_encoder_forward.4} parent=83 // pred_check
        %p2832 = pneg %p391
      $region86: #{text_encoder_forward.4} parent=83 // pred_check_branch
        %2834 = sbr.rel (%p2832) target = $region88
      $region87: #{text_encoder_forward.4} parent=83 // pred_region
        _
      $region88: #{text_encoder_forward.4} parent=83 // pred_fallthru
        _
    $region84: #{text_encoder_forward.4} parent=5 // pred_fallthru
      _
    %p2835 = scmp.le.s32.totalorder 2, %s22
    // Predicated region
    $region89: #{text_encoder_forward.4} parent=5 // pred_check
      %p2836 = pneg %p2835
    $region90: #{text_encoder_forward.4} parent=5 // pred_check_branch
      %2838 = sbr.rel (%p2836) target = $region92
    $region91: #{text_encoder_forward.4} parent=5 // pred_region
      %s2839 = ssub.s32 %s22, 2
      // Predicated region
      $region93: #{text_encoder_forward.4} parent=91 // pred_check
        %p2840 = pneg %p397
      $region94: #{text_encoder_forward.4} parent=91 // pred_check_branch
        %2842 = sbr.rel (%p2840) target = $region96
      $region95: #{text_encoder_forward.4} parent=91 // pred_region
        %p2843 = scmp.lt.s32.totalorder %s28, 1
        %s2844 = scalar_select %p2843, %s28, 1
        %s2845 = smul.addr %s2844, 8
        %s2846 = scalar_lea.vmem %s16, %s2845
      $region96: #{text_encoder_forward.4} parent=91 // pred_fallthru
        _
    $region92: #{text_encoder_forward.4} parent=5 // pred_fallthru
      _
  $region6: #{text_encoder_forward.4} parent=0 // loop_footer
    %s26 = sadd.s32 1, %s22
  $region7: #{text_encoder_forward.4} parent=0 // loop_footer_branch
    %21 = sbr.rel target = $region3
  $region8: #{text_encoder_forward.4} parent=0 // loop_exit
    _

// kernel: text_encoder_forward.3
$region0: #{text_encoder_forward.3}
  #allocation0 [shape = 'u32[]', space=smem, size = 0x4, offset = 0x4, fixed_abs, tag = 'smem constant byte address 0x4 - core index']
  #allocation1 [shape = 'u32[144,128]{1,0:T(1,128)}', space=vmem, size = 0x12000, scoped, tag = 'internal scratch']
  %s0 = inlined_call_operand.vmem [shape: f32[2,8,128], index: 0, kind: input, shape index: {}]
  %s1 = inlined_call_operand.vmem [shape: f32[2,1,8], index: 1, kind: input, shape index: {}]
  %s2 = inlined_call_operand.vmem [shape: f32[8,8], index: 2, kind: input, shape index: {}]
  %s3 = inlined_call_operand.vmem [shape: f32[8,8], index: 3, kind: input, shape index: {}]
  %s4 = inlined_call_operand.hbm [shape: f32[1,128], index: 4, kind: input, shape index: {}]
  %s5 = inlined_call_operand.hbm [shape: f32[1,128], index: 5, kind: input, shape index: {}]
  %s6 = inlined_call_operand.vmem [shape: bf16[128,384], index: 6, kind: input, shape index: {}]
  %s7 = inlined_call_operand.hbm [shape: f32[1,384], index: 7, kind: input, shape index: {}]
  %s8 = inlined_call_operand.hbm [shape: bf16[128,128], index: 8, kind: input, shape index: {}]
  %s9 = inlined_call_operand.hbm [shape: f32[1,128], index: 9, kind: input, shape index: {}]
  %s10 = inlined_call_operand.hbm [shape: f32[1,128], index: 10, kind: input, shape index: {}]
  %s11 = inlined_call_operand.hbm [shape: f32[1,128], index: 11, kind: input, shape index: {}]
  %s12 = inlined_call_operand.hbm [shape: bf16[128,512], index: 12, kind: input, shape index: {}]
  %s13 = inlined_call_operand.vmem [shape: f32[1,512], index: 13, kind: input, shape index: {}]
  %s14 = inlined_call_operand.hbm [shape: bf16[512,128], index: 14, kind: input, shape index: {}]
  %s15 = inlined_call_operand.hbm [shape: f32[1,128], index: 15, kind: input, shape index: {}]
  %s16 = inlined_call_operand.vmem [shape: f32[2,8,128], index: 16, kind: output, shape index: {}]
  %s17 = sld [smem:[#allocation0]]
  $region137: #{text_encoder_forward.3} parent=0
    _
  %s19 = ssub.s32 1, %s17
  %s20 = scalar_select 0, %s19, %s17
  $region1: #{text_encoder_forward.3} parent=0
    #allocation2 [shape = 'u8[512]{0}', space=vmem, size = 0x400, scoped, tag = 'input window, operand 4, single buffered']
    #allocation3 [shape = 's32[2]{0}', space=sflag, size = 0x8, scoped, tag = 'scoped memory for text_encoder_forward.3']
    #allocation4 [shape = 'u8[512]{0}', space=vmem, size = 0x400, scoped, tag = 'input window, operand 5, single buffered']
    #allocation5 [shape = 's32[1]{0}', space=sflag, size = 0x4, scoped, tag = 'scoped memory for text_encoder_forward.3']
    #allocation6 [shape = 'u8[1536]{0}', space=vmem, size = 0x800, scoped, tag = 'input window, operand 7, single buffered']
    #allocation7 [shape = 'u8[32768]{0}', space=vmem, size = 0x8000, scoped, tag = 'input window, operand 8, single buffered']
    #allocation8 [shape = 's32[1]{0}', space=sflag, size = 0x4, scoped, tag = 'scoped memory for text_encoder_forward.3']
    #allocation9 [shape = 'u8[512]{0}', space=vmem, size = 0x400, scoped, tag = 'input window, operand 9, single buffered']
    #allocation10 [shape = 'u8[512]{0}', space=vmem, size = 0x400, scoped, tag = 'input window, operand 10, single buffered']
    #allocation11 [shape = 's32[1]{0}', space=sflag, size = 0x4, scoped, tag = 'scoped memory for text_encoder_forward.3']
    #allocation12 [shape = 'u8[512]{0}', space=vmem, size = 0x400, scoped, tag = 'input window, operand 11, single buffered']
    #allocation13 [shape = 'u8[131072]{0}', space=vmem, size = 0x20000, scoped, tag = 'input window, operand 12, single buffered']
    #allocation14 [shape = 's32[1]{0}', space=sflag, size = 0x4, scoped, tag = 'scoped memory for text_encoder_forward.3']
    #allocation15 [shape = 'u8[131072]{0}', space=vmem, size = 0x20000, scoped, tag = 'input window, operand 14, single buffered']
    #allocation16 [shape = 'u8[512]{0}', space=vmem, size = 0x400, scoped, tag = 'input window, operand 15, single buffered']
    #allocation17 [shape = 's32[1]{0}', space=sflag, size = 0x4, scoped, tag = 'scoped memory for text_encoder_forward.3']
    %21 = vsyncpa [#allocation3], 0
    %22 = vsyncpa [#allocation5], 0
    %23 = vsyncpa [#allocation8], 0
    %24 = vsyncpa [#allocation11], 0
    %25 = vsyncpa [#allocation14], 0
    %26 = vsyncpa [#allocation17], 0
    loop: start=0, step=1, limit=4
    $region2: #{text_encoder_forward.3} parent=1 // loop_pre_header
      _
    $region3: #{text_encoder_forward.3} parent=1 // loop_header
      %s28 = sphi 0, %s32
      %p29 = scmp.ge.s32.totalorder %s28, 4
      %s38 = sphi 0, %s40
      %s41 = sphi 0, %s38
      %s42 = sphi 0, %s41
      %s58 = sphi 0, %s42
      %s64 = sphi 0, %s66
      %s67 = sphi 0, %s64
      %s68 = sphi 0, %s67
      %s84 = sphi 0, %s68
      %s88 = sphi 0, %s88
      %s90 = sphi 0, %s88
      %s91 = sphi 0, %s90
      %s105 = sphi 0, %s91
      %s109 = sphi 0, %s109
      %s111 = sphi 0, %s109
      %s112 = sphi 0, %s111
      %s126 = sphi 0, %s112
      %s130 = sphi 0, %s130
      %s132 = sphi 0, %s130
      %s133 = sphi 0, %s132
      %s147 = sphi 0, %s133
      %s151 = sphi 0, %s151
      %s153 = sphi 0, %s151
      %s154 = sphi 0, %s153
      %s168 = sphi 0, %s154
      %s172 = sphi 0, %s172
      %s174 = sphi 0, %s172
      %s175 = sphi 0, %s174
      %s189 = sphi 0, %s175
      %s193 = sphi 0, %s193
      %s195 = sphi 0, %s193
      %s196 = sphi 0, %s195
      %s210 = sphi 0, %s196
      %s214 = sphi 0, %s214
      %s216 = sphi 0, %s214
      %s217 = sphi 0, %s216
      %s231 = sphi 0, %s217
      %s235 = sphi 0, %s235
      %s237 = sphi 0, %s235
      %s238 = sphi 0, %s237
      %s252 = sphi 0, %s238
      %s256 = sphi 0, %s256
      %s258 = sphi 0, %s256
      %s259 = sphi 0, %s258
      %s273 = sphi 0, %s259
      %s277 = sphi 0, %s277
      %s279 = sphi 0, %s277
      %s280 = sphi 0, %s279
      %s294 = sphi 0, %s280
      %s298 = sphi 0, %s298
      %s300 = sphi 0, %s298
      %s301 = sphi 0, %s300
      %s315 = sphi 0, %s301
      %s319 = sphi 0, %s319
      %s321 = sphi 0, %s319
      %s322 = sphi 0, %s321
      %s336 = sphi 0, %s322
      %s340 = sphi 0, %s340
      %s342 = sphi 0, %s340
      %s343 = sphi 0, %s342
      %s357 = sphi 0, %s343
      %s361 = sphi 0, %s361
      %s363 = sphi 0, %s361
      %s364 = sphi 0, %s363
      %s378 = sphi 0, %s364
      %s384 = sphi 0, %s386
      %s387 = sphi 0, %s384
      %s388 = sphi 0, %s387
      %s404 = sphi 0, %s388
    $region4: #{text_encoder_forward.3} parent=1 // loop_header_branch
      %31 = sbr.rel (%p29) target = $region8
    $region5: #{text_encoder_forward.3} parent=1 // loop_body
      %s33 = ssub.s32 %s28, 1
      %s34 = ssub.s32 %s28, 2
      %s35 = sadd.s32 %s28, 1
      %s36 = ssub.s32 %s28, %s35
      %p37 = scmp.eq.s32.totalorder %s36, 0
      %s39 = sadd.s32 %s38, 1
      %s40 = scalar_select %p37, %s38, %s39
      %p43 = pneg %p37
      %p44 = scmp.eq.s32.totalorder %s28, 1
      %p45 = por %p43, %p44
      %p46 = scmp.ne.s32.totalorder %s38, %s41
      %p47 = scmp.eq.s32.totalorder %s28, 0
      %p48 = por %p46, %p47
      %p49 = scmp.ne.s32.totalorder %s38, %s41
      %p50 = scmp.eq.s32.totalorder %s33, 1
      %p51 = por %p49, %p50
      %p52 = scmp.ne.s32.totalorder %s41, %s42
      %p53 = scmp.eq.s32.totalorder %s33, 0
      %p54 = por %p52, %p53
      %p55 = scmp.ne.s32.totalorder %s41, %s42
      %p56 = scmp.eq.s32.totalorder %s34, 1
      %p57 = por %p55, %p56
      %p59 = scmp.ne.s32.totalorder %s42, %s58
      %p60 = scmp.eq.s32.totalorder %s34, 0
      %p61 = por %p59, %p60
      %s62 = ssub.s32 %s28, %s35
      %p63 = scmp.eq.s32.totalorder %s62, 0
      %s65 = sadd.s32 %s64, 1
      %s66 = scalar_select %p63, %s64, %s65
      %p69 = pneg %p63
      %p70 = scmp.eq.s32.totalorder %s28, 1
      %p71 = por %p69, %p70
      %p72 = scmp.ne.s32.totalorder %s64, %s67
      %p73 = scmp.eq.s32.totalorder %s28, 0
      %p74 = por %p72, %p73
      %p75 = scmp.ne.s32.totalorder %s64, %s67
      %p76 = scmp.eq.s32.totalorder %s33, 1
      %p77 = por %p75, %p76
      %p78 = scmp.ne.s32.totalorder %s67, %s68
      %p79 = scmp.eq.s32.totalorder %s33, 0
      %p80 = por %p78, %p79
      %p81 = scmp.ne.s32.totalorder %s67, %s68
      %p82 = scmp.eq.s32.totalorder %s34, 1
      %p83 = por %p81, %p82
      %p85 = scmp.ne.s32.totalorder %s68, %s84
      %p86 = scmp.eq.s32.totalorder %s34, 0
      %p87 = por %p85, %p86
      %s89 = sadd.s32 %s88, 1
      %p92 = scmp.eq.s32.totalorder %s28, 1
      %p93 = scmp.ne.s32.totalorder %s88, %s90
      %p94 = scmp.eq.s32.totalorder %s28, 0
      %p95 = por %p93, %p94
      %p96 = scmp.ne.s32.totalorder %s88, %s90
      %p97 = scmp.eq.s32.totalorder %s33, 1
      %p98 = por %p96, %p97
      %p99 = scmp.ne.s32.totalorder %s90, %s91
      %p100 = scmp.eq.s32.totalorder %s33, 0
      %p101 = por %p99, %p100
      %p102 = scmp.ne.s32.totalorder %s90, %s91
      %p103 = scmp.eq.s32.totalorder %s34, 1
      %p104 = por %p102, %p103
      %p106 = scmp.ne.s32.totalorder %s91, %s105
      %p107 = scmp.eq.s32.totalorder %s34, 0
      %p108 = por %p106, %p107
      %s110 = sadd.s32 %s109, 1
      %p113 = scmp.eq.s32.totalorder %s28, 1
      %p114 = scmp.ne.s32.totalorder %s109, %s111
      %p115 = scmp.eq.s32.totalorder %s28, 0
      %p116 = por %p114, %p115
      %p117 = scmp.ne.s32.totalorder %s109, %s111
      %p118 = scmp.eq.s32.totalorder %s33, 1
      %p119 = por %p117, %p118
      %p120 = scmp.ne.s32.totalorder %s111, %s112
      %p121 = scmp.eq.s32.totalorder %s33, 0
      %p122 = por %p120, %p121
      %p123 = scmp.ne.s32.totalorder %s111, %s112
      %p124 = scmp.eq.s32.totalorder %s34, 1
      %p125 = por %p123, %p124
      %p127 = scmp.ne.s32.totalorder %s112, %s126
      %p128 = scmp.eq.s32.totalorder %s34, 0
      %p129 = por %p127, %p128
      %s131 = sadd.s32 %s130, 1
      %p134 = scmp.eq.s32.totalorder %s28, 1
      %p135 = scmp.ne.s32.totalorder %s130, %s132
      %p136 = scmp.eq.s32.totalorder %s28, 0
      %p137 = por %p135, %p136
      %p138 = scmp.ne.s32.totalorder %s130, %s132
      %p139 = scmp.eq.s32.totalorder %s33, 1
      %p140 = por %p138, %p139
      %p141 = scmp.ne.s32.totalorder %s132, %s133
      %p142 = scmp.eq.s32.totalorder %s33, 0
      %p143 = por %p141, %p142
      %p144 = scmp.ne.s32.totalorder %s132, %s133
      %p145 = scmp.eq.s32.totalorder %s34, 1
      %p146 = por %p144, %p145
      %p148 = scmp.ne.s32.totalorder %s133, %s147
      %p149 = scmp.eq.s32.totalorder %s34, 0
      %p150 = por %p148, %p149
      %s152 = sadd.s32 %s151, 1
      %p155 = scmp.eq.s32.totalorder %s28, 1
      %p156 = scmp.ne.s32.totalorder %s151, %s153
      %p157 = scmp.eq.s32.totalorder %s28, 0
      %p158 = por %p156, %p157
      %p159 = scmp.ne.s32.totalorder %s151, %s153
      %p160 = scmp.eq.s32.totalorder %s33, 1
      %p161 = por %p159, %p160
      %p162 = scmp.ne.s32.totalorder %s153, %s154
      %p163 = scmp.eq.s32.totalorder %s33, 0
      %p164 = por %p162, %p163
      %p165 = scmp.ne.s32.totalorder %s153, %s154
      %p166 = scmp.eq.s32.totalorder %s34, 1
      %p167 = por %p165, %p166
      %p169 = scmp.ne.s32.totalorder %s154, %s168
      %p170 = scmp.eq.s32.totalorder %s34, 0
      %p171 = por %p169, %p170
      %s173 = sadd.s32 %s172, 1
      %p176 = scmp.eq.s32.totalorder %s28, 1
      %p177 = scmp.ne.s32.totalorder %s172, %s174
      %p178 = scmp.eq.s32.totalorder %s28, 0
      %p179 = por %p177, %p178
      %p180 = scmp.ne.s32.totalorder %s172, %s174
      %p181 = scmp.eq.s32.totalorder %s33, 1
      %p182 = por %p180, %p181
      %p183 = scmp.ne.s32.totalorder %s174, %s175
      %p184 = scmp.eq.s32.totalorder %s33, 0
      %p185 = por %p183, %p184
      %p186 = scmp.ne.s32.totalorder %s174, %s175
      %p187 = scmp.eq.s32.totalorder %s34, 1
      %p188 = por %p186, %p187
      %p190 = scmp.ne.s32.totalorder %s175, %s189
      %p191 = scmp.eq.s32.totalorder %s34, 0
      %p192 = por %p190, %p191
      %s194 = sadd.s32 %s193, 1
      %p197 = scmp.eq.s32.totalorder %s28, 1
      %p198 = scmp.ne.s32.totalorder %s193, %s195
      %p199 = scmp.eq.s32.totalorder %s28, 0
      %p200 = por %p198, %p199
      %p201 = scmp.ne.s32.totalorder %s193, %s195
      %p202 = scmp.eq.s32.totalorder %s33, 1
      %p203 = por %p201, %p202
      %p204 = scmp.ne.s32.totalorder %s195, %s196
      %p205 = scmp.eq.s32.totalorder %s33, 0
      %p206 = por %p204, %p205
      %p207 = scmp.ne.s32.totalorder %s195, %s196
      %p208 = scmp.eq.s32.totalorder %s34, 1
      %p209 = por %p207, %p208
      %p211 = scmp.ne.s32.totalorder %s196, %s210
      %p212 = scmp.eq.s32.totalorder %s34, 0
      %p213 = por %p211, %p212
      %s215 = sadd.s32 %s214, 1
      %p218 = scmp.eq.s32.totalorder %s28, 1
      %p219 = scmp.ne.s32.totalorder %s214, %s216
      %p220 = scmp.eq.s32.totalorder %s28, 0
      %p221 = por %p219, %p220
      %p222 = scmp.ne.s32.totalorder %s214, %s216
      %p223 = scmp.eq.s32.totalorder %s33, 1
      %p224 = por %p222, %p223
      %p225 = scmp.ne.s32.totalorder %s216, %s217
      %p226 = scmp.eq.s32.totalorder %s33, 0
      %p227 = por %p225, %p226
      %p228 = scmp.ne.s32.totalorder %s216, %s217
      %p229 = scmp.eq.s32.totalorder %s34, 1
      %p230 = por %p228, %p229
      %p232 = scmp.ne.s32.totalorder %s217, %s231
      %p233 = scmp.eq.s32.totalorder %s34, 0
      %p234 = por %p232, %p233
      %s236 = sadd.s32 %s235, 1
      %p239 = scmp.eq.s32.totalorder %s28, 1
      %p240 = scmp.ne.s32.totalorder %s235, %s237
      %p241 = scmp.eq.s32.totalorder %s28, 0
      %p242 = por %p240, %p241
      %p243 = scmp.ne.s32.totalorder %s235, %s237
      %p244 = scmp.eq.s32.totalorder %s33, 1
      %p245 = por %p243, %p244
      %p246 = scmp.ne.s32.totalorder %s237, %s238
      %p247 = scmp.eq.s32.totalorder %s33, 0
      %p248 = por %p246, %p247
      %p249 = scmp.ne.s32.totalorder %s237, %s238
      %p250 = scmp.eq.s32.totalorder %s34, 1
      %p251 = por %p249, %p250
      %p253 = scmp.ne.s32.totalorder %s238, %s252
      %p254 = scmp.eq.s32.totalorder %s34, 0
      %p255 = por %p253, %p254
      %s257 = sadd.s32 %s256, 1
      %p260 = scmp.eq.s32.totalorder %s28, 1
      %p261 = scmp.ne.s32.totalorder %s256, %s258
      %p262 = scmp.eq.s32.totalorder %s28, 0
      %p263 = por %p261, %p262
      %p264 = scmp.ne.s32.totalorder %s256, %s258
      %p265 = scmp.eq.s32.totalorder %s33, 1
      %p266 = por %p264, %p265
      %p267 = scmp.ne.s32.totalorder %s258, %s259
      %p268 = scmp.eq.s32.totalorder %s33, 0
      %p269 = por %p267, %p268
      %p270 = scmp.ne.s32.totalorder %s258, %s259
      %p271 = scmp.eq.s32.totalorder %s34, 1
      %p272 = por %p270, %p271
      %p274 = scmp.ne.s32.totalorder %s259, %s273
      %p275 = scmp.eq.s32.totalorder %s34, 0
      %p276 = por %p274, %p275
      %s278 = sadd.s32 %s277, 1
      %p281 = scmp.eq.s32.totalorder %s28, 1
      %p282 = scmp.ne.s32.totalorder %s277, %s279
      %p283 = scmp.eq.s32.totalorder %s28, 0
      %p284 = por %p282, %p283
      %p285 = scmp.ne.s32.totalorder %s277, %s279
      %p286 = scmp.eq.s32.totalorder %s33, 1
      %p287 = por %p285, %p286
      %p288 = scmp.ne.s32.totalorder %s279, %s280
      %p289 = scmp.eq.s32.totalorder %s33, 0
      %p290 = por %p288, %p289
      %p291 = scmp.ne.s32.totalorder %s279, %s280
      %p292 = scmp.eq.s32.totalorder %s34, 1
      %p293 = por %p291, %p292
      %p295 = scmp.ne.s32.totalorder %s280, %s294
      %p296 = scmp.eq.s32.totalorder %s34, 0
      %p297 = por %p295, %p296
      %s299 = sadd.s32 %s298, 1
      %p302 = scmp.eq.s32.totalorder %s28, 1
      %p303 = scmp.ne.s32.totalorder %s298, %s300
      %p304 = scmp.eq.s32.totalorder %s28, 0
      %p305 = por %p303, %p304
      %p306 = scmp.ne.s32.totalorder %s298, %s300
      %p307 = scmp.eq.s32.totalorder %s33, 1
      %p308 = por %p306, %p307
      %p309 = scmp.ne.s32.totalorder %s300, %s301
      %p310 = scmp.eq.s32.totalorder %s33, 0
      %p311 = por %p309, %p310
      %p312 = scmp.ne.s32.totalorder %s300, %s301
      %p313 = scmp.eq.s32.totalorder %s34, 1
      %p314 = por %p312, %p313
      %p316 = scmp.ne.s32.totalorder %s301, %s315
      %p317 = scmp.eq.s32.totalorder %s34, 0
      %p318 = por %p316, %p317
      %s320 = sadd.s32 %s319, 1
      %p323 = scmp.eq.s32.totalorder %s28, 1
      %p324 = scmp.ne.s32.totalorder %s319, %s321
      %p325 = scmp.eq.s32.totalorder %s28, 0
      %p326 = por %p324, %p325
      %p327 = scmp.ne.s32.totalorder %s319, %s321
      %p328 = scmp.eq.s32.totalorder %s33, 1
      %p329 = por %p327, %p328
      %p330 = scmp.ne.s32.totalorder %s321, %s322
      %p331 = scmp.eq.s32.totalorder %s33, 0
      %p332 = por %p330, %p331
      %p333 = scmp.ne.s32.totalorder %s321, %s322
      %p334 = scmp.eq.s32.totalorder %s34, 1
      %p335 = por %p333, %p334
      %p337 = scmp.ne.s32.totalorder %s322, %s336
      %p338 = scmp.eq.s32.totalorder %s34, 0
      %p339 = por %p337, %p338
      %s341 = sadd.s32 %s340, 1
      %p344 = scmp.eq.s32.totalorder %s28, 1
      %p345 = scmp.ne.s32.totalorder %s340, %s342
      %p346 = scmp.eq.s32.totalorder %s28, 0
      %p347 = por %p345, %p346
      %p348 = scmp.ne.s32.totalorder %s340, %s342
      %p349 = scmp.eq.s32.totalorder %s33, 1
      %p350 = por %p348, %p349
      %p351 = scmp.ne.s32.totalorder %s342, %s343
      %p352 = scmp.eq.s32.totalorder %s33, 0
      %p353 = por %p351, %p352
      %p354 = scmp.ne.s32.totalorder %s342, %s343
      %p355 = scmp.eq.s32.totalorder %s34, 1
      %p356 = por %p354, %p355
      %p358 = scmp.ne.s32.totalorder %s343, %s357
      %p359 = scmp.eq.s32.totalorder %s34, 0
      %p360 = por %p358, %p359
      %s362 = sadd.s32 %s361, 1
      %p365 = scmp.eq.s32.totalorder %s28, 1
      %p366 = scmp.ne.s32.totalorder %s361, %s363
      %p367 = scmp.eq.s32.totalorder %s28, 0
      %p368 = por %p366, %p367
      %p369 = scmp.ne.s32.totalorder %s361, %s363
      %p370 = scmp.eq.s32.totalorder %s33, 1
      %p371 = por %p369, %p370
      %p372 = scmp.ne.s32.totalorder %s363, %s364
      %p373 = scmp.eq.s32.totalorder %s33, 0
      %p374 = por %p372, %p373
      %p375 = scmp.ne.s32.totalorder %s363, %s364
      %p376 = scmp.eq.s32.totalorder %s34, 1
      %p377 = por %p375, %p376
      %p379 = scmp.ne.s32.totalorder %s364, %s378
      %p380 = scmp.eq.s32.totalorder %s34, 0
      %p381 = por %p379, %p380
      %s382 = ssub.s32 %s28, %s35
      %p383 = scmp.eq.s32.totalorder %s382, 0
      %s385 = sadd.s32 %s384, 1
      %s386 = scalar_select %p383, %s384, %s385
      %p389 = pneg %p383
      %p390 = scmp.eq.s32.totalorder %s28, 1
      %p391 = por %p389, %p390
      %p392 = scmp.ne.s32.totalorder %s384, %s387
      %p393 = scmp.eq.s32.totalorder %s28, 0
      %p394 = por %p392, %p393
      %p395 = scmp.ne.s32.totalorder %s384, %s387
      %p396 = scmp.eq.s32.totalorder %s33, 1
      %p397 = por %p395, %p396
      %p398 = scmp.ne.s32.totalorder %s387, %s388
      %p399 = scmp.eq.s32.totalorder %s33, 0
      %p400 = por %p398, %p399
      %p401 = scmp.ne.s32.totalorder %s387, %s388
      %p402 = scmp.eq.s32.totalorder %s34, 1
      %p403 = por %p401, %p402
      %p405 = scmp.ne.s32.totalorder %s388, %s404
      %p406 = scmp.eq.s32.totalorder %s34, 0
      %p407 = por %p405, %p406
      %p408 = scmp.le.s32.totalorder 1, %s28
      %p409 = scmp.lt.s32.totalorder %s28, 3
      %p410 = pnand %p408, %p409
      %p411 = pneg %p410
      // Predicated region
      $region9: #{text_encoder_forward.3} parent=5 // pred_check
        _
      $region10: #{text_encoder_forward.3} parent=5 // pred_check_branch
        %413 = sbr.rel (%p410) target = $region12
      $region11: #{text_encoder_forward.3} parent=5 // pred_region
        %s414 = ssub.s32 %s28, 1
        // Predicated region
        $region13: #{text_encoder_forward.3} parent=11 // pred_check
          %p415 = pneg %p101
        $region14: #{text_encoder_forward.3} parent=11 // pred_check_branch
          %417 = sbr.rel (%p415) target = $region16
        $region15: #{text_encoder_forward.3} parent=11 // pred_region
          _
        $region16: #{text_encoder_forward.3} parent=11 // pred_fallthru
          _
        // Predicated region
        $region17: #{text_encoder_forward.3} parent=11 // pred_check
          %p418 = pneg %p122
        $region18: #{text_encoder_forward.3} parent=11 // pred_check_branch
          %420 = sbr.rel (%p418) target = $region20
        $region19: #{text_encoder_forward.3} parent=11 // pred_region
          _
        $region20: #{text_encoder_forward.3} parent=11 // pred_fallthru
          _
        // Predicated region
        $region21: #{text_encoder_forward.3} parent=11 // pred_check
          %p421 = pneg %p143
        $region22: #{text_encoder_forward.3} parent=11 // pred_check_branch
          %423 = sbr.rel (%p421) target = $region24
        $region23: #{text_encoder_forward.3} parent=11 // pred_region
          %s425 = ssub.s32 16, 16
          %426 = vsyncadd [#allocation3], %s425
          %s428 = sshll.u32 [#allocation2], 4
          %s429 = int_to_ptr.vmem [resolvable:$true] %s428
          %431 = dma.hbm_to_vmem [thread:$0]  %s4, 16, %s429, [#allocation3]
        $region24: #{text_encoder_forward.3} parent=11 // pred_fallthru
          _
        // Predicated region
        $region25: #{text_encoder_forward.3} parent=11 // pred_check
          %p432 = pneg %p164
        $region26: #{text_encoder_forward.3} parent=11 // pred_check_branch
          %434 = sbr.rel (%p432) target = $region28
        $region27: #{text_encoder_forward.3} parent=11 // pred_region
          %s436 = ssub.s32 16, 16
          %437 = vsyncadd [#allocation5], %s436
          %s439 = sshll.u32 [#allocation4], 4
          %s440 = int_to_ptr.vmem [resolvable:$true] %s439
          %442 = dma.hbm_to_vmem [thread:$0]  %s5, 16, %s440, [#allocation5]
        $region28: #{text_encoder_forward.3} parent=11 // pred_fallthru
          _
        // Predicated region
        $region29: #{text_encoder_forward.3} parent=11 // pred_check
          %p443 = pneg %p185
        $region30: #{text_encoder_forward.3} parent=11 // pred_check_branch
          %445 = sbr.rel (%p443) target = $region32
        $region31: #{text_encoder_forward.3} parent=11 // pred_region
          _
        $region32: #{text_encoder_forward.3} parent=11 // pred_fallthru
          _
        // Predicated region
        $region33: #{text_encoder_forward.3} parent=11 // pred_check
          %p446 = pneg %p206
        $region34: #{text_encoder_forward.3} parent=11 // pred_check_branch
          %448 = sbr.rel (%p446) target = $region36
        $region35: #{text_encoder_forward.3} parent=11 // pred_region
          %s450 = ssub.s32 48, 48
          %451 = vsyncadd [#allocation5], %s450
          %s453 = sshll.u32 [#allocation6], 4
          %s454 = int_to_ptr.vmem [resolvable:$true] %s453
          %456 = dma.hbm_to_vmem [thread:$0]  %s7, 48, %s454, [#allocation5]
        $region36: #{text_encoder_forward.3} parent=11 // pred_fallthru
          _
        // Predicated region
        $region37: #{text_encoder_forward.3} parent=11 // pred_check
          %p457 = pneg %p227
        $region38: #{text_encoder_forward.3} parent=11 // pred_check_branch
          %459 = sbr.rel (%p457) target = $region40
        $region39: #{text_encoder_forward.3} parent=11 // pred_region
          %s461 = ssub.s32 1024, 1024
          %462 = vsyncadd [#allocation8], %s461
          %s463 = sshll.u32 [#allocation7], 4
          %s464 = int_to_ptr.vmem [resolvable:$true] %s463
          %469 = dma.hbm_to_vmem [thread:$0]  %s8, 1024, %s464, [#allocation8], 64, 64, 4
        $region40: #{text_encoder_forward.3} parent=11 // pred_fallthru
          _
        // Predicated region
        $region41: #{text_encoder_forward.3} parent=11 // pred_check
          %p470 = pneg %p248
        $region42: #{text_encoder_forward.3} parent=11 // pred_check_branch
          %472 = sbr.rel (%p470) target = $region44
        $region43: #{text_encoder_forward.3} parent=11 // pred_region
          %s474 = ssub.s32 16, 16
          %475 = vsyncadd [#allocation8], %s474
          %s477 = sshll.u32 [#allocation9], 4
          %s478 = int_to_ptr.vmem [resolvable:$true] %s477
          %480 = dma.hbm_to_vmem [thread:$0]  %s9, 16, %s478, [#allocation8]
        $region44: #{text_encoder_forward.3} parent=11 // pred_fallthru
          _
        // Predicated region
        $region45: #{text_encoder_forward.3} parent=11 // pred_check
          %p481 = pneg %p269
        $region46: #{text_encoder_forward.3} parent=11 // pred_check_branch
          %483 = sbr.rel (%p481) target = $region48
        $region47: #{text_encoder_forward.3} parent=11 // pred_region
          %s485 = ssub.s32 16, 16
          %486 = vsyncadd [#allocation11], %s485
          %s488 = sshll.u32 [#allocation10], 4
          %s489 = int_to_ptr.vmem [resolvable:$true] %s488
          %491 = dma.hbm_to_vmem [thread:$0]  %s10, 16, %s489, [#allocation11]
        $region48: #{text_encoder_forward.3} parent=11 // pred_fallthru
          _
        // Predicated region
        $region49: #{text_encoder_forward.3} parent=11 // pred_check
          %p492 = pneg %p290
        $region50: #{text_encoder_forward.3} parent=11 // pred_check_branch
          %494 = sbr.rel (%p492) target = $region52
        $region51: #{text_encoder_forward.3} parent=11 // pred_region
          %s496 = ssub.s32 16, 16
          %497 = vsyncadd [#allocation11], %s496
          %s499 = sshll.u32 [#allocation12], 4
          %s500 = int_to_ptr.vmem [resolvable:$true] %s499
          %502 = dma.hbm_to_vmem [thread:$0]  %s11, 16, %s500, [#allocation11]
        $region52: #{text_encoder_forward.3} parent=11 // pred_fallthru
          _
        // Predicated region
        $region53: #{text_encoder_forward.3} parent=11 // pred_check
          %p503 = pneg %p311
        $region54: #{text_encoder_forward.3} parent=11 // pred_check_branch
          %505 = sbr.rel (%p503) target = $region56
        $region55: #{text_encoder_forward.3} parent=11 // pred_region
          %s507 = ssub.s32 4096, 4096
          %508 = vsyncadd [#allocation14], %s507
          %s509 = sshll.u32 [#allocation13], 4
          %s510 = int_to_ptr.vmem [resolvable:$true] %s509
          %515 = dma.hbm_to_vmem [thread:$0]  %s12, 4096, %s510, [#allocation14], 256, 256, 16
        $region56: #{text_encoder_forward.3} parent=11 // pred_fallthru
          _
        // Predicated region
        $region57: #{text_encoder_forward.3} parent=11 // pred_check
          %p516 = pneg %p332
        $region58: #{text_encoder_forward.3} parent=11 // pred_check_branch
          %518 = sbr.rel (%p516) target = $region60
        $region59: #{text_encoder_forward.3} parent=11 // pred_region
          _
        $region60: #{text_encoder_forward.3} parent=11 // pred_fallthru
          _
        // Predicated region
        $region61: #{text_encoder_forward.3} parent=11 // pred_check
          %p519 = pneg %p353
        $region62: #{text_encoder_forward.3} parent=11 // pred_check_branch
          %521 = sbr.rel (%p519) target = $region64
        $region63: #{text_encoder_forward.3} parent=11 // pred_region
          %s523 = ssub.s32 4096, 4096
          %524 = vsyncadd [#allocation14], %s523
          %s525 = sshll.u32 [#allocation15], 4
          %s526 = int_to_ptr.vmem [resolvable:$true] %s525
          %531 = dma.hbm_to_vmem [thread:$0]  %s14, 4096, %s526, [#allocation14], 64, 64, 4
        $region64: #{text_encoder_forward.3} parent=11 // pred_fallthru
          _
        // Predicated region
        $region65: #{text_encoder_forward.3} parent=11 // pred_check
          %p532 = pneg %p374
        $region66: #{text_encoder_forward.3} parent=11 // pred_check_branch
          %534 = sbr.rel (%p532) target = $region68
        $region67: #{text_encoder_forward.3} parent=11 // pred_region
          %s536 = ssub.s32 16, 16
          %537 = vsyncadd [#allocation17], %s536
          %s539 = sshll.u32 [#allocation16], 4
          %s540 = int_to_ptr.vmem [resolvable:$true] %s539
          %542 = dma.hbm_to_vmem [thread:$0]  %s15, 16, %s540, [#allocation17]
        $region68: #{text_encoder_forward.3} parent=11 // pred_fallthru
          _
      $region12: #{text_encoder_forward.3} parent=5 // pred_fallthru
        _
      %p543 = scmp.lt.s32.totalorder %s28, 2
      // Predicated region
      $region69: #{text_encoder_forward.3} parent=5 // pred_check
        %p544 = pneg %p543
      $region70: #{text_encoder_forward.3} parent=5 // pred_check_branch
        %546 = sbr.rel (%p544) target = $region72
      $region71: #{text_encoder_forward.3} parent=5 // pred_region
        // Predicated region
        $region73: #{text_encoder_forward.3} parent=71 // pred_check
          %p547 = pneg %p48
        $region74: #{text_encoder_forward.3} parent=71 // pred_check_branch
          %549 = sbr.rel (%p547) target = $region76
        $region75: #{text_encoder_forward.3} parent=71 // pred_region
          %p550 = scmp.lt.s32.totalorder %s28, 1
          %s551 = scalar_select %p550, %s28, 1
          %s552 = smul.addr %s551, 8
          %s553 = scalar_lea.vmem %s0, %s552
        $region76: #{text_encoder_forward.3} parent=71 // pred_fallthru
          _
        // Predicated region
        $region77: #{text_encoder_forward.3} parent=71 // pred_check
          %p554 = pneg %p74
        $region78: #{text_encoder_forward.3} parent=71 // pred_check_branch
          %556 = sbr.rel (%p554) target = $region80
        $region79: #{text_encoder_forward.3} parent=71 // pred_region
          %p557 = scmp.lt.s32.totalorder %s28, 1
          %s558 = scalar_select %p557, %s28, 1
          %s559 = scalar_lea.vmem %s1, %s558
        $region80: #{text_encoder_forward.3} parent=71 // pred_fallthru
          _
      $region72: #{text_encoder_forward.3} parent=5 // pred_fallthru
        _
      %p560 = scmp.le.s32.totalorder 1, %s28
      %p561 = scmp.lt.s32.totalorder %s28, 3
      %p562 = pnand %p560, %p561
      %p563 = pneg %p562
      // Predicated region
      $region81: #{text_encoder_forward.3} parent=5 // pred_check
        _
      $region82: #{text_encoder_forward.3} parent=5 // pred_check_branch
        %565 = sbr.rel (%p562) target = $region84
      $region83: #{text_encoder_forward.3} parent=5 // pred_region
        %s566 = ssub.s32 %s28, 1
        // Predicated region
        $region85: #{text_encoder_forward.3} parent=83 // pred_check
          %p567 = pneg %p143
        $region86: #{text_encoder_forward.3} parent=83 // pred_check_branch
          %569 = sbr.rel (%p567) target = $region88
        $region87: #{text_encoder_forward.3} parent=83 // pred_region
          %570 = dma.done [#allocation3], 16
        $region88: #{text_encoder_forward.3} parent=83 // pred_fallthru
          _
        // Predicated region
        $region89: #{text_encoder_forward.3} parent=83 // pred_check
          %p571 = pneg %p164
        $region90: #{text_encoder_forward.3} parent=83 // pred_check_branch
          %573 = sbr.rel (%p571) target = $region92
        $region91: #{text_encoder_forward.3} parent=83 // pred_region
          %574 = dma.done [#allocation5], 16
        $region92: #{text_encoder_forward.3} parent=83 // pred_fallthru
          _
        // Predicated region
        $region93: #{text_encoder_forward.3} parent=83 // pred_check
          %p575 = pneg %p206
        $region94: #{text_encoder_forward.3} parent=83 // pred_check_branch
          %577 = sbr.rel (%p575) target = $region96
        $region95: #{text_encoder_forward.3} parent=83 // pred_region
          %578 = dma.done [#allocation5], 48
        $region96: #{text_encoder_forward.3} parent=83 // pred_fallthru
          _
        // Predicated region
        $region97: #{text_encoder_forward.3} parent=83 // pred_check
          %p579 = pneg %p227
        $region98: #{text_encoder_forward.3} parent=83 // pred_check_branch
          %581 = sbr.rel (%p579) target = $region100
        $region99: #{text_encoder_forward.3} parent=83 // pred_region
          %582 = dma.done [#allocation8], 1024
        $region100: #{text_encoder_forward.3} parent=83 // pred_fallthru
          _
        // Predicated region
        $region101: #{text_encoder_forward.3} parent=83 // pred_check
          %p583 = pneg %p248
        $region102: #{text_encoder_forward.3} parent=83 // pred_check_branch
          %585 = sbr.rel (%p583) target = $region104
        $region103: #{text_encoder_forward.3} parent=83 // pred_region
          %586 = dma.done [#allocation8], 16
        $region104: #{text_encoder_forward.3} parent=83 // pred_fallthru
          _
        // Predicated region
        $region105: #{text_encoder_forward.3} parent=83 // pred_check
          %p587 = pneg %p269
        $region106: #{text_encoder_forward.3} parent=83 // pred_check_branch
          %589 = sbr.rel (%p587) target = $region108
        $region107: #{text_encoder_forward.3} parent=83 // pred_region
          %590 = dma.done [#allocation11], 16
        $region108: #{text_encoder_forward.3} parent=83 // pred_fallthru
          _
        // Predicated region
        $region109: #{text_encoder_forward.3} parent=83 // pred_check
          %p591 = pneg %p290
        $region110: #{text_encoder_forward.3} parent=83 // pred_check_branch
          %593 = sbr.rel (%p591) target = $region112
        $region111: #{text_encoder_forward.3} parent=83 // pred_region
          %594 = dma.done [#allocation11], 16
        $region112: #{text_encoder_forward.3} parent=83 // pred_fallthru
          _
        // Predicated region
        $region113: #{text_encoder_forward.3} parent=83 // pred_check
          %p595 = pneg %p311
        $region114: #{text_encoder_forward.3} parent=83 // pred_check_branch
          %597 = sbr.rel (%p595) target = $region116
        $region115: #{text_encoder_forward.3} parent=83 // pred_region
          %598 = dma.done [#allocation14], 4096
        $region116: #{text_encoder_forward.3} parent=83 // pred_fallthru
          _
        // Predicated region
        $region117: #{text_encoder_forward.3} parent=83 // pred_check
          %p599 = pneg %p353
        $region118: #{text_encoder_forward.3} parent=83 // pred_check_branch
          %601 = sbr.rel (%p599) target = $region120
        $region119: #{text_encoder_forward.3} parent=83 // pred_region
          %602 = dma.done [#allocation14], 4096
        $region120: #{text_encoder_forward.3} parent=83 // pred_fallthru
          _
        // Predicated region
        $region121: #{text_encoder_forward.3} parent=83 // pred_check
          %p603 = pneg %p374
        $region122: #{text_encoder_forward.3} parent=83 // pred_check_branch
          %605 = sbr.rel (%p603) target = $region124
        $region123: #{text_encoder_forward.3} parent=83 // pred_region
          %606 = dma.done [#allocation17], 16
        $region124: #{text_encoder_forward.3} parent=83 // pred_fallthru
          _
        %p607 = scmp.lt.s32.totalorder %s33, 1
        %s608 = scalar_select %p607, %s33, 1
        %s609 = smul.addr %s608, 8
        %s610 = scalar_lea.vmem %s0, %s609
        %p611 = pneg %p54
        %p612 = pneg %p51
        %p613 = scmp.lt.s32.totalorder %s33, 1
        %s614 = scalar_select %p613, %s33, 1
        %s615 = scalar_lea.vmem %s1, %s614
        %p616 = pneg %p80
        %p617 = pneg %p77
        %p618 = pneg %p101
        %p619 = pneg %p98
        %p620 = pneg %p122
        %p621 = pneg %p119
        %p622 = pneg %p143
        %p623 = pneg %p140
        %p624 = pneg %p164
        %p625 = pneg %p161
        %p626 = pneg %p185
        %p627 = pneg %p182
        %p628 = pneg %p206
        %p629 = pneg %p203
        %p630 = pneg %p227
        %p631 = pneg %p224
        %p632 = pneg %p248
        %p633 = pneg %p245
        %p634 = pneg %p269
        %p635 = pneg %p266
        %p636 = pneg %p290
        %p637 = pneg %p287
        %p638 = pneg %p311
        %p639 = pneg %p308
        %p640 = pneg %p332
        %p641 = pneg %p329
        %p642 = pneg %p353
        %p643 = pneg %p350
        %p644 = pneg %p374
        %p645 = pneg %p371
        %p646 = pneg %p400
        %p647 = pneg %p397
        %p648 = scmp.lt.s32.totalorder %s33, 1
        %s649 = scalar_select %p648, %s33, 1
        %s650 = smul.addr %s649, 8
        %s651 = scalar_lea.vmem %s16, %s650
        %p652 = scmp.lt.s32.totalorder %s33, 1
        %s653 = scalar_select %p652, %s33, 1
        %s654 = smul.addr %s653, 8
        %s655 = scalar_lea.vmem %s0, %s654
        %p656 = scmp.lt.s32.totalorder %s33, 1
        %s657 = scalar_select %p656, %s33, 1
        %s658 = scalar_lea.vmem %s1, %s657
        %p659 = scmp.lt.s32.totalorder %s33, 1
        %s660 = scalar_select %p659, %s33, 1
        %s661 = smul.addr %s660, 8
        %s662 = scalar_lea.vmem %s16, %s661
        %v664 = vld [vmem:[%s655] sm:$0xff]
        %v665 = vlaneseq
        %v666 = vshrl.u32 %v665, 7
        %v667 = vlaneseq
        %v668 = vand.u32 %v667, 127
        %vm669 = vcmp.ge.s32.totalorder %v666, %v668
        %v670 = vld [vmem:[%s658] sm:$0x1]
        %vm671 = vcmp.gt.f32.partialorder %v670, 0.5
        %v672 = vsel %vm671, 1, 0
        %v673 = vlaneseq
        %v674 = vshrl.u32 %v673, 7
        %v675 = vsub.s32 0, %v674
        %v676 = vrot.slane %v672, %v675
        %vm677 = vcmp.eq.s32.totalorder %v676, 1
        %vm678 = vmand %vm669, %vm677
        %v679 = vsel %vm678, 0.0, -1e+09
        %v680 = vld [vmem:[%s2] sm:$0xff]
        %v681 = vld [vmem:[%s3] sm:$0xff]
        %v682 = vld [vmem:[#allocation2] sm:$0x1]
        %v683 = vld [vmem:[#allocation4] sm:$0x1]
        %684 = vadd.xlane.f32.xlu0 %v664
        %v685 = vpop.xlane.xlu0 %684
        %v686 = vrcp.pop 128.0
        %v687 = vmul.f32 %v685, %v686
        %v688 = vsub.f32 %v664, %v687
        %v689 = vmul.f32 %v688, %v688
        %690 = vadd.xlane.f32.xlu0 %v689
        %v691 = vpop.xlane.xlu0 %690
        %v692 = vmul.f32 %v691, %v686
        %v693 = vadd.f32 %v692, 1e-05
        %v694 = vrsqrt.pop %v693
        %v695 = vmul.f32 %v688, %v694
        %v697 = vlaneseq
        %v698 = vshrl.u32 %v697, 7
        %v699 = vsub.s32 0, %v698
        %v700 = vrot.slane %v682, %v699
        %v702 = vmul.f32 %v695, %v700
        %v704 = vlaneseq
        %v705 = vshrl.u32 %v704, 7
        %v706 = vsub.s32 0, %v705
        %v707 = vrot.slane %v683, %v706
        %v709 = vadd.f32 %v702, %v707
        %v710 = vpack.c.bf16 %v709, %v709
        %v711 = vld [vmem:[%s6] sm:$0xff]
        %v712 = vld [vmem:[%s6 + $0x8] sm:$0xf]
        %v713 = vld [vmem:[%s6 + $0xc] sm:$0xff]
        %v714 = vld [vmem:[%s6 + $0x14] sm:$0xf]
        %v715 = vld [vmem:[%s6 + $0x18] sm:$0xff]
        %v716 = vld [vmem:[%s6 + $0x20] sm:$0xf]
        %v717 = vld [vmem:[%s6 + $0x24] sm:$0xff]
        %v718 = vld [vmem:[%s6 + $0x2c] sm:$0xf]
        %v719 = vld [vmem:[%s6 + $0x30] sm:$0xff]
        %v720 = vld [vmem:[%s6 + $0x38] sm:$0xf]
        %v721 = vld [vmem:[%s6 + $0x3c] sm:$0xff]
        %v722 = vld [vmem:[%s6 + $0x44] sm:$0xf]
        %v723 = vld [vmem:[%s6 + $0x48] sm:$0xff]
        %v724 = vld [vmem:[%s6 + $0x50] sm:$0xf]
        %v725 = vld [vmem:[%s6 + $0x54] sm:$0xff]
        %v726 = vld [vmem:[%s6 + $0x5c] sm:$0xf]
        %v727 = vld [vmem:[%s6 + $0x60] sm:$0xff]
        %v728 = vld [vmem:[%s6 + $0x68] sm:$0xf]
        %v729 = vld [vmem:[%s6 + $0x6c] sm:$0xff]
        %v730 = vld [vmem:[%s6 + $0x74] sm:$0xf]
        %v731 = vld [vmem:[%s6 + $0x78] sm:$0xff]
        %v732 = vld [vmem:[%s6 + $0x80] sm:$0xf]
        %v733 = vld [vmem:[%s6 + $0x84] sm:$0xff]
        %v734 = vld [vmem:[%s6 + $0x8c] sm:$0xf]
        %v735 = vld [vmem:[%s6 + $0x90] sm:$0xff]
        %v736 = vld [vmem:[%s6 + $0x98] sm:$0xf]
        %v737 = vld [vmem:[%s6 + $0x9c] sm:$0xff]
        %v738 = vld [vmem:[%s6 + $0xa4] sm:$0xf]
        %v739 = vld [vmem:[%s6 + $0xa8] sm:$0xff]
        %v740 = vld [vmem:[%s6 + $0xb0] sm:$0xf]
        %v741 = vld [vmem:[%s6 + $0xb4] sm:$0xff]
        %v742 = vld [vmem:[%s6 + $0xbc] sm:$0xf]
        %v743 = vld [vmem:[#allocation6] sm:$0x7]
        %v745 = vlaneseq
        %v746 = vshrl.u32 %v745, 7
        %v747 = vsub.s32 0, %v746
        %v748 = vrot.slane %v743, %v747
        %v749 = vlaneseq
        %v750 = vshrl.u32 %v749, 7
        %v751 = vsub.s32 1, %v750
        %v752 = vrot.slane %v743, %v751
        %v753 = vlaneseq
        %v754 = vshrl.u32 %v753, 7
        %v755 = vsub.s32 2, %v754
        %v756 = vrot.slane %v743, %v755
        %v792 = vunpack.c.l.b16 %v711
        %v793 = vunpack.c.h.b16 %v711
        %v794 = vunpack.c.l.b16 %v712
        %v795 = vunpack.c.l.b16 %v713
        %v796 = vunpack.c.h.b16 %v713
        %v797 = vunpack.c.l.b16 %v714
        %v798 = vunpack.c.l.b16 %v715
        %v799 = vunpack.c.h.b16 %v715
        %v800 = vunpack.c.l.b16 %v716
        %v801 = vunpack.c.l.b16 %v717
        %v802 = vunpack.c.h.b16 %v717
        %v803 = vunpack.c.l.b16 %v718
        %v804 = vunpack.c.l.b16 %v719
        %v805 = vunpack.c.h.b16 %v719
        %v806 = vunpack.c.l.b16 %v720
        %v807 = vunpack.c.l.b16 %v721
        %v808 = vunpack.c.h.b16 %v721
        %v809 = vunpack.c.l.b16 %v722
        %v810 = vunpack.c.l.b16 %v723
        %v811 = vunpack.c.h.b16 %v723
        %v812 = vunpack.c.l.b16 %v724
        %v813 = vunpack.c.l.b16 %v725
        %v814 = vunpack.c.h.b16 %v725
        %v815 = vunpack.c.l.b16 %v726
        %v816 = vunpack.c.l.b16 %v727
        %v817 = vunpack.c.h.b16 %v727
        %v818 = vunpack.c.l.b16 %v728
        %v819 = vunpack.c.l.b16 %v729
        %v820 = vunpack.c.h.b16 %v729
        %v821 = vunpack.c.l.b16 %v730
        %v822 = vunpack.c.l.b16 %v731
        %v823 = vunpack.c.h.b16 %v731
        %v824 = vunpack.c.l.b16 %v732
        %v825 = vunpack.c.l.b16 %v733
        %v826 = vunpack.c.h.b16 %v733
        %v827 = vunpack.c.l.b16 %v734
        %v828 = vunpack.c.l.b16 %v735
        %v829 = vunpack.c.h.b16 %v735
        %v830 = vunpack.c.l.b16 %v736
        %v831 = vunpack.c.l.b16 %v737
        %v832 = vunpack.c.h.b16 %v737
        %v833 = vunpack.c.l.b16 %v738
        %v834 = vunpack.c.l.b16 %v739
        %v835 = vunpack.c.h.b16 %v739
        %v836 = vunpack.c.l.b16 %v740
        %v837 = vunpack.c.l.b16 %v741
        %v838 = vunpack.c.h.b16 %v741
        %v839 = vunpack.c.l.b16 %v742
        %v840 = vpack.c.b16 %v795, %v792
        %v841 = vpack.c.b16 %v796, %v793
        %v842 = vpack.c.b16 %v797, %v794
        %v843 = vpack.c.b16 %v801, %v798
        %v844 = vpack.c.b16 %v802, %v799
        %v845 = vpack.c.b16 %v803, %v800
        %v846 = vpack.c.b16 %v807, %v804
        %v847 = vpack.c.b16 %v808, %v805
        %v848 = vpack.c.b16 %v809, %v806
        %v849 = vpack.c.b16 %v813, %v810
        %v850 = vpack.c.b16 %v814, %v811
        %v851 = vpack.c.b16 %v815, %v812
        %v852 = vpack.c.b16 %v819, %v816
        %v853 = vpack.c.b16 %v820, %v817
        %v854 = vpack.c.b16 %v821, %v818
        %v855 = vpack.c.b16 %v825, %v822
        %v856 = vpack.c.b16 %v826, %v823
        %v857 = vpack.c.b16 %v827, %v824
        %v858 = vpack.c.b16 %v831, %v828
        %v859 = vpack.c.b16 %v832, %v829
        %v860 = vpack.c.b16 %v833, %v830
        %v861 = vpack.c.b16 %v837, %v834
        %v862 = vpack.c.b16 %v838, %v835
        %v863 = vpack.c.b16 %v839, %v836
        %888 = vmatprep.subr.bf16.mxu0 %v841
        %889 = vmatpush1.bf16.msra.mxu0 %v840
        %890 = vmatprep.subr.bf16.mxu0 %v844
        %891 = vmatpush1.bf16.msra.mxu0 %v843
        %892 = vmatprep.subr.bf16.mxu0 %v847
        %893 = vmatpush1.bf16.msra.mxu0 %v846
        %894 = vmatprep.subr.bf16.mxu0 %v850
        %895 = vmatpush1.bf16.msra.mxu0 %v849
        %896 = vmatprep.subr.bf16.mxu0 %v853
        %897 = vmatpush1.bf16.msra.mxu0 %v852
        %898 = vmatprep.subr.bf16.mxu0 %v856
        %899 = vmatpush1.bf16.msra.mxu0 %v855
        %900 = vmatprep.subr.bf16.mxu0 %v859
        %901 = vmatpush1.bf16.msra.mxu0 %v858
        %902 = vmatprep.subr.bf16.mxu0 %v862
        %903 = vmatpush1.bf16.msra.mxu0 %v861
        %904 = vmatprep.subr.bf16.mxu0 0
        %905 = vmatpush1.bf16.msra.mxu0 0
        %906 = vmatprep.subr.bf16.mxu0 0
        %907 = vmatpush1.bf16.msra.mxu0 0
        %908 = vmatprep.subr.bf16.mxu0 0
        %909 = vmatpush1.bf16.msra.mxu0 0
        %910 = vmatprep.subr.bf16.mxu0 0
        %911 = vmatpush1.bf16.msra.mxu0 0
        %912 = vmatprep.subr.bf16.mxu0 0
        %913 = vmatpush1.bf16.msra.mxu0 0
        %914 = vmatprep.subr.bf16.mxu0 0
        %915 = vmatpush1.bf16.msra.mxu0 0
        %916 = vmatprep.subr.bf16.mxu0 0
        %917 = vmatpush1.bf16.msra.mxu0 0
        %918 = vmatprep.subr.bf16.mxu0 0
        %919 = vmatpush1.bf16.msra.mxu0 0
        %920 = vmatprep.mubr.bf16.mxu0 0
        %921 = vmatmul.mubr.bf16.gmra.mrb[0].mxu0 %v710
        %v922 = vpop.f32.mrb[0].mxu0
        %v923 = vadd.f32 %v748, %v922
        %v924 = vpop.f32.mrb[0].mxu0
        %v925 = vadd.f32 %v752, %v924
        %v926 = vpop.f32.mrb[0].mxu0
        %v927 = vpop.f32.mrb[0].mxu0
        %928 = vdwg.mxu0
        %929 = vmatprep.subr.bf16.mxu0 0
        %930 = vmatpush1.bf16.msra.mxu0 %v842
        %931 = vmatprep.subr.bf16.mxu0 0
        %932 = vmatpush1.bf16.msra.mxu0 %v845
        %933 = vmatprep.subr.bf16.mxu0 0
        %934 = vmatpush1.bf16.msra.mxu0 %v848
        %935 = vmatprep.subr.bf16.mxu0 0
        %936 = vmatpush1.bf16.msra.mxu0 %v851
        %937 = vmatprep.subr.bf16.mxu0 0
        %938 = vmatpush1.bf16.msra.mxu0 %v854
        %939 = vmatprep.subr.bf16.mxu0 0
        %940 = vmatpush1.bf16.msra.mxu0 %v857
        %941 = vmatprep.subr.bf16.mxu0 0
        %942 = vmatpush1.bf16.msra.mxu0 %v860
        %943 = vmatprep.subr.bf16.mxu0 0
        %944 = vmatpush1.bf16.msra.mxu0 %v863
        %945 = vmatprep.subr.bf16.mxu0 0
        %946 = vmatpush1.bf16.msra.mxu0 0
        %947 = vmatprep.subr.bf16.mxu0 0
        %948 = vmatpush1.bf16.msra.mxu0 0
        %949 = vmatprep.subr.bf16.mxu0 0
        %950 = vmatpush1.bf16.msra.mxu0 0
        %951 = vmatprep.subr.bf16.mxu0 0
        %952 = vmatpush1.bf16.msra.mxu0 0
        %953 = vmatprep.subr.bf16.mxu0 0
        %954 = vmatpush1.bf16.msra.mxu0 0
        %955 = vmatprep.subr.bf16.mxu0 0
        %956 = vmatpush1.bf16.msra.mxu0 0
        %957 = vmatprep.subr.bf16.mxu0 0
        %958 = vmatpush1.bf16.msra.mxu0 0
        %959 = vmatprep.subr.bf16.mxu0 0
        %960 = vmatpush1.bf16.msra.mxu0 0
        %961 = vmatprep.mubr.bf16.mxu0 0
        %962 = vmatmul.mubr.bf16.gmra.mrb[0].mxu0 %v710
        %v963 = vpop.f32.mrb[0].mxu0
        %v964 = vadd.f32 %v756, %v963
        %v965 = vpop.f32.mrb[0].mxu0
        %v966 = vpop.f32.mrb[0].mxu0
        %v967 = vpop.f32.mrb[0].mxu0
        %968 = vdwg.mxu0
        %v969 = vmul.f32 %v923, %v680
        %971 = vrot.lane.b32.xlu0 %v681, 8
        %v972 = vpop.permute.xlu0 %971
        %v974 = vmul.f32 %v923, %v972
        %976 = vrot.lane.b32.xlu0 %v974, 120
        %v977 = vpop.permute.xlu0 %976
        %v979 = vsub.f32 %v969, %v977
        %981 = vrot.lane.b32.xlu0 %v680, 8
        %v982 = vpop.permute.xlu0 %981
        %v984 = vmul.f32 %v923, %v982
        %v985 = vmul.f32 %v923, %v681
        %987 = vrot.lane.b32.xlu0 %v985, 8
        %v988 = vpop.permute.xlu0 %987
        %v990 = vadd.f32 %v984, %v988
        %v991 = vmul.f32 %v925, %v680
        %v992 = vmul.f32 %v925, %v972
        %994 = vrot.lane.b32.xlu0 %v992, 120
        %v995 = vpop.permute.xlu0 %994
        %v997 = vsub.f32 %v991, %v995
        %v998 = vmul.f32 %v925, %v982
        %v999 = vmul.f32 %v925, %v681
        %1001 = vrot.lane.b32.xlu0 %v999, 8
        %v1002 = vpop.permute.xlu0 %1001
        %v1004 = vadd.f32 %v998, %v1002
        %v1005 = vpack.c.bf16 %v979, %v979
        %v1006 = vpack.c.bf16 %v997, %v997
        %v1007 = vpack.c.bf16 %v990, %v990
        %v1008 = vpack.c.bf16 %v1004, %v1004
        %1010 = vrot.lane.b32.xlu0 %v1007, 120
        %v1011 = vpop.permute.xlu0 %1010
        %1013 = vrot.lane.b32.xlu0 %v1008, 120
        %v1014 = vpop.permute.xlu0 %1013
        %vm1015 = vcmask 64512
        %v1017 = vsel %vm1015, %v1011, 0
        %v1020 = vsel %vm1015, %v1014, 0
        %1022 = vmatprep.subr.bf16.mxu0 0
        %1023 = vmatpush1.bf16.xpose.msra.mxu0 %v1020
        %1024 = vmatprep.subr.bf16.mxu0 0
        %1025 = vmatpush1.bf16.xpose.msra.mxu0 0
        %1026 = vmatprep.subr.bf16.mxu0 0
        %1027 = vmatpush1.bf16.xpose.msra.mxu0 0
        %1028 = vmatprep.subr.bf16.mxu0 0
        %1029 = vmatpush1.bf16.xpose.msra.mxu0 0
        %1030 = vmatprep.subr.bf16.mxu0 0
        %1031 = vmatpush1.bf16.xpose.msra.mxu0 0
        %1032 = vmatprep.subr.bf16.mxu0 0
        %1033 = vmatpush1.bf16.xpose.msra.mxu0 0
        %1034 = vmatprep.subr.bf16.mxu0 0
        %1035 = vmatpush1.bf16.xpose.msra.mxu0 0
        %1036 = vmatprep.subr.bf16.mxu0 0
        %1037 = vmatpush1.bf16.xpose.msra.mxu0 0
        %1038 = vmatprep.subr.bf16.mxu0 0
        %1039 = vmatpush1.bf16.xpose.msra.mxu0 0
        %1040 = vmatprep.subr.bf16.mxu0 0
        %1041 = vmatpush1.bf16.xpose.msra.mxu0 0
        %1042 = vmatprep.subr.bf16.mxu0 0
        %1043 = vmatpush1.bf16.xpose.msra.mxu0 0
        %1044 = vmatprep.subr.bf16.mxu0 0
        %1045 = vmatpush1.bf16.xpose.msra.mxu0 0
        %1046 = vmatprep.subr.bf16.mxu0 0
        %1047 = vmatpush1.bf16.xpose.msra.mxu0 0
        %1048 = vmatprep.subr.bf16.mxu0 0
        %1049 = vmatpush1.bf16.xpose.msra.mxu0 0
        %1050 = vmatprep.subr.bf16.mxu0 0
        %1051 = vmatpush1.bf16.xpose.msra.mxu0 0
        %1052 = vmatprep.subr.bf16.mxu0 0
        %1053 = vmatpush1.bf16.xpose.msra.mxu0 0
        %1054 = vmatprep.mubr.bf16.mxu0 0
        %1055 = vmatmul.mubr.bf16.gmra.mrb[0].mxu0 %v1017
        %v1056 = vpop.f32.mrb[0].mxu0
        %v1057 = vadd.f32 0.0, %v1056
        %v1058 = vpop.f32.mrb[0].mxu0
        %v1059 = vpop.f32.mrb[0].mxu0
        %v1060 = vpop.f32.mrb[0].mxu0
        %1061 = vdwg.mxu0
        %v1063 = vsel %vm1015, %v1005, 0
        %v1066 = vsel %vm1015, %v1006, 0
        %1068 = vmatprep.subr.bf16.mxu0 0
        %1069 = vmatpush1.bf16.xpose.msra.mxu0 %v1066
        %1070 = vmatprep.subr.bf16.mxu0 0
        %1071 = vmatpush1.bf16.xpose.msra.mxu0 0
        %1072 = vmatprep.subr.bf16.mxu0 0
        %1073 = vmatpush1.bf16.xpose.msra.mxu0 0
        %1074 = vmatprep.subr.bf16.mxu0 0
        %1075 = vmatpush1.bf16.xpose.msra.mxu0 0
        %1076 = vmatprep.subr.bf16.mxu0 0
        %1077 = vmatpush1.bf16.xpose.msra.mxu0 0
        %1078 = vmatprep.subr.bf16.mxu0 0
        %1079 = vmatpush1.bf16.xpose.msra.mxu0 0
        %1080 = vmatprep.subr.bf16.mxu0 0
        %1081 = vmatpush1.bf16.xpose.msra.mxu0 0
        %1082 = vmatprep.subr.bf16.mxu0 0
        %1083 = vmatpush1.bf16.xpose.msra.mxu0 0
        %1084 = vmatprep.subr.bf16.mxu0 0
        %1085 = vmatpush1.bf16.xpose.msra.mxu0 0
        %1086 = vmatprep.subr.bf16.mxu0 0
        %1087 = vmatpush1.bf16.xpose.msra.mxu0 0
        %1088 = vmatprep.subr.bf16.mxu0 0
        %1089 = vmatpush1.bf16.xpose.msra.mxu0 0
        %1090 = vmatprep.subr.bf16.mxu0 0
        %1091 = vmatpush1.bf16.xpose.msra.mxu0 0
        %1092 = vmatprep.subr.bf16.mxu0 0
        %1093 = vmatpush1.bf16.xpose.msra.mxu0 0
        %1094 = vmatprep.subr.bf16.mxu0 0
        %1095 = vmatpush1.bf16.xpose.msra.mxu0 0
        %1096 = vmatprep.subr.bf16.mxu0 0
        %1097 = vmatpush1.bf16.xpose.msra.mxu0 0
        %1098 = vmatprep.subr.bf16.mxu0 0
        %1099 = vmatpush1.bf16.xpose.msra.mxu0 0
        %1100 = vmatprep.mubr.bf16.mxu0 0
        %1101 = vmatmul.mubr.bf16.gmra.mrb[0].mxu0 %v1063
        %v1102 = vpop.f32.mrb[0].mxu0
        %v1103 = vadd.f32 %v1057, %v1102
        %v1104 = vpop.f32.mrb[0].mxu0
        %v1105 = vpop.f32.mrb[0].mxu0
        %v1106 = vpop.f32.mrb[0].mxu0
        %1107 = vdwg.mxu0
        %v1108 = vpack.c.bf16 %v923, %v923
        %v1109 = vpack.c.bf16 %v925, %v925
        %1111 = vrot.lane.b32.xlu0 %v1108, 112
        %v1112 = vpop.permute.xlu0 %1111
        %1114 = vrot.lane.b32.xlu0 %v1109, 112
        %v1115 = vpop.permute.xlu0 %1114
        %vm1116 = vcmask 130048
        %v1118 = vsel %vm1116, %v1112, 0
        %v1121 = vsel %vm1116, %v1115, 0
        %1123 = vmatprep.subr.bf16.mxu0 0
        %1124 = vmatpush1.bf16.xpose.msra.mxu0 %v1121
        %1125 = vmatprep.subr.bf16.mxu0 0
        %1126 = vmatpush1.bf16.xpose.msra.mxu0 0
        %1127 = vmatprep.subr.bf16.mxu0 0
        %1128 = vmatpush1.bf16.xpose.msra.mxu0 0
        %1129 = vmatprep.subr.bf16.mxu0 0
        %1130 = vmatpush1.bf16.xpose.msra.mxu0 0
        %1131 = vmatprep.subr.bf16.mxu0 0
        %1132 = vmatpush1.bf16.xpose.msra.mxu0 0
        %1133 = vmatprep.subr.bf16.mxu0 0
        %1134 = vmatpush1.bf16.xpose.msra.mxu0 0
        %1135 = vmatprep.subr.bf16.mxu0 0
        %1136 = vmatpush1.bf16.xpose.msra.mxu0 0
        %1137 = vmatprep.subr.bf16.mxu0 0
        %1138 = vmatpush1.bf16.xpose.msra.mxu0 0
        %1139 = vmatprep.subr.bf16.mxu0 0
        %1140 = vmatpush1.bf16.xpose.msra.mxu0 0
        %1141 = vmatprep.subr.bf16.mxu0 0
        %1142 = vmatpush1.bf16.xpose.msra.mxu0 0
        %1143 = vmatprep.subr.bf16.mxu0 0
        %1144 = vmatpush1.bf16.xpose.msra.mxu0 0
        %1145 = vmatprep.subr.bf16.mxu0 0
        %1146 = vmatpush1.bf16.xpose.msra.mxu0 0
        %1147 = vmatprep.subr.bf16.mxu0 0
        %1148 = vmatpush1.bf16.xpose.msra.mxu0 0
        %1149 = vmatprep.subr.bf16.mxu0 0
        %1150 = vmatpush1.bf16.xpose.msra.mxu0 0
        %1151 = vmatprep.subr.bf16.mxu0 0
        %1152 = vmatpush1.bf16.xpose.msra.mxu0 0
        %1153 = vmatprep.subr.bf16.mxu0 0
        %1154 = vmatpush1.bf16.xpose.msra.mxu0 0
        %1155 = vmatprep.mubr.bf16.mxu0 0
        %1156 = vmatmul.mubr.bf16.gmra.mrb[0].mxu0 %v1118
        %v1157 = vpop.f32.mrb[0].mxu0
        %v1158 = vadd.f32 0.0, %v1157
        %v1159 = vpop.f32.mrb[0].mxu0
        %v1160 = vpop.f32.mrb[0].mxu0
        %v1161 = vpop.f32.mrb[0].mxu0
        %1162 = vdwg.mxu0
        %v1163 = vadd.f32 %v1103, %v1158
        %v1164 = vmul.f32 %v1163, 0.17677669
        %v1165 = vadd.f32 %v1164, %v679
        %v1166 = vsel %vm1015, %v1165, -inf
        %1167 = vmax.xlane.f32.xlu0 %v1166
        %v1168 = vpop.xlane.xlu0 %1167
        %v1169 = vsub.f32 %v1165, %v1168
        %v1170 = vmul.f32 %v1169, 1.442695
        %v1171 = vpow.pop %v1170
        %v1172 = vsel %vm1015, %v1171, 0.0
        %1173 = vadd.xlane.f32.xlu0 %v1172
        %v1174 = vpop.xlane.xlu0 %1173
        %v1175 = vrcp.pop %v1174
        %v1176 = vmul.f32 %v1171, %v1175
        %v1177 = vpack.c.bf16 %v1176, %v1176
        %v1178 = vpack.c.bf16 %v964, %v964
        %v1180 = vsel %vm1015, %v1177, 0
        %vm1182 = vcmask 1043456
        %v1184 = vsel %vm1182, %v1178, 0
        %1186 = vmatprep.subr.bf16.mxu0 0
        %1187 = vmatpush1.bf16.msra.mxu0 %v1184
        %1188 = vmatprep.subr.bf16.mxu0 0
        %1189 = vmatpush1.bf16.msra.mxu0 0
        %1190 = vmatprep.subr.bf16.mxu0 0
        %1191 = vmatpush1.bf16.msra.mxu0 0
        %1192 = vmatprep.subr.bf16.mxu0 0
        %1193 = vmatpush1.bf16.msra.mxu0 0
        %1194 = vmatprep.subr.bf16.mxu0 0
        %1195 = vmatpush1.bf16.msra.mxu0 0
        %1196 = vmatprep.subr.bf16.mxu0 0
        %1197 = vmatpush1.bf16.msra.mxu0 0
        %1198 = vmatprep.subr.bf16.mxu0 0
        %1199 = vmatpush1.bf16.msra.mxu0 0
        %1200 = vmatprep.subr.bf16.mxu0 0
        %1201 = vmatpush1.bf16.msra.mxu0 0
        %1202 = vmatprep.subr.bf16.mxu0 0
        %1203 = vmatpush1.bf16.msra.mxu0 0
        %1204 = vmatprep.subr.bf16.mxu0 0
        %1205 = vmatpush1.bf16.msra.mxu0 0
        %1206 = vmatprep.subr.bf16.mxu0 0
        %1207 = vmatpush1.bf16.msra.mxu0 0
        %1208 = vmatprep.subr.bf16.mxu0 0
        %1209 = vmatpush1.bf16.msra.mxu0 0
        %1210 = vmatprep.subr.bf16.mxu0 0
        %1211 = vmatpush1.bf16.msra.mxu0 0
        %1212 = vmatprep.subr.bf16.mxu0 0
        %1213 = vmatpush1.bf16.msra.mxu0 0
        %1214 = vmatprep.subr.bf16.mxu0 0
        %1215 = vmatpush1.bf16.msra.mxu0 0
        %1216 = vmatprep.subr.bf16.mxu0 0
        %1217 = vmatpush1.bf16.msra.mxu0 0
        %1218 = vmatprep.mubr.bf16.mxu0 0
        %1219 = vmatmul.mubr.bf16.gmra.mrb[0].mxu0 %v1180
        %v1220 = vpop.f32.mrb[0].mxu0
        %v1221 = vadd.f32 0.0, %v1220
        %v1222 = vpop.f32.mrb[0].mxu0
        %v1223 = vpop.f32.mrb[0].mxu0
        %v1224 = vpop.f32.mrb[0].mxu0
        %1225 = vdwg.mxu0
        %v1226 = vpack.c.bf16 %v1221, %v1221
        %v1227 = vld [vmem:[#allocation7] sm:$0xf]
        %v1228 = vld [vmem:[#allocation7 + $0x4] sm:$0xf]
        %v1229 = vld [vmem:[#allocation7 + $0x8] sm:$0xf]
        %v1230 = vld [vmem:[#allocation7 + $0xc] sm:$0xf]
        %1231 = vrot.lane.b32.xlu0 %v680, 32
        %v1232 = vpop.permute.xlu0 %1231
        %v1234 = vmul.f32 %v923, %v1232
        %1235 = vrot.lane.b32.xlu0 %v681, 40
        %v1236 = vpop.permute.xlu0 %1235
        %v1238 = vmul.f32 %v923, %v1236
        %1240 = vrot.lane.b32.xlu0 %v1238, 120
        %v1241 = vpop.permute.xlu0 %1240
        %v1243 = vsub.f32 %v1234, %v1241
        %1244 = vrot.lane.b32.xlu0 %v680, 40
        %v1245 = vpop.permute.xlu0 %1244
        %v1247 = vmul.f32 %v923, %v1245
        %1248 = vrot.lane.b32.xlu0 %v681, 32
        %v1249 = vpop.permute.xlu0 %1248
        %v1251 = vmul.f32 %v923, %v1249
        %1253 = vrot.lane.b32.xlu0 %v1251, 8
        %v1254 = vpop.permute.xlu0 %1253
        %v1256 = vadd.f32 %v1247, %v1254
        %v1257 = vmul.f32 %v925, %v1232
        %v1258 = vmul.f32 %v925, %v1236
        %1260 = vrot.lane.b32.xlu0 %v1258, 120
        %v1261 = vpop.permute.xlu0 %1260
        %v1263 = vsub.f32 %v1257, %v1261
        %v1264 = vmul.f32 %v925, %v1245
        %v1265 = vmul.f32 %v925, %v1249
        %1267 = vrot.lane.b32.xlu0 %v1265, 8
        %v1268 = vpop.permute.xlu0 %1267
        %v1270 = vadd.f32 %v1264, %v1268
        %v1271 = vpack.c.bf16 %v1243, %v1243
        %v1272 = vpack.c.bf16 %v1263, %v1263
        %v1273 = vpack.c.bf16 %v1256, %v1256
        %v1274 = vpack.c.bf16 %v1270, %v1270
        %1276 = vrot.lane.b32.xlu0 %v1273, 88
        %v1277 = vpop.permute.xlu0 %1276
        %1279 = vrot.lane.b32.xlu0 %v1274, 88
        %v1280 = vpop.permute.xlu0 %1279
        %v1282 = vsel %vm1015, %v1277, 0
        %v1285 = vsel %vm1015, %v1280, 0
        %1287 = vmatprep.subr.bf16.mxu0 0
        %1288 = vmatpush1.bf16.xpose.msra.mxu0 %v1285
        %1289 = vmatprep.subr.bf16.mxu0 0
        %1290 = vmatpush1.bf16.xpose.msra.mxu0 0
        %1291 = vmatprep.subr.bf16.mxu0 0
        %1292 = vmatpush1.bf16.xpose.msra.mxu0 0
        %1293 = vmatprep.subr.bf16.mxu0 0
        %1294 = vmatpush1.bf16.xpose.msra.mxu0 0
        %1295 = vmatprep.subr.bf16.mxu0 0
        %1296 = vmatpush1.bf16.xpose.msra.mxu0 0
        %1297 = vmatprep.subr.bf16.mxu0 0
        %1298 = vmatpush1.bf16.xpose.msra.mxu0 0
        %1299 = vmatprep.subr.bf16.mxu0 0
        %1300 = vmatpush1.bf16.xpose.msra.mxu0 0
        %1301 = vmatprep.subr.bf16.mxu0 0
        %1302 = vmatpush1.bf16.xpose.msra.mxu0 0
        %1303 = vmatprep.subr.bf16.mxu0 0
        %1304 = vmatpush1.bf16.xpose.msra.mxu0 0
        %1305 = vmatprep.subr.bf16.mxu0 0
        %1306 = vmatpush1.bf16.xpose.msra.mxu0 0
        %1307 = vmatprep.subr.bf16.mxu0 0
        %1308 = vmatpush1.bf16.xpose.msra.mxu0 0
        %1309 = vmatprep.subr.bf16.mxu0 0
        %1310 = vmatpush1.bf16.xpose.msra.mxu0 0
        %1311 = vmatprep.subr.bf16.mxu0 0
        %1312 = vmatpush1.bf16.xpose.msra.mxu0 0
        %1313 = vmatprep.subr.bf16.mxu0 0
        %1314 = vmatpush1.bf16.xpose.msra.mxu0 0
        %1315 = vmatprep.subr.bf16.mxu0 0
        %1316 = vmatpush1.bf16.xpose.msra.mxu0 0
        %1317 = vmatprep.subr.bf16.mxu0 0
        %1318 = vmatpush1.bf16.xpose.msra.mxu0 0
        %1319 = vmatprep.mubr.bf16.mxu0 0
        %1320 = vmatmul.mubr.bf16.gmra.mrb[0].mxu0 %v1282
        %v1321 = vpop.f32.mrb[0].mxu0
        %v1322 = vadd.f32 0.0, %v1321
        %v1323 = vpop.f32.mrb[0].mxu0
        %v1324 = vpop.f32.mrb[0].mxu0
        %v1325 = vpop.f32.mrb[0].mxu0
        %1326 = vdwg.mxu0
        %1328 = vrot.lane.b32.xlu0 %v1271, 96
        %v1329 = vpop.permute.xlu0 %1328
        %1331 = vrot.lane.b32.xlu0 %v1272, 96
        %v1332 = vpop.permute.xlu0 %1331
        %v1334 = vsel %vm1015, %v1329, 0
        %v1337 = vsel %vm1015, %v1332, 0
        %1339 = vmatprep.subr.bf16.mxu0 0
        %1340 = vmatpush1.bf16.xpose.msra.mxu0 %v1337
        %1341 = vmatprep.subr.bf16.mxu0 0
        %1342 = vmatpush1.bf16.xpose.msra.mxu0 0
        %1343 = vmatprep.subr.bf16.mxu0 0
        %1344 = vmatpush1.bf16.xpose.msra.mxu0 0
        %1345 = vmatprep.subr.bf16.mxu0 0
        %1346 = vmatpush1.bf16.xpose.msra.mxu0 0
        %1347 = vmatprep.subr.bf16.mxu0 0
        %1348 = vmatpush1.bf16.xpose.msra.mxu0 0
        %1349 = vmatprep.subr.bf16.mxu0 0
        %1350 = vmatpush1.bf16.xpose.msra.mxu0 0
        %1351 = vmatprep.subr.bf16.mxu0 0
        %1352 = vmatpush1.bf16.xpose.msra.mxu0 0
        %1353 = vmatprep.subr.bf16.mxu0 0
        %1354 = vmatpush1.bf16.xpose.msra.mxu0 0
        %1355 = vmatprep.subr.bf16.mxu0 0
        %1356 = vmatpush1.bf16.xpose.msra.mxu0 0
        %1357 = vmatprep.subr.bf16.mxu0 0
        %1358 = vmatpush1.bf16.xpose.msra.mxu0 0
        %1359 = vmatprep.subr.bf16.mxu0 0
        %1360 = vmatpush1.bf16.xpose.msra.mxu0 0
        %1361 = vmatprep.subr.bf16.mxu0 0
        %1362 = vmatpush1.bf16.xpose.msra.mxu0 0
        %1363 = vmatprep.subr.bf16.mxu0 0
        %1364 = vmatpush1.bf16.xpose.msra.mxu0 0
        %1365 = vmatprep.subr.bf16.mxu0 0
        %1366 = vmatpush1.bf16.xpose.msra.mxu0 0
        %1367 = vmatprep.subr.bf16.mxu0 0
        %1368 = vmatpush1.bf16.xpose.msra.mxu0 0
        %1369 = vmatprep.subr.bf16.mxu0 0
        %1370 = vmatpush1.bf16.xpose.msra.mxu0 0
        %1371 = vmatprep.mubr.bf16.mxu0 0
        %1372 = vmatmul.mubr.bf16.gmra.mrb[0].mxu0 %v1334
        %v1373 = vpop.f32.mrb[0].mxu0
        %v1374 = vadd.f32 %v1322, %v1373
        %v1375 = vpop.f32.mrb[0].mxu0
        %v1376 = vpop.f32.mrb[0].mxu0
        %v1377 = vpop.f32.mrb[0].mxu0
        %1378 = vdwg.mxu0
        %1379 = vrot.lane.b32.xlu0 %v1108, 80
        %v1380 = vpop.permute.xlu0 %1379
        %1381 = vrot.lane.b32.xlu0 %v1109, 80
        %v1382 = vpop.permute.xlu0 %1381
        %v1384 = vsel %vm1116, %v1380, 0
        %v1387 = vsel %vm1116, %v1382, 0
        %1389 = vmatprep.subr.bf16.mxu0 0
        %1390 = vmatpush1.bf16.xpose.msra.mxu0 %v1387
        %1391 = vmatprep.subr.bf16.mxu0 0
        %1392 = vmatpush1.bf16.xpose.msra.mxu0 0
        %1393 = vmatprep.subr.bf16.mxu0 0
        %1394 = vmatpush1.bf16.xpose.msra.mxu0 0
        %1395 = vmatprep.subr.bf16.mxu0 0
        %1396 = vmatpush1.bf16.xpose.msra.mxu0 0
        %1397 = vmatprep.subr.bf16.mxu0 0
        %1398 = vmatpush1.bf16.xpose.msra.mxu0 0
        %1399 = vmatprep.subr.bf16.mxu0 0
        %1400 = vmatpush1.bf16.xpose.msra.mxu0 0
        %1401 = vmatprep.subr.bf16.mxu0 0
        %1402 = vmatpush1.bf16.xpose.msra.mxu0 0
        %1403 = vmatprep.subr.bf16.mxu0 0
        %1404 = vmatpush1.bf16.xpose.msra.mxu0 0
        %1405 = vmatprep.subr.bf16.mxu0 0
        %1406 = vmatpush1.bf16.xpose.msra.mxu0 0
        %1407 = vmatprep.subr.bf16.mxu0 0
        %1408 = vmatpush1.bf16.xpose.msra.mxu0 0
        %1409 = vmatprep.subr.bf16.mxu0 0
        %1410 = vmatpush1.bf16.xpose.msra.mxu0 0
        %1411 = vmatprep.subr.bf16.mxu0 0
        %1412 = vmatpush1.bf16.xpose.msra.mxu0 0
        %1413 = vmatprep.subr.bf16.mxu0 0
        %1414 = vmatpush1.bf16.xpose.msra.mxu0 0
        %1415 = vmatprep.subr.bf16.mxu0 0
        %1416 = vmatpush1.bf16.xpose.msra.mxu0 0
        %1417 = vmatprep.subr.bf16.mxu0 0
        %1418 = vmatpush1.bf16.xpose.msra.mxu0 0
        %1419 = vmatprep.subr.bf16.mxu0 0
        %1420 = vmatpush1.bf16.xpose.msra.mxu0 0
        %1421 = vmatprep.mubr.bf16.mxu0 0
        %1422 = vmatmul.mubr.bf16.gmra.mrb[0].mxu0 %v1384
        %v1423 = vpop.f32.mrb[0].mxu0
        %v1424 = vadd.f32 0.0, %v1423
        %v1425 = vpop.f32.mrb[0].mxu0
        %v1426 = vpop.f32.mrb[0].mxu0
        %v1427 = vpop.f32.mrb[0].mxu0
        %1428 = vdwg.mxu0
        %v1429 = vadd.f32 %v1374, %v1424
        %v1430 = vmul.f32 %v1429, 0.17677669
        %v1431 = vadd.f32 %v1430, %v679
        %v1432 = vsel %vm1015, %v1431, -inf
        %1433 = vmax.xlane.f32.xlu0 %v1432
        %v1434 = vpop.xlane.xlu0 %1433
        %v1435 = vsub.f32 %v1431, %v1434
        %v1436 = vmul.f32 %v1435, 1.442695
        %v1437 = vpow.pop %v1436
        %v1438 = vsel %vm1015, %v1437, 0.0
        %1439 = vadd.xlane.f32.xlu0 %v1438
        %v1440 = vpop.xlane.xlu0 %1439
        %v1441 = vrcp.pop %v1440
        %v1442 = vmul.f32 %v1437, %v1441
        %v1443 = vpack.c.bf16 %v1442, %v1442
        %1445 = vrot.lane.b32.xlu0 %v1178, 96
        %v1446 = vpop.permute.xlu0 %1445
        %v1448 = vsel %vm1015, %v1443, 0
        %v1451 = vsel %vm1182, %v1446, 0
        %1453 = vmatprep.subr.bf16.mxu0 0
        %1454 = vmatpush1.bf16.msra.mxu0 %v1451
        %1455 = vmatprep.subr.bf16.mxu0 0
        %1456 = vmatpush1.bf16.msra.mxu0 0
        %1457 = vmatprep.subr.bf16.mxu0 0
        %1458 = vmatpush1.bf16.msra.mxu0 0
        %1459 = vmatprep.subr.bf16.mxu0 0
        %1460 = vmatpush1.bf16.msra.mxu0 0
        %1461 = vmatprep.subr.bf16.mxu0 0
        %1462 = vmatpush1.bf16.msra.mxu0 0
        %1463 = vmatprep.subr.bf16.mxu0 0
        %1464 = vmatpush1.bf16.msra.mxu0 0
        %1465 = vmatprep.subr.bf16.mxu0 0
        %1466 = vmatpush1.bf16.msra.mxu0 0
        %1467 = vmatprep.subr.bf16.mxu0 0
        %1468 = vmatpush1.bf16.msra.mxu0 0
        %1469 = vmatprep.subr.bf16.mxu0 0
        %1470 = vmatpush1.bf16.msra.mxu0 0
        %1471 = vmatprep.subr.bf16.mxu0 0
        %1472 = vmatpush1.bf16.msra.mxu0 0
        %1473 = vmatprep.subr.bf16.mxu0 0
        %1474 = vmatpush1.bf16.msra.mxu0 0
        %1475 = vmatprep.subr.bf16.mxu0 0
        %1476 = vmatpush1.bf16.msra.mxu0 0
        %1477 = vmatprep.subr.bf16.mxu0 0
        %1478 = vmatpush1.bf16.msra.mxu0 0
        %1479 = vmatprep.subr.bf16.mxu0 0
        %1480 = vmatpush1.bf16.msra.mxu0 0
        %1481 = vmatprep.subr.bf16.mxu0 0
        %1482 = vmatpush1.bf16.msra.mxu0 0
        %1483 = vmatprep.subr.bf16.mxu0 0
        %1484 = vmatpush1.bf16.msra.mxu0 0
        %1485 = vmatprep.mubr.bf16.mxu0 0
        %1486 = vmatmul.mubr.bf16.gmra.mrb[0].mxu0 %v1448
        %v1487 = vpop.f32.mrb[0].mxu0
        %v1488 = vadd.f32 0.0, %v1487
        %v1489 = vpop.f32.mrb[0].mxu0
        %v1490 = vpop.f32.mrb[0].mxu0
        %v1491 = vpop.f32.mrb[0].mxu0
        %1492 = vdwg.mxu0
        %v1493 = vpack.c.bf16 %v1488, %v1488
        %v1494 = vld [vmem:[#allocation7 + $0x10] sm:$0xf]
        %v1495 = vld [vmem:[#allocation7 + $0x14] sm:$0xf]
        %v1496 = vld [vmem:[#allocation7 + $0x18] sm:$0xf]
        %v1497 = vld [vmem:[#allocation7 + $0x1c] sm:$0xf]
        %v1502 = vunpack.c.l.b16 %v1494
        %v1503 = vunpack.c.l.b16 %v1495
        %v1504 = vunpack.c.l.b16 %v1496
        %v1505 = vunpack.c.l.b16 %v1497
        %v1506 = vpack.c.b16 %v1503, %v1502
        %v1507 = vpack.c.b16 %v1505, %v1504
        %vm1510 = vcmask 261120
        %v1512 = vsel %vm1510, %v1493, 0
        %1514 = vmatprep.subr.bf16.mxu0 0
        %1515 = vmatpush1.bf16.msra.mxu0 %v1506
        %1516 = vmatprep.subr.bf16.mxu0 0
        %1517 = vmatpush1.bf16.msra.mxu0 %v1507
        %1518 = vmatprep.subr.bf16.mxu0 0
        %1519 = vmatpush1.bf16.msra.mxu0 0
        %1520 = vmatprep.subr.bf16.mxu0 0
        %1521 = vmatpush1.bf16.msra.mxu0 0
        %1522 = vmatprep.subr.bf16.mxu0 0
        %1523 = vmatpush1.bf16.msra.mxu0 0
        %1524 = vmatprep.subr.bf16.mxu0 0
        %1525 = vmatpush1.bf16.msra.mxu0 0
        %1526 = vmatprep.subr.bf16.mxu0 0
        %1527 = vmatpush1.bf16.msra.mxu0 0
        %1528 = vmatprep.subr.bf16.mxu0 0
        %1529 = vmatpush1.bf16.msra.mxu0 0
        %1530 = vmatprep.subr.bf16.mxu0 0
        %1531 = vmatpush1.bf16.msra.mxu0 0
        %1532 = vmatprep.subr.bf16.mxu0 0
        %1533 = vmatpush1.bf16.msra.mxu0 0
        %1534 = vmatprep.subr.bf16.mxu0 0
        %1535 = vmatpush1.bf16.msra.mxu0 0
        %1536 = vmatprep.subr.bf16.mxu0 0
        %1537 = vmatpush1.bf16.msra.mxu0 0
        %1538 = vmatprep.subr.bf16.mxu0 0
        %1539 = vmatpush1.bf16.msra.mxu0 0
        %1540 = vmatprep.subr.bf16.mxu0 0
        %1541 = vmatpush1.bf16.msra.mxu0 0
        %1542 = vmatprep.subr.bf16.mxu0 0
        %1543 = vmatpush1.bf16.msra.mxu0 0
        %1544 = vmatprep.subr.bf16.mxu0 0
        %1545 = vmatpush1.bf16.msra.mxu0 0
        %1546 = vmatprep.mubr.bf16.mxu0 0
        %1547 = vmatmul.mubr.bf16.gmra.mrb[0].mxu0 %v1512
        %v1548 = vpop.f32.mrb[0].mxu0
        %v1549 = vadd.f32 0.0, %v1548
        %v1550 = vpop.f32.mrb[0].mxu0
        %v1551 = vpop.f32.mrb[0].mxu0
        %v1552 = vpop.f32.mrb[0].mxu0
        %1553 = vdwg.mxu0
        %v1558 = vunpack.c.l.b16 %v1227
        %v1559 = vunpack.c.l.b16 %v1228
        %v1560 = vunpack.c.l.b16 %v1229
        %v1561 = vunpack.c.l.b16 %v1230
        %v1562 = vpack.c.b16 %v1559, %v1558
        %v1563 = vpack.c.b16 %v1561, %v1560
        %v1567 = vsel %vm1510, %v1226, 0
        %1569 = vmatprep.subr.bf16.mxu0 0
        %1570 = vmatpush1.bf16.msra.mxu0 %v1562
        %1571 = vmatprep.subr.bf16.mxu0 0
        %1572 = vmatpush1.bf16.msra.mxu0 %v1563
        %1573 = vmatprep.subr.bf16.mxu0 0
        %1574 = vmatpush1.bf16.msra.mxu0 0
        %1575 = vmatprep.subr.bf16.mxu0 0
        %1576 = vmatpush1.bf16.msra.mxu0 0
        %1577 = vmatprep.subr.bf16.mxu0 0
        %1578 = vmatpush1.bf16.msra.mxu0 0
        %1579 = vmatprep.subr.bf16.mxu0 0
        %1580 = vmatpush1.bf16.msra.mxu0 0
        %1581 = vmatprep.subr.bf16.mxu0 0
        %1582 = vmatpush1.bf16.msra.mxu0 0
        %1583 = vmatprep.subr.bf16.mxu0 0
        %1584 = vmatpush1.bf16.msra.mxu0 0
        %1585 = vmatprep.subr.bf16.mxu0 0
        %1586 = vmatpush1.bf16.msra.mxu0 0
        %1587 = vmatprep.subr.bf16.mxu0 0
        %1588 = vmatpush1.bf16.msra.mxu0 0
        %1589 = vmatprep.subr.bf16.mxu0 0
        %1590 = vmatpush1.bf16.msra.mxu0 0
        %1591 = vmatprep.subr.bf16.mxu0 0
        %1592 = vmatpush1.bf16.msra.mxu0 0
        %1593 = vmatprep.subr.bf16.mxu0 0
        %1594 = vmatpush1.bf16.msra.mxu0 0
        %1595 = vmatprep.subr.bf16.mxu0 0
        %1596 = vmatpush1.bf16.msra.mxu0 0
        %1597 = vmatprep.subr.bf16.mxu0 0
        %1598 = vmatpush1.bf16.msra.mxu0 0
        %1599 = vmatprep.subr.bf16.mxu0 0
        %1600 = vmatpush1.bf16.msra.mxu0 0
        %1601 = vmatprep.mubr.bf16.mxu0 0
        %1602 = vmatmul.mubr.bf16.gmra.mrb[0].mxu0 %v1567
        %v1603 = vpop.f32.mrb[0].mxu0
        %v1604 = vadd.f32 %v1549, %v1603
        %v1605 = vpop.f32.mrb[0].mxu0
        %v1606 = vpop.f32.mrb[0].mxu0
        %v1607 = vpop.f32.mrb[0].mxu0
        %1608 = vdwg.mxu0
        %1609 = vrot.lane.b32.xlu0 %v680, 64
        %v1610 = vpop.permute.xlu0 %1609
        %v1612 = vmul.f32 %v923, %v1610
        %1613 = vrot.lane.b32.xlu0 %v681, 72
        %v1614 = vpop.permute.xlu0 %1613
        %v1616 = vmul.f32 %v923, %v1614
        %1618 = vrot.lane.b32.xlu0 %v1616, 120
        %v1619 = vpop.permute.xlu0 %1618
        %v1621 = vsub.f32 %v1612, %v1619
        %1622 = vrot.lane.b32.xlu0 %v680, 72
        %v1623 = vpop.permute.xlu0 %1622
        %v1625 = vmul.f32 %v923, %v1623
        %1626 = vrot.lane.b32.xlu0 %v681, 64
        %v1627 = vpop.permute.xlu0 %1626
        %v1629 = vmul.f32 %v923, %v1627
        %1631 = vrot.lane.b32.xlu0 %v1629, 8
        %v1632 = vpop.permute.xlu0 %1631
        %v1634 = vadd.f32 %v1625, %v1632
        %v1635 = vmul.f32 %v925, %v1610
        %v1636 = vmul.f32 %v925, %v1614
        %1638 = vrot.lane.b32.xlu0 %v1636, 120
        %v1639 = vpop.permute.xlu0 %1638
        %v1641 = vsub.f32 %v1635, %v1639
        %v1642 = vmul.f32 %v925, %v1623
        %v1643 = vmul.f32 %v925, %v1627
        %1645 = vrot.lane.b32.xlu0 %v1643, 8
        %v1646 = vpop.permute.xlu0 %1645
        %v1648 = vadd.f32 %v1642, %v1646
        %v1649 = vpack.c.bf16 %v1621, %v1621
        %v1650 = vpack.c.bf16 %v1641, %v1641
        %v1651 = vpack.c.bf16 %v1634, %v1634
        %v1652 = vpack.c.bf16 %v1648, %v1648
        %1654 = vrot.lane.b32.xlu0 %v1651, 56
        %v1655 = vpop.permute.xlu0 %1654
        %1657 = vrot.lane.b32.xlu0 %v1652, 56
        %v1658 = vpop.permute.xlu0 %1657
        %v1660 = vsel %vm1015, %v1655, 0
        %v1663 = vsel %vm1015, %v1658, 0
        %1665 = vmatprep.subr.bf16.mxu0 0
        %1666 = vmatpush1.bf16.xpose.msra.mxu0 %v1663
        %1667 = vmatprep.subr.bf16.mxu0 0
        %1668 = vmatpush1.bf16.xpose.msra.mxu0 0
        %1669 = vmatprep.subr.bf16.mxu0 0
        %1670 = vmatpush1.bf16.xpose.msra.mxu0 0
        %1671 = vmatprep.subr.bf16.mxu0 0
        %1672 = vmatpush1.bf16.xpose.msra.mxu0 0
        %1673 = vmatprep.subr.bf16.mxu0 0
        %1674 = vmatpush1.bf16.xpose.msra.mxu0 0
        %1675 = vmatprep.subr.bf16.mxu0 0
        %1676 = vmatpush1.bf16.xpose.msra.mxu0 0
        %1677 = vmatprep.subr.bf16.mxu0 0
        %1678 = vmatpush1.bf16.xpose.msra.mxu0 0
        %1679 = vmatprep.subr.bf16.mxu0 0
        %1680 = vmatpush1.bf16.xpose.msra.mxu0 0
        %1681 = vmatprep.subr.bf16.mxu0 0
        %1682 = vmatpush1.bf16.xpose.msra.mxu0 0
        %1683 = vmatprep.subr.bf16.mxu0 0
        %1684 = vmatpush1.bf16.xpose.msra.mxu0 0
        %1685 = vmatprep.subr.bf16.mxu0 0
        %1686 = vmatpush1.bf16.xpose.msra.mxu0 0
        %1687 = vmatprep.subr.bf16.mxu0 0
        %1688 = vmatpush1.bf16.xpose.msra.mxu0 0
        %1689 = vmatprep.subr.bf16.mxu0 0
        %1690 = vmatpush1.bf16.xpose.msra.mxu0 0
        %1691 = vmatprep.subr.bf16.mxu0 0
        %1692 = vmatpush1.bf16.xpose.msra.mxu0 0
        %1693 = vmatprep.subr.bf16.mxu0 0
        %1694 = vmatpush1.bf16.xpose.msra.mxu0 0
        %1695 = vmatprep.subr.bf16.mxu0 0
        %1696 = vmatpush1.bf16.xpose.msra.mxu0 0
        %1697 = vmatprep.mubr.bf16.mxu0 0
        %1698 = vmatmul.mubr.bf16.gmra.mrb[0].mxu0 %v1660
        %v1699 = vpop.f32.mrb[0].mxu0
        %v1700 = vadd.f32 0.0, %v1699
        %v1701 = vpop.f32.mrb[0].mxu0
        %v1702 = vpop.f32.mrb[0].mxu0
        %v1703 = vpop.f32.mrb[0].mxu0
        %1704 = vdwg.mxu0
        %1706 = vrot.lane.b32.xlu0 %v1649, 64
        %v1707 = vpop.permute.xlu0 %1706
        %1709 = vrot.lane.b32.xlu0 %v1650, 64
        %v1710 = vpop.permute.xlu0 %1709
        %v1712 = vsel %vm1015, %v1707, 0
        %v1715 = vsel %vm1015, %v1710, 0
        %1717 = vmatprep.subr.bf16.mxu0 0
        %1718 = vmatpush1.bf16.xpose.msra.mxu0 %v1715
        %1719 = vmatprep.subr.bf16.mxu0 0
        %1720 = vmatpush1.bf16.xpose.msra.mxu0 0
        %1721 = vmatprep.subr.bf16.mxu0 0
        %1722 = vmatpush1.bf16.xpose.msra.mxu0 0
        %1723 = vmatprep.subr.bf16.mxu0 0
        %1724 = vmatpush1.bf16.xpose.msra.mxu0 0
        %1725 = vmatprep.subr.bf16.mxu0 0
        %1726 = vmatpush1.bf16.xpose.msra.mxu0 0
        %1727 = vmatprep.subr.bf16.mxu0 0
        %1728 = vmatpush1.bf16.xpose.msra.mxu0 0
        %1729 = vmatprep.subr.bf16.mxu0 0
        %1730 = vmatpush1.bf16.xpose.msra.mxu0 0
        %1731 = vmatprep.subr.bf16.mxu0 0
        %1732 = vmatpush1.bf16.xpose.msra.mxu0 0
        %1733 = vmatprep.subr.bf16.mxu0 0
        %1734 = vmatpush1.bf16.xpose.msra.mxu0 0
        %1735 = vmatprep.subr.bf16.mxu0 0
        %1736 = vmatpush1.bf16.xpose.msra.mxu0 0
        %1737 = vmatprep.subr.bf16.mxu0 0
        %1738 = vmatpush1.bf16.xpose.msra.mxu0 0
        %1739 = vmatprep.subr.bf16.mxu0 0
        %1740 = vmatpush1.bf16.xpose.msra.mxu0 0
        %1741 = vmatprep.subr.bf16.mxu0 0
        %1742 = vmatpush1.bf16.xpose.msra.mxu0 0
        %1743 = vmatprep.subr.bf16.mxu0 0
        %1744 = vmatpush1.bf16.xpose.msra.mxu0 0
        %1745 = vmatprep.subr.bf16.mxu0 0
        %1746 = vmatpush1.bf16.xpose.msra.mxu0 0
        %1747 = vmatprep.subr.bf16.mxu0 0
        %1748 = vmatpush1.bf16.xpose.msra.mxu0 0
        %1749 = vmatprep.mubr.bf16.mxu0 0
        %1750 = vmatmul.mubr.bf16.gmra.mrb[0].mxu0 %v1712
        %v1751 = vpop.f32.mrb[0].mxu0
        %v1752 = vadd.f32 %v1700, %v1751
        %v1753 = vpop.f32.mrb[0].mxu0
        %v1754 = vpop.f32.mrb[0].mxu0
        %v1755 = vpop.f32.mrb[0].mxu0
        %1756 = vdwg.mxu0
        %1757 = vrot.lane.b32.xlu0 %v1108, 48
        %v1758 = vpop.permute.xlu0 %1757
        %1759 = vrot.lane.b32.xlu0 %v1109, 48
        %v1760 = vpop.permute.xlu0 %1759
        %v1762 = vsel %vm1116, %v1758, 0
        %v1765 = vsel %vm1116, %v1760, 0
        %1767 = vmatprep.subr.bf16.mxu0 0
        %1768 = vmatpush1.bf16.xpose.msra.mxu0 %v1765
        %1769 = vmatprep.subr.bf16.mxu0 0
        %1770 = vmatpush1.bf16.xpose.msra.mxu0 0
        %1771 = vmatprep.subr.bf16.mxu0 0
        %1772 = vmatpush1.bf16.xpose.msra.mxu0 0
        %1773 = vmatprep.subr.bf16.mxu0 0
        %1774 = vmatpush1.bf16.xpose.msra.mxu0 0
        %1775 = vmatprep.subr.bf16.mxu0 0
        %1776 = vmatpush1.bf16.xpose.msra.mxu0 0
        %1777 = vmatprep.subr.bf16.mxu0 0
        %1778 = vmatpush1.bf16.xpose.msra.mxu0 0
        %1779 = vmatprep.subr.bf16.mxu0 0
        %1780 = vmatpush1.bf16.xpose.msra.mxu0 0
        %1781 = vmatprep.subr.bf16.mxu0 0
        %1782 = vmatpush1.bf16.xpose.msra.mxu0 0
        %1783 = vmatprep.subr.bf16.mxu0 0
        %1784 = vmatpush1.bf16.xpose.msra.mxu0 0
        %1785 = vmatprep.subr.bf16.mxu0 0
        %1786 = vmatpush1.bf16.xpose.msra.mxu0 0
        %1787 = vmatprep.subr.bf16.mxu0 0
        %1788 = vmatpush1.bf16.xpose.msra.mxu0 0
        %1789 = vmatprep.subr.bf16.mxu0 0
        %1790 = vmatpush1.bf16.xpose.msra.mxu0 0
        %1791 = vmatprep.subr.bf16.mxu0 0
        %1792 = vmatpush1.bf16.xpose.msra.mxu0 0
        %1793 = vmatprep.subr.bf16.mxu0 0
        %1794 = vmatpush1.bf16.xpose.msra.mxu0 0
        %1795 = vmatprep.subr.bf16.mxu0 0
        %1796 = vmatpush1.bf16.xpose.msra.mxu0 0
        %1797 = vmatprep.subr.bf16.mxu0 0
        %1798 = vmatpush1.bf16.xpose.msra.mxu0 0
        %1799 = vmatprep.mubr.bf16.mxu0 0
        %1800 = vmatmul.mubr.bf16.gmra.mrb[0].mxu0 %v1762
        %v1801 = vpop.f32.mrb[0].mxu0
        %v1802 = vadd.f32 0.0, %v1801
        %v1803 = vpop.f32.mrb[0].mxu0
        %v1804 = vpop.f32.mrb[0].mxu0
        %v1805 = vpop.f32.mrb[0].mxu0
        %1806 = vdwg.mxu0
        %v1807 = vadd.f32 %v1752, %v1802
        %v1808 = vmul.f32 %v1807, 0.17677669
        %v1809 = vadd.f32 %v1808, %v679
        %v1810 = vsel %vm1015, %v1809, -inf
        %1811 = vmax.xlane.f32.xlu0 %v1810
        %v1812 = vpop.xlane.xlu0 %1811
        %v1813 = vsub.f32 %v1809, %v1812
        %v1814 = vmul.f32 %v1813, 1.442695
        %v1815 = vpow.pop %v1814
        %v1816 = vsel %vm1015, %v1815, 0.0
        %1817 = vadd.xlane.f32.xlu0 %v1816
        %v1818 = vpop.xlane.xlu0 %1817
        %v1819 = vrcp.pop %v1818
        %v1820 = vmul.f32 %v1815, %v1819
        %v1821 = vpack.c.bf16 %v1820, %v1820
        %1822 = vrot.lane.b32.xlu0 %v1178, 64
        %v1823 = vpop.permute.xlu0 %1822
        %v1825 = vsel %vm1015, %v1821, 0
        %v1828 = vsel %vm1182, %v1823, 0
        %1830 = vmatprep.subr.bf16.mxu0 0
        %1831 = vmatpush1.bf16.msra.mxu0 %v1828
        %1832 = vmatprep.subr.bf16.mxu0 0
        %1833 = vmatpush1.bf16.msra.mxu0 0
        %1834 = vmatprep.subr.bf16.mxu0 0
        %1835 = vmatpush1.bf16.msra.mxu0 0
        %1836 = vmatprep.subr.bf16.mxu0 0
        %1837 = vmatpush1.bf16.msra.mxu0 0
        %1838 = vmatprep.subr.bf16.mxu0 0
        %1839 = vmatpush1.bf16.msra.mxu0 0
        %1840 = vmatprep.subr.bf16.mxu0 0
        %1841 = vmatpush1.bf16.msra.mxu0 0
        %1842 = vmatprep.subr.bf16.mxu0 0
        %1843 = vmatpush1.bf16.msra.mxu0 0
        %1844 = vmatprep.subr.bf16.mxu0 0
        %1845 = vmatpush1.bf16.msra.mxu0 0
        %1846 = vmatprep.subr.bf16.mxu0 0
        %1847 = vmatpush1.bf16.msra.mxu0 0
        %1848 = vmatprep.subr.bf16.mxu0 0
        %1849 = vmatpush1.bf16.msra.mxu0 0
        %1850 = vmatprep.subr.bf16.mxu0 0
        %1851 = vmatpush1.bf16.msra.mxu0 0
        %1852 = vmatprep.subr.bf16.mxu0 0
        %1853 = vmatpush1.bf16.msra.mxu0 0
        %1854 = vmatprep.subr.bf16.mxu0 0
        %1855 = vmatpush1.bf16.msra.mxu0 0
        %1856 = vmatprep.subr.bf16.mxu0 0
        %1857 = vmatpush1.bf16.msra.mxu0 0
        %1858 = vmatprep.subr.bf16.mxu0 0
        %1859 = vmatpush1.bf16.msra.mxu0 0
        %1860 = vmatprep.subr.bf16.mxu0 0
        %1861 = vmatpush1.bf16.msra.mxu0 0
        %1862 = vmatprep.mubr.bf16.mxu0 0
        %1863 = vmatmul.mubr.bf16.gmra.mrb[0].mxu0 %v1825
        %v1864 = vpop.f32.mrb[0].mxu0
        %v1865 = vadd.f32 0.0, %v1864
        %v1866 = vpop.f32.mrb[0].mxu0
        %v1867 = vpop.f32.mrb[0].mxu0
        %v1868 = vpop.f32.mrb[0].mxu0
        %1869 = vdwg.mxu0
        %v1870 = vpack.c.bf16 %v1865, %v1865
        %v1871 = vld [vmem:[#allocation7 + $0x20] sm:$0xf]
        %v1872 = vld [vmem:[#allocation7 + $0x24] sm:$0xf]
        %v1873 = vld [vmem:[#allocation7 + $0x28] sm:$0xf]
        %v1874 = vld [vmem:[#allocation7 + $0x2c] sm:$0xf]
        %v1879 = vunpack.c.l.b16 %v1871
        %v1880 = vunpack.c.l.b16 %v1872
        %v1881 = vunpack.c.l.b16 %v1873
        %v1882 = vunpack.c.l.b16 %v1874
        %v1883 = vpack.c.b16 %v1880, %v1879
        %v1884 = vpack.c.b16 %v1882, %v1881
        %v1888 = vsel %vm1510, %v1870, 0
        %1890 = vmatprep.subr.bf16.mxu0 0
        %1891 = vmatpush1.bf16.msra.mxu0 %v1883
        %1892 = vmatprep.subr.bf16.mxu0 0
        %1893 = vmatpush1.bf16.msra.mxu0 %v1884
        %1894 = vmatprep.subr.bf16.mxu0 0
        %1895 = vmatpush1.bf16.msra.mxu0 0
        %1896 = vmatprep.subr.bf16.mxu0 0
        %1897 = vmatpush1.bf16.msra.mxu0 0
        %1898 = vmatprep.subr.bf16.mxu0 0
        %1899 = vmatpush1.bf16.msra.mxu0 0
        %1900 = vmatprep.subr.bf16.mxu0 0
        %1901 = vmatpush1.bf16.msra.mxu0 0
        %1902 = vmatprep.subr.bf16.mxu0 0
        %1903 = vmatpush1.bf16.msra.mxu0 0
        %1904 = vmatprep.subr.bf16.mxu0 0
        %1905 = vmatpush1.bf16.msra.mxu0 0
        %1906 = vmatprep.subr.bf16.mxu0 0
        %1907 = vmatpush1.bf16.msra.mxu0 0
        %1908 = vmatprep.subr.bf16.mxu0 0
        %1909 = vmatpush1.bf16.msra.mxu0 0
        %1910 = vmatprep.subr.bf16.mxu0 0
        %1911 = vmatpush1.bf16.msra.mxu0 0
        %1912 = vmatprep.subr.bf16.mxu0 0
        %1913 = vmatpush1.bf16.msra.mxu0 0
        %1914 = vmatprep.subr.bf16.mxu0 0
        %1915 = vmatpush1.bf16.msra.mxu0 0
        %1916 = vmatprep.subr.bf16.mxu0 0
        %1917 = vmatpush1.bf16.msra.mxu0 0
        %1918 = vmatprep.subr.bf16.mxu0 0
        %1919 = vmatpush1.bf16.msra.mxu0 0
        %1920 = vmatprep.subr.bf16.mxu0 0
        %1921 = vmatpush1.bf16.msra.mxu0 0
        %1922 = vmatprep.mubr.bf16.mxu0 0
        %1923 = vmatmul.mubr.bf16.gmra.mrb[0].mxu0 %v1888
        %v1924 = vpop.f32.mrb[0].mxu0
        %v1925 = vadd.f32 0.0, %v1924
        %v1926 = vpop.f32.mrb[0].mxu0
        %v1927 = vpop.f32.mrb[0].mxu0
        %v1928 = vpop.f32.mrb[0].mxu0
        %1929 = vdwg.mxu0
        %v1930 = vadd.f32 %v1604, %v1925
        %1931 = vrot.lane.b32.xlu0 %v680, 96
        %v1932 = vpop.permute.xlu0 %1931
        %v1934 = vmul.f32 %v923, %v1932
        %1935 = vrot.lane.b32.xlu0 %v681, 104
        %v1936 = vpop.permute.xlu0 %1935
        %v1938 = vmul.f32 %v923, %v1936
        %1940 = vrot.lane.b32.xlu0 %v1938, 120
        %v1941 = vpop.permute.xlu0 %1940
        %v1943 = vsub.f32 %v1934, %v1941
        %1944 = vrot.lane.b32.xlu0 %v680, 104
        %v1945 = vpop.permute.xlu0 %1944
        %v1947 = vmul.f32 %v923, %v1945
        %1948 = vrot.lane.b32.xlu0 %v681, 96
        %v1949 = vpop.permute.xlu0 %1948
        %v1951 = vmul.f32 %v923, %v1949
        %1953 = vrot.lane.b32.xlu0 %v1951, 8
        %v1954 = vpop.permute.xlu0 %1953
        %v1956 = vadd.f32 %v1947, %v1954
        %v1957 = vmul.f32 %v925, %v1932
        %v1958 = vmul.f32 %v925, %v1936
        %1960 = vrot.lane.b32.xlu0 %v1958, 120
        %v1961 = vpop.permute.xlu0 %1960
        %v1963 = vsub.f32 %v1957, %v1961
        %v1964 = vmul.f32 %v925, %v1945
        %v1965 = vmul.f32 %v925, %v1949
        %1967 = vrot.lane.b32.xlu0 %v1965, 8
        %v1968 = vpop.permute.xlu0 %1967
        %v1970 = vadd.f32 %v1964, %v1968
        %v1971 = vpack.c.bf16 %v1943, %v1943
        %v1972 = vpack.c.bf16 %v1963, %v1963
        %v1973 = vpack.c.bf16 %v1956, %v1956
        %v1974 = vpack.c.bf16 %v1970, %v1970
        %1976 = vrot.lane.b32.xlu0 %v1973, 24
        %v1977 = vpop.permute.xlu0 %1976
        %1979 = vrot.lane.b32.xlu0 %v1974, 24
        %v1980 = vpop.permute.xlu0 %1979
        %v1982 = vsel %vm1015, %v1977, 0
        %v1985 = vsel %vm1015, %v1980, 0
        %1987 = vmatprep.subr.bf16.mxu0 0
        %1988 = vmatpush1.bf16.xpose.msra.mxu0 %v1985
        %1989 = vmatprep.subr.bf16.mxu0 0
        %1990 = vmatpush1.bf16.xpose.msra.mxu0 0
        %1991 = vmatprep.subr.bf16.mxu0 0
        %1992 = vmatpush1.bf16.xpose.msra.mxu0 0
        %1993 = vmatprep.subr.bf16.mxu0 0
        %1994 = vmatpush1.bf16.xpose.msra.mxu0 0
        %1995 = vmatprep.subr.bf16.mxu0 0
        %1996 = vmatpush1.bf16.xpose.msra.mxu0 0
        %1997 = vmatprep.subr.bf16.mxu0 0
        %1998 = vmatpush1.bf16.xpose.msra.mxu0 0
        %1999 = vmatprep.subr.bf16.mxu0 0
        %2000 = vmatpush1.bf16.xpose.msra.mxu0 0
        %2001 = vmatprep.subr.bf16.mxu0 0
        %2002 = vmatpush1.bf16.xpose.msra.mxu0 0
        %2003 = vmatprep.subr.bf16.mxu0 0
        %2004 = vmatpush1.bf16.xpose.msra.mxu0 0
        %2005 = vmatprep.subr.bf16.mxu0 0
        %2006 = vmatpush1.bf16.xpose.msra.mxu0 0
        %2007 = vmatprep.subr.bf16.mxu0 0
        %2008 = vmatpush1.bf16.xpose.msra.mxu0 0
        %2009 = vmatprep.subr.bf16.mxu0 0
        %2010 = vmatpush1.bf16.xpose.msra.mxu0 0
        %2011 = vmatprep.subr.bf16.mxu0 0
        %2012 = vmatpush1.bf16.xpose.msra.mxu0 0
        %2013 = vmatprep.subr.bf16.mxu0 0
        %2014 = vmatpush1.bf16.xpose.msra.mxu0 0
        %2015 = vmatprep.subr.bf16.mxu0 0
        %2016 = vmatpush1.bf16.xpose.msra.mxu0 0
        %2017 = vmatprep.subr.bf16.mxu0 0
        %2018 = vmatpush1.bf16.xpose.msra.mxu0 0
        %2019 = vmatprep.mubr.bf16.mxu0 0
        %2020 = vmatmul.mubr.bf16.gmra.mrb[0].mxu0 %v1982
        %v2021 = vpop.f32.mrb[0].mxu0
        %v2022 = vadd.f32 0.0, %v2021
        %v2023 = vpop.f32.mrb[0].mxu0
        %v2024 = vpop.f32.mrb[0].mxu0
        %v2025 = vpop.f32.mrb[0].mxu0
        %2026 = vdwg.mxu0
        %2028 = vrot.lane.b32.xlu0 %v1971, 32
        %v2029 = vpop.permute.xlu0 %2028
        %2031 = vrot.lane.b32.xlu0 %v1972, 32
        %v2032 = vpop.permute.xlu0 %2031
        %v2034 = vsel %vm1015, %v2029, 0
        %v2037 = vsel %vm1015, %v2032, 0
        %2039 = vmatprep.subr.bf16.mxu0 0
        %2040 = vmatpush1.bf16.xpose.msra.mxu0 %v2037
        %2041 = vmatprep.subr.bf16.mxu0 0
        %2042 = vmatpush1.bf16.xpose.msra.mxu0 0
        %2043 = vmatprep.subr.bf16.mxu0 0
        %2044 = vmatpush1.bf16.xpose.msra.mxu0 0
        %2045 = vmatprep.subr.bf16.mxu0 0
        %2046 = vmatpush1.bf16.xpose.msra.mxu0 0
        %2047 = vmatprep.subr.bf16.mxu0 0
        %2048 = vmatpush1.bf16.xpose.msra.mxu0 0
        %2049 = vmatprep.subr.bf16.mxu0 0
        %2050 = vmatpush1.bf16.xpose.msra.mxu0 0
        %2051 = vmatprep.subr.bf16.mxu0 0
        %2052 = vmatpush1.bf16.xpose.msra.mxu0 0
        %2053 = vmatprep.subr.bf16.mxu0 0
        %2054 = vmatpush1.bf16.xpose.msra.mxu0 0
        %2055 = vmatprep.subr.bf16.mxu0 0
        %2056 = vmatpush1.bf16.xpose.msra.mxu0 0
        %2057 = vmatprep.subr.bf16.mxu0 0
        %2058 = vmatpush1.bf16.xpose.msra.mxu0 0
        %2059 = vmatprep.subr.bf16.mxu0 0
        %2060 = vmatpush1.bf16.xpose.msra.mxu0 0
        %2061 = vmatprep.subr.bf16.mxu0 0
        %2062 = vmatpush1.bf16.xpose.msra.mxu0 0
        %2063 = vmatprep.subr.bf16.mxu0 0
        %2064 = vmatpush1.bf16.xpose.msra.mxu0 0
        %2065 = vmatprep.subr.bf16.mxu0 0
        %2066 = vmatpush1.bf16.xpose.msra.mxu0 0
        %2067 = vmatprep.subr.bf16.mxu0 0
        %2068 = vmatpush1.bf16.xpose.msra.mxu0 0
        %2069 = vmatprep.subr.bf16.mxu0 0
        %2070 = vmatpush1.bf16.xpose.msra.mxu0 0
        %2071 = vmatprep.mubr.bf16.mxu0 0
        %2072 = vmatmul.mubr.bf16.gmra.mrb[0].mxu0 %v2034
        %v2073 = vpop.f32.mrb[0].mxu0
        %v2074 = vadd.f32 %v2022, %v2073
        %v2075 = vpop.f32.mrb[0].mxu0
        %v2076 = vpop.f32.mrb[0].mxu0
        %v2077 = vpop.f32.mrb[0].mxu0
        %2078 = vdwg.mxu0
        %2079 = vrot.lane.b32.xlu0 %v1108, 16
        %v2080 = vpop.permute.xlu0 %2079
        %2081 = vrot.lane.b32.xlu0 %v1109, 16
        %v2082 = vpop.permute.xlu0 %2081
        %v2084 = vsel %vm1116, %v2080, 0
        %v2087 = vsel %vm1116, %v2082, 0
        %2089 = vmatprep.subr.bf16.mxu0 0
        %2090 = vmatpush1.bf16.xpose.msra.mxu0 %v2087
        %2091 = vmatprep.subr.bf16.mxu0 0
        %2092 = vmatpush1.bf16.xpose.msra.mxu0 0
        %2093 = vmatprep.subr.bf16.mxu0 0
        %2094 = vmatpush1.bf16.xpose.msra.mxu0 0
        %2095 = vmatprep.subr.bf16.mxu0 0
        %2096 = vmatpush1.bf16.xpose.msra.mxu0 0
        %2097 = vmatprep.subr.bf16.mxu0 0
        %2098 = vmatpush1.bf16.xpose.msra.mxu0 0
        %2099 = vmatprep.subr.bf16.mxu0 0
        %2100 = vmatpush1.bf16.xpose.msra.mxu0 0
        %2101 = vmatprep.subr.bf16.mxu0 0
        %2102 = vmatpush1.bf16.xpose.msra.mxu0 0
        %2103 = vmatprep.subr.bf16.mxu0 0
        %2104 = vmatpush1.bf16.xpose.msra.mxu0 0
        %2105 = vmatprep.subr.bf16.mxu0 0
        %2106 = vmatpush1.bf16.xpose.msra.mxu0 0
        %2107 = vmatprep.subr.bf16.mxu0 0
        %2108 = vmatpush1.bf16.xpose.msra.mxu0 0
        %2109 = vmatprep.subr.bf16.mxu0 0
        %2110 = vmatpush1.bf16.xpose.msra.mxu0 0
        %2111 = vmatprep.subr.bf16.mxu0 0
        %2112 = vmatpush1.bf16.xpose.msra.mxu0 0
        %2113 = vmatprep.subr.bf16.mxu0 0
        %2114 = vmatpush1.bf16.xpose.msra.mxu0 0
        %2115 = vmatprep.subr.bf16.mxu0 0
        %2116 = vmatpush1.bf16.xpose.msra.mxu0 0
        %2117 = vmatprep.subr.bf16.mxu0 0
        %2118 = vmatpush1.bf16.xpose.msra.mxu0 0
        %2119 = vmatprep.subr.bf16.mxu0 0
        %2120 = vmatpush1.bf16.xpose.msra.mxu0 0
        %2121 = vmatprep.mubr.bf16.mxu0 0
        %2122 = vmatmul.mubr.bf16.gmra.mrb[0].mxu0 %v2084
        %v2123 = vpop.f32.mrb[0].mxu0
        %v2124 = vadd.f32 0.0, %v2123
        %v2125 = vpop.f32.mrb[0].mxu0
        %v2126 = vpop.f32.mrb[0].mxu0
        %v2127 = vpop.f32.mrb[0].mxu0
        %2128 = vdwg.mxu0
        %v2129 = vadd.f32 %v2074, %v2124
        %v2130 = vmul.f32 %v2129, 0.17677669
        %v2131 = vadd.f32 %v2130, %v679
        %v2132 = vsel %vm1015, %v2131, -inf
        %2133 = vmax.xlane.f32.xlu0 %v2132
        %v2134 = vpop.xlane.xlu0 %2133
        %v2135 = vsub.f32 %v2131, %v2134
        %v2136 = vmul.f32 %v2135, 1.442695
        %v2137 = vpow.pop %v2136
        %v2138 = vsel %vm1015, %v2137, 0.0
        %2139 = vadd.xlane.f32.xlu0 %v2138
        %v2140 = vpop.xlane.xlu0 %2139
        %v2141 = vrcp.pop %v2140
        %v2142 = vmul.f32 %v2137, %v2141
        %v2143 = vpack.c.bf16 %v2142, %v2142
        %2144 = vrot.lane.b32.xlu0 %v1178, 32
        %v2145 = vpop.permute.xlu0 %2144
        %v2147 = vsel %vm1015, %v2143, 0
        %v2150 = vsel %vm1182, %v2145, 0
        %2152 = vmatprep.subr.bf16.mxu0 0
        %2153 = vmatpush1.bf16.msra.mxu0 %v2150
        %2154 = vmatprep.subr.bf16.mxu0 0
        %2155 = vmatpush1.bf16.msra.mxu0 0
        %2156 = vmatprep.subr.bf16.mxu0 0
        %2157 = vmatpush1.bf16.msra.mxu0 0
        %2158 = vmatprep.subr.bf16.mxu0 0
        %2159 = vmatpush1.bf16.msra.mxu0 0
        %2160 = vmatprep.subr.bf16.mxu0 0
        %2161 = vmatpush1.bf16.msra.mxu0 0
        %2162 = vmatprep.subr.bf16.mxu0 0
        %2163 = vmatpush1.bf16.msra.mxu0 0
        %2164 = vmatprep.subr.bf16.mxu0 0
        %2165 = vmatpush1.bf16.msra.mxu0 0
        %2166 = vmatprep.subr.bf16.mxu0 0
        %2167 = vmatpush1.bf16.msra.mxu0 0
        %2168 = vmatprep.subr.bf16.mxu0 0
        %2169 = vmatpush1.bf16.msra.mxu0 0
        %2170 = vmatprep.subr.bf16.mxu0 0
        %2171 = vmatpush1.bf16.msra.mxu0 0
        %2172 = vmatprep.subr.bf16.mxu0 0
        %2173 = vmatpush1.bf16.msra.mxu0 0
        %2174 = vmatprep.subr.bf16.mxu0 0
        %2175 = vmatpush1.bf16.msra.mxu0 0
        %2176 = vmatprep.subr.bf16.mxu0 0
        %2177 = vmatpush1.bf16.msra.mxu0 0
        %2178 = vmatprep.subr.bf16.mxu0 0
        %2179 = vmatpush1.bf16.msra.mxu0 0
        %2180 = vmatprep.subr.bf16.mxu0 0
        %2181 = vmatpush1.bf16.msra.mxu0 0
        %2182 = vmatprep.subr.bf16.mxu0 0
        %2183 = vmatpush1.bf16.msra.mxu0 0
        %2184 = vmatprep.mubr.bf16.mxu0 0
        %2185 = vmatmul.mubr.bf16.gmra.mrb[0].mxu0 %v2147
        %v2186 = vpop.f32.mrb[0].mxu0
        %v2187 = vadd.f32 0.0, %v2186
        %v2188 = vpop.f32.mrb[0].mxu0
        %v2189 = vpop.f32.mrb[0].mxu0
        %v2190 = vpop.f32.mrb[0].mxu0
        %2191 = vdwg.mxu0
        %v2192 = vpack.c.bf16 %v2187, %v2187
        %v2193 = vld [vmem:[#allocation7 + $0x30] sm:$0xf]
        %v2194 = vld [vmem:[#allocation7 + $0x34] sm:$0xf]
        %v2195 = vld [vmem:[#allocation7 + $0x38] sm:$0xf]
        %v2196 = vld [vmem:[#allocation7 + $0x3c] sm:$0xf]
        %v2201 = vunpack.c.l.b16 %v2193
        %v2202 = vunpack.c.l.b16 %v2194
        %v2203 = vunpack.c.l.b16 %v2195
        %v2204 = vunpack.c.l.b16 %v2196
        %v2205 = vpack.c.b16 %v2202, %v2201
        %v2206 = vpack.c.b16 %v2204, %v2203
        %v2210 = vsel %vm1510, %v2192, 0
        %2212 = vmatprep.subr.bf16.mxu0 0
        %2213 = vmatpush1.bf16.msra.mxu0 %v2205
        %2214 = vmatprep.subr.bf16.mxu0 0
        %2215 = vmatpush1.bf16.msra.mxu0 %v2206
        %2216 = vmatprep.subr.bf16.mxu0 0
        %2217 = vmatpush1.bf16.msra.mxu0 0
        %2218 = vmatprep.subr.bf16.mxu0 0
        %2219 = vmatpush1.bf16.msra.mxu0 0
        %2220 = vmatprep.subr.bf16.mxu0 0
        %2221 = vmatpush1.bf16.msra.mxu0 0
        %2222 = vmatprep.subr.bf16.mxu0 0
        %2223 = vmatpush1.bf16.msra.mxu0 0
        %2224 = vmatprep.subr.bf16.mxu0 0
        %2225 = vmatpush1.bf16.msra.mxu0 0
        %2226 = vmatprep.subr.bf16.mxu0 0
        %2227 = vmatpush1.bf16.msra.mxu0 0
        %2228 = vmatprep.subr.bf16.mxu0 0
        %2229 = vmatpush1.bf16.msra.mxu0 0
        %2230 = vmatprep.subr.bf16.mxu0 0
        %2231 = vmatpush1.bf16.msra.mxu0 0
        %2232 = vmatprep.subr.bf16.mxu0 0
        %2233 = vmatpush1.bf16.msra.mxu0 0
        %2234 = vmatprep.subr.bf16.mxu0 0
        %2235 = vmatpush1.bf16.msra.mxu0 0
        %2236 = vmatprep.subr.bf16.mxu0 0
        %2237 = vmatpush1.bf16.msra.mxu0 0
        %2238 = vmatprep.subr.bf16.mxu0 0
        %2239 = vmatpush1.bf16.msra.mxu0 0
        %2240 = vmatprep.subr.bf16.mxu0 0
        %2241 = vmatpush1.bf16.msra.mxu0 0
        %2242 = vmatprep.subr.bf16.mxu0 0
        %2243 = vmatpush1.bf16.msra.mxu0 0
        %2244 = vmatprep.mubr.bf16.mxu0 0
        %2245 = vmatmul.mubr.bf16.gmra.mrb[0].mxu0 %v2210
        %v2246 = vpop.f32.mrb[0].mxu0
        %v2247 = vadd.f32 0.0, %v2246
        %v2248 = vpop.f32.mrb[0].mxu0
        %v2249 = vpop.f32.mrb[0].mxu0
        %v2250 = vpop.f32.mrb[0].mxu0
        %2251 = vdwg.mxu0
        %v2252 = vadd.f32 %v1930, %v2247
        %v2253 = vld [vmem:[#allocation9] sm:$0x1]
        %v2255 = vlaneseq
        %v2256 = vshrl.u32 %v2255, 7
        %v2257 = vsub.s32 0, %v2256
        %v2258 = vrot.slane %v2253, %v2257
        %v2260 = vadd.f32 %v2252, %v2258
        %v2261 = vld [vmem:[#allocation10] sm:$0x1]
        %v2262 = vld [vmem:[#allocation12] sm:$0x1]
        %v2264 = vlaneseq
        %v2265 = vshrl.u32 %v2264, 7
        %v2266 = vsub.s32 0, %v2265
        %v2267 = vrot.slane %v2261, %v2266
        %v2269 = vmul.f32 %v695, %v2267
        %v2271 = vlaneseq
        %v2272 = vshrl.u32 %v2271, 7
        %v2273 = vsub.s32 0, %v2272
        %v2274 = vrot.slane %v2262, %v2273
        %v2276 = vadd.f32 %v2269, %v2274
        %v2277 = vpack.c.bf16 %v2276, %v2276
        %v2278 = vld [vmem:[#allocation13] sm:$0xff]
        %v2279 = vld [vmem:[#allocation13 + $0x8] sm:$0xff]
        %v2280 = vld [vmem:[#allocation13 + $0x10] sm:$0xff]
        %v2281 = vld [vmem:[#allocation13 + $0x18] sm:$0xff]
        %v2282 = vld [vmem:[#allocation13 + $0x20] sm:$0xff]
        %v2283 = vld [vmem:[#allocation13 + $0x28] sm:$0xff]
        %v2284 = vld [vmem:[#allocation13 + $0x30] sm:$0xff]
        %v2285 = vld [vmem:[#allocation13 + $0x38] sm:$0xff]
        %v2286 = vld [vmem:[#allocation13 + $0x40] sm:$0xff]
        %v2287 = vld [vmem:[#allocation13 + $0x48] sm:$0xff]
        %v2288 = vld [vmem:[#allocation13 + $0x50] sm:$0xff]
        %v2289 = vld [vmem:[#allocation13 + $0x58] sm:$0xff]
        %v2290 = vld [vmem:[#allocation13 + $0x60] sm:$0xff]
        %v2291 = vld [vmem:[#allocation13 + $0x68] sm:$0xff]
        %v2292 = vld [vmem:[#allocation13 + $0x70] sm:$0xff]
        %v2293 = vld [vmem:[#allocation13 + $0x78] sm:$0xff]
        %v2294 = vld [vmem:[#allocation13 + $0x80] sm:$0xff]
        %v2295 = vld [vmem:[#allocation13 + $0x88] sm:$0xff]
        %v2296 = vld [vmem:[#allocation13 + $0x90] sm:$0xff]
        %v2297 = vld [vmem:[#allocation13 + $0x98] sm:$0xff]
        %v2298 = vld [vmem:[#allocation13 + $0xa0] sm:$0xff]
        %v2299 = vld [vmem:[#allocation13 + $0xa8] sm:$0xff]
        %v2300 = vld [vmem:[#allocation13 + $0xb0] sm:$0xff]
        %v2301 = vld [vmem:[#allocation13 + $0xb8] sm:$0xff]
        %v2302 = vld [vmem:[#allocation13 + $0xc0] sm:$0xff]
        %v2303 = vld [vmem:[#allocation13 + $0xc8] sm:$0xff]
        %v2304 = vld [vmem:[#allocation13 + $0xd0] sm:$0xff]
        %v2305 = vld [vmem:[#allocation13 + $0xd8] sm:$0xff]
        %v2306 = vld [vmem:[#allocation13 + $0xe0] sm:$0xff]
        %v2307 = vld [vmem:[#allocation13 + $0xe8] sm:$0xff]
        %v2308 = vld [vmem:[#allocation13 + $0xf0] sm:$0xff]
        %v2309 = vld [vmem:[#allocation13 + $0xf8] sm:$0xff]
        %v2310 = vld [vmem:[%s13] sm:$0xf]
        %v2312 = vlaneseq
        %v2313 = vshrl.u32 %v2312, 7
        %v2314 = vsub.s32 0, %v2313
        %v2315 = vrot.slane %v2310, %v2314
        %v2316 = vlaneseq
        %v2317 = vshrl.u32 %v2316, 7
        %v2318 = vsub.s32 1, %v2317
        %v2319 = vrot.slane %v2310, %v2318
        %v2320 = vlaneseq
        %v2321 = vshrl.u32 %v2320, 7
        %v2322 = vsub.s32 2, %v2321
        %v2323 = vrot.slane %v2310, %v2322
        %v2324 = vlaneseq
        %v2325 = vshrl.u32 %v2324, 7
        %v2326 = vsub.s32 3, %v2325
        %v2327 = vrot.slane %v2310, %v2326
        %v2364 = vunpack.c.l.b16 %v2278
        %v2365 = vunpack.c.h.b16 %v2278
        %v2366 = vunpack.c.l.b16 %v2279
        %v2367 = vunpack.c.h.b16 %v2279
        %v2368 = vunpack.c.l.b16 %v2280
        %v2369 = vunpack.c.h.b16 %v2280
        %v2370 = vunpack.c.l.b16 %v2281
        %v2371 = vunpack.c.h.b16 %v2281
        %v2372 = vunpack.c.l.b16 %v2282
        %v2373 = vunpack.c.h.b16 %v2282
        %v2374 = vunpack.c.l.b16 %v2283
        %v2375 = vunpack.c.h.b16 %v2283
        %v2376 = vunpack.c.l.b16 %v2284
        %v2377 = vunpack.c.h.b16 %v2284
        %v2378 = vunpack.c.l.b16 %v2285
        %v2379 = vunpack.c.h.b16 %v2285
        %v2380 = vunpack.c.l.b16 %v2286
        %v2381 = vunpack.c.h.b16 %v2286
        %v2382 = vunpack.c.l.b16 %v2287
        %v2383 = vunpack.c.h.b16 %v2287
        %v2384 = vunpack.c.l.b16 %v2288
        %v2385 = vunpack.c.h.b16 %v2288
        %v2386 = vunpack.c.l.b16 %v2289
        %v2387 = vunpack.c.h.b16 %v2289
        %v2388 = vunpack.c.l.b16 %v2290
        %v2389 = vunpack.c.h.b16 %v2290
        %v2390 = vunpack.c.l.b16 %v2291
        %v2391 = vunpack.c.h.b16 %v2291
        %v2392 = vunpack.c.l.b16 %v2292
        %v2393 = vunpack.c.h.b16 %v2292
        %v2394 = vunpack.c.l.b16 %v2293
        %v2395 = vunpack.c.h.b16 %v2293
        %v2396 = vunpack.c.l.b16 %v2294
        %v2397 = vunpack.c.h.b16 %v2294
        %v2398 = vunpack.c.l.b16 %v2295
        %v2399 = vunpack.c.h.b16 %v2295
        %v2400 = vunpack.c.l.b16 %v2296
        %v2401 = vunpack.c.h.b16 %v2296
        %v2402 = vunpack.c.l.b16 %v2297
        %v2403 = vunpack.c.h.b16 %v2297
        %v2404 = vunpack.c.l.b16 %v2298
        %v2405 = vunpack.c.h.b16 %v2298
        %v2406 = vunpack.c.l.b16 %v2299
        %v2407 = vunpack.c.h.b16 %v2299
        %v2408 = vunpack.c.l.b16 %v2300
        %v2409 = vunpack.c.h.b16 %v2300
        %v2410 = vunpack.c.l.b16 %v2301
        %v2411 = vunpack.c.h.b16 %v2301
        %v2412 = vunpack.c.l.b16 %v2302
        %v2413 = vunpack.c.h.b16 %v2302
        %v2414 = vunpack.c.l.b16 %v2303
        %v2415 = vunpack.c.h.b16 %v2303
        %v2416 = vunpack.c.l.b16 %v2304
        %v2417 = vunpack.c.h.b16 %v2304
        %v2418 = vunpack.c.l.b16 %v2305
        %v2419 = vunpack.c.h.b16 %v2305
        %v2420 = vunpack.c.l.b16 %v2306
        %v2421 = vunpack.c.h.b16 %v2306
        %v2422 = vunpack.c.l.b16 %v2307
        %v2423 = vunpack.c.h.b16 %v2307
        %v2424 = vunpack.c.l.b16 %v2308
        %v2425 = vunpack.c.h.b16 %v2308
        %v2426 = vunpack.c.l.b16 %v2309
        %v2427 = vunpack.c.h.b16 %v2309
        %v2428 = vpack.c.b16 %v2368, %v2364
        %v2429 = vpack.c.b16 %v2369, %v2365
        %v2430 = vpack.c.b16 %v2370, %v2366
        %v2431 = vpack.c.b16 %v2371, %v2367
        %v2432 = vpack.c.b16 %v2376, %v2372
        %v2433 = vpack.c.b16 %v2377, %v2373
        %v2434 = vpack.c.b16 %v2378, %v2374
        %v2435 = vpack.c.b16 %v2379, %v2375
        %v2436 = vpack.c.b16 %v2384, %v2380
        %v2437 = vpack.c.b16 %v2385, %v2381
        %v2438 = vpack.c.b16 %v2386, %v2382
        %v2439 = vpack.c.b16 %v2387, %v2383
        %v2440 = vpack.c.b16 %v2392, %v2388
        %v2441 = vpack.c.b16 %v2393, %v2389
        %v2442 = vpack.c.b16 %v2394, %v2390
        %v2443 = vpack.c.b16 %v2395, %v2391
        %v2444 = vpack.c.b16 %v2400, %v2396
        %v2445 = vpack.c.b16 %v2401, %v2397
        %v2446 = vpack.c.b16 %v2402, %v2398
        %v2447 = vpack.c.b16 %v2403, %v2399
        %v2448 = vpack.c.b16 %v2408, %v2404
        %v2449 = vpack.c.b16 %v2409, %v2405
        %v2450 = vpack.c.b16 %v2410, %v2406
        %v2451 = vpack.c.b16 %v2411, %v2407
        %v2452 = vpack.c.b16 %v2416, %v2412
        %v2453 = vpack.c.b16 %v2417, %v2413
        %v2454 = vpack.c.b16 %v2418, %v2414
        %v2455 = vpack.c.b16 %v2419, %v2415
        %v2456 = vpack.c.b16 %v2424, %v2420
        %v2457 = vpack.c.b16 %v2425, %v2421
        %v2458 = vpack.c.b16 %v2426, %v2422
        %v2459 = vpack.c.b16 %v2427, %v2423
        %2492 = vmatprep.subr.bf16.mxu0 %v2429
        %2493 = vmatpush1.bf16.msra.mxu0 %v2428
        %2494 = vmatprep.subr.bf16.mxu0 %v2433
        %2495 = vmatpush1.bf16.msra.mxu0 %v2432
        %2496 = vmatprep.subr.bf16.mxu0 %v2437
        %2497 = vmatpush1.bf16.msra.mxu0 %v2436
        %2498 = vmatprep.subr.bf16.mxu0 %v2441
        %2499 = vmatpush1.bf16.msra.mxu0 %v2440
        %2500 = vmatprep.subr.bf16.mxu0 %v2445
        %2501 = vmatpush1.bf16.msra.mxu0 %v2444
        %2502 = vmatprep.subr.bf16.mxu0 %v2449
        %2503 = vmatpush1.bf16.msra.mxu0 %v2448
        %2504 = vmatprep.subr.bf16.mxu0 %v2453
        %2505 = vmatpush1.bf16.msra.mxu0 %v2452
        %2506 = vmatprep.subr.bf16.mxu0 %v2457
        %2507 = vmatpush1.bf16.msra.mxu0 %v2456
        %2508 = vmatprep.subr.bf16.mxu0 0
        %2509 = vmatpush1.bf16.msra.mxu0 0
        %2510 = vmatprep.subr.bf16.mxu0 0
        %2511 = vmatpush1.bf16.msra.mxu0 0
        %2512 = vmatprep.subr.bf16.mxu0 0
        %2513 = vmatpush1.bf16.msra.mxu0 0
        %2514 = vmatprep.subr.bf16.mxu0 0
        %2515 = vmatpush1.bf16.msra.mxu0 0
        %2516 = vmatprep.subr.bf16.mxu0 0
        %2517 = vmatpush1.bf16.msra.mxu0 0
        %2518 = vmatprep.subr.bf16.mxu0 0
        %2519 = vmatpush1.bf16.msra.mxu0 0
        %2520 = vmatprep.subr.bf16.mxu0 0
        %2521 = vmatpush1.bf16.msra.mxu0 0
        %2522 = vmatprep.subr.bf16.mxu0 0
        %2523 = vmatpush1.bf16.msra.mxu0 0
        %2524 = vmatprep.mubr.bf16.mxu0 0
        %2525 = vmatmul.mubr.bf16.gmra.mrb[0].mxu0 %v2277
        %v2526 = vpop.f32.mrb[0].mxu0
        %v2527 = vadd.f32 %v2315, %v2526
        %v2528 = vpop.f32.mrb[0].mxu0
        %v2529 = vadd.f32 %v2319, %v2528
        %v2530 = vpop.f32.mrb[0].mxu0
        %v2531 = vpop.f32.mrb[0].mxu0
        %2532 = vdwg.mxu0
        %2533 = vmatprep.subr.bf16.mxu0 %v2431
        %2534 = vmatpush1.bf16.msra.mxu0 %v2430
        %2535 = vmatprep.subr.bf16.mxu0 %v2435
        %2536 = vmatpush1.bf16.msra.mxu0 %v2434
        %2537 = vmatprep.subr.bf16.mxu0 %v2439
        %2538 = vmatpush1.bf16.msra.mxu0 %v2438
        %2539 = vmatprep.subr.bf16.mxu0 %v2443
        %2540 = vmatpush1.bf16.msra.mxu0 %v2442
        %2541 = vmatprep.subr.bf16.mxu0 %v2447
        %2542 = vmatpush1.bf16.msra.mxu0 %v2446
        %2543 = vmatprep.subr.bf16.mxu0 %v2451
        %2544 = vmatpush1.bf16.msra.mxu0 %v2450
        %2545 = vmatprep.subr.bf16.mxu0 %v2455
        %2546 = vmatpush1.bf16.msra.mxu0 %v2454
        %2547 = vmatprep.subr.bf16.mxu0 %v2459
        %2548 = vmatpush1.bf16.msra.mxu0 %v2458
        %2549 = vmatprep.subr.bf16.mxu0 0
        %2550 = vmatpush1.bf16.msra.mxu0 0
        %2551 = vmatprep.subr.bf16.mxu0 0
        %2552 = vmatpush1.bf16.msra.mxu0 0
        %2553 = vmatprep.subr.bf16.mxu0 0
        %2554 = vmatpush1.bf16.msra.mxu0 0
        %2555 = vmatprep.subr.bf16.mxu0 0
        %2556 = vmatpush1.bf16.msra.mxu0 0
        %2557 = vmatprep.subr.bf16.mxu0 0
        %2558 = vmatpush1.bf16.msra.mxu0 0
        %2559 = vmatprep.subr.bf16.mxu0 0
        %2560 = vmatpush1.bf16.msra.mxu0 0
        %2561 = vmatprep.subr.bf16.mxu0 0
        %2562 = vmatpush1.bf16.msra.mxu0 0
        %2563 = vmatprep.subr.bf16.mxu0 0
        %2564 = vmatpush1.bf16.msra.mxu0 0
        %2565 = vmatprep.mubr.bf16.mxu0 0
        %2566 = vmatmul.mubr.bf16.gmra.mrb[0].mxu0 %v2277
        %v2567 = vpop.f32.mrb[0].mxu0
        %v2568 = vadd.f32 %v2323, %v2567
        %v2569 = vpop.f32.mrb[0].mxu0
        %v2570 = vadd.f32 %v2327, %v2569
        %v2571 = vpop.f32.mrb[0].mxu0
        %v2572 = vpop.f32.mrb[0].mxu0
        %2573 = vdwg.mxu0
        %v2574 = vmul.f32 %v2527, %v2527
        %v2575 = vmul.f32 %v2529, %v2529
        %v2576 = vmul.f32 %v2568, %v2568
        %v2577 = vmul.f32 %v2570, %v2570
        %v2578 = vmul.f32 %v2527, %v2574
        %v2579 = vmul.f32 %v2529, %v2575
        %v2580 = vmul.f32 %v2568, %v2576
        %v2581 = vmul.f32 %v2570, %v2577
        %v2582 = vmul.f32 %v2578, 0.044715
        %v2583 = vmul.f32 %v2579, 0.044715
        %v2584 = vmul.f32 %v2580, 0.044715
        %v2585 = vmul.f32 %v2581, 0.044715
        %v2586 = vadd.f32 %v2527, %v2582
        %v2587 = vadd.f32 %v2529, %v2583
        %v2588 = vadd.f32 %v2568, %v2584
        %v2589 = vadd.f32 %v2570, %v2585
        %v2590 = vmul.f32 %v2586, 0.7978846
        %v2591 = vmul.f32 %v2587, 0.7978846
        %v2592 = vmul.f32 %v2588, 0.7978846
        %v2593 = vmul.f32 %v2589, 0.7978846
        %v2594 = vtanh.pop %v2590
        %v2595 = vtanh.pop %v2591
        %v2596 = vtanh.pop %v2592
        %v2597 = vtanh.pop %v2593
        %v2598 = vadd.f32 %v2594, 1.0
        %v2599 = vadd.f32 %v2595, 1.0
        %v2600 = vadd.f32 %v2596, 1.0
        %v2601 = vadd.f32 %v2597, 1.0
        %v2602 = vmul.f32 %v2598, 0.5
        %v2603 = vmul.f32 %v2599, 0.5
        %v2604 = vmul.f32 %v2600, 0.5
        %v2605 = vmul.f32 %v2601, 0.5
        %v2606 = vmul.f32 %v2527, %v2602
        %v2607 = vmul.f32 %v2529, %v2603
        %v2608 = vmul.f32 %v2568, %v2604
        %v2609 = vmul.f32 %v2570, %v2605
        %v2610 = vpack.c.bf16 %v2606, %v2606
        %v2611 = vpack.c.bf16 %v2607, %v2607
        %v2612 = vpack.c.bf16 %v2608, %v2608
        %v2613 = vpack.c.bf16 %v2609, %v2609
        %v2614 = vld [vmem:[#allocation15] sm:$0xf]
        %v2615 = vld [vmem:[#allocation15 + $0x4] sm:$0xf]
        %v2616 = vld [vmem:[#allocation15 + $0x8] sm:$0xf]
        %v2617 = vld [vmem:[#allocation15 + $0xc] sm:$0xf]
        %v2618 = vld [vmem:[#allocation15 + $0x10] sm:$0xf]
        %v2619 = vld [vmem:[#allocation15 + $0x14] sm:$0xf]
        %v2620 = vld [vmem:[#allocation15 + $0x18] sm:$0xf]
        %v2621 = vld [vmem:[#allocation15 + $0x1c] sm:$0xf]
        %v2622 = vld [vmem:[#allocation15 + $0x20] sm:$0xf]
        %v2623 = vld [vmem:[#allocation15 + $0x24] sm:$0xf]
        %v2624 = vld [vmem:[#allocation15 + $0x28] sm:$0xf]
        %v2625 = vld [vmem:[#allocation15 + $0x2c] sm:$0xf]
        %v2626 = vld [vmem:[#allocation15 + $0x30] sm:$0xf]
        %v2627 = vld [vmem:[#allocation15 + $0x34] sm:$0xf]
        %v2628 = vld [vmem:[#allocation15 + $0x38] sm:$0xf]
        %v2629 = vld [vmem:[#allocation15 + $0x3c] sm:$0xf]
        %v2630 = vld [vmem:[#allocation15 + $0x40] sm:$0xf]
        %v2631 = vld [vmem:[#allocation15 + $0x44] sm:$0xf]
        %v2632 = vld [vmem:[#allocation15 + $0x48] sm:$0xf]
        %v2633 = vld [vmem:[#allocation15 + $0x4c] sm:$0xf]
        %v2634 = vld [vmem:[#allocation15 + $0x50] sm:$0xf]
        %v2635 = vld [vmem:[#allocation15 + $0x54] sm:$0xf]
        %v2636 = vld [vmem:[#allocation15 + $0x58] sm:$0xf]
        %v2637 = vld [vmem:[#allocation15 + $0x5c] sm:$0xf]
        %v2638 = vld [vmem:[#allocation15 + $0x60] sm:$0xf]
        %v2639 = vld [vmem:[#allocation15 + $0x64] sm:$0xf]
        %v2640 = vld [vmem:[#allocation15 + $0x68] sm:$0xf]
        %v2641 = vld [vmem:[#allocation15 + $0x6c] sm:$0xf]
        %v2642 = vld [vmem:[#allocation15 + $0x70] sm:$0xf]
        %v2643 = vld [vmem:[#allocation15 + $0x74] sm:$0xf]
        %v2644 = vld [vmem:[#allocation15 + $0x78] sm:$0xf]
        %v2645 = vld [vmem:[#allocation15 + $0x7c] sm:$0xf]
        %v2646 = vld [vmem:[#allocation15 + $0x80] sm:$0xf]
        %v2647 = vld [vmem:[#allocation15 + $0x84] sm:$0xf]
        %v2648 = vld [vmem:[#allocation15 + $0x88] sm:$0xf]
        %v2649 = vld [vmem:[#allocation15 + $0x8c] sm:$0xf]
        %v2650 = vld [vmem:[#allocation15 + $0x90] sm:$0xf]
        %v2651 = vld [vmem:[#allocation15 + $0x94] sm:$0xf]
        %v2652 = vld [vmem:[#allocation15 + $0x98] sm:$0xf]
        %v2653 = vld [vmem:[#allocation15 + $0x9c] sm:$0xf]
        %v2654 = vld [vmem:[#allocation15 + $0xa0] sm:$0xf]
        %v2655 = vld [vmem:[#allocation15 + $0xa4] sm:$0xf]
        %v2656 = vld [vmem:[#allocation15 + $0xa8] sm:$0xf]
        %v2657 = vld [vmem:[#allocation15 + $0xac] sm:$0xf]
        %v2658 = vld [vmem:[#allocation15 + $0xb0] sm:$0xf]
        %v2659 = vld [vmem:[#allocation15 + $0xb4] sm:$0xf]
        %v2660 = vld [vmem:[#allocation15 + $0xb8] sm:$0xf]
        %v2661 = vld [vmem:[#allocation15 + $0xbc] sm:$0xf]
        %v2662 = vld [vmem:[#allocation15 + $0xc0] sm:$0xf]
        %v2663 = vld [vmem:[#allocation15 + $0xc4] sm:$0xf]
        %v2664 = vld [vmem:[#allocation15 + $0xc8] sm:$0xf]
        %v2665 = vld [vmem:[#allocation15 + $0xcc] sm:$0xf]
        %v2666 = vld [vmem:[#allocation15 + $0xd0] sm:$0xf]
        %v2667 = vld [vmem:[#allocation15 + $0xd4] sm:$0xf]
        %v2668 = vld [vmem:[#allocation15 + $0xd8] sm:$0xf]
        %v2669 = vld [vmem:[#allocation15 + $0xdc] sm:$0xf]
        %v2670 = vld [vmem:[#allocation15 + $0xe0] sm:$0xf]
        %v2671 = vld [vmem:[#allocation15 + $0xe4] sm:$0xf]
        %v2672 = vld [vmem:[#allocation15 + $0xe8] sm:$0xf]
        %v2673 = vld [vmem:[#allocation15 + $0xec] sm:$0xf]
        %v2674 = vld [vmem:[#allocation15 + $0xf0] sm:$0xf]
        %v2675 = vld [vmem:[#allocation15 + $0xf4] sm:$0xf]
        %v2676 = vld [vmem:[#allocation15 + $0xf8] sm:$0xf]
        %v2677 = vld [vmem:[#allocation15 + $0xfc] sm:$0xf]
        %v2678 = vld [vmem:[#allocation16] sm:$0x1]
        %v2680 = vlaneseq
        %v2681 = vshrl.u32 %v2680, 7
        %v2682 = vsub.s32 0, %v2681
        %v2683 = vrot.slane %v2678, %v2682
        %v2749 = vunpack.c.l.b16 %v2614
        %v2750 = vunpack.c.l.b16 %v2615
        %v2751 = vunpack.c.l.b16 %v2616
        %v2752 = vunpack.c.l.b16 %v2617
        %v2753 = vunpack.c.l.b16 %v2618
        %v2754 = vunpack.c.l.b16 %v2619
        %v2755 = vunpack.c.l.b16 %v2620
        %v2756 = vunpack.c.l.b16 %v2621
        %v2757 = vunpack.c.l.b16 %v2622
        %v2758 = vunpack.c.l.b16 %v2623
        %v2759 = vunpack.c.l.b16 %v2624
        %v2760 = vunpack.c.l.b16 %v2625
        %v2761 = vunpack.c.l.b16 %v2626
        %v2762 = vunpack.c.l.b16 %v2627
        %v2763 = vunpack.c.l.b16 %v2628
        %v2764 = vunpack.c.l.b16 %v2629
        %v2765 = vunpack.c.l.b16 %v2630
        %v2766 = vunpack.c.l.b16 %v2631
        %v2767 = vunpack.c.l.b16 %v2632
        %v2768 = vunpack.c.l.b16 %v2633
        %v2769 = vunpack.c.l.b16 %v2634
        %v2770 = vunpack.c.l.b16 %v2635
        %v2771 = vunpack.c.l.b16 %v2636
        %v2772 = vunpack.c.l.b16 %v2637
        %v2773 = vunpack.c.l.b16 %v2638
        %v2774 = vunpack.c.l.b16 %v2639
        %v2775 = vunpack.c.l.b16 %v2640
        %v2776 = vunpack.c.l.b16 %v2641
        %v2777 = vunpack.c.l.b16 %v2642
        %v2778 = vunpack.c.l.b16 %v2643
        %v2779 = vunpack.c.l.b16 %v2644
        %v2780 = vunpack.c.l.b16 %v2645
        %v2781 = vunpack.c.l.b16 %v2646
        %v2782 = vunpack.c.l.b16 %v2647
        %v2783 = vunpack.c.l.b16 %v2648
        %v2784 = vunpack.c.l.b16 %v2649
        %v2785 = vunpack.c.l.b16 %v2650
        %v2786 = vunpack.c.l.b16 %v2651
        %v2787 = vunpack.c.l.b16 %v2652
        %v2788 = vunpack.c.l.b16 %v2653
        %v2789 = vunpack.c.l.b16 %v2654
        %v2790 = vunpack.c.l.b16 %v2655
        %v2791 = vunpack.c.l.b16 %v2656
        %v2792 = vunpack.c.l.b16 %v2657
        %v2793 = vunpack.c.l.b16 %v2658
        %v2794 = vunpack.c.l.b16 %v2659
        %v2795 = vunpack.c.l.b16 %v2660
        %v2796 = vunpack.c.l.b16 %v2661
        %v2797 = vunpack.c.l.b16 %v2662
        %v2798 = vunpack.c.l.b16 %v2663
        %v2799 = vunpack.c.l.b16 %v2664
        %v2800 = vunpack.c.l.b16 %v2665
        %v2801 = vunpack.c.l.b16 %v2666
        %v2802 = vunpack.c.l.b16 %v2667
        %v2803 = vunpack.c.l.b16 %v2668
        %v2804 = vunpack.c.l.b16 %v2669
        %v2805 = vunpack.c.l.b16 %v2670
        %v2806 = vunpack.c.l.b16 %v2671
        %v2807 = vunpack.c.l.b16 %v2672
        %v2808 = vunpack.c.l.b16 %v2673
        %v2809 = vunpack.c.l.b16 %v2674
        %v2810 = vunpack.c.l.b16 %v2675
        %v2811 = vunpack.c.l.b16 %v2676
        %v2812 = vunpack.c.l.b16 %v2677
        %v2813 = vpack.c.b16 %v2750, %v2749
        %v2814 = vpack.c.b16 %v2752, %v2751
        %v2815 = vpack.c.b16 %v2754, %v2753
        %v2816 = vpack.c.b16 %v2756, %v2755
        %v2817 = vpack.c.b16 %v2758, %v2757
        %v2818 = vpack.c.b16 %v2760, %v2759
        %v2819 = vpack.c.b16 %v2762, %v2761
        %v2820 = vpack.c.b16 %v2764, %v2763
        %v2821 = vpack.c.b16 %v2766, %v2765
        %v2822 = vpack.c.b16 %v2768, %v2767
        %v2823 = vpack.c.b16 %v2770, %v2769
        %v2824 = vpack.c.b16 %v2772, %v2771
        %v2825 = vpack.c.b16 %v2774, %v2773
        %v2826 = vpack.c.b16 %v2776, %v2775
        %v2827 = vpack.c.b16 %v2778, %v2777
        %v2828 = vpack.c.b16 %v2780, %v2779
        %v2829 = vpack.c.b16 %v2782, %v2781
        %v2830 = vpack.c.b16 %v2784, %v2783
        %v2831 = vpack.c.b16 %v2786, %v2785
        %v2832 = vpack.c.b16 %v2788, %v2787
        %v2833 = vpack.c.b16 %v2790, %v2789
        %v2834 = vpack.c.b16 %v2792, %v2791
        %v2835 = vpack.c.b16 %v2794, %v2793
        %v2836 = vpack.c.b16 %v2796, %v2795
        %v2837 = vpack.c.b16 %v2798, %v2797
        %v2838 = vpack.c.b16 %v2800, %v2799
        %v2839 = vpack.c.b16 %v2802, %v2801
        %v2840 = vpack.c.b16 %v2804, %v2803
        %v2841 = vpack.c.b16 %v2806, %v2805
        %v2842 = vpack.c.b16 %v2808, %v2807
        %v2843 = vpack.c.b16 %v2810, %v2809
        %v2844 = vpack.c.b16 %v2812, %v2811
        %2877 = vmatprep.subr.bf16.mxu0 0
        %2878 = vmatpush1.bf16.msra.mxu0 %v2813
        %2879 = vmatprep.subr.bf16.mxu0 0
        %2880 = vmatpush1.bf16.msra.mxu0 %v2814
        %2881 = vmatprep.subr.bf16.mxu0 0
        %2882 = vmatpush1.bf16.msra.mxu0 %v2815
        %2883 = vmatprep.subr.bf16.mxu0 0
        %2884 = vmatpush1.bf16.msra.mxu0 %v2816
        %2885 = vmatprep.subr.bf16.mxu0 0
        %2886 = vmatpush1.bf16.msra.mxu0 %v2817
        %2887 = vmatprep.subr.bf16.mxu0 0
        %2888 = vmatpush1.bf16.msra.mxu0 %v2818
        %2889 = vmatprep.subr.bf16.mxu0 0
        %2890 = vmatpush1.bf16.msra.mxu0 %v2819
        %2891 = vmatprep.subr.bf16.mxu0 0
        %2892 = vmatpush1.bf16.msra.mxu0 %v2820
        %2893 = vmatprep.subr.bf16.mxu0 0
        %2894 = vmatpush1.bf16.msra.mxu0 %v2821
        %2895 = vmatprep.subr.bf16.mxu0 0
        %2896 = vmatpush1.bf16.msra.mxu0 %v2822
        %2897 = vmatprep.subr.bf16.mxu0 0
        %2898 = vmatpush1.bf16.msra.mxu0 %v2823
        %2899 = vmatprep.subr.bf16.mxu0 0
        %2900 = vmatpush1.bf16.msra.mxu0 %v2824
        %2901 = vmatprep.subr.bf16.mxu0 0
        %2902 = vmatpush1.bf16.msra.mxu0 %v2825
        %2903 = vmatprep.subr.bf16.mxu0 0
        %2904 = vmatpush1.bf16.msra.mxu0 %v2826
        %2905 = vmatprep.subr.bf16.mxu0 0
        %2906 = vmatpush1.bf16.msra.mxu0 %v2827
        %2907 = vmatprep.subr.bf16.mxu0 0
        %2908 = vmatpush1.bf16.msra.mxu0 %v2828
        %2909 = vmatprep.mubr.bf16.mxu0 %v2611
        %2910 = vmatmul.mubr.bf16.gmra.mrb[0].mxu0 %v2610
        %v2911 = vpop.f32.mrb[0].mxu0
        %v2912 = vadd.f32 %v2683, %v2911
        %v2913 = vpop.f32.mrb[0].mxu0
        %v2914 = vpop.f32.mrb[0].mxu0
        %v2915 = vpop.f32.mrb[0].mxu0
        %2916 = vdwg.mxu0
        %2917 = vmatprep.subr.bf16.mxu0 0
        %2918 = vmatpush1.bf16.msra.mxu0 %v2829
        %2919 = vmatprep.subr.bf16.mxu0 0
        %2920 = vmatpush1.bf16.msra.mxu0 %v2830
        %2921 = vmatprep.subr.bf16.mxu0 0
        %2922 = vmatpush1.bf16.msra.mxu0 %v2831
        %2923 = vmatprep.subr.bf16.mxu0 0
        %2924 = vmatpush1.bf16.msra.mxu0 %v2832
        %2925 = vmatprep.subr.bf16.mxu0 0
        %2926 = vmatpush1.bf16.msra.mxu0 %v2833
        %2927 = vmatprep.subr.bf16.mxu0 0
        %2928 = vmatpush1.bf16.msra.mxu0 %v2834
        %2929 = vmatprep.subr.bf16.mxu0 0
        %2930 = vmatpush1.bf16.msra.mxu0 %v2835
        %2931 = vmatprep.subr.bf16.mxu0 0
        %2932 = vmatpush1.bf16.msra.mxu0 %v2836
        %2933 = vmatprep.subr.bf16.mxu0 0
        %2934 = vmatpush1.bf16.msra.mxu0 %v2837
        %2935 = vmatprep.subr.bf16.mxu0 0
        %2936 = vmatpush1.bf16.msra.mxu0 %v2838
        %2937 = vmatprep.subr.bf16.mxu0 0
        %2938 = vmatpush1.bf16.msra.mxu0 %v2839
        %2939 = vmatprep.subr.bf16.mxu0 0
        %2940 = vmatpush1.bf16.msra.mxu0 %v2840
        %2941 = vmatprep.subr.bf16.mxu0 0
        %2942 = vmatpush1.bf16.msra.mxu0 %v2841
        %2943 = vmatprep.subr.bf16.mxu0 0
        %2944 = vmatpush1.bf16.msra.mxu0 %v2842
        %2945 = vmatprep.subr.bf16.mxu0 0
        %2946 = vmatpush1.bf16.msra.mxu0 %v2843
        %2947 = vmatprep.subr.bf16.mxu0 0
        %2948 = vmatpush1.bf16.msra.mxu0 %v2844
        %2949 = vmatprep.mubr.bf16.mxu0 %v2613
        %2950 = vmatmul.mubr.bf16.gmra.mrb[0].mxu0 %v2612
        %v2951 = vpop.f32.mrb[0].mxu0
        %v2952 = vadd.f32 %v2912, %v2951
        %v2953 = vpop.f32.mrb[0].mxu0
        %v2954 = vpop.f32.mrb[0].mxu0
        %v2955 = vpop.f32.mrb[0].mxu0
        %2956 = vdwg.mxu0
        %v2957 = vadd.f32 %v664, %v2260
        %v2958 = vadd.f32 %v2957, %v2952
        %2959 = vst [vmem:[%s662] sm:$0xff] %v2958
        %p2960 = scmp.lt.s32.totalorder %s33, 1
        %s2961 = scalar_select %p2960, %s33, 1
        %s2962 = smul.addr %s2961, 8
        %s2963 = scalar_lea.vmem %s16, %s2962
        // Predicated region
        $region125: #{text_encoder_forward.3} parent=83 // pred_check
          %p2964 = pneg %p397
        $region126: #{text_encoder_forward.3} parent=83 // pred_check_branch
          %2966 = sbr.rel (%p2964) target = $region128
        $region127: #{text_encoder_forward.3} parent=83 // pred_region
          _
        $region128: #{text_encoder_forward.3} parent=83 // pred_fallthru
          _
      $region84: #{text_encoder_forward.3} parent=5 // pred_fallthru
        _
      %p2967 = scmp.le.s32.totalorder 2, %s28
      // Predicated region
      $region129: #{text_encoder_forward.3} parent=5 // pred_check
        %p2968 = pneg %p2967
      $region130: #{text_encoder_forward.3} parent=5 // pred_check_branch
        %2970 = sbr.rel (%p2968) target = $region132
      $region131: #{text_encoder_forward.3} parent=5 // pred_region
        %s2971 = ssub.s32 %s28, 2
        // Predicated region
        $region133: #{text_encoder_forward.3} parent=131 // pred_check
          %p2972 = pneg %p403
        $region134: #{text_encoder_forward.3} parent=131 // pred_check_branch
          %2974 = sbr.rel (%p2972) target = $region136
        $region135: #{text_encoder_forward.3} parent=131 // pred_region
          %p2975 = scmp.lt.s32.totalorder %s34, 1
          %s2976 = scalar_select %p2975, %s34, 1
          %s2977 = smul.addr %s2976, 8
          %s2978 = scalar_lea.vmem %s16, %s2977
        $region136: #{text_encoder_forward.3} parent=131 // pred_fallthru
          _
      $region132: #{text_encoder_forward.3} parent=5 // pred_fallthru
        _
    $region6: #{text_encoder_forward.3} parent=1 // loop_footer
      %s32 = sadd.s32 1, %s28
    $region7: #{text_encoder_forward.3} parent=1 // loop_footer_branch
      %27 = sbr.rel target = $region3
    $region8: #{text_encoder_forward.3} parent=1 // loop_exit
      _
    %2979 = vsyncpa [#allocation3], 1
    %s2980 = scalar_lea.sflag [#allocation3], 1
    %2981 = vsyncpa %s2980, 1
    %2982 = vsyncpa [#allocation5], 1
    %2983 = vsyncpa [#allocation8], 1
    %2984 = vsyncpa [#allocation11], 1
    %2985 = vsyncpa [#allocation14], 1
    %2986 = vsyncpa [#allocation17], 1

</llo_original>
